<compile_context>
chip_gen: v7x
topology: tpu7x:2x2x1
jax: 0.10.0
libtpu: 0.0.40
codegen_flags: <defaults>
</compile_context>

<pallas_src>
import jax
import jax.numpy as jnp
import numpy as np
from jax.experimental import pallas as pl
from jax.experimental.pallas import tpu as pltpu

CLASSES = 10


# ---------------------------------------------------------------------------
# Pallas kernels
# ---------------------------------------------------------------------------
def conv_stages_kernel(x_ref, u1_ref, v1_ref, u2_ref, v2_ref,
                       w1_ref, b1_ref, w2_ref, b2_ref, s_ref, t_ref, o_ref):
    """Fused conv1+pool+relu -> conv2+pool+relu -> BN(eval) for ONE image.

    x_ref : (1, 256, 128) input image (VMEM)
    u1/v1 : (256,256)/(128,128) constant stage-1 unfold (im2col) matrices
    u2/v2 : (256,256)/(32,32)   constant stage-2 unfold matrices
    w1/b1 : conv1 weight (flat 16 = [co,dy,dx]) / bias (4)      -- SMEM scalars
    w2/b2 : conv2 weight (flat 256 = [po,ci,dy,dx]) / bias (8)  -- SMEM scalars
    s/t   : folded eval-mode BN scale / shift per channel (8)   -- SMEM scalars
    o_ref : (1, 16, 64) output tile with o[0, i2, po*8 + j2] = h2[po, i2, j2]
    """
    x = x_ref[0]                                              # (256, 128)

    # ---------------- stage 1: conv1 + 2x2 maxpool + relu ----------------
    # x1[dy*128 + pa*64 + i, dx*64 + pb*32 + j] = x[4i + 2pa + dy, 4j + 2pb + dx]
    x1 = jnp.dot(u1_ref[...], x, preferred_element_type=jnp.float32)
    x1 = jnp.dot(x1, v1_ref[...], preferred_element_type=jnp.float32)
    blk1 = [x1[dy * 128:(dy + 1) * 128, dx * 64:(dx + 1) * 64]
            for dy in range(2) for dx in range(2)]            # 4 x (128, 64)
    h1_parts = []
    for co in range(4):
        acc = w1_ref[co * 4] * blk1[0]
        for k in range(1, 4):
            acc = acc + w1_ref[co * 4 + k] * blk1[k]
        # 2x2 max-pool == max over the four (pa, pb) quadrants; bias added once after max.
        pooled = jnp.maximum(jnp.maximum(acc[0:64, 0:32], acc[0:64, 32:64]),
                             jnp.maximum(acc[64:128, 0:32], acc[64:128, 32:64]))
        h1_parts.append(jnp.maximum(pooled + b1_ref[co], 0.0))   # (64, 32)
    h1 = jnp.concatenate(h1_parts, axis=0)                    # (256, 32) = [ci*64 + i, j]

    # ---------------- stage 2: conv2 + 2x2 maxpool + relu + BN(eval) -----
    # h2b[ci*64 + dy*32 + pa*16 + i2, dx*16 + pb*8 + j2] = h1[ci, 4i2+2pa+dy, 4j2+2pb+dx]
    h2a = jnp.dot(u2_ref[...], h1, preferred_element_type=jnp.float32)
    h2b = jnp.dot(h2a, v2_ref[...], preferred_element_type=jnp.float32)
    blk2 = [h2b[ci * 64 + dy * 32: ci * 64 + dy * 32 + 32, dx * 16: dx * 16 + 16]
            for ci in range(4) for dy in range(2) for dx in range(2)]   # 16 x (32, 16)
    outs = []
    for po in range(8):
        acc = w2_ref[po * 16] * blk2[0]
        for k in range(1, 16):
            acc = acc + w2_ref[po * 16 + k] * blk2[k]
        pooled = jnp.maximum(jnp.maximum(acc[0:16, 0:8], acc[0:16, 8:16]),
                             jnp.maximum(acc[16:32, 0:8], acc[16:32, 8:16]))
        h2 = jnp.maximum(pooled + b2_ref[po], 0.0)            # relu
        outs.append(h2 * s_ref[po] + t_ref[po])               # eval-mode BatchNorm affine
    o_ref[0] = jnp.concatenate(outs, axis=1)                  # (16, 64) single dense store


def fc_head_kernel(a_ref, w1_ref, b1_ref, w2_ref, b2_ref, w3_ref, b3_ref, o_ref):
    """Fused fc1+relu -> fc2+relu -> fc3 -> log_softmax for one row tile."""
    a = a_ref[...]                                            # (Tb, 1024)
    h = jnp.dot(a, w1_ref[...], preferred_element_type=jnp.float32) + b1_ref[...]
    h = jnp.maximum(h, 0.0)
    h = jnp.dot(h, w2_ref[...], preferred_element_type=jnp.float32) + b2_ref[...]
    h = jnp.maximum(h, 0.0)
    # TODO(synk): PyTorch stashes this as self.feature_vectors; no module state here.
    y = jnp.dot(h, w3_ref[...], preferred_element_type=jnp.float32) + b3_ref[...]
    m = jnp.max(y, axis=-1, keepdims=True)
    lse = jnp.log(jnp.sum(jnp.exp(y - m), axis=-1, keepdims=True)) + m
    o_ref[...] = y - lse


# ---------------------------------------------------------------------------
# pallas_call wrappers
# ---------------------------------------------------------------------------
def _conv_stages(x, prep):
    B = x.shape[0]
    smem = pl.BlockSpec(memory_space=pltpu.MemorySpace.SMEM)
    return pl.pallas_call(
        conv_stages_kernel,
        grid=(B,),
        in_specs=[
            pl.BlockSpec((1, 256, 128), lambda b: (b, 0, 0)),
            pl.BlockSpec((256, 256), lambda b: (0, 0)),
            pl.BlockSpec((128, 128), lambda b: (0, 0)),
            pl.BlockSpec((256, 256), lambda b: (0, 0)),
            pl.BlockSpec((32, 32), lambda b: (0, 0)),
            smem, smem, smem, smem, smem, smem,
        ],
        out_specs=pl.BlockSpec((1, 16, 64), lambda b: (b, 0, 0)),
        out_shape=jax.ShapeDtypeStruct((B, 16, 64), jnp.float32),
        compiler_params=pltpu.CompilerParams(dimension_semantics=("parallel",)),
    )(x, prep["u1"], prep["v1"], prep["u2"], prep["v2"],
      prep["conv1_w"], prep["conv1_b"], prep["conv2_w"], prep["conv2_b"],
      prep["bn_scale"], prep["bn_shift"])


def _fc_head(a, prep):
    B = a.shape[0]
    tb = 128 if B % 128 == 0 else B           # row tile; whole batch when tiny
    return pl.pallas_call(
        fc_head_kernel,
        grid=(B // tb,),
        in_specs=[
            pl.BlockSpec((tb, 1024), lambda i: (i, 0)),
            pl.BlockSpec((1024, 512), lambda i: (0, 0)),
            pl.BlockSpec((1, 512), lambda i: (0, 0)),
            pl.BlockSpec((512, 256), lambda i: (0, 0)),
            pl.BlockSpec((1, 256), lambda i: (0, 0)),
            pl.BlockSpec((256, CLASSES), lambda i: (0, 0)),
            pl.BlockSpec((1, CLASSES), lambda i: (0, 0)),
        ],
        out_specs=pl.BlockSpec((tb, CLASSES), lambda i: (i, 0)),
        out_shape=jax.ShapeDtypeStruct((B, CLASSES), jnp.float32),
        compiler_params=pltpu.CompilerParams(dimension_semantics=("parallel",)),
    )(a, prep["fc1_w"], prep["fc1_b"], prep["fc2_w"], prep["fc2_b"],
      prep["fc3_w"], prep["fc3_b"])


# ---------------------------------------------------------------------------
# Parameters (PyTorch-style init) and one-time kernel-ready repacking
# ---------------------------------------------------------------------------
def init_params(key):
    ks = jax.random.split(key, 14)

    def u(k, shape, fan_in):
        bound = 1.0 / (fan_in ** 0.5)
        return jax.random.uniform(k, shape, jnp.float32, -bound, bound)

    p = {}
    p["conv1_w"] = u(ks[0], (4, 1, 2, 2), 4)
    p["conv1_b"] = u(ks[1], (4,), 4)
    p["conv2_w"] = u(ks[2], (8, 4, 2, 2), 16)
    p["conv2_b"] = u(ks[3], (8,), 16)
    # BatchNorm2d(8), eval-mode parameters / running stats
    p["bn_gamma"] = 1.0 + 0.1 * jax.random.normal(ks[4], (8,), jnp.float32)
    p["bn_beta"] = 0.1 * jax.random.normal(ks[5], (8,), jnp.float32)
    p["bn_mean"] = 0.1 * jax.random.normal(ks[6], (8,), jnp.float32)
    p["bn_var"] = 1.0 + jnp.abs(jax.random.normal(ks[7], (8,), jnp.float32))
    # Linear weights stored PyTorch-style (out_features, in_features)
    p["fc1_w"] = u(ks[8], (512, 1024), 1024)
    p["fc1_b"] = u(ks[9], (512,), 1024)
    p["fc2_w"] = u(ks[10], (256, 512), 512)
    p["fc2_b"] = u(ks[11], (256,), 512)
    p["fc3_w"] = u(ks[12], (CLASSES, 256), 256)
    p["fc3_b"] = u(ks[13], (CLASSES,), 256)
    return p


def _unfold_constants():
    """Constant 0/1 matrices that perform the in-kernel im2col via matmul."""
    # stage 1: X1 = U1 @ x ; X1c = X1 @ V1
    dy, pa, i = np.meshgrid(np.arange(2), np.arange(2), np.arange(64), indexing="ij")
    u1 = np.zeros((256, 256), np.float32)
    u1[(dy * 128 + pa * 64 + i).ravel(), (4 * i + 2 * pa + dy).ravel()] = 1.0
    dx, pb, j = np.meshgrid(np.arange(2), np.arange(2), np.arange(32), indexing="ij")
    v1 = np.zeros((128, 128), np.float32)
    v1[(4 * j + 2 * pb + dx).ravel(), (dx * 64 + pb * 32 + j).ravel()] = 1.0
    # stage 2: H2a = U2 @ H1 ; H2b = H2a @ V2
    ci, dy2, pa2, i2 = np.meshgrid(np.arange(4), np.arange(2), np.arange(2),
                                   np.arange(16), indexing="ij")
    u2 = np.zeros((256, 256), np.float32)
    u2[(ci * 64 + dy2 * 32 + pa2 * 16 + i2).ravel(),
       (ci * 64 + 4 * i2 + 2 * pa2 + dy2).ravel()] = 1.0
    dx2, pb2, j2 = np.meshgrid(np.arange(2), np.arange(2), np.arange(8), indexing="ij")
    v2 = np.zeros((32, 32), np.float32)
    v2[(4 * j2 + 2 * pb2 + dx2).ravel(), (dx2 * 16 + pb2 * 8 + j2).ravel()] = 1.0
    return jnp.asarray(u1), jnp.asarray(v1), jnp.asarray(u2), jnp.asarray(v2)


def _fc1_column_permutation():
    # kernel feature index g = i2*64 + po*8 + j2  <->  PyTorch CHW index f = po*128 + i2*8 + j2
    i2, po, j2 = np.meshgrid(np.arange(16), np.arange(8), np.arange(8), indexing="ij")
    perm = np.zeros(1024, np.int32)
    perm[(i2 * 64 + po * 8 + j2).ravel()] = (po * 128 + i2 * 8 + j2).ravel()
    return jnp.asarray(perm)


def prepare_params(raw):
    """One-time repack: BN folding, weight transposes, CHW flatten folded into fc1 columns."""
    eps = 1e-5
    scale = raw["bn_gamma"] * jax.lax.rsqrt(raw["bn_var"] + eps)
    shift = raw["bn_beta"] - raw["bn_mean"] * scale
    u1, v1, u2, v2 = _unfold_constants()
    perm = _fc1_column_permutation()
    return {
        "u1": u1, "v1": v1, "u2": u2, "v2": v2,
        "conv1_w": raw["conv1_w"].reshape(-1),             # (16,)  [co,dy,dx]
        "conv1_b": raw["conv1_b"],
        "conv2_w": raw["conv2_w"].reshape(-1),             # (256,) [po,ci,dy,dx]
        "conv2_b": raw["conv2_b"],
        "bn_scale": scale, "bn_shift": shift,
        "fc1_w": jnp.take(raw["fc1_w"], perm, axis=1).T,   # (1024, 512), columns permuted
        "fc1_b": raw["fc1_b"].reshape(1, -1),
        "fc2_w": raw["fc2_w"].T, "fc2_b": raw["fc2_b"].reshape(1, -1),
        "fc3_w": raw["fc3_w"].T, "fc3_b": raw["fc3_b"].reshape(1, -1),
    }
    # TODO(synk): training-mode BatchNorm (batch statistics + running-stat updates)
    # is not reproduced; eval-mode running stats are folded here.


# ---------------------------------------------------------------------------
# Forward pass
# ---------------------------------------------------------------------------
@jax.jit
def feature_net_forward(prep, x):
    x = x.reshape(-1, 256, 128).astype(jnp.float32)   # == x.view(-1, 1, 256, 128)
    B = x.shape[0]
    feats = _conv_stages(x, prep)                     # (B, 16, 64)
    a = feats.reshape(B, 16 * 64)                     # contiguous -> free reshape
    return _fc_head(a, prep)                          # (B, CLASSES) log-probs


# ---------------------------------------------------------------------------
# Plain-JAX reference of the PyTorch module (for a sanity check only)
# ---------------------------------------------------------------------------
def reference_forward(raw, x):
    hp = jax.lax.Precision.HIGHEST
    x = x.reshape(-1, 1, 256, 128).astype(jnp.float32)
    B = x.shape[0]
    xb = x.reshape(B, 1, 128, 2, 64, 2)
    c1 = jnp.einsum("bihywx,oiyx->bohw", xb, raw["conv1_w"], precision=hp)
    c1 = c1 + raw["conv1_b"][None, :, None, None]
    h1 = jnp.maximum(c1.reshape(B, 4, 64, 2, 32, 2).max(axis=(3, 5)), 0.0)
    hb = h1.reshape(B, 4, 32, 2, 16, 2)
    c2 = jnp.einsum("bihywx,oiyx->bohw", hb, raw["conv2_w"], precision=hp)
    c2 = c2 + raw["conv2_b"][None, :, None, None]
    h2 = jnp.maximum(c2.reshape(B, 8, 16, 2, 8, 2).max(axis=(3, 5)), 0.0)
    eps = 1e-5
    scale = raw["bn_gamma"] / jnp.sqrt(raw["bn_var"] + eps)
    shift = raw["bn_beta"] - raw["bn_mean"] * scale
    h2 = h2 * scale[None, :, None, None] + shift[None, :, None, None]
    feat = h2.reshape(B, 1024)                         # NCHW flatten, as in view(-1, 1024)
    a = jnp.maximum(jnp.dot(feat, raw["fc1_w"].T, precision=hp) + raw["fc1_b"], 0.0)
    a = jnp.maximum(jnp.dot(a, raw["fc2_w"].T, precision=hp) + raw["fc2_b"], 0.0)
    y = jnp.dot(a, raw["fc3_w"].T, precision=hp) + raw["fc3_b"]
    return feat, jax.nn.log_softmax(y, axis=-1)


if __name__ == "__main__":
    key = jax.random.PRNGKey(0)
    k_param, k_x = jax.random.split(key)
    raw = init_params(k_param)
    prep = prepare_params(raw)
    x = jax.random.normal(k_x, (2, 1, 256, 128), jnp.float32)   # batch = 2

    out = jax.block_until_ready(feature_net_forward(prep, x))
    assert out.shape == (2, CLASSES), out.shape
    # log-softmax rows must (numerically) sum to 1 in prob space
    assert bool(jnp.all(jnp.abs(jnp.sum(jnp.exp(out), axis=1) - 1.0) < 1e-4))

    # sanity check against a plain-JAX reference of the PyTorch module
    ref_feat, ref_out = reference_forward(raw, x)
    kern_feat = _conv_stages(x.reshape(-1, 256, 128), prep)                 # (B, 16, 64)
    kern_feat_chw = kern_feat.reshape(-1, 16, 8, 8).transpose(0, 2, 1, 3).reshape(-1, 1024)
    assert bool(jnp.allclose(kern_feat_chw, ref_feat, atol=1e-1, rtol=1e-1))
    assert bool(jnp.allclose(out, ref_out, atol=1e-1, rtol=1e-1))
    print("KERNEL_OK")
</pallas_src>

<mosaic_0001>
module attributes {stable_mosaic.version = 11 : i64} {
  func.func @fc_head_kernel(%arg0: i32, %arg1: memref<2x1024xf32, #tpu.memory_space<vmem>>, %arg2: memref<1024x512xf32, #tpu.memory_space<vmem>>, %arg3: memref<1x512xf32, #tpu.memory_space<vmem>>, %arg4: memref<512x256xf32, #tpu.memory_space<vmem>>, %arg5: memref<1x256xf32, #tpu.memory_space<vmem>>, %arg6: memref<256x10xf32, #tpu.memory_space<vmem>>, %arg7: memref<1x10xf32, #tpu.memory_space<vmem>>, %arg8: memref<2x10xf32, #tpu.memory_space<vmem>>) attributes {dimension_semantics = [#tpu.dimension_semantics<parallel>], iteration_bounds = array<i64: 1>, scalar_prefetch = 0 : i64, scratch_operands = 0 : i64, tpu.core_type = #tpu.core_type<tc>, window_params = [{transform_indices = @transform_0, window_bounds = array<i64: 2, 1024>}, {pipeline_mode = #tpu.pipeline_mode<synchronous>, transform_indices = @transform_1, window_bounds = array<i64: 1024, 512>}, {pipeline_mode = #tpu.pipeline_mode<synchronous>, transform_indices = @transform_2, window_bounds = array<i64: 1, 512>}, {pipeline_mode = #tpu.pipeline_mode<synchronous>, transform_indices = @transform_3, window_bounds = array<i64: 512, 256>}, {pipeline_mode = #tpu.pipeline_mode<synchronous>, transform_indices = @transform_4, window_bounds = array<i64: 1, 256>}, {pipeline_mode = #tpu.pipeline_mode<synchronous>, transform_indices = @transform_5, window_bounds = array<i64: 256, 10>}, {pipeline_mode = #tpu.pipeline_mode<synchronous>, transform_indices = @transform_6, window_bounds = array<i64: 1, 10>}, {transform_indices = @transform_7, window_bounds = array<i64: 2, 10>}]} {
    %c0 = arith.constant 0 : index
    %c0_0 = arith.constant 0 : index
    %0 = vector.load %arg1[%c0, %c0_0] : memref<2x1024xf32, #tpu.memory_space<vmem>>, vector<2x1024xf32>
    %c0_1 = arith.constant 0 : index
    %c0_2 = arith.constant 0 : index
    %1 = vector.load %arg2[%c0_1, %c0_2] : memref<1024x512xf32, #tpu.memory_space<vmem>>, vector<1024x512xf32>
    %cst = arith.constant dense<0.000000e+00> : vector<2x512xf32>
    %2 = tpu.matmul %0, %1, %cst {dimension_numbers = #tpu.dot_dimension_numbers<[1], [0], [0], [1], [0, 0, 1, 1], [], []>} : vector<2x1024xf32>, vector<1024x512xf32>, vector<2x512xf32> -> vector<2x512xf32>
    %c0_3 = arith.constant 0 : index
    %c0_4 = arith.constant 0 : index
    %3 = vector.load %arg3[%c0_3, %c0_4] : memref<1x512xf32, #tpu.memory_space<vmem>>, vector<1x512xf32>
    %4 = vector.broadcast %3 : vector<1x512xf32> to vector<2x512xf32>
    %5 = arith.addf %2, %4 : vector<2x512xf32>
    %cst_5 = arith.constant 0.000000e+00 : f32
    %6 = vector.broadcast %cst_5 : f32 to vector<2x512xf32>
    %7 = arith.maximumf %5, %6 : vector<2x512xf32>
    %c0_6 = arith.constant 0 : index
    %c0_7 = arith.constant 0 : index
    %8 = vector.load %arg4[%c0_6, %c0_7] : memref<512x256xf32, #tpu.memory_space<vmem>>, vector<512x256xf32>
    %cst_8 = arith.constant dense<0.000000e+00> : vector<2x256xf32>
    %9 = tpu.matmul %7, %8, %cst_8 {dimension_numbers = #tpu.dot_dimension_numbers<[1], [0], [0], [1], [0, 0, 1, 1], [], []>} : vector<2x512xf32>, vector<512x256xf32>, vector<2x256xf32> -> vector<2x256xf32>
    %c0_9 = arith.constant 0 : index
    %c0_10 = arith.constant 0 : index
    %10 = vector.load %arg5[%c0_9, %c0_10] : memref<1x256xf32, #tpu.memory_space<vmem>>, vector<1x256xf32>
    %11 = vector.broadcast %10 : vector<1x256xf32> to vector<2x256xf32>
    %12 = arith.addf %9, %11 : vector<2x256xf32>
    %cst_11 = arith.constant 0.000000e+00 : f32
    %13 = vector.broadcast %cst_11 : f32 to vector<2x256xf32>
    %14 = arith.maximumf %12, %13 : vector<2x256xf32>
    %c0_12 = arith.constant 0 : index
    %c0_13 = arith.constant 0 : index
    %15 = vector.load %arg6[%c0_12, %c0_13] : memref<256x10xf32, #tpu.memory_space<vmem>>, vector<256x10xf32>
    %cst_14 = arith.constant dense<0.000000e+00> : vector<2x10xf32>
    %16 = tpu.matmul %14, %15, %cst_14 {dimension_numbers = #tpu.dot_dimension_numbers<[1], [0], [0], [1], [0, 0, 1, 1], [], []>} : vector<2x256xf32>, vector<256x10xf32>, vector<2x10xf32> -> vector<2x10xf32>
    %c0_15 = arith.constant 0 : index
    %c0_16 = arith.constant 0 : index
    %17 = vector.load %arg7[%c0_15, %c0_16] : memref<1x10xf32, #tpu.memory_space<vmem>>, vector<1x10xf32>
    %18 = vector.broadcast %17 : vector<1x10xf32> to vector<2x10xf32>
    %19 = arith.addf %16, %18 : vector<2x10xf32>
    %cst_17 = arith.constant dense<0xFF800000> : vector<2xf32>
    %20 = vector.multi_reduction <maximumf>, %19, %cst_17 [1] : vector<2x10xf32> to vector<2xf32>
    %21 = vector.shape_cast %20 : vector<2xf32> to vector<2x1xf32>
    %22 = vector.broadcast %21 : vector<2x1xf32> to vector<2x10xf32>
    %23 = arith.subf %19, %22 : vector<2x10xf32>
    %24 = math.exp %23 : vector<2x10xf32>
    %cst_18 = arith.constant dense<0.000000e+00> : vector<2xf32>
    %25 = vector.multi_reduction <add>, %24, %cst_18 [1] : vector<2x10xf32> to vector<2xf32>
    %26 = vector.shape_cast %25 : vector<2xf32> to vector<2x1xf32>
    %27 = math.log %26 : vector<2x1xf32>
    %28 = arith.addf %27, %21 : vector<2x1xf32>
    %29 = vector.broadcast %28 : vector<2x1xf32> to vector<2x10xf32>
    %30 = arith.subf %19, %29 : vector<2x10xf32>
    %c0_19 = arith.constant 0 : index
    %c0_20 = arith.constant 0 : index
    %31 = vector.load %arg8[%c0_19, %c0_20] : memref<2x10xf32, #tpu.memory_space<vmem>>, vector<2x10xf32>
    tpu.vector_store %arg8[%c0_19, %c0_20], %30 {strides = array<i32>} : memref<2x10xf32, #tpu.memory_space<vmem>>, vector<2x10xf32>,
    return
  }
  func.func @transform_0(%arg0: i32) -> (i32, i32) {
    %c0_i32 = arith.constant 0 : i32
    %c0_i32_0 = arith.constant 0 : i32
    return %arg0, %c0_i32 : i32, i32
  }
  func.func @transform_1(%arg0: i32) -> (i32, i32) {
    %c0_i32 = arith.constant 0 : i32
    %c0_i32_0 = arith.constant 0 : i32
    %c0_i32_1 = arith.constant 0 : i32
    return %c0_i32, %c0_i32_0 : i32, i32
  }
  func.func @transform_2(%arg0: i32) -> (i32, i32) {
    %c0_i32 = arith.constant 0 : i32
    %c0_i32_0 = arith.constant 0 : i32
    %c0_i32_1 = arith.constant 0 : i32
    return %c0_i32, %c0_i32_0 : i32, i32
  }
  func.func @transform_3(%arg0: i32) -> (i32, i32) {
    %c0_i32 = arith.constant 0 : i32
    %c0_i32_0 = arith.constant 0 : i32
    %c0_i32_1 = arith.constant 0 : i32
    return %c0_i32, %c0_i32_0 : i32, i32
  }
  func.func @transform_4(%arg0: i32) -> (i32, i32) {
    %c0_i32 = arith.constant 0 : i32
    %c0_i32_0 = arith.constant 0 : i32
    %c0_i32_1 = arith.constant 0 : i32
    return %c0_i32, %c0_i32_0 : i32, i32
  }
  func.func @transform_5(%arg0: i32) -> (i32, i32) {
    %c0_i32 = arith.constant 0 : i32
    %c0_i32_0 = arith.constant 0 : i32
    %c0_i32_1 = arith.constant 0 : i32
    return %c0_i32, %c0_i32_0 : i32, i32
  }
  func.func @transform_6(%arg0: i32) -> (i32, i32) {
    %c0_i32 = arith.constant 0 : i32
    %c0_i32_0 = arith.constant 0 : i32
    %c0_i32_1 = arith.constant 0 : i32
    return %c0_i32, %c0_i32_0 : i32, i32
  }
  func.func @transform_7(%arg0: i32) -> (i32, i32) {
    %c0_i32 = arith.constant 0 : i32
    %c0_i32_0 = arith.constant 0 : i32
    return %arg0, %c0_i32 : i32, i32
  }
}

module attributes {stable_mosaic.version = 11 : i64} {
  func.func @conv_stages_kernel(%arg0: i32, %arg1: memref<1x256x128xf32, #tpu.memory_space<vmem>>, %arg2: memref<256x256xf32, #tpu.memory_space<vmem>>, %arg3: memref<128x128xf32, #tpu.memory_space<vmem>>, %arg4: memref<256x256xf32, #tpu.memory_space<vmem>>, %arg5: memref<32x32xf32, #tpu.memory_space<vmem>>, %arg6: memref<16xf32, #tpu.memory_space<smem>>, %arg7: memref<4xf32, #tpu.memory_space<smem>>, %arg8: memref<128xf32, #tpu.memory_space<smem>>, %arg9: memref<8xf32, #tpu.memory_space<smem>>, %arg10: memref<8xf32, #tpu.memory_space<smem>>, %arg11: memref<8xf32, #tpu.memory_space<smem>>, %arg12: memref<1x16x64xf32, #tpu.memory_space<vmem>>) attributes {dimension_semantics = [#tpu.dimension_semantics<parallel>], iteration_bounds = array<i64: 2>, scalar_prefetch = 0 : i64, scratch_operands = 0 : i64, tpu.core_type = #tpu.core_type<tc>, window_params = [{transform_indices = @transform_0, window_bounds = array<i64: 1, 256, 128>}, {pipeline_mode = #tpu.pipeline_mode<synchronous>, transform_indices = @transform_1, window_bounds = array<i64: 256, 256>}, {pipeline_mode = #tpu.pipeline_mode<synchronous>, transform_indices = @transform_2, window_bounds = array<i64: 128, 128>}, {pipeline_mode = #tpu.pipeline_mode<synchronous>, transform_indices = @transform_3, window_bounds = array<i64: 256, 256>}, {pipeline_mode = #tpu.pipeline_mode<synchronous>, transform_indices = @transform_4, window_bounds = array<i64: 32, 32>}, {transform_indices = @transform_5, window_bounds = array<i64: 16>}, {transform_indices = @transform_6, window_bounds = array<i64: 4>}, {transform_indices = @transform_7, window_bounds = array<i64: 128>}, {transform_indices = @transform_8, window_bounds = array<i64: 8>}, {transform_indices = @transform_9, window_bounds = array<i64: 8>}, {transform_indices = @transform_10, window_bounds = array<i64: 8>}, {transform_indices = @transform_11, window_bounds = array<i64: 1, 16, 64>}]} {
    %c0 = arith.constant 0 : index
    %c0_0 = arith.constant 0 : index
    %c0_1 = arith.constant 0 : index
    %0 = vector.load %arg1[%c0, %c0_0, %c0_1] : memref<1x256x128xf32, #tpu.memory_space<vmem>>, vector<1x256x128xf32>
    %1 = vector.shape_cast %0 : vector<1x256x128xf32> to vector<256x128xf32>
    %c0_2 = arith.constant 0 : index
    %c0_3 = arith.constant 0 : index
    %2 = vector.load %arg2[%c0_2, %c0_3] : memref<256x256xf32, #tpu.memory_space<vmem>>, vector<256x256xf32>
    %cst = arith.constant dense<0.000000e+00> : vector<256x128xf32>
    %3 = tpu.matmul %2, %1, %cst {dimension_numbers = #tpu.dot_dimension_numbers<[1], [0], [0], [1], [0, 0, 1, 1], [], []>} : vector<256x256xf32>, vector<256x128xf32>, vector<256x128xf32> -> vector<256x128xf32>
    %c0_4 = arith.constant 0 : index
    %c0_5 = arith.constant 0 : index
    %4 = vector.load %arg3[%c0_4, %c0_5] : memref<128x128xf32, #tpu.memory_space<vmem>>, vector<128x128xf32>
    %cst_6 = arith.constant dense<0.000000e+00> : vector<256x128xf32>
    %5 = tpu.matmul %3, %4, %cst_6 {dimension_numbers = #tpu.dot_dimension_numbers<[1], [0], [0], [1], [0, 0, 1, 1], [], []>} : vector<256x128xf32>, vector<128x128xf32>, vector<256x128xf32> -> vector<256x128xf32>
    %6 = vector.extract_strided_slice %5 {offsets = [0, 0], sizes = [128, 64], strides = [1, 1]} : vector<256x128xf32> to vector<128x64xf32>
    %7 = vector.extract_strided_slice %5 {offsets = [0, 64], sizes = [128, 64], strides = [1, 1]} : vector<256x128xf32> to vector<128x64xf32>
    %8 = vector.extract_strided_slice %5 {offsets = [128, 0], sizes = [128, 64], strides = [1, 1]} : vector<256x128xf32> to vector<128x64xf32>
    %9 = vector.extract_strided_slice %5 {offsets = [128, 64], sizes = [128, 64], strides = [1, 1]} : vector<256x128xf32> to vector<128x64xf32>
    %c0_7 = arith.constant 0 : index
    %10 = memref.load %arg6[%c0_7] : memref<16xf32, #tpu.memory_space<smem>>
    %11 = vector.broadcast %10 : f32 to vector<128x64xf32>
    %12 = arith.mulf %11, %6 : vector<128x64xf32>
    %c1 = arith.constant 1 : index
    %13 = memref.load %arg6[%c1] : memref<16xf32, #tpu.memory_space<smem>>
    %14 = vector.broadcast %13 : f32 to vector<128x64xf32>
    %15 = arith.mulf %14, %7 : vector<128x64xf32>
    %16 = arith.addf %12, %15 : vector<128x64xf32>
    %c2 = arith.constant 2 : index
    %17 = memref.load %arg6[%c2] : memref<16xf32, #tpu.memory_space<smem>>
    %18 = vector.broadcast %17 : f32 to vector<128x64xf32>
    %19 = arith.mulf %18, %8 : vector<128x64xf32>
    %20 = arith.addf %16, %19 : vector<128x64xf32>
    %c3 = arith.constant 3 : index
    %21 = memref.load %arg6[%c3] : memref<16xf32, #tpu.memory_space<smem>>
    %22 = vector.broadcast %21 : f32 to vector<128x64xf32>
    %23 = arith.mulf %22, %9 : vector<128x64xf32>
    %24 = arith.addf %20, %23 : vector<128x64xf32>
    %25 = vector.extract_strided_slice %24 {offsets = [0, 0], sizes = [64, 32], strides = [1, 1]} : vector<128x64xf32> to vector<64x32xf32>
    %26 = vector.extract_strided_slice %24 {offsets = [0, 32], sizes = [64, 32], strides = [1, 1]} : vector<128x64xf32> to vector<64x32xf32>
    %27 = arith.maximumf %25, %26 : vector<64x32xf32>
    %28 = vector.extract_strided_slice %24 {offsets = [64, 0], sizes = [64, 32], strides = [1, 1]} : vector<128x64xf32> to vector<64x32xf32>
    %29 = vector.extract_strided_slice %24 {offsets = [64, 32], sizes = [64, 32], strides = [1, 1]} : vector<128x64xf32> to vector<64x32xf32>
    %30 = arith.maximumf %28, %29 : vector<64x32xf32>
    %31 = arith.maximumf %27, %30 : vector<64x32xf32>
    %c0_8 = arith.constant 0 : index
    %32 = memref.load %arg7[%c0_8] : memref<4xf32, #tpu.memory_space<smem>>
    %33 = vector.broadcast %32 : f32 to vector<64x32xf32>
    %34 = arith.addf %31, %33 : vector<64x32xf32>
    %cst_9 = arith.constant 0.000000e+00 : f32
    %35 = vector.broadcast %cst_9 : f32 to vector<64x32xf32>
    %36 = arith.maximumf %34, %35 : vector<64x32xf32>
    %c4 = arith.constant 4 : index
    %37 = memref.load %arg6[%c4] : memref<16xf32, #tpu.memory_space<smem>>
    %38 = vector.broadcast %37 : f32 to vector<128x64xf32>
    %39 = arith.mulf %38, %6 : vector<128x64xf32>
    %c5 = arith.constant 5 : index
    %40 = memref.load %arg6[%c5] : memref<16xf32, #tpu.memory_space<smem>>
    %41 = vector.broadcast %40 : f32 to vector<128x64xf32>
    %42 = arith.mulf %41, %7 : vector<128x64xf32>
    %43 = arith.addf %39, %42 : vector<128x64xf32>
    %c6 = arith.constant 6 : index
    %44 = memref.load %arg6[%c6] : memref<16xf32, #tpu.memory_space<smem>>
    %45 = vector.broadcast %44 : f32 to vector<128x64xf32>
    %46 = arith.mulf %45, %8 : vector<128x64xf32>
    %47 = arith.addf %43, %46 : vector<128x64xf32>
    %c7 = arith.constant 7 : index
    %48 = memref.load %arg6[%c7] : memref<16xf32, #tpu.memory_space<smem>>
    %49 = vector.broadcast %48 : f32 to vector<128x64xf32>
    %50 = arith.mulf %49, %9 : vector<128x64xf32>
    %51 = arith.addf %47, %50 : vector<128x64xf32>
    %52 = vector.extract_strided_slice %51 {offsets = [0, 0], sizes = [64, 32], strides = [1, 1]} : vector<128x64xf32> to vector<64x32xf32>
    %53 = vector.extract_strided_slice %51 {offsets = [0, 32], sizes = [64, 32], strides = [1, 1]} : vector<128x64xf32> to vector<64x32xf32>
    %54 = arith.maximumf %52, %53 : vector<64x32xf32>
    %55 = vector.extract_strided_slice %51 {offsets = [64, 0], sizes = [64, 32], strides = [1, 1]} : vector<128x64xf32> to vector<64x32xf32>
    %56 = vector.extract_strided_slice %51 {offsets = [64, 32], sizes = [64, 32], strides = [1, 1]} : vector<128x64xf32> to vector<64x32xf32>
    %57 = arith.maximumf %55, %56 : vector<64x32xf32>
    %58 = arith.maximumf %54, %57 : vector<64x32xf32>
    %c1_10 = arith.constant 1 : index
    %59 = memref.load %arg7[%c1_10] : memref<4xf32, #tpu.memory_space<smem>>
    %60 = vector.broadcast %59 : f32 to vector<64x32xf32>
    %61 = arith.addf %58, %60 : vector<64x32xf32>
    %cst_11 = arith.constant 0.000000e+00 : f32
    %62 = vector.broadcast %cst_11 : f32 to vector<64x32xf32>
    %63 = arith.maximumf %61, %62 : vector<64x32xf32>
    %c8 = arith.constant 8 : index
    %64 = memref.load %arg6[%c8] : memref<16xf32, #tpu.memory_space<smem>>
    %65 = vector.broadcast %64 : f32 to vector<128x64xf32>
    %66 = arith.mulf %65, %6 : vector<128x64xf32>
    %c9 = arith.constant 9 : index
    %67 = memref.load %arg6[%c9] : memref<16xf32, #tpu.memory_space<smem>>
    %68 = vector.broadcast %67 : f32 to vector<128x64xf32>
    %69 = arith.mulf %68, %7 : vector<128x64xf32>
    %70 = arith.addf %66, %69 : vector<128x64xf32>
    %c10 = arith.constant 10 : index
    %71 = memref.load %arg6[%c10] : memref<16xf32, #tpu.memory_space<smem>>
    %72 = vector.broadcast %71 : f32 to vector<128x64xf32>
    %73 = arith.mulf %72, %8 : vector<128x64xf32>
    %74 = arith.addf %70, %73 : vector<128x64xf32>
    %c11 = arith.constant 11 : index
    %75 = memref.load %arg6[%c11] : memref<16xf32, #tpu.memory_space<smem>>
    %76 = vector.broadcast %75 : f32 to vector<128x64xf32>
    %77 = arith.mulf %76, %9 : vector<128x64xf32>
    %78 = arith.addf %74, %77 : vector<128x64xf32>
    %79 = vector.extract_strided_slice %78 {offsets = [0, 0], sizes = [64, 32], strides = [1, 1]} : vector<128x64xf32> to vector<64x32xf32>
    %80 = vector.extract_strided_slice %78 {offsets = [0, 32], sizes = [64, 32], strides = [1, 1]} : vector<128x64xf32> to vector<64x32xf32>
    %81 = arith.maximumf %79, %80 : vector<64x32xf32>
    %82 = vector.extract_strided_slice %78 {offsets = [64, 0], sizes = [64, 32], strides = [1, 1]} : vector<128x64xf32> to vector<64x32xf32>
    %83 = vector.extract_strided_slice %78 {offsets = [64, 32], sizes = [64, 32], strides = [1, 1]} : vector<128x64xf32> to vector<64x32xf32>
    %84 = arith.maximumf %82, %83 : vector<64x32xf32>
    %85 = arith.maximumf %81, %84 : vector<64x32xf32>
    %c2_12 = arith.constant 2 : index
    %86 = memref.load %arg7[%c2_12] : memref<4xf32, #tpu.memory_space<smem>>
    %87 = vector.broadcast %86 : f32 to vector<64x32xf32>
    %88 = arith.addf %85, %87 : vector<64x32xf32>
    %cst_13 = arith.constant 0.000000e+00 : f32
    %89 = vector.broadcast %cst_13 : f32 to vector<64x32xf32>
    %90 = arith.maximumf %88, %89 : vector<64x32xf32>
    %c12 = arith.constant 12 : index
    %91 = memref.load %arg6[%c12] : memref<16xf32, #tpu.memory_space<smem>>
    %92 = vector.broadcast %91 : f32 to vector<128x64xf32>
    %93 = arith.mulf %92, %6 : vector<128x64xf32>
    %c13 = arith.constant 13 : index
    %94 = memref.load %arg6[%c13] : memref<16xf32, #tpu.memory_space<smem>>
    %95 = vector.broadcast %94 : f32 to vector<128x64xf32>
    %96 = arith.mulf %95, %7 : vector<128x64xf32>
    %97 = arith.addf %93, %96 : vector<128x64xf32>
    %c14 = arith.constant 14 : index
    %98 = memref.load %arg6[%c14] : memref<16xf32, #tpu.memory_space<smem>>
    %99 = vector.broadcast %98 : f32 to vector<128x64xf32>
    %100 = arith.mulf %99, %8 : vector<128x64xf32>
    %101 = arith.addf %97, %100 : vector<128x64xf32>
    %c15 = arith.constant 15 : index
    %102 = memref.load %arg6[%c15] : memref<16xf32, #tpu.memory_space<smem>>
    %103 = vector.broadcast %102 : f32 to vector<128x64xf32>
    %104 = arith.mulf %103, %9 : vector<128x64xf32>
    %105 = arith.addf %101, %104 : vector<128x64xf32>
    %106 = vector.extract_strided_slice %105 {offsets = [0, 0], sizes = [64, 32], strides = [1, 1]} : vector<128x64xf32> to vector<64x32xf32>
    %107 = vector.extract_strided_slice %105 {offsets = [0, 32], sizes = [64, 32], strides = [1, 1]} : vector<128x64xf32> to vector<64x32xf32>
    %108 = arith.maximumf %106, %107 : vector<64x32xf32>
    %109 = vector.extract_strided_slice %105 {offsets = [64, 0], sizes = [64, 32], strides = [1, 1]} : vector<128x64xf32> to vector<64x32xf32>
    %110 = vector.extract_strided_slice %105 {offsets = [64, 32], sizes = [64, 32], strides = [1, 1]} : vector<128x64xf32> to vector<64x32xf32>
    %111 = arith.maximumf %109, %110 : vector<64x32xf32>
    %112 = arith.maximumf %108, %111 : vector<64x32xf32>
    %c3_14 = arith.constant 3 : index
    %113 = memref.load %arg7[%c3_14] : memref<4xf32, #tpu.memory_space<smem>>
    %114 = vector.broadcast %113 : f32 to vector<64x32xf32>
    %115 = arith.addf %112, %114 : vector<64x32xf32>
    %cst_15 = arith.constant 0.000000e+00 : f32
    %116 = vector.broadcast %cst_15 : f32 to vector<64x32xf32>
    %117 = arith.maximumf %115, %116 : vector<64x32xf32>
    %118 = tpu.concatenate %36, %63, %90, %117 in 0 : vector<64x32xf32>, vector<64x32xf32>, vector<64x32xf32>, vector<64x32xf32> -> vector<256x32xf32>
    %c0_16 = arith.constant 0 : index
    %c0_17 = arith.constant 0 : index
    %119 = vector.load %arg4[%c0_16, %c0_17] : memref<256x256xf32, #tpu.memory_space<vmem>>, vector<256x256xf32>
    %cst_18 = arith.constant dense<0.000000e+00> : vector<256x32xf32>
    %120 = tpu.matmul %119, %118, %cst_18 {dimension_numbers = #tpu.dot_dimension_numbers<[1], [0], [0], [1], [0, 0, 1, 1], [], []>} : vector<256x256xf32>, vector<256x32xf32>, vector<256x32xf32> -> vector<256x32xf32>
    %c0_19 = arith.constant 0 : index
    %c0_20 = arith.constant 0 : index
    %121 = vector.load %arg5[%c0_19, %c0_20] : memref<32x32xf32, #tpu.memory_space<vmem>>, vector<32x32xf32>
    %cst_21 = arith.constant dense<0.000000e+00> : vector<256x32xf32>
    %122 = tpu.matmul %120, %121, %cst_21 {dimension_numbers = #tpu.dot_dimension_numbers<[1], [0], [0], [1], [0, 0, 1, 1], [], []>} : vector<256x32xf32>, vector<32x32xf32>, vector<256x32xf32> -> vector<256x32xf32>
    %123 = vector.extract_strided_slice %122 {offsets = [0, 0], sizes = [32, 16], strides = [1, 1]} : vector<256x32xf32> to vector<32x16xf32>
    %124 = vector.extract_strided_slice %122 {offsets = [0, 16], sizes = [32, 16], strides = [1, 1]} : vector<256x32xf32> to vector<32x16xf32>
    %125 = vector.extract_strided_slice %122 {offsets = [32, 0], sizes = [32, 16], strides = [1, 1]} : vector<256x32xf32> to vector<32x16xf32>
    %126 = vector.extract_strided_slice %122 {offsets = [32, 16], sizes = [32, 16], strides = [1, 1]} : vector<256x32xf32> to vector<32x16xf32>
    %127 = vector.extract_strided_slice %122 {offsets = [64, 0], sizes = [32, 16], strides = [1, 1]} : vector<256x32xf32> to vector<32x16xf32>
    %128 = vector.extract_strided_slice %122 {offsets = [64, 16], sizes = [32, 16], strides = [1, 1]} : vector<256x32xf32> to vector<32x16xf32>
    %129 = vector.extract_strided_slice %122 {offsets = [96, 0], sizes = [32, 16], strides = [1, 1]} : vector<256x32xf32> to vector<32x16xf32>
    %130 = vector.extract_strided_slice %122 {offsets = [96, 16], sizes = [32, 16], strides = [1, 1]} : vector<256x32xf32> to vector<32x16xf32>
    %131 = vector.extract_strided_slice %122 {offsets = [128, 0], sizes = [32, 16], strides = [1, 1]} : vector<256x32xf32> to vector<32x16xf32>
    %132 = vector.extract_strided_slice %122 {offsets = [128, 16], sizes = [32, 16], strides = [1, 1]} : vector<256x32xf32> to vector<32x16xf32>
    %133 = vector.extract_strided_slice %122 {offsets = [160, 0], sizes = [32, 16], strides = [1, 1]} : vector<256x32xf32> to vector<32x16xf32>
    %134 = vector.extract_strided_slice %122 {offsets = [160, 16], sizes = [32, 16], strides = [1, 1]} : vector<256x32xf32> to vector<32x16xf32>
    %135 = vector.extract_strided_slice %122 {offsets = [192, 0], sizes = [32, 16], strides = [1, 1]} : vector<256x32xf32> to vector<32x16xf32>
    %136 = vector.extract_strided_slice %122 {offsets = [192, 16], sizes = [32, 16], strides = [1, 1]} : vector<256x32xf32> to vector<32x16xf32>
    %137 = vector.extract_strided_slice %122 {offsets = [224, 0], sizes = [32, 16], strides = [1, 1]} : vector<256x32xf32> to vector<32x16xf32>
    %138 = vector.extract_strided_slice %122 {offsets = [224, 16], sizes = [32, 16], strides = [1, 1]} : vector<256x32xf32> to vector<32x16xf32>
    %c0_22 = arith.constant 0 : index
    %139 = memref.load %arg8[%c0_22] : memref<128xf32, #tpu.memory_space<smem>>
    %140 = vector.broadcast %139 : f32 to vector<32x16xf32>
    %141 = arith.mulf %140, %123 : vector<32x16xf32>
    %c1_23 = arith.constant 1 : index
    %142 = memref.load %arg8[%c1_23] : memref<128xf32, #tpu.memory_space<smem>>
    %143 = vector.broadcast %142 : f32 to vector<32x16xf32>
    %144 = arith.mulf %143, %124 : vector<32x16xf32>
    %145 = arith.addf %141, %144 : vector<32x16xf32>
    %c2_24 = arith.constant 2 : index
    %146 = memref.load %arg8[%c2_24] : memref<128xf32, #tpu.memory_space<smem>>
    %147 = vector.broadcast %146 : f32 to vector<32x16xf32>
    %148 = arith.mulf %147, %125 : vector<32x16xf32>
    %149 = arith.addf %145, %148 : vector<32x16xf32>
    %c3_25 = arith.constant 3 : index
    %150 = memref.load %arg8[%c3_25] : memref<128xf32, #tpu.memory_space<smem>>
    %151 = vector.broadcast %150 : f32 to vector<32x16xf32>
    %152 = arith.mulf %151, %126 : vector<32x16xf32>
    %153 = arith.addf %149, %152 : vector<32x16xf32>
    %c4_26 = arith.constant 4 : index
    %154 = memref.load %arg8[%c4_26] : memref<128xf32, #tpu.memory_space<smem>>
    %155 = vector.broadcast %154 : f32 to vector<32x16xf32>
    %156 = arith.mulf %155, %127 : vector<32x16xf32>
    %157 = arith.addf %153, %156 : vector<32x16xf32>
    %c5_27 = arith.constant 5 : index
    %158 = memref.load %arg8[%c5_27] : memref<128xf32, #tpu.memory_space<smem>>
    %159 = vector.broadcast %158 : f32 to vector<32x16xf32>
    %160 = arith.mulf %159, %128 : vector<32x16xf32>
    %161 = arith.addf %157, %160 : vector<32x16xf32>
    %c6_28 = arith.constant 6 : index
    %162 = memref.load %arg8[%c6_28] : memref<128xf32, #tpu.memory_space<smem>>
    %163 = vector.broadcast %162 : f32 to vector<32x16xf32>
    %164 = arith.mulf %163, %129 : vector<32x16xf32>
    %165 = arith.addf %161, %164 : vector<32x16xf32>
    %c7_29 = arith.constant 7 : index
    %166 = memref.load %arg8[%c7_29] : memref<128xf32, #tpu.memory_space<smem>>
    %167 = vector.broadcast %166 : f32 to vector<32x16xf32>
    %168 = arith.mulf %167, %130 : vector<32x16xf32>
    %169 = arith.addf %165, %168 : vector<32x16xf32>
    %c8_30 = arith.constant 8 : index
    %170 = memref.load %arg8[%c8_30] : memref<128xf32, #tpu.memory_space<smem>>
    %171 = vector.broadcast %170 : f32 to vector<32x16xf32>
    %172 = arith.mulf %171, %131 : vector<32x16xf32>
    %173 = arith.addf %169, %172 : vector<32x16xf32>
    %c9_31 = arith.constant 9 : index
    %174 = memref.load %arg8[%c9_31] : memref<128xf32, #tpu.memory_space<smem>>
    %175 = vector.broadcast %174 : f32 to vector<32x16xf32>
    %176 = arith.mulf %175, %132 : vector<32x16xf32>
    %177 = arith.addf %173, %176 : vector<32x16xf32>
    %c10_32 = arith.constant 10 : index
    %178 = memref.load %arg8[%c10_32] : memref<128xf32, #tpu.memory_space<smem>>
    %179 = vector.broadcast %178 : f32 to vector<32x16xf32>
    %180 = arith.mulf %179, %133 : vector<32x16xf32>
    %181 = arith.addf %177, %180 : vector<32x16xf32>
    %c11_33 = arith.constant 11 : index
    %182 = memref.load %arg8[%c11_33] : memref<128xf32, #tpu.memory_space<smem>>
    %183 = vector.broadcast %182 : f32 to vector<32x16xf32>
    %184 = arith.mulf %183, %134 : vector<32x16xf32>
    %185 = arith.addf %181, %184 : vector<32x16xf32>
    %c12_34 = arith.constant 12 : index
    %186 = memref.load %arg8[%c12_34] : memref<128xf32, #tpu.memory_space<smem>>
    %187 = vector.broadcast %186 : f32 to vector<32x16xf32>
    %188 = arith.mulf %187, %135 : vector<32x16xf32>
    %189 = arith.addf %185, %188 : vector<32x16xf32>
    %c13_35 = arith.constant 13 : index
    %190 = memref.load %arg8[%c13_35] : memref<128xf32, #tpu.memory_space<smem>>
    %191 = vector.broadcast %190 : f32 to vector<32x16xf32>
    %192 = arith.mulf %191, %136 : vector<32x16xf32>
    %193 = arith.addf %189, %192 : vector<32x16xf32>
    %c14_36 = arith.constant 14 : index
    %194 = memref.load %arg8[%c14_36] : memref<128xf32, #tpu.memory_space<smem>>
    %195 = vector.broadcast %194 : f32 to vector<32x16xf32>
    %196 = arith.mulf %195, %137 : vector<32x16xf32>
    %197 = arith.addf %193, %196 : vector<32x16xf32>
    %c15_37 = arith.constant 15 : index
    %198 = memref.load %arg8[%c15_37] : memref<128xf32, #tpu.memory_space<smem>>
    %199 = vector.broadcast %198 : f32 to vector<32x16xf32>
    %200 = arith.mulf %199, %138 : vector<32x16xf32>
    %201 = arith.addf %197, %200 : vector<32x16xf32>
    %202 = vector.extract_strided_slice %201 {offsets = [0, 0], sizes = [16, 8], strides = [1, 1]} : vector<32x16xf32> to vector<16x8xf32>
    %203 = vector.extract_strided_slice %201 {offsets = [0, 8], sizes = [16, 8], strides = [1, 1]} : vector<32x16xf32> to vector<16x8xf32>
    %204 = arith.maximumf %202, %203 : vector<16x8xf32>
    %205 = vector.extract_strided_slice %201 {offsets = [16, 0], sizes = [16, 8], strides = [1, 1]} : vector<32x16xf32> to vector<16x8xf32>
    %206 = vector.extract_strided_slice %201 {offsets = [16, 8], sizes = [16, 8], strides = [1, 1]} : vector<32x16xf32> to vector<16x8xf32>
    %207 = arith.maximumf %205, %206 : vector<16x8xf32>
    %208 = arith.maximumf %204, %207 : vector<16x8xf32>
    %c0_38 = arith.constant 0 : index
    %209 = memref.load %arg9[%c0_38] : memref<8xf32, #tpu.memory_space<smem>>
    %210 = vector.broadcast %209 : f32 to vector<16x8xf32>
    %211 = arith.addf %208, %210 : vector<16x8xf32>
    %cst_39 = arith.constant 0.000000e+00 : f32
    %212 = vector.broadcast %cst_39 : f32 to vector<16x8xf32>
    %213 = arith.maximumf %211, %212 : vector<16x8xf32>
    %c0_40 = arith.constant 0 : index
    %214 = memref.load %arg10[%c0_40] : memref<8xf32, #tpu.memory_space<smem>>
    %215 = vector.broadcast %214 : f32 to vector<16x8xf32>
    %216 = arith.mulf %213, %215 : vector<16x8xf32>
    %c0_41 = arith.constant 0 : index
    %217 = memref.load %arg11[%c0_41] : memref<8xf32, #tpu.memory_space<smem>>
    %218 = vector.broadcast %217 : f32 to vector<16x8xf32>
    %219 = arith.addf %216, %218 : vector<16x8xf32>
    %c16 = arith.constant 16 : index
    %220 = memref.load %arg8[%c16] : memref<128xf32, #tpu.memory_space<smem>>
    %221 = vector.broadcast %220 : f32 to vector<32x16xf32>
    %222 = arith.mulf %221, %123 : vector<32x16xf32>
    %c17 = arith.constant 17 : index
    %223 = memref.load %arg8[%c17] : memref<128xf32, #tpu.memory_space<smem>>
    %224 = vector.broadcast %223 : f32 to vector<32x16xf32>
    %225 = arith.mulf %224, %124 : vector<32x16xf32>
    %226 = arith.addf %222, %225 : vector<32x16xf32>
    %c18 = arith.constant 18 : index
    %227 = memref.load %arg8[%c18] : memref<128xf32, #tpu.memory_space<smem>>
    %228 = vector.broadcast %227 : f32 to vector<32x16xf32>
    %229 = arith.mulf %228, %125 : vector<32x16xf32>
    %230 = arith.addf %226, %229 : vector<32x16xf32>
    %c19 = arith.constant 19 : index
    %231 = memref.load %arg8[%c19] : memref<128xf32, #tpu.memory_space<smem>>
    %232 = vector.broadcast %231 : f32 to vector<32x16xf32>
    %233 = arith.mulf %232, %126 : vector<32x16xf32>
    %234 = arith.addf %230, %233 : vector<32x16xf32>
    %c20 = arith.constant 20 : index
    %235 = memref.load %arg8[%c20] : memref<128xf32, #tpu.memory_space<smem>>
    %236 = vector.broadcast %235 : f32 to vector<32x16xf32>
    %237 = arith.mulf %236, %127 : vector<32x16xf32>
    %238 = arith.addf %234, %237 : vector<32x16xf32>
    %c21 = arith.constant 21 : index
    %239 = memref.load %arg8[%c21] : memref<128xf32, #tpu.memory_space<smem>>
    %240 = vector.broadcast %239 : f32 to vector<32x16xf32>
    %241 = arith.mulf %240, %128 : vector<32x16xf32>
    %242 = arith.addf %238, %241 : vector<32x16xf32>
    %c22 = arith.constant 22 : index
    %243 = memref.load %arg8[%c22] : memref<128xf32, #tpu.memory_space<smem>>
    %244 = vector.broadcast %243 : f32 to vector<32x16xf32>
    %245 = arith.mulf %244, %129 : vector<32x16xf32>
    %246 = arith.addf %242, %245 : vector<32x16xf32>
    %c23 = arith.constant 23 : index
    %247 = memref.load %arg8[%c23] : memref<128xf32, #tpu.memory_space<smem>>
    %248 = vector.broadcast %247 : f32 to vector<32x16xf32>
    %249 = arith.mulf %248, %130 : vector<32x16xf32>
    %250 = arith.addf %246, %249 : vector<32x16xf32>
    %c24 = arith.constant 24 : index
    %251 = memref.load %arg8[%c24] : memref<128xf32, #tpu.memory_space<smem>>
    %252 = vector.broadcast %251 : f32 to vector<32x16xf32>
    %253 = arith.mulf %252, %131 : vector<32x16xf32>
    %254 = arith.addf %250, %253 : vector<32x16xf32>
    %c25 = arith.constant 25 : index
    %255 = memref.load %arg8[%c25] : memref<128xf32, #tpu.memory_space<smem>>
    %256 = vector.broadcast %255 : f32 to vector<32x16xf32>
    %257 = arith.mulf %256, %132 : vector<32x16xf32>
    %258 = arith.addf %254, %257 : vector<32x16xf32>
    %c26 = arith.constant 26 : index
    %259 = memref.load %arg8[%c26] : memref<128xf32, #tpu.memory_space<smem>>
    %260 = vector.broadcast %259 : f32 to vector<32x16xf32>
    %261 = arith.mulf %260, %133 : vector<32x16xf32>
    %262 = arith.addf %258, %261 : vector<32x16xf32>
    %c27 = arith.constant 27 : index
    %263 = memref.load %arg8[%c27] : memref<128xf32, #tpu.memory_space<smem>>
    %264 = vector.broadcast %263 : f32 to vector<32x16xf32>
    %265 = arith.mulf %264, %134 : vector<32x16xf32>
    %266 = arith.addf %262, %265 : vector<32x16xf32>
    %c28 = arith.constant 28 : index
    %267 = memref.load %arg8[%c28] : memref<128xf32, #tpu.memory_space<smem>>
    %268 = vector.broadcast %267 : f32 to vector<32x16xf32>
    %269 = arith.mulf %268, %135 : vector<32x16xf32>
    %270 = arith.addf %266, %269 : vector<32x16xf32>
    %c29 = arith.constant 29 : index
    %271 = memref.load %arg8[%c29] : memref<128xf32, #tpu.memory_space<smem>>
    %272 = vector.broadcast %271 : f32 to vector<32x16xf32>
    %273 = arith.mulf %272, %136 : vector<32x16xf32>
    %274 = arith.addf %270, %273 : vector<32x16xf32>
    %c30 = arith.constant 30 : index
    %275 = memref.load %arg8[%c30] : memref<128xf32, #tpu.memory_space<smem>>
    %276 = vector.broadcast %275 : f32 to vector<32x16xf32>
    %277 = arith.mulf %276, %137 : vector<32x16xf32>
    %278 = arith.addf %274, %277 : vector<32x16xf32>
    %c31 = arith.constant 31 : index
    %279 = memref.load %arg8[%c31] : memref<128xf32, #tpu.memory_space<smem>>
    %280 = vector.broadcast %279 : f32 to vector<32x16xf32>
    %281 = arith.mulf %280, %138 : vector<32x16xf32>
    %282 = arith.addf %278, %281 : vector<32x16xf32>
    %283 = vector.extract_strided_slice %282 {offsets = [0, 0], sizes = [16, 8], strides = [1, 1]} : vector<32x16xf32> to vector<16x8xf32>
    %284 = vector.extract_strided_slice %282 {offsets = [0, 8], sizes = [16, 8], strides = [1, 1]} : vector<32x16xf32> to vector<16x8xf32>
    %285 = arith.maximumf %283, %284 : vector<16x8xf32>
    %286 = vector.extract_strided_slice %282 {offsets = [16, 0], sizes = [16, 8], strides = [1, 1]} : vector<32x16xf32> to vector<16x8xf32>
    %287 = vector.extract_strided_slice %282 {offsets = [16, 8], sizes = [16, 8], strides = [1, 1]} : vector<32x16xf32> to vector<16x8xf32>
    %288 = arith.maximumf %286, %287 : vector<16x8xf32>
    %289 = arith.maximumf %285, %288 : vector<16x8xf32>
    %c1_42 = arith.constant 1 : index
    %290 = memref.load %arg9[%c1_42] : memref<8xf32, #tpu.memory_space<smem>>
    %291 = vector.broadcast %290 : f32 to vector<16x8xf32>
    %292 = arith.addf %289, %291 : vector<16x8xf32>
    %cst_43 = arith.constant 0.000000e+00 : f32
    %293 = vector.broadcast %cst_43 : f32 to vector<16x8xf32>
    %294 = arith.maximumf %292, %293 : vector<16x8xf32>
    %c1_44 = arith.constant 1 : index
    %295 = memref.load %arg10[%c1_44] : memref<8xf32, #tpu.memory_space<smem>>
    %296 = vector.broadcast %295 : f32 to vector<16x8xf32>
    %297 = arith.mulf %294, %296 : vector<16x8xf32>
    %c1_45 = arith.constant 1 : index
    %298 = memref.load %arg11[%c1_45] : memref<8xf32, #tpu.memory_space<smem>>
    %299 = vector.broadcast %298 : f32 to vector<16x8xf32>
    %300 = arith.addf %297, %299 : vector<16x8xf32>
    %c32 = arith.constant 32 : index
    %301 = memref.load %arg8[%c32] : memref<128xf32, #tpu.memory_space<smem>>
    %302 = vector.broadcast %301 : f32 to vector<32x16xf32>
    %303 = arith.mulf %302, %123 : vector<32x16xf32>
    %c33 = arith.constant 33 : index
    %304 = memref.load %arg8[%c33] : memref<128xf32, #tpu.memory_space<smem>>
    %305 = vector.broadcast %304 : f32 to vector<32x16xf32>
    %306 = arith.mulf %305, %124 : vector<32x16xf32>
    %307 = arith.addf %303, %306 : vector<32x16xf32>
    %c34 = arith.constant 34 : index
    %308 = memref.load %arg8[%c34] : memref<128xf32, #tpu.memory_space<smem>>
    %309 = vector.broadcast %308 : f32 to vector<32x16xf32>
    %310 = arith.mulf %309, %125 : vector<32x16xf32>
    %311 = arith.addf %307, %310 : vector<32x16xf32>
    %c35 = arith.constant 35 : index
    %312 = memref.load %arg8[%c35] : memref<128xf32, #tpu.memory_space<smem>>
    %313 = vector.broadcast %312 : f32 to vector<32x16xf32>
    %314 = arith.mulf %313, %126 : vector<32x16xf32>
    %315 = arith.addf %311, %314 : vector<32x16xf32>
    %c36 = arith.constant 36 : index
    %316 = memref.load %arg8[%c36] : memref<128xf32, #tpu.memory_space<smem>>
    %317 = vector.broadcast %316 : f32 to vector<32x16xf32>
    %318 = arith.mulf %317, %127 : vector<32x16xf32>
    %319 = arith.addf %315, %318 : vector<32x16xf32>
    %c37 = arith.constant 37 : index
    %320 = memref.load %arg8[%c37] : memref<128xf32, #tpu.memory_space<smem>>
    %321 = vector.broadcast %320 : f32 to vector<32x16xf32>
    %322 = arith.mulf %321, %128 : vector<32x16xf32>
    %323 = arith.addf %319, %322 : vector<32x16xf32>
    %c38 = arith.constant 38 : index
    %324 = memref.load %arg8[%c38] : memref<128xf32, #tpu.memory_space<smem>>
    %325 = vector.broadcast %324 : f32 to vector<32x16xf32>
    %326 = arith.mulf %325, %129 : vector<32x16xf32>
    %327 = arith.addf %323, %326 : vector<32x16xf32>
    %c39 = arith.constant 39 : index
    %328 = memref.load %arg8[%c39] : memref<128xf32, #tpu.memory_space<smem>>
    %329 = vector.broadcast %328 : f32 to vector<32x16xf32>
    %330 = arith.mulf %329, %130 : vector<32x16xf32>
    %331 = arith.addf %327, %330 : vector<32x16xf32>
    %c40 = arith.constant 40 : index
    %332 = memref.load %arg8[%c40] : memref<128xf32, #tpu.memory_space<smem>>
    %333 = vector.broadcast %332 : f32 to vector<32x16xf32>
    %334 = arith.mulf %333, %131 : vector<32x16xf32>
    %335 = arith.addf %331, %334 : vector<32x16xf32>
    %c41 = arith.constant 41 : index
    %336 = memref.load %arg8[%c41] : memref<128xf32, #tpu.memory_space<smem>>
    %337 = vector.broadcast %336 : f32 to vector<32x16xf32>
    %338 = arith.mulf %337, %132 : vector<32x16xf32>
    %339 = arith.addf %335, %338 : vector<32x16xf32>
    %c42 = arith.constant 42 : index
    %340 = memref.load %arg8[%c42] : memref<128xf32, #tpu.memory_space<smem>>
    %341 = vector.broadcast %340 : f32 to vector<32x16xf32>
    %342 = arith.mulf %341, %133 : vector<32x16xf32>
    %343 = arith.addf %339, %342 : vector<32x16xf32>
    %c43 = arith.constant 43 : index
    %344 = memref.load %arg8[%c43] : memref<128xf32, #tpu.memory_space<smem>>
    %345 = vector.broadcast %344 : f32 to vector<32x16xf32>
    %346 = arith.mulf %345, %134 : vector<32x16xf32>
    %347 = arith.addf %343, %346 : vector<32x16xf32>
    %c44 = arith.constant 44 : index
    %348 = memref.load %arg8[%c44] : memref<128xf32, #tpu.memory_space<smem>>
    %349 = vector.broadcast %348 : f32 to vector<32x16xf32>
    %350 = arith.mulf %349, %135 : vector<32x16xf32>
    %351 = arith.addf %347, %350 : vector<32x16xf32>
    %c45 = arith.constant 45 : index
    %352 = memref.load %arg8[%c45] : memref<128xf32, #tpu.memory_space<smem>>
    %353 = vector.broadcast %352 : f32 to vector<32x16xf32>
    %354 = arith.mulf %353, %136 : vector<32x16xf32>
    %355 = arith.addf %351, %354 : vector<32x16xf32>
    %c46 = arith.constant 46 : index
    %356 = memref.load %arg8[%c46] : memref<128xf32, #tpu.memory_space<smem>>
    %357 = vector.broadcast %356 : f32 to vector<32x16xf32>
    %358 = arith.mulf %357, %137 : vector<32x16xf32>
    %359 = arith.addf %355, %358 : vector<32x16xf32>
    %c47 = arith.constant 47 : index
    %360 = memref.load %arg8[%c47] : memref<128xf32, #tpu.memory_space<smem>>
    %361 = vector.broadcast %360 : f32 to vector<32x16xf32>
    %362 = arith.mulf %361, %138 : vector<32x16xf32>
    %363 = arith.addf %359, %362 : vector<32x16xf32>
    %364 = vector.extract_strided_slice %363 {offsets = [0, 0], sizes = [16, 8], strides = [1, 1]} : vector<32x16xf32> to vector<16x8xf32>
    %365 = vector.extract_strided_slice %363 {offsets = [0, 8], sizes = [16, 8], strides = [1, 1]} : vector<32x16xf32> to vector<16x8xf32>
    %366 = arith.maximumf %364, %365 : vector<16x8xf32>
    %367 = vector.extract_strided_slice %363 {offsets = [16, 0], sizes = [16, 8], strides = [1, 1]} : vector<32x16xf32> to vector<16x8xf32>
    %368 = vector.extract_strided_slice %363 {offsets = [16, 8], sizes = [16, 8], strides = [1, 1]} : vector<32x16xf32> to vector<16x8xf32>
    %369 = arith.maximumf %367, %368 : vector<16x8xf32>
    %370 = arith.maximumf %366, %369 : vector<16x8xf32>
    %c2_46 = arith.constant 2 : index
    %371 = memref.load %arg9[%c2_46] : memref<8xf32, #tpu.memory_space<smem>>
    %372 = vector.broadcast %371 : f32 to vector<16x8xf32>
    %373 = arith.addf %370, %372 : vector<16x8xf32>
    %cst_47 = arith.constant 0.000000e+00 : f32
    %374 = vector.broadcast %cst_47 : f32 to vector<16x8xf32>
    %375 = arith.maximumf %373, %374 : vector<16x8xf32>
    %c2_48 = arith.constant 2 : index
    %376 = memref.load %arg10[%c2_48] : memref<8xf32, #tpu.memory_space<smem>>
    %377 = vector.broadcast %376 : f32 to vector<16x8xf32>
    %378 = arith.mulf %375, %377 : vector<16x8xf32>
    %c2_49 = arith.constant 2 : index
    %379 = memref.load %arg11[%c2_49] : memref<8xf32, #tpu.memory_space<smem>>
    %380 = vector.broadcast %379 : f32 to vector<16x8xf32>
    %381 = arith.addf %378, %380 : vector<16x8xf32>
    %c48 = arith.constant 48 : index
    %382 = memref.load %arg8[%c48] : memref<128xf32, #tpu.memory_space<smem>>
    %383 = vector.broadcast %382 : f32 to vector<32x16xf32>
    %384 = arith.mulf %383, %123 : vector<32x16xf32>
    %c49 = arith.constant 49 : index
    %385 = memref.load %arg8[%c49] : memref<128xf32, #tpu.memory_space<smem>>
    %386 = vector.broadcast %385 : f32 to vector<32x16xf32>
    %387 = arith.mulf %386, %124 : vector<32x16xf32>
    %388 = arith.addf %384, %387 : vector<32x16xf32>
    %c50 = arith.constant 50 : index
    %389 = memref.load %arg8[%c50] : memref<128xf32, #tpu.memory_space<smem>>
    %390 = vector.broadcast %389 : f32 to vector<32x16xf32>
    %391 = arith.mulf %390, %125 : vector<32x16xf32>
    %392 = arith.addf %388, %391 : vector<32x16xf32>
    %c51 = arith.constant 51 : index
    %393 = memref.load %arg8[%c51] : memref<128xf32, #tpu.memory_space<smem>>
    %394 = vector.broadcast %393 : f32 to vector<32x16xf32>
    %395 = arith.mulf %394, %126 : vector<32x16xf32>
    %396 = arith.addf %392, %395 : vector<32x16xf32>
    %c52 = arith.constant 52 : index
    %397 = memref.load %arg8[%c52] : memref<128xf32, #tpu.memory_space<smem>>
    %398 = vector.broadcast %397 : f32 to vector<32x16xf32>
    %399 = arith.mulf %398, %127 : vector<32x16xf32>
    %400 = arith.addf %396, %399 : vector<32x16xf32>
    %c53 = arith.constant 53 : index
    %401 = memref.load %arg8[%c53] : memref<128xf32, #tpu.memory_space<smem>>
    %402 = vector.broadcast %401 : f32 to vector<32x16xf32>
    %403 = arith.mulf %402, %128 : vector<32x16xf32>
    %404 = arith.addf %400, %403 : vector<32x16xf32>
    %c54 = arith.constant 54 : index
    %405 = memref.load %arg8[%c54] : memref<128xf32, #tpu.memory_space<smem>>
    %406 = vector.broadcast %405 : f32 to vector<32x16xf32>
    %407 = arith.mulf %406, %129 : vector<32x16xf32>
    %408 = arith.addf %404, %407 : vector<32x16xf32>
    %c55 = arith.constant 55 : index
    %409 = memref.load %arg8[%c55] : memref<128xf32, #tpu.memory_space<smem>>
    %410 = vector.broadcast %409 : f32 to vector<32x16xf32>
    %411 = arith.mulf %410, %130 : vector<32x16xf32>
    %412 = arith.addf %408, %411 : vector<32x16xf32>
    %c56 = arith.constant 56 : index
    %413 = memref.load %arg8[%c56] : memref<128xf32, #tpu.memory_space<smem>>
    %414 = vector.broadcast %413 : f32 to vector<32x16xf32>
    %415 = arith.mulf %414, %131 : vector<32x16xf32>
    %416 = arith.addf %412, %415 : vector<32x16xf32>
    %c57 = arith.constant 57 : index
    %417 = memref.load %arg8[%c57] : memref<128xf32, #tpu.memory_space<smem>>
    %418 = vector.broadcast %417 : f32 to vector<32x16xf32>
    %419 = arith.mulf %418, %132 : vector<32x16xf32>
    %420 = arith.addf %416, %419 : vector<32x16xf32>
    %c58 = arith.constant 58 : index
    %421 = memref.load %arg8[%c58] : memref<128xf32, #tpu.memory_space<smem>>
    %422 = vector.broadcast %421 : f32 to vector<32x16xf32>
    %423 = arith.mulf %422, %133 : vector<32x16xf32>
    %424 = arith.addf %420, %423 : vector<32x16xf32>
    %c59 = arith.constant 59 : index
    %425 = memref.load %arg8[%c59] : memref<128xf32, #tpu.memory_space<smem>>
    %426 = vector.broadcast %425 : f32 to vector<32x16xf32>
    %427 = arith.mulf %426, %134 : vector<32x16xf32>
    %428 = arith.addf %424, %427 : vector<32x16xf32>
    %c60 = arith.constant 60 : index
    %429 = memref.load %arg8[%c60] : memref<128xf32, #tpu.memory_space<smem>>
    %430 = vector.broadcast %429 : f32 to vector<32x16xf32>
    %431 = arith.mulf %430, %135 : vector<32x16xf32>
    %432 = arith.addf %428, %431 : vector<32x16xf32>
    %c61 = arith.constant 61 : index
    %433 = memref.load %arg8[%c61] : memref<128xf32, #tpu.memory_space<smem>>
    %434 = vector.broadcast %433 : f32 to vector<32x16xf32>
    %435 = arith.mulf %434, %136 : vector<32x16xf32>
    %436 = arith.addf %432, %435 : vector<32x16xf32>
    %c62 = arith.constant 62 : index
    %437 = memref.load %arg8[%c62] : memref<128xf32, #tpu.memory_space<smem>>
    %438 = vector.broadcast %437 : f32 to vector<32x16xf32>
    %439 = arith.mulf %438, %137 : vector<32x16xf32>
    %440 = arith.addf %436, %439 : vector<32x16xf32>
    %c63 = arith.constant 63 : index
    %441 = memref.load %arg8[%c63] : memref<128xf32, #tpu.memory_space<smem>>
    %442 = vector.broadcast %441 : f32 to vector<32x16xf32>
    %443 = arith.mulf %442, %138 : vector<32x16xf32>
    %444 = arith.addf %440, %443 : vector<32x16xf32>
    %445 = vector.extract_strided_slice %444 {offsets = [0, 0], sizes = [16, 8], strides = [1, 1]} : vector<32x16xf32> to vector<16x8xf32>
    %446 = vector.extract_strided_slice %444 {offsets = [0, 8], sizes = [16, 8], strides = [1, 1]} : vector<32x16xf32> to vector<16x8xf32>
    %447 = arith.maximumf %445, %446 : vector<16x8xf32>
    %448 = vector.extract_strided_slice %444 {offsets = [16, 0], sizes = [16, 8], strides = [1, 1]} : vector<32x16xf32> to vector<16x8xf32>
    %449 = vector.extract_strided_slice %444 {offsets = [16, 8], sizes = [16, 8], strides = [1, 1]} : vector<32x16xf32> to vector<16x8xf32>
    %450 = arith.maximumf %448, %449 : vector<16x8xf32>
    %451 = arith.maximumf %447, %450 : vector<16x8xf32>
    %c3_50 = arith.constant 3 : index
    %452 = memref.load %arg9[%c3_50] : memref<8xf32, #tpu.memory_space<smem>>
    %453 = vector.broadcast %452 : f32 to vector<16x8xf32>
    %454 = arith.addf %451, %453 : vector<16x8xf32>
    %cst_51 = arith.constant 0.000000e+00 : f32
    %455 = vector.broadcast %cst_51 : f32 to vector<16x8xf32>
    %456 = arith.maximumf %454, %455 : vector<16x8xf32>
    %c3_52 = arith.constant 3 : index
    %457 = memref.load %arg10[%c3_52] : memref<8xf32, #tpu.memory_space<smem>>
    %458 = vector.broadcast %457 : f32 to vector<16x8xf32>
    %459 = arith.mulf %456, %458 : vector<16x8xf32>
    %c3_53 = arith.constant 3 : index
    %460 = memref.load %arg11[%c3_53] : memref<8xf32, #tpu.memory_space<smem>>
    %461 = vector.broadcast %460 : f32 to vector<16x8xf32>
    %462 = arith.addf %459, %461 : vector<16x8xf32>
    %c64 = arith.constant 64 : index
    %463 = memref.load %arg8[%c64] : memref<128xf32, #tpu.memory_space<smem>>
    %464 = vector.broadcast %463 : f32 to vector<32x16xf32>
    %465 = arith.mulf %464, %123 : vector<32x16xf32>
    %c65 = arith.constant 65 : index
    %466 = memref.load %arg8[%c65] : memref<128xf32, #tpu.memory_space<smem>>
    %467 = vector.broadcast %466 : f32 to vector<32x16xf32>
    %468 = arith.mulf %467, %124 : vector<32x16xf32>
    %469 = arith.addf %465, %468 : vector<32x16xf32>
    %c66 = arith.constant 66 : index
    %470 = memref.load %arg8[%c66] : memref<128xf32, #tpu.memory_space<smem>>
    %471 = vector.broadcast %470 : f32 to vector<32x16xf32>
    %472 = arith.mulf %471, %125 : vector<32x16xf32>
    %473 = arith.addf %469, %472 : vector<32x16xf32>
    %c67 = arith.constant 67 : index
    %474 = memref.load %arg8[%c67] : memref<128xf32, #tpu.memory_space<smem>>
    %475 = vector.broadcast %474 : f32 to vector<32x16xf32>
    %476 = arith.mulf %475, %126 : vector<32x16xf32>
    %477 = arith.addf %473, %476 : vector<32x16xf32>
    %c68 = arith.constant 68 : index
    %478 = memref.load %arg8[%c68] : memref<128xf32, #tpu.memory_space<smem>>
    %479 = vector.broadcast %478 : f32 to vector<32x16xf32>
    %480 = arith.mulf %479, %127 : vector<32x16xf32>
    %481 = arith.addf %477, %480 : vector<32x16xf32>
    %c69 = arith.constant 69 : index
    %482 = memref.load %arg8[%c69] : memref<128xf32, #tpu.memory_space<smem>>
    %483 = vector.broadcast %482 : f32 to vector<32x16xf32>
    %484 = arith.mulf %483, %128 : vector<32x16xf32>
    %485 = arith.addf %481, %484 : vector<32x16xf32>
    %c70 = arith.constant 70 : index
    %486 = memref.load %arg8[%c70] : memref<128xf32, #tpu.memory_space<smem>>
    %487 = vector.broadcast %486 : f32 to vector<32x16xf32>
    %488 = arith.mulf %487, %129 : vector<32x16xf32>
    %489 = arith.addf %485, %488 : vector<32x16xf32>
    %c71 = arith.constant 71 : index
    %490 = memref.load %arg8[%c71] : memref<128xf32, #tpu.memory_space<smem>>
    %491 = vector.broadcast %490 : f32 to vector<32x16xf32>
    %492 = arith.mulf %491, %130 : vector<32x16xf32>
    %493 = arith.addf %489, %492 : vector<32x16xf32>
    %c72 = arith.constant 72 : index
    %494 = memref.load %arg8[%c72] : memref<128xf32, #tpu.memory_space<smem>>
    %495 = vector.broadcast %494 : f32 to vector<32x16xf32>
    %496 = arith.mulf %495, %131 : vector<32x16xf32>
    %497 = arith.addf %493, %496 : vector<32x16xf32>
    %c73 = arith.constant 73 : index
    %498 = memref.load %arg8[%c73] : memref<128xf32, #tpu.memory_space<smem>>
    %499 = vector.broadcast %498 : f32 to vector<32x16xf32>
    %500 = arith.mulf %499, %132 : vector<32x16xf32>
    %501 = arith.addf %497, %500 : vector<32x16xf32>
    %c74 = arith.constant 74 : index
    %502 = memref.load %arg8[%c74] : memref<128xf32, #tpu.memory_space<smem>>
    %503 = vector.broadcast %502 : f32 to vector<32x16xf32>
    %504 = arith.mulf %503, %133 : vector<32x16xf32>
    %505 = arith.addf %501, %504 : vector<32x16xf32>
    %c75 = arith.constant 75 : index
    %506 = memref.load %arg8[%c75] : memref<128xf32, #tpu.memory_space<smem>>
    %507 = vector.broadcast %506 : f32 to vector<32x16xf32>
    %508 = arith.mulf %507, %134 : vector<32x16xf32>
    %509 = arith.addf %505, %508 : vector<32x16xf32>
    %c76 = arith.constant 76 : index
    %510 = memref.load %arg8[%c76] : memref<128xf32, #tpu.memory_space<smem>>
    %511 = vector.broadcast %510 : f32 to vector<32x16xf32>
    %512 = arith.mulf %511, %135 : vector<32x16xf32>
    %513 = arith.addf %509, %512 : vector<32x16xf32>
    %c77 = arith.constant 77 : index
    %514 = memref.load %arg8[%c77] : memref<128xf32, #tpu.memory_space<smem>>
    %515 = vector.broadcast %514 : f32 to vector<32x16xf32>
    %516 = arith.mulf %515, %136 : vector<32x16xf32>
    %517 = arith.addf %513, %516 : vector<32x16xf32>
    %c78 = arith.constant 78 : index
    %518 = memref.load %arg8[%c78] : memref<128xf32, #tpu.memory_space<smem>>
    %519 = vector.broadcast %518 : f32 to vector<32x16xf32>
    %520 = arith.mulf %519, %137 : vector<32x16xf32>
    %521 = arith.addf %517, %520 : vector<32x16xf32>
    %c79 = arith.constant 79 : index
    %522 = memref.load %arg8[%c79] : memref<128xf32, #tpu.memory_space<smem>>
    %523 = vector.broadcast %522 : f32 to vector<32x16xf32>
    %524 = arith.mulf %523, %138 : vector<32x16xf32>
    %525 = arith.addf %521, %524 : vector<32x16xf32>
    %526 = vector.extract_strided_slice %525 {offsets = [0, 0], sizes = [16, 8], strides = [1, 1]} : vector<32x16xf32> to vector<16x8xf32>
    %527 = vector.extract_strided_slice %525 {offsets = [0, 8], sizes = [16, 8], strides = [1, 1]} : vector<32x16xf32> to vector<16x8xf32>
    %528 = arith.maximumf %526, %527 : vector<16x8xf32>
    %529 = vector.extract_strided_slice %525 {offsets = [16, 0], sizes = [16, 8], strides = [1, 1]} : vector<32x16xf32> to vector<16x8xf32>
    %530 = vector.extract_strided_slice %525 {offsets = [16, 8], sizes = [16, 8], strides = [1, 1]} : vector<32x16xf32> to vector<16x8xf32>
    %531 = arith.maximumf %529, %530 : vector<16x8xf32>
    %532 = arith.maximumf %528, %531 : vector<16x8xf32>
    %c4_54 = arith.constant 4 : index
    %533 = memref.load %arg9[%c4_54] : memref<8xf32, #tpu.memory_space<smem>>
    %534 = vector.broadcast %533 : f32 to vector<16x8xf32>
    %535 = arith.addf %532, %534 : vector<16x8xf32>
    %cst_55 = arith.constant 0.000000e+00 : f32
    %536 = vector.broadcast %cst_55 : f32 to vector<16x8xf32>
    %537 = arith.maximumf %535, %536 : vector<16x8xf32>
    %c4_56 = arith.constant 4 : index
    %538 = memref.load %arg10[%c4_56] : memref<8xf32, #tpu.memory_space<smem>>
    %539 = vector.broadcast %538 : f32 to vector<16x8xf32>
    %540 = arith.mulf %537, %539 : vector<16x8xf32>
    %c4_57 = arith.constant 4 : index
    %541 = memref.load %arg11[%c4_57] : memref<8xf32, #tpu.memory_space<smem>>
    %542 = vector.broadcast %541 : f32 to vector<16x8xf32>
    %543 = arith.addf %540, %542 : vector<16x8xf32>
    %c80 = arith.constant 80 : index
    %544 = memref.load %arg8[%c80] : memref<128xf32, #tpu.memory_space<smem>>
    %545 = vector.broadcast %544 : f32 to vector<32x16xf32>
    %546 = arith.mulf %545, %123 : vector<32x16xf32>
    %c81 = arith.constant 81 : index
    %547 = memref.load %arg8[%c81] : memref<128xf32, #tpu.memory_space<smem>>
    %548 = vector.broadcast %547 : f32 to vector<32x16xf32>
    %549 = arith.mulf %548, %124 : vector<32x16xf32>
    %550 = arith.addf %546, %549 : vector<32x16xf32>
    %c82 = arith.constant 82 : index
    %551 = memref.load %arg8[%c82] : memref<128xf32, #tpu.memory_space<smem>>
    %552 = vector.broadcast %551 : f32 to vector<32x16xf32>
    %553 = arith.mulf %552, %125 : vector<32x16xf32>
    %554 = arith.addf %550, %553 : vector<32x16xf32>
    %c83 = arith.constant 83 : index
    %555 = memref.load %arg8[%c83] : memref<128xf32, #tpu.memory_space<smem>>
    %556 = vector.broadcast %555 : f32 to vector<32x16xf32>
    %557 = arith.mulf %556, %126 : vector<32x16xf32>
    %558 = arith.addf %554, %557 : vector<32x16xf32>
    %c84 = arith.constant 84 : index
    %559 = memref.load %arg8[%c84] : memref<128xf32, #tpu.memory_space<smem>>
    %560 = vector.broadcast %559 : f32 to vector<32x16xf32>
    %561 = arith.mulf %560, %127 : vector<32x16xf32>
    %562 = arith.addf %558, %561 : vector<32x16xf32>
    %c85 = arith.constant 85 : index
    %563 = memref.load %arg8[%c85] : memref<128xf32, #tpu.memory_space<smem>>
    %564 = vector.broadcast %563 : f32 to vector<32x16xf32>
    %565 = arith.mulf %564, %128 : vector<32x16xf32>
    %566 = arith.addf %562, %565 : vector<32x16xf32>
    %c86 = arith.constant 86 : index
    %567 = memref.load %arg8[%c86] : memref<128xf32, #tpu.memory_space<smem>>
    %568 = vector.broadcast %567 : f32 to vector<32x16xf32>
    %569 = arith.mulf %568, %129 : vector<32x16xf32>
    %570 = arith.addf %566, %569 : vector<32x16xf32>
    %c87 = arith.constant 87 : index
    %571 = memref.load %arg8[%c87] : memref<128xf32, #tpu.memory_space<smem>>
    %572 = vector.broadcast %571 : f32 to vector<32x16xf32>
    %573 = arith.mulf %572, %130 : vector<32x16xf32>
    %574 = arith.addf %570, %573 : vector<32x16xf32>
    %c88 = arith.constant 88 : index
    %575 = memref.load %arg8[%c88] : memref<128xf32, #tpu.memory_space<smem>>
    %576 = vector.broadcast %575 : f32 to vector<32x16xf32>
    %577 = arith.mulf %576, %131 : vector<32x16xf32>
    %578 = arith.addf %574, %577 : vector<32x16xf32>
    %c89 = arith.constant 89 : index
    %579 = memref.load %arg8[%c89] : memref<128xf32, #tpu.memory_space<smem>>
    %580 = vector.broadcast %579 : f32 to vector<32x16xf32>
    %581 = arith.mulf %580, %132 : vector<32x16xf32>
    %582 = arith.addf %578, %581 : vector<32x16xf32>
    %c90 = arith.constant 90 : index
    %583 = memref.load %arg8[%c90] : memref<128xf32, #tpu.memory_space<smem>>
    %584 = vector.broadcast %583 : f32 to vector<32x16xf32>
    %585 = arith.mulf %584, %133 : vector<32x16xf32>
    %586 = arith.addf %582, %585 : vector<32x16xf32>
    %c91 = arith.constant 91 : index
    %587 = memref.load %arg8[%c91] : memref<128xf32, #tpu.memory_space<smem>>
    %588 = vector.broadcast %587 : f32 to vector<32x16xf32>
    %589 = arith.mulf %588, %134 : vector<32x16xf32>
    %590 = arith.addf %586, %589 : vector<32x16xf32>
    %c92 = arith.constant 92 : index
    %591 = memref.load %arg8[%c92] : memref<128xf32, #tpu.memory_space<smem>>
    %592 = vector.broadcast %591 : f32 to vector<32x16xf32>
    %593 = arith.mulf %592, %135 : vector<32x16xf32>
    %594 = arith.addf %590, %593 : vector<32x16xf32>
    %c93 = arith.constant 93 : index
    %595 = memref.load %arg8[%c93] : memref<128xf32, #tpu.memory_space<smem>>
    %596 = vector.broadcast %595 : f32 to vector<32x16xf32>
    %597 = arith.mulf %596, %136 : vector<32x16xf32>
    %598 = arith.addf %594, %597 : vector<32x16xf32>
    %c94 = arith.constant 94 : index
    %599 = memref.load %arg8[%c94] : memref<128xf32, #tpu.memory_space<smem>>
    %600 = vector.broadcast %599 : f32 to vector<32x16xf32>
    %601 = arith.mulf %600, %137 : vector<32x16xf32>
    %602 = arith.addf %598, %601 : vector<32x16xf32>
    %c95 = arith.constant 95 : index
    %603 = memref.load %arg8[%c95] : memref<128xf32, #tpu.memory_space<smem>>
    %604 = vector.broadcast %603 : f32 to vector<32x16xf32>
    %605 = arith.mulf %604, %138 : vector<32x16xf32>
    %606 = arith.addf %602, %605 : vector<32x16xf32>
    %607 = vector.extract_strided_slice %606 {offsets = [0, 0], sizes = [16, 8], strides = [1, 1]} : vector<32x16xf32> to vector<16x8xf32>
    %608 = vector.extract_strided_slice %606 {offsets = [0, 8], sizes = [16, 8], strides = [1, 1]} : vector<32x16xf32> to vector<16x8xf32>
    %609 = arith.maximumf %607, %608 : vector<16x8xf32>
    %610 = vector.extract_strided_slice %606 {offsets = [16, 0], sizes = [16, 8], strides = [1, 1]} : vector<32x16xf32> to vector<16x8xf32>
    %611 = vector.extract_strided_slice %606 {offsets = [16, 8], sizes = [16, 8], strides = [1, 1]} : vector<32x16xf32> to vector<16x8xf32>
    %612 = arith.maximumf %610, %611 : vector<16x8xf32>
    %613 = arith.maximumf %609, %612 : vector<16x8xf32>
    %c5_58 = arith.constant 5 : index
    %614 = memref.load %arg9[%c5_58] : memref<8xf32, #tpu.memory_space<smem>>
    %615 = vector.broadcast %614 : f32 to vector<16x8xf32>
    %616 = arith.addf %613, %615 : vector<16x8xf32>
    %cst_59 = arith.constant 0.000000e+00 : f32
    %617 = vector.broadcast %cst_59 : f32 to vector<16x8xf32>
    %618 = arith.maximumf %616, %617 : vector<16x8xf32>
    %c5_60 = arith.constant 5 : index
    %619 = memref.load %arg10[%c5_60] : memref<8xf32, #tpu.memory_space<smem>>
    %620 = vector.broadcast %619 : f32 to vector<16x8xf32>
    %621 = arith.mulf %618, %620 : vector<16x8xf32>
    %c5_61 = arith.constant 5 : index
    %622 = memref.load %arg11[%c5_61] : memref<8xf32, #tpu.memory_space<smem>>
    %623 = vector.broadcast %622 : f32 to vector<16x8xf32>
    %624 = arith.addf %621, %623 : vector<16x8xf32>
    %c96 = arith.constant 96 : index
    %625 = memref.load %arg8[%c96] : memref<128xf32, #tpu.memory_space<smem>>
    %626 = vector.broadcast %625 : f32 to vector<32x16xf32>
    %627 = arith.mulf %626, %123 : vector<32x16xf32>
    %c97 = arith.constant 97 : index
    %628 = memref.load %arg8[%c97] : memref<128xf32, #tpu.memory_space<smem>>
    %629 = vector.broadcast %628 : f32 to vector<32x16xf32>
    %630 = arith.mulf %629, %124 : vector<32x16xf32>
    %631 = arith.addf %627, %630 : vector<32x16xf32>
    %c98 = arith.constant 98 : index
    %632 = memref.load %arg8[%c98] : memref<128xf32, #tpu.memory_space<smem>>
    %633 = vector.broadcast %632 : f32 to vector<32x16xf32>
    %634 = arith.mulf %633, %125 : vector<32x16xf32>
    %635 = arith.addf %631, %634 : vector<32x16xf32>
    %c99 = arith.constant 99 : index
    %636 = memref.load %arg8[%c99] : memref<128xf32, #tpu.memory_space<smem>>
    %637 = vector.broadcast %636 : f32 to vector<32x16xf32>
    %638 = arith.mulf %637, %126 : vector<32x16xf32>
    %639 = arith.addf %635, %638 : vector<32x16xf32>
    %c100 = arith.constant 100 : index
    %640 = memref.load %arg8[%c100] : memref<128xf32, #tpu.memory_space<smem>>
    %641 = vector.broadcast %640 : f32 to vector<32x16xf32>
    %642 = arith.mulf %641, %127 : vector<32x16xf32>
    %643 = arith.addf %639, %642 : vector<32x16xf32>
    %c101 = arith.constant 101 : index
    %644 = memref.load %arg8[%c101] : memref<128xf32, #tpu.memory_space<smem>>
    %645 = vector.broadcast %644 : f32 to vector<32x16xf32>
    %646 = arith.mulf %645, %128 : vector<32x16xf32>
    %647 = arith.addf %643, %646 : vector<32x16xf32>
    %c102 = arith.constant 102 : index
    %648 = memref.load %arg8[%c102] : memref<128xf32, #tpu.memory_space<smem>>
    %649 = vector.broadcast %648 : f32 to vector<32x16xf32>
    %650 = arith.mulf %649, %129 : vector<32x16xf32>
    %651 = arith.addf %647, %650 : vector<32x16xf32>
    %c103 = arith.constant 103 : index
    %652 = memref.load %arg8[%c103] : memref<128xf32, #tpu.memory_space<smem>>
    %653 = vector.broadcast %652 : f32 to vector<32x16xf32>
    %654 = arith.mulf %653, %130 : vector<32x16xf32>
    %655 = arith.addf %651, %654 : vector<32x16xf32>
    %c104 = arith.constant 104 : index
    %656 = memref.load %arg8[%c104] : memref<128xf32, #tpu.memory_space<smem>>
    %657 = vector.broadcast %656 : f32 to vector<32x16xf32>
    %658 = arith.mulf %657, %131 : vector<32x16xf32>
    %659 = arith.addf %655, %658 : vector<32x16xf32>
    %c105 = arith.constant 105 : index
    %660 = memref.load %arg8[%c105] : memref<128xf32, #tpu.memory_space<smem>>
    %661 = vector.broadcast %660 : f32 to vector<32x16xf32>
    %662 = arith.mulf %661, %132 : vector<32x16xf32>
    %663 = arith.addf %659, %662 : vector<32x16xf32>
    %c106 = arith.constant 106 : index
    %664 = memref.load %arg8[%c106] : memref<128xf32, #tpu.memory_space<smem>>
    %665 = vector.broadcast %664 : f32 to vector<32x16xf32>
    %666 = arith.mulf %665, %133 : vector<32x16xf32>
    %667 = arith.addf %663, %666 : vector<32x16xf32>
    %c107 = arith.constant 107 : index
    %668 = memref.load %arg8[%c107] : memref<128xf32, #tpu.memory_space<smem>>
    %669 = vector.broadcast %668 : f32 to vector<32x16xf32>
    %670 = arith.mulf %669, %134 : vector<32x16xf32>
    %671 = arith.addf %667, %670 : vector<32x16xf32>
    %c108 = arith.constant 108 : index
    %672 = memref.load %arg8[%c108] : memref<128xf32, #tpu.memory_space<smem>>
    %673 = vector.broadcast %672 : f32 to vector<32x16xf32>
    %674 = arith.mulf %673, %135 : vector<32x16xf32>
    %675 = arith.addf %671, %674 : vector<32x16xf32>
    %c109 = arith.constant 109 : index
    %676 = memref.load %arg8[%c109] : memref<128xf32, #tpu.memory_space<smem>>
    %677 = vector.broadcast %676 : f32 to vector<32x16xf32>
    %678 = arith.mulf %677, %136 : vector<32x16xf32>
    %679 = arith.addf %675, %678 : vector<32x16xf32>
    %c110 = arith.constant 110 : index
    %680 = memref.load %arg8[%c110] : memref<128xf32, #tpu.memory_space<smem>>
    %681 = vector.broadcast %680 : f32 to vector<32x16xf32>
    %682 = arith.mulf %681, %137 : vector<32x16xf32>
    %683 = arith.addf %679, %682 : vector<32x16xf32>
    %c111 = arith.constant 111 : index
    %684 = memref.load %arg8[%c111] : memref<128xf32, #tpu.memory_space<smem>>
    %685 = vector.broadcast %684 : f32 to vector<32x16xf32>
    %686 = arith.mulf %685, %138 : vector<32x16xf32>
    %687 = arith.addf %683, %686 : vector<32x16xf32>
    %688 = vector.extract_strided_slice %687 {offsets = [0, 0], sizes = [16, 8], strides = [1, 1]} : vector<32x16xf32> to vector<16x8xf32>
    %689 = vector.extract_strided_slice %687 {offsets = [0, 8], sizes = [16, 8], strides = [1, 1]} : vector<32x16xf32> to vector<16x8xf32>
    %690 = arith.maximumf %688, %689 : vector<16x8xf32>
    %691 = vector.extract_strided_slice %687 {offsets = [16, 0], sizes = [16, 8], strides = [1, 1]} : vector<32x16xf32> to vector<16x8xf32>
    %692 = vector.extract_strided_slice %687 {offsets = [16, 8], sizes = [16, 8], strides = [1, 1]} : vector<32x16xf32> to vector<16x8xf32>
    %693 = arith.maximumf %691, %692 : vector<16x8xf32>
    %694 = arith.maximumf %690, %693 : vector<16x8xf32>
    %c6_62 = arith.constant 6 : index
    %695 = memref.load %arg9[%c6_62] : memref<8xf32, #tpu.memory_space<smem>>
    %696 = vector.broadcast %695 : f32 to vector<16x8xf32>
    %697 = arith.addf %694, %696 : vector<16x8xf32>
    %cst_63 = arith.constant 0.000000e+00 : f32
    %698 = vector.broadcast %cst_63 : f32 to vector<16x8xf32>
    %699 = arith.maximumf %697, %698 : vector<16x8xf32>
    %c6_64 = arith.constant 6 : index
    %700 = memref.load %arg10[%c6_64] : memref<8xf32, #tpu.memory_space<smem>>
    %701 = vector.broadcast %700 : f32 to vector<16x8xf32>
    %702 = arith.mulf %699, %701 : vector<16x8xf32>
    %c6_65 = arith.constant 6 : index
    %703 = memref.load %arg11[%c6_65] : memref<8xf32, #tpu.memory_space<smem>>
    %704 = vector.broadcast %703 : f32 to vector<16x8xf32>
    %705 = arith.addf %702, %704 : vector<16x8xf32>
    %c112 = arith.constant 112 : index
    %706 = memref.load %arg8[%c112] : memref<128xf32, #tpu.memory_space<smem>>
    %707 = vector.broadcast %706 : f32 to vector<32x16xf32>
    %708 = arith.mulf %707, %123 : vector<32x16xf32>
    %c113 = arith.constant 113 : index
    %709 = memref.load %arg8[%c113] : memref<128xf32, #tpu.memory_space<smem>>
    %710 = vector.broadcast %709 : f32 to vector<32x16xf32>
    %711 = arith.mulf %710, %124 : vector<32x16xf32>
    %712 = arith.addf %708, %711 : vector<32x16xf32>
    %c114 = arith.constant 114 : index
    %713 = memref.load %arg8[%c114] : memref<128xf32, #tpu.memory_space<smem>>
    %714 = vector.broadcast %713 : f32 to vector<32x16xf32>
    %715 = arith.mulf %714, %125 : vector<32x16xf32>
    %716 = arith.addf %712, %715 : vector<32x16xf32>
    %c115 = arith.constant 115 : index
    %717 = memref.load %arg8[%c115] : memref<128xf32, #tpu.memory_space<smem>>
    %718 = vector.broadcast %717 : f32 to vector<32x16xf32>
    %719 = arith.mulf %718, %126 : vector<32x16xf32>
    %720 = arith.addf %716, %719 : vector<32x16xf32>
    %c116 = arith.constant 116 : index
    %721 = memref.load %arg8[%c116] : memref<128xf32, #tpu.memory_space<smem>>
    %722 = vector.broadcast %721 : f32 to vector<32x16xf32>
    %723 = arith.mulf %722, %127 : vector<32x16xf32>
    %724 = arith.addf %720, %723 : vector<32x16xf32>
    %c117 = arith.constant 117 : index
    %725 = memref.load %arg8[%c117] : memref<128xf32, #tpu.memory_space<smem>>
    %726 = vector.broadcast %725 : f32 to vector<32x16xf32>
    %727 = arith.mulf %726, %128 : vector<32x16xf32>
    %728 = arith.addf %724, %727 : vector<32x16xf32>
    %c118 = arith.constant 118 : index
    %729 = memref.load %arg8[%c118] : memref<128xf32, #tpu.memory_space<smem>>
    %730 = vector.broadcast %729 : f32 to vector<32x16xf32>
    %731 = arith.mulf %730, %129 : vector<32x16xf32>
    %732 = arith.addf %728, %731 : vector<32x16xf32>
    %c119 = arith.constant 119 : index
    %733 = memref.load %arg8[%c119] : memref<128xf32, #tpu.memory_space<smem>>
    %734 = vector.broadcast %733 : f32 to vector<32x16xf32>
    %735 = arith.mulf %734, %130 : vector<32x16xf32>
    %736 = arith.addf %732, %735 : vector<32x16xf32>
    %c120 = arith.constant 120 : index
    %737 = memref.load %arg8[%c120] : memref<128xf32, #tpu.memory_space<smem>>
    %738 = vector.broadcast %737 : f32 to vector<32x16xf32>
    %739 = arith.mulf %738, %131 : vector<32x16xf32>
    %740 = arith.addf %736, %739 : vector<32x16xf32>
    %c121 = arith.constant 121 : index
    %741 = memref.load %arg8[%c121] : memref<128xf32, #tpu.memory_space<smem>>
    %742 = vector.broadcast %741 : f32 to vector<32x16xf32>
    %743 = arith.mulf %742, %132 : vector<32x16xf32>
    %744 = arith.addf %740, %743 : vector<32x16xf32>
    %c122 = arith.constant 122 : index
    %745 = memref.load %arg8[%c122] : memref<128xf32, #tpu.memory_space<smem>>
    %746 = vector.broadcast %745 : f32 to vector<32x16xf32>
    %747 = arith.mulf %746, %133 : vector<32x16xf32>
    %748 = arith.addf %744, %747 : vector<32x16xf32>
    %c123 = arith.constant 123 : index
    %749 = memref.load %arg8[%c123] : memref<128xf32, #tpu.memory_space<smem>>
    %750 = vector.broadcast %749 : f32 to vector<32x16xf32>
    %751 = arith.mulf %750, %134 : vector<32x16xf32>
    %752 = arith.addf %748, %751 : vector<32x16xf32>
    %c124 = arith.constant 124 : index
    %753 = memref.load %arg8[%c124] : memref<128xf32, #tpu.memory_space<smem>>
    %754 = vector.broadcast %753 : f32 to vector<32x16xf32>
    %755 = arith.mulf %754, %135 : vector<32x16xf32>
    %756 = arith.addf %752, %755 : vector<32x16xf32>
    %c125 = arith.constant 125 : index
    %757 = memref.load %arg8[%c125] : memref<128xf32, #tpu.memory_space<smem>>
    %758 = vector.broadcast %757 : f32 to vector<32x16xf32>
    %759 = arith.mulf %758, %136 : vector<32x16xf32>
    %760 = arith.addf %756, %759 : vector<32x16xf32>
    %c126 = arith.constant 126 : index
    %761 = memref.load %arg8[%c126] : memref<128xf32, #tpu.memory_space<smem>>
    %762 = vector.broadcast %761 : f32 to vector<32x16xf32>
    %763 = arith.mulf %762, %137 : vector<32x16xf32>
    %764 = arith.addf %760, %763 : vector<32x16xf32>
    %c127 = arith.constant 127 : index
    %765 = memref.load %arg8[%c127] : memref<128xf32, #tpu.memory_space<smem>>
    %766 = vector.broadcast %765 : f32 to vector<32x16xf32>
    %767 = arith.mulf %766, %138 : vector<32x16xf32>
    %768 = arith.addf %764, %767 : vector<32x16xf32>
    %769 = vector.extract_strided_slice %768 {offsets = [0, 0], sizes = [16, 8], strides = [1, 1]} : vector<32x16xf32> to vector<16x8xf32>
    %770 = vector.extract_strided_slice %768 {offsets = [0, 8], sizes = [16, 8], strides = [1, 1]} : vector<32x16xf32> to vector<16x8xf32>
    %771 = arith.maximumf %769, %770 : vector<16x8xf32>
    %772 = vector.extract_strided_slice %768 {offsets = [16, 0], sizes = [16, 8], strides = [1, 1]} : vector<32x16xf32> to vector<16x8xf32>
    %773 = vector.extract_strided_slice %768 {offsets = [16, 8], sizes = [16, 8], strides = [1, 1]} : vector<32x16xf32> to vector<16x8xf32>
    %774 = arith.maximumf %772, %773 : vector<16x8xf32>
    %775 = arith.maximumf %771, %774 : vector<16x8xf32>
    %c7_66 = arith.constant 7 : index
    %776 = memref.load %arg9[%c7_66] : memref<8xf32, #tpu.memory_space<smem>>
    %777 = vector.broadcast %776 : f32 to vector<16x8xf32>
    %778 = arith.addf %775, %777 : vector<16x8xf32>
    %cst_67 = arith.constant 0.000000e+00 : f32
    %779 = vector.broadcast %cst_67 : f32 to vector<16x8xf32>
    %780 = arith.maximumf %778, %779 : vector<16x8xf32>
    %c7_68 = arith.constant 7 : index
    %781 = memref.load %arg10[%c7_68] : memref<8xf32, #tpu.memory_space<smem>>
    %782 = vector.broadcast %781 : f32 to vector<16x8xf32>
    %783 = arith.mulf %780, %782 : vector<16x8xf32>
    %c7_69 = arith.constant 7 : index
    %784 = memref.load %arg11[%c7_69] : memref<8xf32, #tpu.memory_space<smem>>
    %785 = vector.broadcast %784 : f32 to vector<16x8xf32>
    %786 = arith.addf %783, %785 : vector<16x8xf32>
    %787 = tpu.concatenate %219, %300, %381, %462, %543, %624, %705, %786 in 1 : vector<16x8xf32>, vector<16x8xf32>, vector<16x8xf32>, vector<16x8xf32>, vector<16x8xf32>, vector<16x8xf32>, vector<16x8xf32>, vector<16x8xf32> -> vector<16x64xf32>
    %c0_70 = arith.constant 0 : index
    %c0_71 = arith.constant 0 : index
    %c0_72 = arith.constant 0 : index
    %788 = vector.load %arg12[%c0_70, %c0_71, %c0_72] : memref<1x16x64xf32, #tpu.memory_space<vmem>>, vector<1x16x64xf32>
    %789 = vector.shape_cast %788 : vector<1x16x64xf32> to vector<16x64xf32>
    %790 = vector.shape_cast %787 : vector<16x64xf32> to vector<1x16x64xf32>
    tpu.vector_store %arg12[%c0_70, %c0_71, %c0_72], %790 {strides = array<i32>} : memref<1x16x64xf32, #tpu.memory_space<vmem>>, vector<1x16x64xf32>,
    return
  }
  func.func @transform_0(%arg0: i32) -> (i32, i32, i32) {
    %c0_i32 = arith.constant 0 : i32
    %c0_i32_0 = arith.constant 0 : i32
    %c0_i32_1 = arith.constant 0 : i32
    return %arg0, %c0_i32, %c0_i32_0 : i32, i32, i32
  }
  func.func @transform_1(%arg0: i32) -> (i32, i32) {
    %c0_i32 = arith.constant 0 : i32
    %c0_i32_0 = arith.constant 0 : i32
    %c0_i32_1 = arith.constant 0 : i32
    return %c0_i32, %c0_i32_0 : i32, i32
  }
  func.func @transform_2(%arg0: i32) -> (i32, i32) {
    %c0_i32 = arith.constant 0 : i32
    %c0_i32_0 = arith.constant 0 : i32
    %c0_i32_1 = arith.constant 0 : i32
    return %c0_i32, %c0_i32_0 : i32, i32
  }
  func.func @transform_3(%arg0: i32) -> (i32, i32) {
    %c0_i32 = arith.constant 0 : i32
    %c0_i32_0 = arith.constant 0 : i32
    %c0_i32_1 = arith.constant 0 : i32
    return %c0_i32, %c0_i32_0 : i32, i32
  }
  func.func @transform_4(%arg0: i32) -> (i32, i32) {
    %c0_i32 = arith.constant 0 : i32
    %c0_i32_0 = arith.constant 0 : i32
    %c0_i32_1 = arith.constant 0 : i32
    return %c0_i32, %c0_i32_0 : i32, i32
  }
  func.func @transform_5(%arg0: i32) -> i32 {
    %c0_i32 = arith.constant 0 : i32
    %c0_i32_0 = arith.constant 0 : i32
    return %c0_i32 : i32
  }
  func.func @transform_6(%arg0: i32) -> i32 {
    %c0_i32 = arith.constant 0 : i32
    %c0_i32_0 = arith.constant 0 : i32
    return %c0_i32 : i32
  }
  func.func @transform_7(%arg0: i32) -> i32 {
    %c0_i32 = arith.constant 0 : i32
    %c0_i32_0 = arith.constant 0 : i32
    return %c0_i32 : i32
  }
  func.func @transform_8(%arg0: i32) -> i32 {
    %c0_i32 = arith.constant 0 : i32
    %c0_i32_0 = arith.constant 0 : i32
    return %c0_i32 : i32
  }
  func.func @transform_9(%arg0: i32) -> i32 {
    %c0_i32 = arith.constant 0 : i32
    %c0_i32_0 = arith.constant 0 : i32
    return %c0_i32 : i32
  }
  func.func @transform_10(%arg0: i32) -> i32 {
    %c0_i32 = arith.constant 0 : i32
    %c0_i32_0 = arith.constant 0 : i32
    return %c0_i32 : i32
  }
  func.func @transform_11(%arg0: i32) -> (i32, i32, i32) {
    %c0_i32 = arith.constant 0 : i32
    %c0_i32_0 = arith.constant 0 : i32
    %c0_i32_1 = arith.constant 0 : i32
    return %arg0, %c0_i32, %c0_i32_0 : i32, i32, i32
  }
}

</mosaic_0001>

<llo_original>
// kernel: feature_net_forward.3
$region0: #{feature_net_forward.3}
  #allocation0 [shape = 'u32[]', space=smem, size = 0x4, offset = 0x4, fixed_abs, tag = 'smem constant byte address 0x4 - core index']
  #allocation1 [shape = 'u32[144,128]{1,0:T(1,128)}', space=vmem, size = 0x12000, scoped, tag = 'internal scratch']
  %s0 = inlined_call_operand.vmem [shape: f32[2,1024], index: 0, kind: input, shape index: {}]
  %s1 = inlined_call_operand.hbm [shape: f32[1024,512], index: 1, kind: input, shape index: {}]
  %s2 = inlined_call_operand.hbm [shape: f32[1,512], index: 2, kind: input, shape index: {}]
  %s3 = inlined_call_operand.hbm [shape: f32[512,256], index: 3, kind: input, shape index: {}]
  %s4 = inlined_call_operand.hbm [shape: f32[1,256], index: 4, kind: input, shape index: {}]
  %s5 = inlined_call_operand.vmem [shape: f32[256,10], index: 5, kind: input, shape index: {}]
  %s6 = inlined_call_operand.hbm [shape: f32[1,10], index: 6, kind: input, shape index: {}]
  %s7 = inlined_call_operand.hbm [shape: f32[2,10], index: 7, kind: output, shape index: {}]
  %s8 = sld [smem:[#allocation0]]
  $region58: #{feature_net_forward.3} parent=0
    _
  %s10 = ssub.s32 1, %s8
  %s11 = scalar_select 0, %s10, %s8
  $region1: #{feature_net_forward.3} parent=0
    #allocation2 [shape = 'u8[2097152]{0}', space=vmem, size = 0x200000, scoped, tag = 'input window, operand 1, single buffered']
    #allocation3 [shape = 's32[1]{0}', space=sflag, size = 0x4, scoped, tag = 'scoped memory for feature_net_forward.3']
    #allocation4 [shape = 's32[1]{0}', space=sflag, size = 0x4, scoped, tag = 'scoped memory for feature_net_forward.3']
    #allocation5 [shape = 'u8[2048]{0}', space=vmem, size = 0x800, scoped, tag = 'input window, operand 2, single buffered']
    #allocation6 [shape = 's32[1]{0}', space=sflag, size = 0x4, scoped, tag = 'scoped memory for feature_net_forward.3']
    #allocation7 [shape = 'u8[524288]{0}', space=vmem, size = 0x80000, scoped, tag = 'input window, operand 3, single buffered']
    #allocation8 [shape = 'u8[1024]{0}', space=vmem, size = 0x400, scoped, tag = 'input window, operand 4, single buffered']
    #allocation9 [shape = 's32[1]{0}', space=sflag, size = 0x4, scoped, tag = 'scoped memory for feature_net_forward.3']
    #allocation10 [shape = 'u8[512]{0}', space=vmem, size = 0x400, scoped, tag = 'input window, operand 6, single buffered']
    #allocation11 [shape = 'u8[1024]{0}', space=vmem, size = 0x400, scoped, tag = 'output window, operand 0, single buffered']
    %12 = vsyncpa [#allocation3], 0
    %13 = vsyncpa [#allocation6], 0
    %14 = vsyncpa [#allocation9], 0
    %15 = vsyncpa [#allocation4], 0
    // Predicated region
    $region2: #{feature_net_forward.3} parent=1 // pred_check
      _
    $region3: #{feature_net_forward.3} parent=1 // pred_check_branch
      %17 = sbr.rel (0) target = $region5
    $region4: #{feature_net_forward.3} parent=1 // pred_region
      _
    $region5: #{feature_net_forward.3} parent=1 // pred_fallthru
      _
    // Predicated region
    $region6: #{feature_net_forward.3} parent=1 // pred_check
      _
    $region7: #{feature_net_forward.3} parent=1 // pred_check_branch
      %19 = sbr.rel (0) target = $region9
    $region8: #{feature_net_forward.3} parent=1 // pred_region
      %s21 = ssub.s32 65536, 65536
      %22 = vsyncadd [#allocation3], %s21
      %s23 = sshll.u32 [#allocation2], 4
      %s24 = int_to_ptr.vmem [resolvable:$true] %s23
      %29 = dma.hbm_to_vmem [thread:$0]  %s1, 65536, %s24, [#allocation3], 512, 512, 32
    $region9: #{feature_net_forward.3} parent=1 // pred_fallthru
      _
    // Predicated region
    $region10: #{feature_net_forward.3} parent=1 // pred_check
      _
    $region11: #{feature_net_forward.3} parent=1 // pred_check_branch
      %31 = sbr.rel (0) target = $region13
    $region12: #{feature_net_forward.3} parent=1 // pred_region
      %s33 = ssub.s32 64, 64
      %34 = vsyncadd [#allocation6], %s33
      %s36 = sshll.u32 [#allocation5], 4
      %s37 = int_to_ptr.vmem [resolvable:$true] %s36
      %39 = dma.hbm_to_vmem [thread:$0]  %s2, 64, %s37, [#allocation6]
    $region13: #{feature_net_forward.3} parent=1 // pred_fallthru
      _
    // Predicated region
    $region14: #{feature_net_forward.3} parent=1 // pred_check
      _
    $region15: #{feature_net_forward.3} parent=1 // pred_check_branch
      %41 = sbr.rel (0) target = $region17
    $region16: #{feature_net_forward.3} parent=1 // pred_region
      %s43 = ssub.s32 16384, 16384
      %44 = vsyncadd [#allocation6], %s43
      %s45 = sshll.u32 [#allocation7], 4
      %s46 = int_to_ptr.vmem [resolvable:$true] %s45
      %51 = dma.hbm_to_vmem [thread:$0]  %s3, 16384, %s46, [#allocation6], 256, 256, 16
    $region17: #{feature_net_forward.3} parent=1 // pred_fallthru
      _
    // Predicated region
    $region18: #{feature_net_forward.3} parent=1 // pred_check
      _
    $region19: #{feature_net_forward.3} parent=1 // pred_check_branch
      %53 = sbr.rel (0) target = $region21
    $region20: #{feature_net_forward.3} parent=1 // pred_region
      %s55 = ssub.s32 32, 32
      %56 = vsyncadd [#allocation9], %s55
      %s58 = sshll.u32 [#allocation8], 4
      %s59 = int_to_ptr.vmem [resolvable:$true] %s58
      %61 = dma.hbm_to_vmem [thread:$0]  %s4, 32, %s59, [#allocation9]
    $region21: #{feature_net_forward.3} parent=1 // pred_fallthru
      _
    // Predicated region
    $region22: #{feature_net_forward.3} parent=1 // pred_check
      _
    $region23: #{feature_net_forward.3} parent=1 // pred_check_branch
      %63 = sbr.rel (0) target = $region25
    $region24: #{feature_net_forward.3} parent=1 // pred_region
      _
    $region25: #{feature_net_forward.3} parent=1 // pred_fallthru
      _
    // Predicated region
    $region26: #{feature_net_forward.3} parent=1 // pred_check
      _
    $region27: #{feature_net_forward.3} parent=1 // pred_check_branch
      %65 = sbr.rel (0) target = $region29
    $region28: #{feature_net_forward.3} parent=1 // pred_region
      %s67 = ssub.s32 16, 16
      %68 = vsyncadd [#allocation9], %s67
      %s70 = sshll.u32 [#allocation10], 4
      %s71 = int_to_ptr.vmem [resolvable:$true] %s70
      %73 = dma.hbm_to_vmem [thread:$0]  %s6, 16, %s71, [#allocation9]
    $region29: #{feature_net_forward.3} parent=1 // pred_fallthru
      _
    // Predicated region
    $region30: #{feature_net_forward.3} parent=1 // pred_check
      _
    $region31: #{feature_net_forward.3} parent=1 // pred_check_branch
      %75 = sbr.rel (0) target = $region33
    $region32: #{feature_net_forward.3} parent=1 // pred_region
      %76 = dma.done [#allocation3], 65536
    $region33: #{feature_net_forward.3} parent=1 // pred_fallthru
      _
    // Predicated region
    $region34: #{feature_net_forward.3} parent=1 // pred_check
      _
    $region35: #{feature_net_forward.3} parent=1 // pred_check_branch
      %78 = sbr.rel (0) target = $region37
    $region36: #{feature_net_forward.3} parent=1 // pred_region
      %79 = dma.done [#allocation6], 64
    $region37: #{feature_net_forward.3} parent=1 // pred_fallthru
      _
    // Predicated region
    $region38: #{feature_net_forward.3} parent=1 // pred_check
      _
    $region39: #{feature_net_forward.3} parent=1 // pred_check_branch
      %81 = sbr.rel (0) target = $region41
    $region40: #{feature_net_forward.3} parent=1 // pred_region
      %82 = dma.done [#allocation6], 16384
    $region41: #{feature_net_forward.3} parent=1 // pred_fallthru
      _
    // Predicated region
    $region42: #{feature_net_forward.3} parent=1 // pred_check
      _
    $region43: #{feature_net_forward.3} parent=1 // pred_check_branch
      %84 = sbr.rel (0) target = $region45
    $region44: #{feature_net_forward.3} parent=1 // pred_region
      %85 = dma.done [#allocation9], 32
    $region45: #{feature_net_forward.3} parent=1 // pred_fallthru
      _
    // Predicated region
    $region46: #{feature_net_forward.3} parent=1 // pred_check
      _
    $region47: #{feature_net_forward.3} parent=1 // pred_check_branch
      %87 = sbr.rel (0) target = $region49
    $region48: #{feature_net_forward.3} parent=1 // pred_region
      %88 = dma.done [#allocation9], 16
    $region49: #{feature_net_forward.3} parent=1 // pred_fallthru
      _
    %v89 = vld [vmem:[%s0] sm:$0xff]
    %v90 = vld [vmem:[%s0 + $0x8] sm:$0xff]
    %v91 = vld [vmem:[#allocation2] sm:$0xff]
    %v92 = vld [vmem:[#allocation2 + $0x8] sm:$0xff]
    %v93 = vld [vmem:[#allocation2 + $0x10] sm:$0xff]
    %v94 = vld [vmem:[#allocation2 + $0x18] sm:$0xff]
    %v95 = vld [vmem:[#allocation2 + $0x20] sm:$0xff]
    %v96 = vld [vmem:[#allocation2 + $0x28] sm:$0xff]
    %v97 = vld [vmem:[#allocation2 + $0x30] sm:$0xff]
    %v98 = vld [vmem:[#allocation2 + $0x38] sm:$0xff]
    %v99 = vld [vmem:[#allocation2 + $0x40] sm:$0xff]
    %v100 = vld [vmem:[#allocation2 + $0x48] sm:$0xff]
    %v101 = vld [vmem:[#allocation2 + $0x50] sm:$0xff]
    %v102 = vld [vmem:[#allocation2 + $0x58] sm:$0xff]
    %v103 = vld [vmem:[#allocation2 + $0x60] sm:$0xff]
    %v104 = vld [vmem:[#allocation2 + $0x68] sm:$0xff]
    %v105 = vld [vmem:[#allocation2 + $0x70] sm:$0xff]
    %v106 = vld [vmem:[#allocation2 + $0x78] sm:$0xff]
    %v107 = vld [vmem:[#allocation2 + $0x80] sm:$0xff]
    %v108 = vld [vmem:[#allocation2 + $0x88] sm:$0xff]
    %v109 = vld [vmem:[#allocation2 + $0x90] sm:$0xff]
    %v110 = vld [vmem:[#allocation2 + $0x98] sm:$0xff]
    %v111 = vld [vmem:[#allocation2 + $0xa0] sm:$0xff]
    %v112 = vld [vmem:[#allocation2 + $0xa8] sm:$0xff]
    %v113 = vld [vmem:[#allocation2 + $0xb0] sm:$0xff]
    %v114 = vld [vmem:[#allocation2 + $0xb8] sm:$0xff]
    %v115 = vld [vmem:[#allocation2 + $0xc0] sm:$0xff]
    %v116 = vld [vmem:[#allocation2 + $0xc8] sm:$0xff]
    %v117 = vld [vmem:[#allocation2 + $0xd0] sm:$0xff]
    %v118 = vld [vmem:[#allocation2 + $0xd8] sm:$0xff]
    %v119 = vld [vmem:[#allocation2 + $0xe0] sm:$0xff]
    %v120 = vld [vmem:[#allocation2 + $0xe8] sm:$0xff]
    %v121 = vld [vmem:[#allocation2 + $0xf0] sm:$0xff]
    %v122 = vld [vmem:[#allocation2 + $0xf8] sm:$0xff]
    %v123 = vld [vmem:[#allocation2 + $0x100] sm:$0xff]
    %v124 = vld [vmem:[#allocation2 + $0x108] sm:$0xff]
    %v125 = vld [vmem:[#allocation2 + $0x110] sm:$0xff]
    %v126 = vld [vmem:[#allocation2 + $0x118] sm:$0xff]
    %v127 = vld [vmem:[#allocation2 + $0x120] sm:$0xff]
    %v128 = vld [vmem:[#allocation2 + $0x128] sm:$0xff]
    %v129 = vld [vmem:[#allocation2 + $0x130] sm:$0xff]
    %v130 = vld [vmem:[#allocation2 + $0x138] sm:$0xff]
    %v131 = vld [vmem:[#allocation2 + $0x140] sm:$0xff]
    %v132 = vld [vmem:[#allocation2 + $0x148] sm:$0xff]
    %v133 = vld [vmem:[#allocation2 + $0x150] sm:$0xff]
    %v134 = vld [vmem:[#allocation2 + $0x158] sm:$0xff]
    %v135 = vld [vmem:[#allocation2 + $0x160] sm:$0xff]
    %v136 = vld [vmem:[#allocation2 + $0x168] sm:$0xff]
    %v137 = vld [vmem:[#allocation2 + $0x170] sm:$0xff]
    %v138 = vld [vmem:[#allocation2 + $0x178] sm:$0xff]
    %v139 = vld [vmem:[#allocation2 + $0x180] sm:$0xff]
    %v140 = vld [vmem:[#allocation2 + $0x188] sm:$0xff]
    %v141 = vld [vmem:[#allocation2 + $0x190] sm:$0xff]
    %v142 = vld [vmem:[#allocation2 + $0x198] sm:$0xff]
    %v143 = vld [vmem:[#allocation2 + $0x1a0] sm:$0xff]
    %v144 = vld [vmem:[#allocation2 + $0x1a8] sm:$0xff]
    %v145 = vld [vmem:[#allocation2 + $0x1b0] sm:$0xff]
    %v146 = vld [vmem:[#allocation2 + $0x1b8] sm:$0xff]
    %v147 = vld [vmem:[#allocation2 + $0x1c0] sm:$0xff]
    %v148 = vld [vmem:[#allocation2 + $0x1c8] sm:$0xff]
    %v149 = vld [vmem:[#allocation2 + $0x1d0] sm:$0xff]
    %v150 = vld [vmem:[#allocation2 + $0x1d8] sm:$0xff]
    %v151 = vld [vmem:[#allocation2 + $0x1e0] sm:$0xff]
    %v152 = vld [vmem:[#allocation2 + $0x1e8] sm:$0xff]
    %v153 = vld [vmem:[#allocation2 + $0x1f0] sm:$0xff]
    %v154 = vld [vmem:[#allocation2 + $0x1f8] sm:$0xff]
    %v155 = vld [vmem:[#allocation2 + $0x200] sm:$0xff]
    %v156 = vld [vmem:[#allocation2 + $0x208] sm:$0xff]
    %v157 = vld [vmem:[#allocation2 + $0x210] sm:$0xff]
    %v158 = vld [vmem:[#allocation2 + $0x218] sm:$0xff]
    %v159 = vld [vmem:[#allocation2 + $0x220] sm:$0xff]
    %v160 = vld [vmem:[#allocation2 + $0x228] sm:$0xff]
    %v161 = vld [vmem:[#allocation2 + $0x230] sm:$0xff]
    %v162 = vld [vmem:[#allocation2 + $0x238] sm:$0xff]
    %v163 = vld [vmem:[#allocation2 + $0x240] sm:$0xff]
    %v164 = vld [vmem:[#allocation2 + $0x248] sm:$0xff]
    %v165 = vld [vmem:[#allocation2 + $0x250] sm:$0xff]
    %v166 = vld [vmem:[#allocation2 + $0x258] sm:$0xff]
    %v167 = vld [vmem:[#allocation2 + $0x260] sm:$0xff]
    %v168 = vld [vmem:[#allocation2 + $0x268] sm:$0xff]
    %v169 = vld [vmem:[#allocation2 + $0x270] sm:$0xff]
    %v170 = vld [vmem:[#allocation2 + $0x278] sm:$0xff]
    %v171 = vld [vmem:[#allocation2 + $0x280] sm:$0xff]
    %v172 = vld [vmem:[#allocation2 + $0x288] sm:$0xff]
    %v173 = vld [vmem:[#allocation2 + $0x290] sm:$0xff]
    %v174 = vld [vmem:[#allocation2 + $0x298] sm:$0xff]
    %v175 = vld [vmem:[#allocation2 + $0x2a0] sm:$0xff]
    %v176 = vld [vmem:[#allocation2 + $0x2a8] sm:$0xff]
    %v177 = vld [vmem:[#allocation2 + $0x2b0] sm:$0xff]
    %v178 = vld [vmem:[#allocation2 + $0x2b8] sm:$0xff]
    %v179 = vld [vmem:[#allocation2 + $0x2c0] sm:$0xff]
    %v180 = vld [vmem:[#allocation2 + $0x2c8] sm:$0xff]
    %v181 = vld [vmem:[#allocation2 + $0x2d0] sm:$0xff]
    %v182 = vld [vmem:[#allocation2 + $0x2d8] sm:$0xff]
    %v183 = vld [vmem:[#allocation2 + $0x2e0] sm:$0xff]
    %v184 = vld [vmem:[#allocation2 + $0x2e8] sm:$0xff]
    %v185 = vld [vmem:[#allocation2 + $0x2f0] sm:$0xff]
    %v186 = vld [vmem:[#allocation2 + $0x2f8] sm:$0xff]
    %v187 = vld [vmem:[#allocation2 + $0x300] sm:$0xff]
    %v188 = vld [vmem:[#allocation2 + $0x308] sm:$0xff]
    %v189 = vld [vmem:[#allocation2 + $0x310] sm:$0xff]
    %v190 = vld [vmem:[#allocation2 + $0x318] sm:$0xff]
    %v191 = vld [vmem:[#allocation2 + $0x320] sm:$0xff]
    %v192 = vld [vmem:[#allocation2 + $0x328] sm:$0xff]
    %v193 = vld [vmem:[#allocation2 + $0x330] sm:$0xff]
    %v194 = vld [vmem:[#allocation2 + $0x338] sm:$0xff]
    %v195 = vld [vmem:[#allocation2 + $0x340] sm:$0xff]
    %v196 = vld [vmem:[#allocation2 + $0x348] sm:$0xff]
    %v197 = vld [vmem:[#allocation2 + $0x350] sm:$0xff]
    %v198 = vld [vmem:[#allocation2 + $0x358] sm:$0xff]
    %v199 = vld [vmem:[#allocation2 + $0x360] sm:$0xff]
    %v200 = vld [vmem:[#allocation2 + $0x368] sm:$0xff]
    %v201 = vld [vmem:[#allocation2 + $0x370] sm:$0xff]
    %v202 = vld [vmem:[#allocation2 + $0x378] sm:$0xff]
    %v203 = vld [vmem:[#allocation2 + $0x380] sm:$0xff]
    %v204 = vld [vmem:[#allocation2 + $0x388] sm:$0xff]
    %v205 = vld [vmem:[#allocation2 + $0x390] sm:$0xff]
    %v206 = vld [vmem:[#allocation2 + $0x398] sm:$0xff]
    %v207 = vld [vmem:[#allocation2 + $0x3a0] sm:$0xff]
    %v208 = vld [vmem:[#allocation2 + $0x3a8] sm:$0xff]
    %v209 = vld [vmem:[#allocation2 + $0x3b0] sm:$0xff]
    %v210 = vld [vmem:[#allocation2 + $0x3b8] sm:$0xff]
    %v211 = vld [vmem:[#allocation2 + $0x3c0] sm:$0xff]
    %v212 = vld [vmem:[#allocation2 + $0x3c8] sm:$0xff]
    %v213 = vld [vmem:[#allocation2 + $0x3d0] sm:$0xff]
    %v214 = vld [vmem:[#allocation2 + $0x3d8] sm:$0xff]
    %v215 = vld [vmem:[#allocation2 + $0x3e0] sm:$0xff]
    %v216 = vld [vmem:[#allocation2 + $0x3e8] sm:$0xff]
    %v217 = vld [vmem:[#allocation2 + $0x3f0] sm:$0xff]
    %v218 = vld [vmem:[#allocation2 + $0x3f8] sm:$0xff]
    %v219 = vld [vmem:[#allocation2 + $0x400] sm:$0xff]
    %v220 = vld [vmem:[#allocation2 + $0x408] sm:$0xff]
    %v221 = vld [vmem:[#allocation2 + $0x410] sm:$0xff]
    %v222 = vld [vmem:[#allocation2 + $0x418] sm:$0xff]
    %v223 = vld [vmem:[#allocation2 + $0x420] sm:$0xff]
    %v224 = vld [vmem:[#allocation2 + $0x428] sm:$0xff]
    %v225 = vld [vmem:[#allocation2 + $0x430] sm:$0xff]
    %v226 = vld [vmem:[#allocation2 + $0x438] sm:$0xff]
    %v227 = vld [vmem:[#allocation2 + $0x440] sm:$0xff]
    %v228 = vld [vmem:[#allocation2 + $0x448] sm:$0xff]
    %v229 = vld [vmem:[#allocation2 + $0x450] sm:$0xff]
    %v230 = vld [vmem:[#allocation2 + $0x458] sm:$0xff]
    %v231 = vld [vmem:[#allocation2 + $0x460] sm:$0xff]
    %v232 = vld [vmem:[#allocation2 + $0x468] sm:$0xff]
    %v233 = vld [vmem:[#allocation2 + $0x470] sm:$0xff]
    %v234 = vld [vmem:[#allocation2 + $0x478] sm:$0xff]
    %v235 = vld [vmem:[#allocation2 + $0x480] sm:$0xff]
    %v236 = vld [vmem:[#allocation2 + $0x488] sm:$0xff]
    %v237 = vld [vmem:[#allocation2 + $0x490] sm:$0xff]
    %v238 = vld [vmem:[#allocation2 + $0x498] sm:$0xff]
    %v239 = vld [vmem:[#allocation2 + $0x4a0] sm:$0xff]
    %v240 = vld [vmem:[#allocation2 + $0x4a8] sm:$0xff]
    %v241 = vld [vmem:[#allocation2 + $0x4b0] sm:$0xff]
    %v242 = vld [vmem:[#allocation2 + $0x4b8] sm:$0xff]
    %v243 = vld [vmem:[#allocation2 + $0x4c0] sm:$0xff]
    %v244 = vld [vmem:[#allocation2 + $0x4c8] sm:$0xff]
    %v245 = vld [vmem:[#allocation2 + $0x4d0] sm:$0xff]
    %v246 = vld [vmem:[#allocation2 + $0x4d8] sm:$0xff]
    %v247 = vld [vmem:[#allocation2 + $0x4e0] sm:$0xff]
    %v248 = vld [vmem:[#allocation2 + $0x4e8] sm:$0xff]
    %v249 = vld [vmem:[#allocation2 + $0x4f0] sm:$0xff]
    %v250 = vld [vmem:[#allocation2 + $0x4f8] sm:$0xff]
    %v251 = vld [vmem:[#allocation2 + $0x500] sm:$0xff]
    %v252 = vld [vmem:[#allocation2 + $0x508] sm:$0xff]
    %v253 = vld [vmem:[#allocation2 + $0x510] sm:$0xff]
    %v254 = vld [vmem:[#allocation2 + $0x518] sm:$0xff]
    %v255 = vld [vmem:[#allocation2 + $0x520] sm:$0xff]
    %v256 = vld [vmem:[#allocation2 + $0x528] sm:$0xff]
    %v257 = vld [vmem:[#allocation2 + $0x530] sm:$0xff]
    %v258 = vld [vmem:[#allocation2 + $0x538] sm:$0xff]
    %v259 = vld [vmem:[#allocation2 + $0x540] sm:$0xff]
    %v260 = vld [vmem:[#allocation2 + $0x548] sm:$0xff]
    %v261 = vld [vmem:[#allocation2 + $0x550] sm:$0xff]
    %v262 = vld [vmem:[#allocation2 + $0x558] sm:$0xff]
    %v263 = vld [vmem:[#allocation2 + $0x560] sm:$0xff]
    %v264 = vld [vmem:[#allocation2 + $0x568] sm:$0xff]
    %v265 = vld [vmem:[#allocation2 + $0x570] sm:$0xff]
    %v266 = vld [vmem:[#allocation2 + $0x578] sm:$0xff]
    %v267 = vld [vmem:[#allocation2 + $0x580] sm:$0xff]
    %v268 = vld [vmem:[#allocation2 + $0x588] sm:$0xff]
    %v269 = vld [vmem:[#allocation2 + $0x590] sm:$0xff]
    %v270 = vld [vmem:[#allocation2 + $0x598] sm:$0xff]
    %v271 = vld [vmem:[#allocation2 + $0x5a0] sm:$0xff]
    %v272 = vld [vmem:[#allocation2 + $0x5a8] sm:$0xff]
    %v273 = vld [vmem:[#allocation2 + $0x5b0] sm:$0xff]
    %v274 = vld [vmem:[#allocation2 + $0x5b8] sm:$0xff]
    %v275 = vld [vmem:[#allocation2 + $0x5c0] sm:$0xff]
    %v276 = vld [vmem:[#allocation2 + $0x5c8] sm:$0xff]
    %v277 = vld [vmem:[#allocation2 + $0x5d0] sm:$0xff]
    %v278 = vld [vmem:[#allocation2 + $0x5d8] sm:$0xff]
    %v279 = vld [vmem:[#allocation2 + $0x5e0] sm:$0xff]
    %v280 = vld [vmem:[#allocation2 + $0x5e8] sm:$0xff]
    %v281 = vld [vmem:[#allocation2 + $0x5f0] sm:$0xff]
    %v282 = vld [vmem:[#allocation2 + $0x5f8] sm:$0xff]
    %v283 = vld [vmem:[#allocation2 + $0x600] sm:$0xff]
    %v284 = vld [vmem:[#allocation2 + $0x608] sm:$0xff]
    %v285 = vld [vmem:[#allocation2 + $0x610] sm:$0xff]
    %v286 = vld [vmem:[#allocation2 + $0x618] sm:$0xff]
    %v287 = vld [vmem:[#allocation2 + $0x620] sm:$0xff]
    %v288 = vld [vmem:[#allocation2 + $0x628] sm:$0xff]
    %v289 = vld [vmem:[#allocation2 + $0x630] sm:$0xff]
    %v290 = vld [vmem:[#allocation2 + $0x638] sm:$0xff]
    %v291 = vld [vmem:[#allocation2 + $0x640] sm:$0xff]
    %v292 = vld [vmem:[#allocation2 + $0x648] sm:$0xff]
    %v293 = vld [vmem:[#allocation2 + $0x650] sm:$0xff]
    %v294 = vld [vmem:[#allocation2 + $0x658] sm:$0xff]
    %v295 = vld [vmem:[#allocation2 + $0x660] sm:$0xff]
    %v296 = vld [vmem:[#allocation2 + $0x668] sm:$0xff]
    %v297 = vld [vmem:[#allocation2 + $0x670] sm:$0xff]
    %v298 = vld [vmem:[#allocation2 + $0x678] sm:$0xff]
    %v299 = vld [vmem:[#allocation2 + $0x680] sm:$0xff]
    %v300 = vld [vmem:[#allocation2 + $0x688] sm:$0xff]
    %v301 = vld [vmem:[#allocation2 + $0x690] sm:$0xff]
    %v302 = vld [vmem:[#allocation2 + $0x698] sm:$0xff]
    %v303 = vld [vmem:[#allocation2 + $0x6a0] sm:$0xff]
    %v304 = vld [vmem:[#allocation2 + $0x6a8] sm:$0xff]
    %v305 = vld [vmem:[#allocation2 + $0x6b0] sm:$0xff]
    %v306 = vld [vmem:[#allocation2 + $0x6b8] sm:$0xff]
    %v307 = vld [vmem:[#allocation2 + $0x6c0] sm:$0xff]
    %v308 = vld [vmem:[#allocation2 + $0x6c8] sm:$0xff]
    %v309 = vld [vmem:[#allocation2 + $0x6d0] sm:$0xff]
    %v310 = vld [vmem:[#allocation2 + $0x6d8] sm:$0xff]
    %v311 = vld [vmem:[#allocation2 + $0x6e0] sm:$0xff]
    %v312 = vld [vmem:[#allocation2 + $0x6e8] sm:$0xff]
    %v313 = vld [vmem:[#allocation2 + $0x6f0] sm:$0xff]
    %v314 = vld [vmem:[#allocation2 + $0x6f8] sm:$0xff]
    %v315 = vld [vmem:[#allocation2 + $0x700] sm:$0xff]
    %v316 = vld [vmem:[#allocation2 + $0x708] sm:$0xff]
    %v317 = vld [vmem:[#allocation2 + $0x710] sm:$0xff]
    %v318 = vld [vmem:[#allocation2 + $0x718] sm:$0xff]
    %v319 = vld [vmem:[#allocation2 + $0x720] sm:$0xff]
    %v320 = vld [vmem:[#allocation2 + $0x728] sm:$0xff]
    %v321 = vld [vmem:[#allocation2 + $0x730] sm:$0xff]
    %v322 = vld [vmem:[#allocation2 + $0x738] sm:$0xff]
    %v323 = vld [vmem:[#allocation2 + $0x740] sm:$0xff]
    %v324 = vld [vmem:[#allocation2 + $0x748] sm:$0xff]
    %v325 = vld [vmem:[#allocation2 + $0x750] sm:$0xff]
    %v326 = vld [vmem:[#allocation2 + $0x758] sm:$0xff]
    %v327 = vld [vmem:[#allocation2 + $0x760] sm:$0xff]
    %v328 = vld [vmem:[#allocation2 + $0x768] sm:$0xff]
    %v329 = vld [vmem:[#allocation2 + $0x770] sm:$0xff]
    %v330 = vld [vmem:[#allocation2 + $0x778] sm:$0xff]
    %v331 = vld [vmem:[#allocation2 + $0x780] sm:$0xff]
    %v332 = vld [vmem:[#allocation2 + $0x788] sm:$0xff]
    %v333 = vld [vmem:[#allocation2 + $0x790] sm:$0xff]
    %v334 = vld [vmem:[#allocation2 + $0x798] sm:$0xff]
    %v335 = vld [vmem:[#allocation2 + $0x7a0] sm:$0xff]
    %v336 = vld [vmem:[#allocation2 + $0x7a8] sm:$0xff]
    %v337 = vld [vmem:[#allocation2 + $0x7b0] sm:$0xff]
    %v338 = vld [vmem:[#allocation2 + $0x7b8] sm:$0xff]
    %v339 = vld [vmem:[#allocation2 + $0x7c0] sm:$0xff]
    %v340 = vld [vmem:[#allocation2 + $0x7c8] sm:$0xff]
    %v341 = vld [vmem:[#allocation2 + $0x7d0] sm:$0xff]
    %v342 = vld [vmem:[#allocation2 + $0x7d8] sm:$0xff]
    %v343 = vld [vmem:[#allocation2 + $0x7e0] sm:$0xff]
    %v344 = vld [vmem:[#allocation2 + $0x7e8] sm:$0xff]
    %v345 = vld [vmem:[#allocation2 + $0x7f0] sm:$0xff]
    %v346 = vld [vmem:[#allocation2 + $0x7f8] sm:$0xff]
    %v347 = vld [vmem:[#allocation2 + $0x800] sm:$0xff]
    %v348 = vld [vmem:[#allocation2 + $0x808] sm:$0xff]
    %v349 = vld [vmem:[#allocation2 + $0x810] sm:$0xff]
    %v350 = vld [vmem:[#allocation2 + $0x818] sm:$0xff]
    %v351 = vld [vmem:[#allocation2 + $0x820] sm:$0xff]
    %v352 = vld [vmem:[#allocation2 + $0x828] sm:$0xff]
    %v353 = vld [vmem:[#allocation2 + $0x830] sm:$0xff]
    %v354 = vld [vmem:[#allocation2 + $0x838] sm:$0xff]
    %v355 = vld [vmem:[#allocation2 + $0x840] sm:$0xff]
    %v356 = vld [vmem:[#allocation2 + $0x848] sm:$0xff]
    %v357 = vld [vmem:[#allocation2 + $0x850] sm:$0xff]
    %v358 = vld [vmem:[#allocation2 + $0x858] sm:$0xff]
    %v359 = vld [vmem:[#allocation2 + $0x860] sm:$0xff]
    %v360 = vld [vmem:[#allocation2 + $0x868] sm:$0xff]
    %v361 = vld [vmem:[#allocation2 + $0x870] sm:$0xff]
    %v362 = vld [vmem:[#allocation2 + $0x878] sm:$0xff]
    %v363 = vld [vmem:[#allocation2 + $0x880] sm:$0xff]
    %v364 = vld [vmem:[#allocation2 + $0x888] sm:$0xff]
    %v365 = vld [vmem:[#allocation2 + $0x890] sm:$0xff]
    %v366 = vld [vmem:[#allocation2 + $0x898] sm:$0xff]
    %v367 = vld [vmem:[#allocation2 + $0x8a0] sm:$0xff]
    %v368 = vld [vmem:[#allocation2 + $0x8a8] sm:$0xff]
    %v369 = vld [vmem:[#allocation2 + $0x8b0] sm:$0xff]
    %v370 = vld [vmem:[#allocation2 + $0x8b8] sm:$0xff]
    %v371 = vld [vmem:[#allocation2 + $0x8c0] sm:$0xff]
    %v372 = vld [vmem:[#allocation2 + $0x8c8] sm:$0xff]
    %v373 = vld [vmem:[#allocation2 + $0x8d0] sm:$0xff]
    %v374 = vld [vmem:[#allocation2 + $0x8d8] sm:$0xff]
    %v375 = vld [vmem:[#allocation2 + $0x8e0] sm:$0xff]
    %v376 = vld [vmem:[#allocation2 + $0x8e8] sm:$0xff]
    %v377 = vld [vmem:[#allocation2 + $0x8f0] sm:$0xff]
    %v378 = vld [vmem:[#allocation2 + $0x8f8] sm:$0xff]
    %v379 = vld [vmem:[#allocation2 + $0x900] sm:$0xff]
    %v380 = vld [vmem:[#allocation2 + $0x908] sm:$0xff]
    %v381 = vld [vmem:[#allocation2 + $0x910] sm:$0xff]
    %v382 = vld [vmem:[#allocation2 + $0x918] sm:$0xff]
    %v383 = vld [vmem:[#allocation2 + $0x920] sm:$0xff]
    %v384 = vld [vmem:[#allocation2 + $0x928] sm:$0xff]
    %v385 = vld [vmem:[#allocation2 + $0x930] sm:$0xff]
    %v386 = vld [vmem:[#allocation2 + $0x938] sm:$0xff]
    %v387 = vld [vmem:[#allocation2 + $0x940] sm:$0xff]
    %v388 = vld [vmem:[#allocation2 + $0x948] sm:$0xff]
    %v389 = vld [vmem:[#allocation2 + $0x950] sm:$0xff]
    %v390 = vld [vmem:[#allocation2 + $0x958] sm:$0xff]
    %v391 = vld [vmem:[#allocation2 + $0x960] sm:$0xff]
    %v392 = vld [vmem:[#allocation2 + $0x968] sm:$0xff]
    %v393 = vld [vmem:[#allocation2 + $0x970] sm:$0xff]
    %v394 = vld [vmem:[#allocation2 + $0x978] sm:$0xff]
    %v395 = vld [vmem:[#allocation2 + $0x980] sm:$0xff]
    %v396 = vld [vmem:[#allocation2 + $0x988] sm:$0xff]
    %v397 = vld [vmem:[#allocation2 + $0x990] sm:$0xff]
    %v398 = vld [vmem:[#allocation2 + $0x998] sm:$0xff]
    %v399 = vld [vmem:[#allocation2 + $0x9a0] sm:$0xff]
    %v400 = vld [vmem:[#allocation2 + $0x9a8] sm:$0xff]
    %v401 = vld [vmem:[#allocation2 + $0x9b0] sm:$0xff]
    %v402 = vld [vmem:[#allocation2 + $0x9b8] sm:$0xff]
    %v403 = vld [vmem:[#allocation2 + $0x9c0] sm:$0xff]
    %v404 = vld [vmem:[#allocation2 + $0x9c8] sm:$0xff]
    %v405 = vld [vmem:[#allocation2 + $0x9d0] sm:$0xff]
    %v406 = vld [vmem:[#allocation2 + $0x9d8] sm:$0xff]
    %v407 = vld [vmem:[#allocation2 + $0x9e0] sm:$0xff]
    %v408 = vld [vmem:[#allocation2 + $0x9e8] sm:$0xff]
    %v409 = vld [vmem:[#allocation2 + $0x9f0] sm:$0xff]
    %v410 = vld [vmem:[#allocation2 + $0x9f8] sm:$0xff]
    %v411 = vld [vmem:[#allocation2 + $0xa00] sm:$0xff]
    %v412 = vld [vmem:[#allocation2 + $0xa08] sm:$0xff]
    %v413 = vld [vmem:[#allocation2 + $0xa10] sm:$0xff]
    %v414 = vld [vmem:[#allocation2 + $0xa18] sm:$0xff]
    %v415 = vld [vmem:[#allocation2 + $0xa20] sm:$0xff]
    %v416 = vld [vmem:[#allocation2 + $0xa28] sm:$0xff]
    %v417 = vld [vmem:[#allocation2 + $0xa30] sm:$0xff]
    %v418 = vld [vmem:[#allocation2 + $0xa38] sm:$0xff]
    %v419 = vld [vmem:[#allocation2 + $0xa40] sm:$0xff]
    %v420 = vld [vmem:[#allocation2 + $0xa48] sm:$0xff]
    %v421 = vld [vmem:[#allocation2 + $0xa50] sm:$0xff]
    %v422 = vld [vmem:[#allocation2 + $0xa58] sm:$0xff]
    %v423 = vld [vmem:[#allocation2 + $0xa60] sm:$0xff]
    %v424 = vld [vmem:[#allocation2 + $0xa68] sm:$0xff]
    %v425 = vld [vmem:[#allocation2 + $0xa70] sm:$0xff]
    %v426 = vld [vmem:[#allocation2 + $0xa78] sm:$0xff]
    %v427 = vld [vmem:[#allocation2 + $0xa80] sm:$0xff]
    %v428 = vld [vmem:[#allocation2 + $0xa88] sm:$0xff]
    %v429 = vld [vmem:[#allocation2 + $0xa90] sm:$0xff]
    %v430 = vld [vmem:[#allocation2 + $0xa98] sm:$0xff]
    %v431 = vld [vmem:[#allocation2 + $0xaa0] sm:$0xff]
    %v432 = vld [vmem:[#allocation2 + $0xaa8] sm:$0xff]
    %v433 = vld [vmem:[#allocation2 + $0xab0] sm:$0xff]
    %v434 = vld [vmem:[#allocation2 + $0xab8] sm:$0xff]
    %v435 = vld [vmem:[#allocation2 + $0xac0] sm:$0xff]
    %v436 = vld [vmem:[#allocation2 + $0xac8] sm:$0xff]
    %v437 = vld [vmem:[#allocation2 + $0xad0] sm:$0xff]
    %v438 = vld [vmem:[#allocation2 + $0xad8] sm:$0xff]
    %v439 = vld [vmem:[#allocation2 + $0xae0] sm:$0xff]
    %v440 = vld [vmem:[#allocation2 + $0xae8] sm:$0xff]
    %v441 = vld [vmem:[#allocation2 + $0xaf0] sm:$0xff]
    %v442 = vld [vmem:[#allocation2 + $0xaf8] sm:$0xff]
    %v443 = vld [vmem:[#allocation2 + $0xb00] sm:$0xff]
    %v444 = vld [vmem:[#allocation2 + $0xb08] sm:$0xff]
    %v445 = vld [vmem:[#allocation2 + $0xb10] sm:$0xff]
    %v446 = vld [vmem:[#allocation2 + $0xb18] sm:$0xff]
    %v447 = vld [vmem:[#allocation2 + $0xb20] sm:$0xff]
    %v448 = vld [vmem:[#allocation2 + $0xb28] sm:$0xff]
    %v449 = vld [vmem:[#allocation2 + $0xb30] sm:$0xff]
    %v450 = vld [vmem:[#allocation2 + $0xb38] sm:$0xff]
    %v451 = vld [vmem:[#allocation2 + $0xb40] sm:$0xff]
    %v452 = vld [vmem:[#allocation2 + $0xb48] sm:$0xff]
    %v453 = vld [vmem:[#allocation2 + $0xb50] sm:$0xff]
    %v454 = vld [vmem:[#allocation2 + $0xb58] sm:$0xff]
    %v455 = vld [vmem:[#allocation2 + $0xb60] sm:$0xff]
    %v456 = vld [vmem:[#allocation2 + $0xb68] sm:$0xff]
    %v457 = vld [vmem:[#allocation2 + $0xb70] sm:$0xff]
    %v458 = vld [vmem:[#allocation2 + $0xb78] sm:$0xff]
    %v459 = vld [vmem:[#allocation2 + $0xb80] sm:$0xff]
    %v460 = vld [vmem:[#allocation2 + $0xb88] sm:$0xff]
    %v461 = vld [vmem:[#allocation2 + $0xb90] sm:$0xff]
    %v462 = vld [vmem:[#allocation2 + $0xb98] sm:$0xff]
    %v463 = vld [vmem:[#allocation2 + $0xba0] sm:$0xff]
    %v464 = vld [vmem:[#allocation2 + $0xba8] sm:$0xff]
    %v465 = vld [vmem:[#allocation2 + $0xbb0] sm:$0xff]
    %v466 = vld [vmem:[#allocation2 + $0xbb8] sm:$0xff]
    %v467 = vld [vmem:[#allocation2 + $0xbc0] sm:$0xff]
    %v468 = vld [vmem:[#allocation2 + $0xbc8] sm:$0xff]
    %v469 = vld [vmem:[#allocation2 + $0xbd0] sm:$0xff]
    %v470 = vld [vmem:[#allocation2 + $0xbd8] sm:$0xff]
    %v471 = vld [vmem:[#allocation2 + $0xbe0] sm:$0xff]
    %v472 = vld [vmem:[#allocation2 + $0xbe8] sm:$0xff]
    %v473 = vld [vmem:[#allocation2 + $0xbf0] sm:$0xff]
    %v474 = vld [vmem:[#allocation2 + $0xbf8] sm:$0xff]
    %v475 = vld [vmem:[#allocation2 + $0xc00] sm:$0xff]
    %v476 = vld [vmem:[#allocation2 + $0xc08] sm:$0xff]
    %v477 = vld [vmem:[#allocation2 + $0xc10] sm:$0xff]
    %v478 = vld [vmem:[#allocation2 + $0xc18] sm:$0xff]
    %v479 = vld [vmem:[#allocation2 + $0xc20] sm:$0xff]
    %v480 = vld [vmem:[#allocation2 + $0xc28] sm:$0xff]
    %v481 = vld [vmem:[#allocation2 + $0xc30] sm:$0xff]
    %v482 = vld [vmem:[#allocation2 + $0xc38] sm:$0xff]
    %v483 = vld [vmem:[#allocation2 + $0xc40] sm:$0xff]
    %v484 = vld [vmem:[#allocation2 + $0xc48] sm:$0xff]
    %v485 = vld [vmem:[#allocation2 + $0xc50] sm:$0xff]
    %v486 = vld [vmem:[#allocation2 + $0xc58] sm:$0xff]
    %v487 = vld [vmem:[#allocation2 + $0xc60] sm:$0xff]
    %v488 = vld [vmem:[#allocation2 + $0xc68] sm:$0xff]
    %v489 = vld [vmem:[#allocation2 + $0xc70] sm:$0xff]
    %v490 = vld [vmem:[#allocation2 + $0xc78] sm:$0xff]
    %v491 = vld [vmem:[#allocation2 + $0xc80] sm:$0xff]
    %v492 = vld [vmem:[#allocation2 + $0xc88] sm:$0xff]
    %v493 = vld [vmem:[#allocation2 + $0xc90] sm:$0xff]
    %v494 = vld [vmem:[#allocation2 + $0xc98] sm:$0xff]
    %v495 = vld [vmem:[#allocation2 + $0xca0] sm:$0xff]
    %v496 = vld [vmem:[#allocation2 + $0xca8] sm:$0xff]
    %v497 = vld [vmem:[#allocation2 + $0xcb0] sm:$0xff]
    %v498 = vld [vmem:[#allocation2 + $0xcb8] sm:$0xff]
    %v499 = vld [vmem:[#allocation2 + $0xcc0] sm:$0xff]
    %v500 = vld [vmem:[#allocation2 + $0xcc8] sm:$0xff]
    %v501 = vld [vmem:[#allocation2 + $0xcd0] sm:$0xff]
    %v502 = vld [vmem:[#allocation2 + $0xcd8] sm:$0xff]
    %v503 = vld [vmem:[#allocation2 + $0xce0] sm:$0xff]
    %v504 = vld [vmem:[#allocation2 + $0xce8] sm:$0xff]
    %v505 = vld [vmem:[#allocation2 + $0xcf0] sm:$0xff]
    %v506 = vld [vmem:[#allocation2 + $0xcf8] sm:$0xff]
    %v507 = vld [vmem:[#allocation2 + $0xd00] sm:$0xff]
    %v508 = vld [vmem:[#allocation2 + $0xd08] sm:$0xff]
    %v509 = vld [vmem:[#allocation2 + $0xd10] sm:$0xff]
    %v510 = vld [vmem:[#allocation2 + $0xd18] sm:$0xff]
    %v511 = vld [vmem:[#allocation2 + $0xd20] sm:$0xff]
    %v512 = vld [vmem:[#allocation2 + $0xd28] sm:$0xff]
    %v513 = vld [vmem:[#allocation2 + $0xd30] sm:$0xff]
    %v514 = vld [vmem:[#allocation2 + $0xd38] sm:$0xff]
    %v515 = vld [vmem:[#allocation2 + $0xd40] sm:$0xff]
    %v516 = vld [vmem:[#allocation2 + $0xd48] sm:$0xff]
    %v517 = vld [vmem:[#allocation2 + $0xd50] sm:$0xff]
    %v518 = vld [vmem:[#allocation2 + $0xd58] sm:$0xff]
    %v519 = vld [vmem:[#allocation2 + $0xd60] sm:$0xff]
    %v520 = vld [vmem:[#allocation2 + $0xd68] sm:$0xff]
    %v521 = vld [vmem:[#allocation2 + $0xd70] sm:$0xff]
    %v522 = vld [vmem:[#allocation2 + $0xd78] sm:$0xff]
    %v523 = vld [vmem:[#allocation2 + $0xd80] sm:$0xff]
    %v524 = vld [vmem:[#allocation2 + $0xd88] sm:$0xff]
    %v525 = vld [vmem:[#allocation2 + $0xd90] sm:$0xff]
    %v526 = vld [vmem:[#allocation2 + $0xd98] sm:$0xff]
    %v527 = vld [vmem:[#allocation2 + $0xda0] sm:$0xff]
    %v528 = vld [vmem:[#allocation2 + $0xda8] sm:$0xff]
    %v529 = vld [vmem:[#allocation2 + $0xdb0] sm:$0xff]
    %v530 = vld [vmem:[#allocation2 + $0xdb8] sm:$0xff]
    %v531 = vld [vmem:[#allocation2 + $0xdc0] sm:$0xff]
    %v532 = vld [vmem:[#allocation2 + $0xdc8] sm:$0xff]
    %v533 = vld [vmem:[#allocation2 + $0xdd0] sm:$0xff]
    %v534 = vld [vmem:[#allocation2 + $0xdd8] sm:$0xff]
    %v535 = vld [vmem:[#allocation2 + $0xde0] sm:$0xff]
    %v536 = vld [vmem:[#allocation2 + $0xde8] sm:$0xff]
    %v537 = vld [vmem:[#allocation2 + $0xdf0] sm:$0xff]
    %v538 = vld [vmem:[#allocation2 + $0xdf8] sm:$0xff]
    %v539 = vld [vmem:[#allocation2 + $0xe00] sm:$0xff]
    %v540 = vld [vmem:[#allocation2 + $0xe08] sm:$0xff]
    %v541 = vld [vmem:[#allocation2 + $0xe10] sm:$0xff]
    %v542 = vld [vmem:[#allocation2 + $0xe18] sm:$0xff]
    %v543 = vld [vmem:[#allocation2 + $0xe20] sm:$0xff]
    %v544 = vld [vmem:[#allocation2 + $0xe28] sm:$0xff]
    %v545 = vld [vmem:[#allocation2 + $0xe30] sm:$0xff]
    %v546 = vld [vmem:[#allocation2 + $0xe38] sm:$0xff]
    %v547 = vld [vmem:[#allocation2 + $0xe40] sm:$0xff]
    %v548 = vld [vmem:[#allocation2 + $0xe48] sm:$0xff]
    %v549 = vld [vmem:[#allocation2 + $0xe50] sm:$0xff]
    %v550 = vld [vmem:[#allocation2 + $0xe58] sm:$0xff]
    %v551 = vld [vmem:[#allocation2 + $0xe60] sm:$0xff]
    %v552 = vld [vmem:[#allocation2 + $0xe68] sm:$0xff]
    %v553 = vld [vmem:[#allocation2 + $0xe70] sm:$0xff]
    %v554 = vld [vmem:[#allocation2 + $0xe78] sm:$0xff]
    %v555 = vld [vmem:[#allocation2 + $0xe80] sm:$0xff]
    %v556 = vld [vmem:[#allocation2 + $0xe88] sm:$0xff]
    %v557 = vld [vmem:[#allocation2 + $0xe90] sm:$0xff]
    %v558 = vld [vmem:[#allocation2 + $0xe98] sm:$0xff]
    %v559 = vld [vmem:[#allocation2 + $0xea0] sm:$0xff]
    %v560 = vld [vmem:[#allocation2 + $0xea8] sm:$0xff]
    %v561 = vld [vmem:[#allocation2 + $0xeb0] sm:$0xff]
    %v562 = vld [vmem:[#allocation2 + $0xeb8] sm:$0xff]
    %v563 = vld [vmem:[#allocation2 + $0xec0] sm:$0xff]
    %v564 = vld [vmem:[#allocation2 + $0xec8] sm:$0xff]
    %v565 = vld [vmem:[#allocation2 + $0xed0] sm:$0xff]
    %v566 = vld [vmem:[#allocation2 + $0xed8] sm:$0xff]
    %v567 = vld [vmem:[#allocation2 + $0xee0] sm:$0xff]
    %v568 = vld [vmem:[#allocation2 + $0xee8] sm:$0xff]
    %v569 = vld [vmem:[#allocation2 + $0xef0] sm:$0xff]
    %v570 = vld [vmem:[#allocation2 + $0xef8] sm:$0xff]
    %v571 = vld [vmem:[#allocation2 + $0xf00] sm:$0xff]
    %v572 = vld [vmem:[#allocation2 + $0xf08] sm:$0xff]
    %v573 = vld [vmem:[#allocation2 + $0xf10] sm:$0xff]
    %v574 = vld [vmem:[#allocation2 + $0xf18] sm:$0xff]
    %v575 = vld [vmem:[#allocation2 + $0xf20] sm:$0xff]
    %v576 = vld [vmem:[#allocation2 + $0xf28] sm:$0xff]
    %v577 = vld [vmem:[#allocation2 + $0xf30] sm:$0xff]
    %v578 = vld [vmem:[#allocation2 + $0xf38] sm:$0xff]
    %v579 = vld [vmem:[#allocation2 + $0xf40] sm:$0xff]
    %v580 = vld [vmem:[#allocation2 + $0xf48] sm:$0xff]
    %v581 = vld [vmem:[#allocation2 + $0xf50] sm:$0xff]
    %v582 = vld [vmem:[#allocation2 + $0xf58] sm:$0xff]
    %v583 = vld [vmem:[#allocation2 + $0xf60] sm:$0xff]
    %v584 = vld [vmem:[#allocation2 + $0xf68] sm:$0xff]
    %v585 = vld [vmem:[#allocation2 + $0xf70] sm:$0xff]
    %v586 = vld [vmem:[#allocation2 + $0xf78] sm:$0xff]
    %v587 = vld [vmem:[#allocation2 + $0xf80] sm:$0xff]
    %v588 = vld [vmem:[#allocation2 + $0xf88] sm:$0xff]
    %v589 = vld [vmem:[#allocation2 + $0xf90] sm:$0xff]
    %v590 = vld [vmem:[#allocation2 + $0xf98] sm:$0xff]
    %v591 = vld [vmem:[#allocation2 + $0xfa0] sm:$0xff]
    %v592 = vld [vmem:[#allocation2 + $0xfa8] sm:$0xff]
    %v593 = vld [vmem:[#allocation2 + $0xfb0] sm:$0xff]
    %v594 = vld [vmem:[#allocation2 + $0xfb8] sm:$0xff]
    %v595 = vld [vmem:[#allocation2 + $0xfc0] sm:$0xff]
    %v596 = vld [vmem:[#allocation2 + $0xfc8] sm:$0xff]
    %v597 = vld [vmem:[#allocation2 + $0xfd0] sm:$0xff]
    %v598 = vld [vmem:[#allocation2 + $0xfd8] sm:$0xff]
    %v599 = vld [vmem:[#allocation2 + $0xfe0] sm:$0xff]
    %v600 = vld [vmem:[#allocation2 + $0xfe8] sm:$0xff]
    %v601 = vld [vmem:[#allocation2 + $0xff0] sm:$0xff]
    %v602 = vld [vmem:[#allocation2 + $0xff8] sm:$0xff]
    %v603 = vld [vmem:[#allocation5] sm:$0xf]
    %v605 = vlaneseq
    %v606 = vshrl.u32 %v605, 7
    %v607 = vsub.s32 0, %v606
    %v608 = vrot.slane %v603, %v607
    %v609 = vlaneseq
    %v610 = vshrl.u32 %v609, 7
    %v611 = vsub.s32 1, %v610
    %v612 = vrot.slane %v603, %v611
    %v613 = vlaneseq
    %v614 = vshrl.u32 %v613, 7
    %v615 = vsub.s32 2, %v614
    %v616 = vrot.slane %v603, %v615
    %v617 = vlaneseq
    %v618 = vshrl.u32 %v617, 7
    %v619 = vsub.s32 3, %v618
    %v620 = vrot.slane %v603, %v619
    %v627 = vcombine.high %v89, %v89
    %v629 = vunpack.c.l.s4 1983009808
    %v630 = vunpack.c.0.s8 %v629
    %v631 = vlaneseq
    %v632 = vshrl.u32 %v631, 7
    %v633 = vsub.s32 %v630, %v632
    %v634 = vrot.slane %v89, %v633
    %v636 = vunpack.c.l.s4 1983009808
    %v637 = vunpack.c.0.s8 %v636
    %v638 = vlaneseq
    %v639 = vshrl.u32 %v638, 7
    %v640 = vsub.s32 %v637, %v639
    %v641 = vrot.slane %v627, %v640
    %v642 = vcombine.high %v634, %v634
    %v643 = vcombine.high %v641, %v641
    %v644 = vcombine.high %v90, %v90
    %v646 = vunpack.c.l.s4 1983009808
    %v647 = vunpack.c.0.s8 %v646
    %v648 = vlaneseq
    %v649 = vshrl.u32 %v648, 7
    %v650 = vsub.s32 %v647, %v649
    %v651 = vrot.slane %v90, %v650
    %v653 = vunpack.c.l.s4 1983009808
    %v654 = vunpack.c.0.s8 %v653
    %v655 = vlaneseq
    %v656 = vshrl.u32 %v655, 7
    %v657 = vsub.s32 %v654, %v656
    %v658 = vrot.slane %v644, %v657
    %v659 = vcombine.high %v651, %v651
    %v660 = vcombine.high %v658, %v658
    %669 = vmatprep.subr.mxu0 %v92
    %670 = vmatpush1.msra.mxu0 %v91
    %671 = vmatprep.subr.mxu0 %v96
    %672 = vmatpush1.msra.mxu0 %v95
    %673 = vmatprep.subr.mxu0 %v100
    %674 = vmatpush1.msra.mxu0 %v99
    %675 = vmatprep.subr.mxu0 %v104
    %676 = vmatpush1.msra.mxu0 %v103
    %677 = vmatprep.subr.mxu0 %v108
    %678 = vmatpush1.msra.mxu0 %v107
    %679 = vmatprep.subr.mxu0 %v112
    %680 = vmatpush1.msra.mxu0 %v111
    %681 = vmatprep.subr.mxu0 %v116
    %682 = vmatpush1.msra.mxu0 %v115
    %683 = vmatprep.subr.mxu0 %v120
    %684 = vmatpush1.msra.mxu0 %v119
    %685 = vmatprep.subr.mxu0 %v124
    %686 = vmatpush1.msra.mxu0 %v123
    %687 = vmatprep.subr.mxu0 %v128
    %688 = vmatpush1.msra.mxu0 %v127
    %689 = vmatprep.subr.mxu0 %v132
    %690 = vmatpush1.msra.mxu0 %v131
    %691 = vmatprep.subr.mxu0 %v136
    %692 = vmatpush1.msra.mxu0 %v135
    %693 = vmatprep.subr.mxu0 %v140
    %694 = vmatpush1.msra.mxu0 %v139
    %695 = vmatprep.subr.mxu0 %v144
    %696 = vmatpush1.msra.mxu0 %v143
    %697 = vmatprep.subr.mxu0 %v148
    %698 = vmatpush1.msra.mxu0 %v147
    %699 = vmatprep.subr.mxu0 %v152
    %700 = vmatpush1.msra.mxu0 %v151
    %701 = vmatprep.subr.mxu0 %v156
    %702 = vmatpush1.msra.mxu0 %v155
    %703 = vmatprep.subr.mxu0 %v160
    %704 = vmatpush1.msra.mxu0 %v159
    %705 = vmatprep.subr.mxu0 %v164
    %706 = vmatpush1.msra.mxu0 %v163
    %707 = vmatprep.subr.mxu0 %v168
    %708 = vmatpush1.msra.mxu0 %v167
    %709 = vmatprep.subr.mxu0 %v172
    %710 = vmatpush1.msra.mxu0 %v171
    %711 = vmatprep.subr.mxu0 %v176
    %712 = vmatpush1.msra.mxu0 %v175
    %713 = vmatprep.subr.mxu0 %v180
    %714 = vmatpush1.msra.mxu0 %v179
    %715 = vmatprep.subr.mxu0 %v184
    %716 = vmatpush1.msra.mxu0 %v183
    %717 = vmatprep.subr.mxu0 %v188
    %718 = vmatpush1.msra.mxu0 %v187
    %719 = vmatprep.subr.mxu0 %v192
    %720 = vmatpush1.msra.mxu0 %v191
    %721 = vmatprep.subr.mxu0 %v196
    %722 = vmatpush1.msra.mxu0 %v195
    %723 = vmatprep.subr.mxu0 %v200
    %724 = vmatpush1.msra.mxu0 %v199
    %725 = vmatprep.subr.mxu0 %v204
    %726 = vmatpush1.msra.mxu0 %v203
    %727 = vmatprep.subr.mxu0 %v208
    %728 = vmatpush1.msra.mxu0 %v207
    %729 = vmatprep.subr.mxu0 %v212
    %730 = vmatpush1.msra.mxu0 %v211
    %731 = vmatprep.subr.mxu0 %v216
    %732 = vmatpush1.msra.mxu0 %v215
    %733 = vmatprep.mubr.f32.mxu0 %v642
    %734 = vmatmul.mubr.f32.gmra.mrb[0].mxu0 %v634
    %v735 = vpop.f32.mrb[0].mxu0
    %v736 = vadd.f32 %v608, %v735
    %v737 = vpop.f32.mrb[0].mxu0
    %v738 = vadd.f32 %v612, %v737
    %739 = vdwg.mxu0
    %740 = vmatprep.subr.mxu0 %v220
    %741 = vmatpush1.msra.mxu0 %v219
    %742 = vmatprep.subr.mxu0 %v224
    %743 = vmatpush1.msra.mxu0 %v223
    %744 = vmatprep.subr.mxu0 %v228
    %745 = vmatpush1.msra.mxu0 %v227
    %746 = vmatprep.subr.mxu0 %v232
    %747 = vmatpush1.msra.mxu0 %v231
    %748 = vmatprep.subr.mxu0 %v236
    %749 = vmatpush1.msra.mxu0 %v235
    %750 = vmatprep.subr.mxu0 %v240
    %751 = vmatpush1.msra.mxu0 %v239
    %752 = vmatprep.subr.mxu0 %v244
    %753 = vmatpush1.msra.mxu0 %v243
    %754 = vmatprep.subr.mxu0 %v248
    %755 = vmatpush1.msra.mxu0 %v247
    %756 = vmatprep.subr.mxu0 %v252
    %757 = vmatpush1.msra.mxu0 %v251
    %758 = vmatprep.subr.mxu0 %v256
    %759 = vmatpush1.msra.mxu0 %v255
    %760 = vmatprep.subr.mxu0 %v260
    %761 = vmatpush1.msra.mxu0 %v259
    %762 = vmatprep.subr.mxu0 %v264
    %763 = vmatpush1.msra.mxu0 %v263
    %764 = vmatprep.subr.mxu0 %v268
    %765 = vmatpush1.msra.mxu0 %v267
    %766 = vmatprep.subr.mxu0 %v272
    %767 = vmatpush1.msra.mxu0 %v271
    %768 = vmatprep.subr.mxu0 %v276
    %769 = vmatpush1.msra.mxu0 %v275
    %770 = vmatprep.subr.mxu0 %v280
    %771 = vmatpush1.msra.mxu0 %v279
    %772 = vmatprep.subr.mxu0 %v284
    %773 = vmatpush1.msra.mxu0 %v283
    %774 = vmatprep.subr.mxu0 %v288
    %775 = vmatpush1.msra.mxu0 %v287
    %776 = vmatprep.subr.mxu0 %v292
    %777 = vmatpush1.msra.mxu0 %v291
    %778 = vmatprep.subr.mxu0 %v296
    %779 = vmatpush1.msra.mxu0 %v295
    %780 = vmatprep.subr.mxu0 %v300
    %781 = vmatpush1.msra.mxu0 %v299
    %782 = vmatprep.subr.mxu0 %v304
    %783 = vmatpush1.msra.mxu0 %v303
    %784 = vmatprep.subr.mxu0 %v308
    %785 = vmatpush1.msra.mxu0 %v307
    %786 = vmatprep.subr.mxu0 %v312
    %787 = vmatpush1.msra.mxu0 %v311
    %788 = vmatprep.subr.mxu0 %v316
    %789 = vmatpush1.msra.mxu0 %v315
    %790 = vmatprep.subr.mxu0 %v320
    %791 = vmatpush1.msra.mxu0 %v319
    %792 = vmatprep.subr.mxu0 %v324
    %793 = vmatpush1.msra.mxu0 %v323
    %794 = vmatprep.subr.mxu0 %v328
    %795 = vmatpush1.msra.mxu0 %v327
    %796 = vmatprep.subr.mxu0 %v332
    %797 = vmatpush1.msra.mxu0 %v331
    %798 = vmatprep.subr.mxu0 %v336
    %799 = vmatpush1.msra.mxu0 %v335
    %800 = vmatprep.subr.mxu0 %v340
    %801 = vmatpush1.msra.mxu0 %v339
    %802 = vmatprep.subr.mxu0 %v344
    %803 = vmatpush1.msra.mxu0 %v343
    %804 = vmatprep.mubr.f32.mxu0 %v643
    %805 = vmatmul.mubr.f32.gmra.mrb[0].mxu0 %v641
    %v806 = vpop.f32.mrb[0].mxu0
    %v807 = vadd.f32 %v736, %v806
    %v808 = vpop.f32.mrb[0].mxu0
    %v809 = vadd.f32 %v738, %v808
    %810 = vdwg.mxu0
    %811 = vmatprep.subr.mxu0 %v348
    %812 = vmatpush1.msra.mxu0 %v347
    %813 = vmatprep.subr.mxu0 %v352
    %814 = vmatpush1.msra.mxu0 %v351
    %815 = vmatprep.subr.mxu0 %v356
    %816 = vmatpush1.msra.mxu0 %v355
    %817 = vmatprep.subr.mxu0 %v360
    %818 = vmatpush1.msra.mxu0 %v359
    %819 = vmatprep.subr.mxu0 %v364
    %820 = vmatpush1.msra.mxu0 %v363
    %821 = vmatprep.subr.mxu0 %v368
    %822 = vmatpush1.msra.mxu0 %v367
    %823 = vmatprep.subr.mxu0 %v372
    %824 = vmatpush1.msra.mxu0 %v371
    %825 = vmatprep.subr.mxu0 %v376
    %826 = vmatpush1.msra.mxu0 %v375
    %827 = vmatprep.subr.mxu0 %v380
    %828 = vmatpush1.msra.mxu0 %v379
    %829 = vmatprep.subr.mxu0 %v384
    %830 = vmatpush1.msra.mxu0 %v383
    %831 = vmatprep.subr.mxu0 %v388
    %832 = vmatpush1.msra.mxu0 %v387
    %833 = vmatprep.subr.mxu0 %v392
    %834 = vmatpush1.msra.mxu0 %v391
    %835 = vmatprep.subr.mxu0 %v396
    %836 = vmatpush1.msra.mxu0 %v395
    %837 = vmatprep.subr.mxu0 %v400
    %838 = vmatpush1.msra.mxu0 %v399
    %839 = vmatprep.subr.mxu0 %v404
    %840 = vmatpush1.msra.mxu0 %v403
    %841 = vmatprep.subr.mxu0 %v408
    %842 = vmatpush1.msra.mxu0 %v407
    %843 = vmatprep.subr.mxu0 %v412
    %844 = vmatpush1.msra.mxu0 %v411
    %845 = vmatprep.subr.mxu0 %v416
    %846 = vmatpush1.msra.mxu0 %v415
    %847 = vmatprep.subr.mxu0 %v420
    %848 = vmatpush1.msra.mxu0 %v419
    %849 = vmatprep.subr.mxu0 %v424
    %850 = vmatpush1.msra.mxu0 %v423
    %851 = vmatprep.subr.mxu0 %v428
    %852 = vmatpush1.msra.mxu0 %v427
    %853 = vmatprep.subr.mxu0 %v432
    %854 = vmatpush1.msra.mxu0 %v431
    %855 = vmatprep.subr.mxu0 %v436
    %856 = vmatpush1.msra.mxu0 %v435
    %857 = vmatprep.subr.mxu0 %v440
    %858 = vmatpush1.msra.mxu0 %v439
    %859 = vmatprep.subr.mxu0 %v444
    %860 = vmatpush1.msra.mxu0 %v443
    %861 = vmatprep.subr.mxu0 %v448
    %862 = vmatpush1.msra.mxu0 %v447
    %863 = vmatprep.subr.mxu0 %v452
    %864 = vmatpush1.msra.mxu0 %v451
    %865 = vmatprep.subr.mxu0 %v456
    %866 = vmatpush1.msra.mxu0 %v455
    %867 = vmatprep.subr.mxu0 %v460
    %868 = vmatpush1.msra.mxu0 %v459
    %869 = vmatprep.subr.mxu0 %v464
    %870 = vmatpush1.msra.mxu0 %v463
    %871 = vmatprep.subr.mxu0 %v468
    %872 = vmatpush1.msra.mxu0 %v467
    %873 = vmatprep.subr.mxu0 %v472
    %874 = vmatpush1.msra.mxu0 %v471
    %875 = vmatprep.mubr.f32.mxu0 %v659
    %876 = vmatmul.mubr.f32.gmra.mrb[0].mxu0 %v651
    %v877 = vpop.f32.mrb[0].mxu0
    %v878 = vadd.f32 %v807, %v877
    %v879 = vpop.f32.mrb[0].mxu0
    %v880 = vadd.f32 %v809, %v879
    %881 = vdwg.mxu0
    %882 = vmatprep.subr.mxu0 %v476
    %883 = vmatpush1.msra.mxu0 %v475
    %884 = vmatprep.subr.mxu0 %v480
    %885 = vmatpush1.msra.mxu0 %v479
    %886 = vmatprep.subr.mxu0 %v484
    %887 = vmatpush1.msra.mxu0 %v483
    %888 = vmatprep.subr.mxu0 %v488
    %889 = vmatpush1.msra.mxu0 %v487
    %890 = vmatprep.subr.mxu0 %v492
    %891 = vmatpush1.msra.mxu0 %v491
    %892 = vmatprep.subr.mxu0 %v496
    %893 = vmatpush1.msra.mxu0 %v495
    %894 = vmatprep.subr.mxu0 %v500
    %895 = vmatpush1.msra.mxu0 %v499
    %896 = vmatprep.subr.mxu0 %v504
    %897 = vmatpush1.msra.mxu0 %v503
    %898 = vmatprep.subr.mxu0 %v508
    %899 = vmatpush1.msra.mxu0 %v507
    %900 = vmatprep.subr.mxu0 %v512
    %901 = vmatpush1.msra.mxu0 %v511
    %902 = vmatprep.subr.mxu0 %v516
    %903 = vmatpush1.msra.mxu0 %v515
    %904 = vmatprep.subr.mxu0 %v520
    %905 = vmatpush1.msra.mxu0 %v519
    %906 = vmatprep.subr.mxu0 %v524
    %907 = vmatpush1.msra.mxu0 %v523
    %908 = vmatprep.subr.mxu0 %v528
    %909 = vmatpush1.msra.mxu0 %v527
    %910 = vmatprep.subr.mxu0 %v532
    %911 = vmatpush1.msra.mxu0 %v531
    %912 = vmatprep.subr.mxu0 %v536
    %913 = vmatpush1.msra.mxu0 %v535
    %914 = vmatprep.subr.mxu0 %v540
    %915 = vmatpush1.msra.mxu0 %v539
    %916 = vmatprep.subr.mxu0 %v544
    %917 = vmatpush1.msra.mxu0 %v543
    %918 = vmatprep.subr.mxu0 %v548
    %919 = vmatpush1.msra.mxu0 %v547
    %920 = vmatprep.subr.mxu0 %v552
    %921 = vmatpush1.msra.mxu0 %v551
    %922 = vmatprep.subr.mxu0 %v556
    %923 = vmatpush1.msra.mxu0 %v555
    %924 = vmatprep.subr.mxu0 %v560
    %925 = vmatpush1.msra.mxu0 %v559
    %926 = vmatprep.subr.mxu0 %v564
    %927 = vmatpush1.msra.mxu0 %v563
    %928 = vmatprep.subr.mxu0 %v568
    %929 = vmatpush1.msra.mxu0 %v567
    %930 = vmatprep.subr.mxu0 %v572
    %931 = vmatpush1.msra.mxu0 %v571
    %932 = vmatprep.subr.mxu0 %v576
    %933 = vmatpush1.msra.mxu0 %v575
    %934 = vmatprep.subr.mxu0 %v580
    %935 = vmatpush1.msra.mxu0 %v579
    %936 = vmatprep.subr.mxu0 %v584
    %937 = vmatpush1.msra.mxu0 %v583
    %938 = vmatprep.subr.mxu0 %v588
    %939 = vmatpush1.msra.mxu0 %v587
    %940 = vmatprep.subr.mxu0 %v592
    %941 = vmatpush1.msra.mxu0 %v591
    %942 = vmatprep.subr.mxu0 %v596
    %943 = vmatpush1.msra.mxu0 %v595
    %944 = vmatprep.subr.mxu0 %v600
    %945 = vmatpush1.msra.mxu0 %v599
    %946 = vmatprep.mubr.f32.mxu0 %v660
    %947 = vmatmul.mubr.f32.gmra.mrb[0].mxu0 %v658
    %v948 = vpop.f32.mrb[0].mxu0
    %v949 = vadd.f32 %v878, %v948
    %v950 = vpop.f32.mrb[0].mxu0
    %v951 = vadd.f32 %v880, %v950
    %952 = vdwg.mxu0
    %953 = vmatprep.subr.mxu0 %v94
    %954 = vmatpush1.msra.mxu0 %v93
    %955 = vmatprep.subr.mxu0 %v98
    %956 = vmatpush1.msra.mxu0 %v97
    %957 = vmatprep.subr.mxu0 %v102
    %958 = vmatpush1.msra.mxu0 %v101
    %959 = vmatprep.subr.mxu0 %v106
    %960 = vmatpush1.msra.mxu0 %v105
    %961 = vmatprep.subr.mxu0 %v110
    %962 = vmatpush1.msra.mxu0 %v109
    %963 = vmatprep.subr.mxu0 %v114
    %964 = vmatpush1.msra.mxu0 %v113
    %965 = vmatprep.subr.mxu0 %v118
    %966 = vmatpush1.msra.mxu0 %v117
    %967 = vmatprep.subr.mxu0 %v122
    %968 = vmatpush1.msra.mxu0 %v121
    %969 = vmatprep.subr.mxu0 %v126
    %970 = vmatpush1.msra.mxu0 %v125
    %971 = vmatprep.subr.mxu0 %v130
    %972 = vmatpush1.msra.mxu0 %v129
    %973 = vmatprep.subr.mxu0 %v134
    %974 = vmatpush1.msra.mxu0 %v133
    %975 = vmatprep.subr.mxu0 %v138
    %976 = vmatpush1.msra.mxu0 %v137
    %977 = vmatprep.subr.mxu0 %v142
    %978 = vmatpush1.msra.mxu0 %v141
    %979 = vmatprep.subr.mxu0 %v146
    %980 = vmatpush1.msra.mxu0 %v145
    %981 = vmatprep.subr.mxu0 %v150
    %982 = vmatpush1.msra.mxu0 %v149
    %983 = vmatprep.subr.mxu0 %v154
    %984 = vmatpush1.msra.mxu0 %v153
    %985 = vmatprep.subr.mxu0 %v158
    %986 = vmatpush1.msra.mxu0 %v157
    %987 = vmatprep.subr.mxu0 %v162
    %988 = vmatpush1.msra.mxu0 %v161
    %989 = vmatprep.subr.mxu0 %v166
    %990 = vmatpush1.msra.mxu0 %v165
    %991 = vmatprep.subr.mxu0 %v170
    %992 = vmatpush1.msra.mxu0 %v169
    %993 = vmatprep.subr.mxu0 %v174
    %994 = vmatpush1.msra.mxu0 %v173
    %995 = vmatprep.subr.mxu0 %v178
    %996 = vmatpush1.msra.mxu0 %v177
    %997 = vmatprep.subr.mxu0 %v182
    %998 = vmatpush1.msra.mxu0 %v181
    %999 = vmatprep.subr.mxu0 %v186
    %1000 = vmatpush1.msra.mxu0 %v185
    %1001 = vmatprep.subr.mxu0 %v190
    %1002 = vmatpush1.msra.mxu0 %v189
    %1003 = vmatprep.subr.mxu0 %v194
    %1004 = vmatpush1.msra.mxu0 %v193
    %1005 = vmatprep.subr.mxu0 %v198
    %1006 = vmatpush1.msra.mxu0 %v197
    %1007 = vmatprep.subr.mxu0 %v202
    %1008 = vmatpush1.msra.mxu0 %v201
    %1009 = vmatprep.subr.mxu0 %v206
    %1010 = vmatpush1.msra.mxu0 %v205
    %1011 = vmatprep.subr.mxu0 %v210
    %1012 = vmatpush1.msra.mxu0 %v209
    %1013 = vmatprep.subr.mxu0 %v214
    %1014 = vmatpush1.msra.mxu0 %v213
    %1015 = vmatprep.subr.mxu0 %v218
    %1016 = vmatpush1.msra.mxu0 %v217
    %1017 = vmatprep.mubr.f32.mxu0 %v642
    %1018 = vmatmul.mubr.f32.gmra.mrb[0].mxu0 %v634
    %v1019 = vpop.f32.mrb[0].mxu0
    %v1020 = vadd.f32 %v616, %v1019
    %v1021 = vpop.f32.mrb[0].mxu0
    %v1022 = vadd.f32 %v620, %v1021
    %1023 = vdwg.mxu0
    %1024 = vmatprep.subr.mxu0 %v222
    %1025 = vmatpush1.msra.mxu0 %v221
    %1026 = vmatprep.subr.mxu0 %v226
    %1027 = vmatpush1.msra.mxu0 %v225
    %1028 = vmatprep.subr.mxu0 %v230
    %1029 = vmatpush1.msra.mxu0 %v229
    %1030 = vmatprep.subr.mxu0 %v234
    %1031 = vmatpush1.msra.mxu0 %v233
    %1032 = vmatprep.subr.mxu0 %v238
    %1033 = vmatpush1.msra.mxu0 %v237
    %1034 = vmatprep.subr.mxu0 %v242
    %1035 = vmatpush1.msra.mxu0 %v241
    %1036 = vmatprep.subr.mxu0 %v246
    %1037 = vmatpush1.msra.mxu0 %v245
    %1038 = vmatprep.subr.mxu0 %v250
    %1039 = vmatpush1.msra.mxu0 %v249
    %1040 = vmatprep.subr.mxu0 %v254
    %1041 = vmatpush1.msra.mxu0 %v253
    %1042 = vmatprep.subr.mxu0 %v258
    %1043 = vmatpush1.msra.mxu0 %v257
    %1044 = vmatprep.subr.mxu0 %v262
    %1045 = vmatpush1.msra.mxu0 %v261
    %1046 = vmatprep.subr.mxu0 %v266
    %1047 = vmatpush1.msra.mxu0 %v265
    %1048 = vmatprep.subr.mxu0 %v270
    %1049 = vmatpush1.msra.mxu0 %v269
    %1050 = vmatprep.subr.mxu0 %v274
    %1051 = vmatpush1.msra.mxu0 %v273
    %1052 = vmatprep.subr.mxu0 %v278
    %1053 = vmatpush1.msra.mxu0 %v277
    %1054 = vmatprep.subr.mxu0 %v282
    %1055 = vmatpush1.msra.mxu0 %v281
    %1056 = vmatprep.subr.mxu0 %v286
    %1057 = vmatpush1.msra.mxu0 %v285
    %1058 = vmatprep.subr.mxu0 %v290
    %1059 = vmatpush1.msra.mxu0 %v289
    %1060 = vmatprep.subr.mxu0 %v294
    %1061 = vmatpush1.msra.mxu0 %v293
    %1062 = vmatprep.subr.mxu0 %v298
    %1063 = vmatpush1.msra.mxu0 %v297
    %1064 = vmatprep.subr.mxu0 %v302
    %1065 = vmatpush1.msra.mxu0 %v301
    %1066 = vmatprep.subr.mxu0 %v306
    %1067 = vmatpush1.msra.mxu0 %v305
    %1068 = vmatprep.subr.mxu0 %v310
    %1069 = vmatpush1.msra.mxu0 %v309
    %1070 = vmatprep.subr.mxu0 %v314
    %1071 = vmatpush1.msra.mxu0 %v313
    %1072 = vmatprep.subr.mxu0 %v318
    %1073 = vmatpush1.msra.mxu0 %v317
    %1074 = vmatprep.subr.mxu0 %v322
    %1075 = vmatpush1.msra.mxu0 %v321
    %1076 = vmatprep.subr.mxu0 %v326
    %1077 = vmatpush1.msra.mxu0 %v325
    %1078 = vmatprep.subr.mxu0 %v330
    %1079 = vmatpush1.msra.mxu0 %v329
    %1080 = vmatprep.subr.mxu0 %v334
    %1081 = vmatpush1.msra.mxu0 %v333
    %1082 = vmatprep.subr.mxu0 %v338
    %1083 = vmatpush1.msra.mxu0 %v337
    %1084 = vmatprep.subr.mxu0 %v342
    %1085 = vmatpush1.msra.mxu0 %v341
    %1086 = vmatprep.subr.mxu0 %v346
    %1087 = vmatpush1.msra.mxu0 %v345
    %1088 = vmatprep.mubr.f32.mxu0 %v643
    %1089 = vmatmul.mubr.f32.gmra.mrb[0].mxu0 %v641
    %v1090 = vpop.f32.mrb[0].mxu0
    %v1091 = vadd.f32 %v1020, %v1090
    %v1092 = vpop.f32.mrb[0].mxu0
    %v1093 = vadd.f32 %v1022, %v1092
    %1094 = vdwg.mxu0
    %1095 = vmatprep.subr.mxu0 %v350
    %1096 = vmatpush1.msra.mxu0 %v349
    %1097 = vmatprep.subr.mxu0 %v354
    %1098 = vmatpush1.msra.mxu0 %v353
    %1099 = vmatprep.subr.mxu0 %v358
    %1100 = vmatpush1.msra.mxu0 %v357
    %1101 = vmatprep.subr.mxu0 %v362
    %1102 = vmatpush1.msra.mxu0 %v361
    %1103 = vmatprep.subr.mxu0 %v366
    %1104 = vmatpush1.msra.mxu0 %v365
    %1105 = vmatprep.subr.mxu0 %v370
    %1106 = vmatpush1.msra.mxu0 %v369
    %1107 = vmatprep.subr.mxu0 %v374
    %1108 = vmatpush1.msra.mxu0 %v373
    %1109 = vmatprep.subr.mxu0 %v378
    %1110 = vmatpush1.msra.mxu0 %v377
    %1111 = vmatprep.subr.mxu0 %v382
    %1112 = vmatpush1.msra.mxu0 %v381
    %1113 = vmatprep.subr.mxu0 %v386
    %1114 = vmatpush1.msra.mxu0 %v385
    %1115 = vmatprep.subr.mxu0 %v390
    %1116 = vmatpush1.msra.mxu0 %v389
    %1117 = vmatprep.subr.mxu0 %v394
    %1118 = vmatpush1.msra.mxu0 %v393
    %1119 = vmatprep.subr.mxu0 %v398
    %1120 = vmatpush1.msra.mxu0 %v397
    %1121 = vmatprep.subr.mxu0 %v402
    %1122 = vmatpush1.msra.mxu0 %v401
    %1123 = vmatprep.subr.mxu0 %v406
    %1124 = vmatpush1.msra.mxu0 %v405
    %1125 = vmatprep.subr.mxu0 %v410
    %1126 = vmatpush1.msra.mxu0 %v409
    %1127 = vmatprep.subr.mxu0 %v414
    %1128 = vmatpush1.msra.mxu0 %v413
    %1129 = vmatprep.subr.mxu0 %v418
    %1130 = vmatpush1.msra.mxu0 %v417
    %1131 = vmatprep.subr.mxu0 %v422
    %1132 = vmatpush1.msra.mxu0 %v421
    %1133 = vmatprep.subr.mxu0 %v426
    %1134 = vmatpush1.msra.mxu0 %v425
    %1135 = vmatprep.subr.mxu0 %v430
    %1136 = vmatpush1.msra.mxu0 %v429
    %1137 = vmatprep.subr.mxu0 %v434
    %1138 = vmatpush1.msra.mxu0 %v433
    %1139 = vmatprep.subr.mxu0 %v438
    %1140 = vmatpush1.msra.mxu0 %v437
    %1141 = vmatprep.subr.mxu0 %v442
    %1142 = vmatpush1.msra.mxu0 %v441
    %1143 = vmatprep.subr.mxu0 %v446
    %1144 = vmatpush1.msra.mxu0 %v445
    %1145 = vmatprep.subr.mxu0 %v450
    %1146 = vmatpush1.msra.mxu0 %v449
    %1147 = vmatprep.subr.mxu0 %v454
    %1148 = vmatpush1.msra.mxu0 %v453
    %1149 = vmatprep.subr.mxu0 %v458
    %1150 = vmatpush1.msra.mxu0 %v457
    %1151 = vmatprep.subr.mxu0 %v462
    %1152 = vmatpush1.msra.mxu0 %v461
    %1153 = vmatprep.subr.mxu0 %v466
    %1154 = vmatpush1.msra.mxu0 %v465
    %1155 = vmatprep.subr.mxu0 %v470
    %1156 = vmatpush1.msra.mxu0 %v469
    %1157 = vmatprep.subr.mxu0 %v474
    %1158 = vmatpush1.msra.mxu0 %v473
    %1159 = vmatprep.mubr.f32.mxu0 %v659
    %1160 = vmatmul.mubr.f32.gmra.mrb[0].mxu0 %v651
    %v1161 = vpop.f32.mrb[0].mxu0
    %v1162 = vadd.f32 %v1091, %v1161
    %v1163 = vpop.f32.mrb[0].mxu0
    %v1164 = vadd.f32 %v1093, %v1163
    %1165 = vdwg.mxu0
    %1166 = vmatprep.subr.mxu0 %v478
    %1167 = vmatpush1.msra.mxu0 %v477
    %1168 = vmatprep.subr.mxu0 %v482
    %1169 = vmatpush1.msra.mxu0 %v481
    %1170 = vmatprep.subr.mxu0 %v486
    %1171 = vmatpush1.msra.mxu0 %v485
    %1172 = vmatprep.subr.mxu0 %v490
    %1173 = vmatpush1.msra.mxu0 %v489
    %1174 = vmatprep.subr.mxu0 %v494
    %1175 = vmatpush1.msra.mxu0 %v493
    %1176 = vmatprep.subr.mxu0 %v498
    %1177 = vmatpush1.msra.mxu0 %v497
    %1178 = vmatprep.subr.mxu0 %v502
    %1179 = vmatpush1.msra.mxu0 %v501
    %1180 = vmatprep.subr.mxu0 %v506
    %1181 = vmatpush1.msra.mxu0 %v505
    %1182 = vmatprep.subr.mxu0 %v510
    %1183 = vmatpush1.msra.mxu0 %v509
    %1184 = vmatprep.subr.mxu0 %v514
    %1185 = vmatpush1.msra.mxu0 %v513
    %1186 = vmatprep.subr.mxu0 %v518
    %1187 = vmatpush1.msra.mxu0 %v517
    %1188 = vmatprep.subr.mxu0 %v522
    %1189 = vmatpush1.msra.mxu0 %v521
    %1190 = vmatprep.subr.mxu0 %v526
    %1191 = vmatpush1.msra.mxu0 %v525
    %1192 = vmatprep.subr.mxu0 %v530
    %1193 = vmatpush1.msra.mxu0 %v529
    %1194 = vmatprep.subr.mxu0 %v534
    %1195 = vmatpush1.msra.mxu0 %v533
    %1196 = vmatprep.subr.mxu0 %v538
    %1197 = vmatpush1.msra.mxu0 %v537
    %1198 = vmatprep.subr.mxu0 %v542
    %1199 = vmatpush1.msra.mxu0 %v541
    %1200 = vmatprep.subr.mxu0 %v546
    %1201 = vmatpush1.msra.mxu0 %v545
    %1202 = vmatprep.subr.mxu0 %v550
    %1203 = vmatpush1.msra.mxu0 %v549
    %1204 = vmatprep.subr.mxu0 %v554
    %1205 = vmatpush1.msra.mxu0 %v553
    %1206 = vmatprep.subr.mxu0 %v558
    %1207 = vmatpush1.msra.mxu0 %v557
    %1208 = vmatprep.subr.mxu0 %v562
    %1209 = vmatpush1.msra.mxu0 %v561
    %1210 = vmatprep.subr.mxu0 %v566
    %1211 = vmatpush1.msra.mxu0 %v565
    %1212 = vmatprep.subr.mxu0 %v570
    %1213 = vmatpush1.msra.mxu0 %v569
    %1214 = vmatprep.subr.mxu0 %v574
    %1215 = vmatpush1.msra.mxu0 %v573
    %1216 = vmatprep.subr.mxu0 %v578
    %1217 = vmatpush1.msra.mxu0 %v577
    %1218 = vmatprep.subr.mxu0 %v582
    %1219 = vmatpush1.msra.mxu0 %v581
    %1220 = vmatprep.subr.mxu0 %v586
    %1221 = vmatpush1.msra.mxu0 %v585
    %1222 = vmatprep.subr.mxu0 %v590
    %1223 = vmatpush1.msra.mxu0 %v589
    %1224 = vmatprep.subr.mxu0 %v594
    %1225 = vmatpush1.msra.mxu0 %v593
    %1226 = vmatprep.subr.mxu0 %v598
    %1227 = vmatpush1.msra.mxu0 %v597
    %1228 = vmatprep.subr.mxu0 %v602
    %1229 = vmatpush1.msra.mxu0 %v601
    %1230 = vmatprep.mubr.f32.mxu0 %v660
    %1231 = vmatmul.mubr.f32.gmra.mrb[0].mxu0 %v658
    %v1232 = vpop.f32.mrb[0].mxu0
    %v1233 = vadd.f32 %v1162, %v1232
    %v1234 = vpop.f32.mrb[0].mxu0
    %v1235 = vadd.f32 %v1164, %v1234
    %1236 = vdwg.mxu0
    %v1237 = vmax.f32 %v949, 0.0
    %v1238 = vmax.f32 %v951, 0.0
    %v1239 = vmax.f32 %v1233, 0.0
    %v1240 = vmax.f32 %v1235, 0.0
    %v1241 = vld [vmem:[#allocation7] sm:$0xff]
    %v1242 = vld [vmem:[#allocation7 + $0x8] sm:$0xff]
    %v1243 = vld [vmem:[#allocation7 + $0x10] sm:$0xff]
    %v1244 = vld [vmem:[#allocation7 + $0x18] sm:$0xff]
    %v1245 = vld [vmem:[#allocation7 + $0x20] sm:$0xff]
    %v1246 = vld [vmem:[#allocation7 + $0x28] sm:$0xff]
    %v1247 = vld [vmem:[#allocation7 + $0x30] sm:$0xff]
    %v1248 = vld [vmem:[#allocation7 + $0x38] sm:$0xff]
    %v1249 = vld [vmem:[#allocation7 + $0x40] sm:$0xff]
    %v1250 = vld [vmem:[#allocation7 + $0x48] sm:$0xff]
    %v1251 = vld [vmem:[#allocation7 + $0x50] sm:$0xff]
    %v1252 = vld [vmem:[#allocation7 + $0x58] sm:$0xff]
    %v1253 = vld [vmem:[#allocation7 + $0x60] sm:$0xff]
    %v1254 = vld [vmem:[#allocation7 + $0x68] sm:$0xff]
    %v1255 = vld [vmem:[#allocation7 + $0x70] sm:$0xff]
    %v1256 = vld [vmem:[#allocation7 + $0x78] sm:$0xff]
    %v1257 = vld [vmem:[#allocation7 + $0x80] sm:$0xff]
    %v1258 = vld [vmem:[#allocation7 + $0x88] sm:$0xff]
    %v1259 = vld [vmem:[#allocation7 + $0x90] sm:$0xff]
    %v1260 = vld [vmem:[#allocation7 + $0x98] sm:$0xff]
    %v1261 = vld [vmem:[#allocation7 + $0xa0] sm:$0xff]
    %v1262 = vld [vmem:[#allocation7 + $0xa8] sm:$0xff]
    %v1263 = vld [vmem:[#allocation7 + $0xb0] sm:$0xff]
    %v1264 = vld [vmem:[#allocation7 + $0xb8] sm:$0xff]
    %v1265 = vld [vmem:[#allocation7 + $0xc0] sm:$0xff]
    %v1266 = vld [vmem:[#allocation7 + $0xc8] sm:$0xff]
    %v1267 = vld [vmem:[#allocation7 + $0xd0] sm:$0xff]
    %v1268 = vld [vmem:[#allocation7 + $0xd8] sm:$0xff]
    %v1269 = vld [vmem:[#allocation7 + $0xe0] sm:$0xff]
    %v1270 = vld [vmem:[#allocation7 + $0xe8] sm:$0xff]
    %v1271 = vld [vmem:[#allocation7 + $0xf0] sm:$0xff]
    %v1272 = vld [vmem:[#allocation7 + $0xf8] sm:$0xff]
    %v1273 = vld [vmem:[#allocation7 + $0x100] sm:$0xff]
    %v1274 = vld [vmem:[#allocation7 + $0x108] sm:$0xff]
    %v1275 = vld [vmem:[#allocation7 + $0x110] sm:$0xff]
    %v1276 = vld [vmem:[#allocation7 + $0x118] sm:$0xff]
    %v1277 = vld [vmem:[#allocation7 + $0x120] sm:$0xff]
    %v1278 = vld [vmem:[#allocation7 + $0x128] sm:$0xff]
    %v1279 = vld [vmem:[#allocation7 + $0x130] sm:$0xff]
    %v1280 = vld [vmem:[#allocation7 + $0x138] sm:$0xff]
    %v1281 = vld [vmem:[#allocation7 + $0x140] sm:$0xff]
    %v1282 = vld [vmem:[#allocation7 + $0x148] sm:$0xff]
    %v1283 = vld [vmem:[#allocation7 + $0x150] sm:$0xff]
    %v1284 = vld [vmem:[#allocation7 + $0x158] sm:$0xff]
    %v1285 = vld [vmem:[#allocation7 + $0x160] sm:$0xff]
    %v1286 = vld [vmem:[#allocation7 + $0x168] sm:$0xff]
    %v1287 = vld [vmem:[#allocation7 + $0x170] sm:$0xff]
    %v1288 = vld [vmem:[#allocation7 + $0x178] sm:$0xff]
    %v1289 = vld [vmem:[#allocation7 + $0x180] sm:$0xff]
    %v1290 = vld [vmem:[#allocation7 + $0x188] sm:$0xff]
    %v1291 = vld [vmem:[#allocation7 + $0x190] sm:$0xff]
    %v1292 = vld [vmem:[#allocation7 + $0x198] sm:$0xff]
    %v1293 = vld [vmem:[#allocation7 + $0x1a0] sm:$0xff]
    %v1294 = vld [vmem:[#allocation7 + $0x1a8] sm:$0xff]
    %v1295 = vld [vmem:[#allocation7 + $0x1b0] sm:$0xff]
    %v1296 = vld [vmem:[#allocation7 + $0x1b8] sm:$0xff]
    %v1297 = vld [vmem:[#allocation7 + $0x1c0] sm:$0xff]
    %v1298 = vld [vmem:[#allocation7 + $0x1c8] sm:$0xff]
    %v1299 = vld [vmem:[#allocation7 + $0x1d0] sm:$0xff]
    %v1300 = vld [vmem:[#allocation7 + $0x1d8] sm:$0xff]
    %v1301 = vld [vmem:[#allocation7 + $0x1e0] sm:$0xff]
    %v1302 = vld [vmem:[#allocation7 + $0x1e8] sm:$0xff]
    %v1303 = vld [vmem:[#allocation7 + $0x1f0] sm:$0xff]
    %v1304 = vld [vmem:[#allocation7 + $0x1f8] sm:$0xff]
    %v1305 = vld [vmem:[#allocation7 + $0x200] sm:$0xff]
    %v1306 = vld [vmem:[#allocation7 + $0x208] sm:$0xff]
    %v1307 = vld [vmem:[#allocation7 + $0x210] sm:$0xff]
    %v1308 = vld [vmem:[#allocation7 + $0x218] sm:$0xff]
    %v1309 = vld [vmem:[#allocation7 + $0x220] sm:$0xff]
    %v1310 = vld [vmem:[#allocation7 + $0x228] sm:$0xff]
    %v1311 = vld [vmem:[#allocation7 + $0x230] sm:$0xff]
    %v1312 = vld [vmem:[#allocation7 + $0x238] sm:$0xff]
    %v1313 = vld [vmem:[#allocation7 + $0x240] sm:$0xff]
    %v1314 = vld [vmem:[#allocation7 + $0x248] sm:$0xff]
    %v1315 = vld [vmem:[#allocation7 + $0x250] sm:$0xff]
    %v1316 = vld [vmem:[#allocation7 + $0x258] sm:$0xff]
    %v1317 = vld [vmem:[#allocation7 + $0x260] sm:$0xff]
    %v1318 = vld [vmem:[#allocation7 + $0x268] sm:$0xff]
    %v1319 = vld [vmem:[#allocation7 + $0x270] sm:$0xff]
    %v1320 = vld [vmem:[#allocation7 + $0x278] sm:$0xff]
    %v1321 = vld [vmem:[#allocation7 + $0x280] sm:$0xff]
    %v1322 = vld [vmem:[#allocation7 + $0x288] sm:$0xff]
    %v1323 = vld [vmem:[#allocation7 + $0x290] sm:$0xff]
    %v1324 = vld [vmem:[#allocation7 + $0x298] sm:$0xff]
    %v1325 = vld [vmem:[#allocation7 + $0x2a0] sm:$0xff]
    %v1326 = vld [vmem:[#allocation7 + $0x2a8] sm:$0xff]
    %v1327 = vld [vmem:[#allocation7 + $0x2b0] sm:$0xff]
    %v1328 = vld [vmem:[#allocation7 + $0x2b8] sm:$0xff]
    %v1329 = vld [vmem:[#allocation7 + $0x2c0] sm:$0xff]
    %v1330 = vld [vmem:[#allocation7 + $0x2c8] sm:$0xff]
    %v1331 = vld [vmem:[#allocation7 + $0x2d0] sm:$0xff]
    %v1332 = vld [vmem:[#allocation7 + $0x2d8] sm:$0xff]
    %v1333 = vld [vmem:[#allocation7 + $0x2e0] sm:$0xff]
    %v1334 = vld [vmem:[#allocation7 + $0x2e8] sm:$0xff]
    %v1335 = vld [vmem:[#allocation7 + $0x2f0] sm:$0xff]
    %v1336 = vld [vmem:[#allocation7 + $0x2f8] sm:$0xff]
    %v1337 = vld [vmem:[#allocation7 + $0x300] sm:$0xff]
    %v1338 = vld [vmem:[#allocation7 + $0x308] sm:$0xff]
    %v1339 = vld [vmem:[#allocation7 + $0x310] sm:$0xff]
    %v1340 = vld [vmem:[#allocation7 + $0x318] sm:$0xff]
    %v1341 = vld [vmem:[#allocation7 + $0x320] sm:$0xff]
    %v1342 = vld [vmem:[#allocation7 + $0x328] sm:$0xff]
    %v1343 = vld [vmem:[#allocation7 + $0x330] sm:$0xff]
    %v1344 = vld [vmem:[#allocation7 + $0x338] sm:$0xff]
    %v1345 = vld [vmem:[#allocation7 + $0x340] sm:$0xff]
    %v1346 = vld [vmem:[#allocation7 + $0x348] sm:$0xff]
    %v1347 = vld [vmem:[#allocation7 + $0x350] sm:$0xff]
    %v1348 = vld [vmem:[#allocation7 + $0x358] sm:$0xff]
    %v1349 = vld [vmem:[#allocation7 + $0x360] sm:$0xff]
    %v1350 = vld [vmem:[#allocation7 + $0x368] sm:$0xff]
    %v1351 = vld [vmem:[#allocation7 + $0x370] sm:$0xff]
    %v1352 = vld [vmem:[#allocation7 + $0x378] sm:$0xff]
    %v1353 = vld [vmem:[#allocation7 + $0x380] sm:$0xff]
    %v1354 = vld [vmem:[#allocation7 + $0x388] sm:$0xff]
    %v1355 = vld [vmem:[#allocation7 + $0x390] sm:$0xff]
    %v1356 = vld [vmem:[#allocation7 + $0x398] sm:$0xff]
    %v1357 = vld [vmem:[#allocation7 + $0x3a0] sm:$0xff]
    %v1358 = vld [vmem:[#allocation7 + $0x3a8] sm:$0xff]
    %v1359 = vld [vmem:[#allocation7 + $0x3b0] sm:$0xff]
    %v1360 = vld [vmem:[#allocation7 + $0x3b8] sm:$0xff]
    %v1361 = vld [vmem:[#allocation7 + $0x3c0] sm:$0xff]
    %v1362 = vld [vmem:[#allocation7 + $0x3c8] sm:$0xff]
    %v1363 = vld [vmem:[#allocation7 + $0x3d0] sm:$0xff]
    %v1364 = vld [vmem:[#allocation7 + $0x3d8] sm:$0xff]
    %v1365 = vld [vmem:[#allocation7 + $0x3e0] sm:$0xff]
    %v1366 = vld [vmem:[#allocation7 + $0x3e8] sm:$0xff]
    %v1367 = vld [vmem:[#allocation7 + $0x3f0] sm:$0xff]
    %v1368 = vld [vmem:[#allocation7 + $0x3f8] sm:$0xff]
    %v1369 = vld [vmem:[#allocation8] sm:$0x3]
    %v1371 = vlaneseq
    %v1372 = vshrl.u32 %v1371, 7
    %v1373 = vsub.s32 0, %v1372
    %v1374 = vrot.slane %v1369, %v1373
    %v1375 = vlaneseq
    %v1376 = vshrl.u32 %v1375, 7
    %v1377 = vsub.s32 1, %v1376
    %v1378 = vrot.slane %v1369, %v1377
    %1381 = vmatprep.subr.mxu0 %v1242
    %1382 = vmatpush1.msra.mxu0 %v1241
    %1383 = vmatprep.subr.mxu0 %v1244
    %1384 = vmatpush1.msra.mxu0 %v1243
    %1385 = vmatprep.subr.mxu0 %v1246
    %1386 = vmatpush1.msra.mxu0 %v1245
    %1387 = vmatprep.subr.mxu0 %v1248
    %1388 = vmatpush1.msra.mxu0 %v1247
    %1389 = vmatprep.subr.mxu0 %v1250
    %1390 = vmatpush1.msra.mxu0 %v1249
    %1391 = vmatprep.subr.mxu0 %v1252
    %1392 = vmatpush1.msra.mxu0 %v1251
    %1393 = vmatprep.subr.mxu0 %v1254
    %1394 = vmatpush1.msra.mxu0 %v1253
    %1395 = vmatprep.subr.mxu0 %v1256
    %1396 = vmatpush1.msra.mxu0 %v1255
    %1397 = vmatprep.subr.mxu0 %v1258
    %1398 = vmatpush1.msra.mxu0 %v1257
    %1399 = vmatprep.subr.mxu0 %v1260
    %1400 = vmatpush1.msra.mxu0 %v1259
    %1401 = vmatprep.subr.mxu0 %v1262
    %1402 = vmatpush1.msra.mxu0 %v1261
    %1403 = vmatprep.subr.mxu0 %v1264
    %1404 = vmatpush1.msra.mxu0 %v1263
    %1405 = vmatprep.subr.mxu0 %v1266
    %1406 = vmatpush1.msra.mxu0 %v1265
    %1407 = vmatprep.subr.mxu0 %v1268
    %1408 = vmatpush1.msra.mxu0 %v1267
    %1409 = vmatprep.subr.mxu0 %v1270
    %1410 = vmatpush1.msra.mxu0 %v1269
    %1411 = vmatprep.subr.mxu0 %v1272
    %1412 = vmatpush1.msra.mxu0 %v1271
    %1413 = vmatprep.subr.mxu0 %v1274
    %1414 = vmatpush1.msra.mxu0 %v1273
    %1415 = vmatprep.subr.mxu0 %v1276
    %1416 = vmatpush1.msra.mxu0 %v1275
    %1417 = vmatprep.subr.mxu0 %v1278
    %1418 = vmatpush1.msra.mxu0 %v1277
    %1419 = vmatprep.subr.mxu0 %v1280
    %1420 = vmatpush1.msra.mxu0 %v1279
    %1421 = vmatprep.subr.mxu0 %v1282
    %1422 = vmatpush1.msra.mxu0 %v1281
    %1423 = vmatprep.subr.mxu0 %v1284
    %1424 = vmatpush1.msra.mxu0 %v1283
    %1425 = vmatprep.subr.mxu0 %v1286
    %1426 = vmatpush1.msra.mxu0 %v1285
    %1427 = vmatprep.subr.mxu0 %v1288
    %1428 = vmatpush1.msra.mxu0 %v1287
    %1429 = vmatprep.subr.mxu0 %v1290
    %1430 = vmatpush1.msra.mxu0 %v1289
    %1431 = vmatprep.subr.mxu0 %v1292
    %1432 = vmatpush1.msra.mxu0 %v1291
    %1433 = vmatprep.subr.mxu0 %v1294
    %1434 = vmatpush1.msra.mxu0 %v1293
    %1435 = vmatprep.subr.mxu0 %v1296
    %1436 = vmatpush1.msra.mxu0 %v1295
    %1437 = vmatprep.subr.mxu0 %v1298
    %1438 = vmatpush1.msra.mxu0 %v1297
    %1439 = vmatprep.subr.mxu0 %v1300
    %1440 = vmatpush1.msra.mxu0 %v1299
    %1441 = vmatprep.subr.mxu0 %v1302
    %1442 = vmatpush1.msra.mxu0 %v1301
    %1443 = vmatprep.subr.mxu0 %v1304
    %1444 = vmatpush1.msra.mxu0 %v1303
    %1445 = vmatprep.mubr.f32.mxu0 %v1238
    %1446 = vmatmul.mubr.f32.gmra.mrb[0].mxu0 %v1237
    %v1447 = vpop.f32.mrb[0].mxu0
    %v1448 = vadd.f32 %v1374, %v1447
    %v1449 = vpop.f32.mrb[0].mxu0
    %v1450 = vadd.f32 %v1378, %v1449
    %1451 = vdwg.mxu0
    %1452 = vmatprep.subr.mxu0 %v1306
    %1453 = vmatpush1.msra.mxu0 %v1305
    %1454 = vmatprep.subr.mxu0 %v1308
    %1455 = vmatpush1.msra.mxu0 %v1307
    %1456 = vmatprep.subr.mxu0 %v1310
    %1457 = vmatpush1.msra.mxu0 %v1309
    %1458 = vmatprep.subr.mxu0 %v1312
    %1459 = vmatpush1.msra.mxu0 %v1311
    %1460 = vmatprep.subr.mxu0 %v1314
    %1461 = vmatpush1.msra.mxu0 %v1313
    %1462 = vmatprep.subr.mxu0 %v1316
    %1463 = vmatpush1.msra.mxu0 %v1315
    %1464 = vmatprep.subr.mxu0 %v1318
    %1465 = vmatpush1.msra.mxu0 %v1317
    %1466 = vmatprep.subr.mxu0 %v1320
    %1467 = vmatpush1.msra.mxu0 %v1319
    %1468 = vmatprep.subr.mxu0 %v1322
    %1469 = vmatpush1.msra.mxu0 %v1321
    %1470 = vmatprep.subr.mxu0 %v1324
    %1471 = vmatpush1.msra.mxu0 %v1323
    %1472 = vmatprep.subr.mxu0 %v1326
    %1473 = vmatpush1.msra.mxu0 %v1325
    %1474 = vmatprep.subr.mxu0 %v1328
    %1475 = vmatpush1.msra.mxu0 %v1327
    %1476 = vmatprep.subr.mxu0 %v1330
    %1477 = vmatpush1.msra.mxu0 %v1329
    %1478 = vmatprep.subr.mxu0 %v1332
    %1479 = vmatpush1.msra.mxu0 %v1331
    %1480 = vmatprep.subr.mxu0 %v1334
    %1481 = vmatpush1.msra.mxu0 %v1333
    %1482 = vmatprep.subr.mxu0 %v1336
    %1483 = vmatpush1.msra.mxu0 %v1335
    %1484 = vmatprep.subr.mxu0 %v1338
    %1485 = vmatpush1.msra.mxu0 %v1337
    %1486 = vmatprep.subr.mxu0 %v1340
    %1487 = vmatpush1.msra.mxu0 %v1339
    %1488 = vmatprep.subr.mxu0 %v1342
    %1489 = vmatpush1.msra.mxu0 %v1341
    %1490 = vmatprep.subr.mxu0 %v1344
    %1491 = vmatpush1.msra.mxu0 %v1343
    %1492 = vmatprep.subr.mxu0 %v1346
    %1493 = vmatpush1.msra.mxu0 %v1345
    %1494 = vmatprep.subr.mxu0 %v1348
    %1495 = vmatpush1.msra.mxu0 %v1347
    %1496 = vmatprep.subr.mxu0 %v1350
    %1497 = vmatpush1.msra.mxu0 %v1349
    %1498 = vmatprep.subr.mxu0 %v1352
    %1499 = vmatpush1.msra.mxu0 %v1351
    %1500 = vmatprep.subr.mxu0 %v1354
    %1501 = vmatpush1.msra.mxu0 %v1353
    %1502 = vmatprep.subr.mxu0 %v1356
    %1503 = vmatpush1.msra.mxu0 %v1355
    %1504 = vmatprep.subr.mxu0 %v1358
    %1505 = vmatpush1.msra.mxu0 %v1357
    %1506 = vmatprep.subr.mxu0 %v1360
    %1507 = vmatpush1.msra.mxu0 %v1359
    %1508 = vmatprep.subr.mxu0 %v1362
    %1509 = vmatpush1.msra.mxu0 %v1361
    %1510 = vmatprep.subr.mxu0 %v1364
    %1511 = vmatpush1.msra.mxu0 %v1363
    %1512 = vmatprep.subr.mxu0 %v1366
    %1513 = vmatpush1.msra.mxu0 %v1365
    %1514 = vmatprep.subr.mxu0 %v1368
    %1515 = vmatpush1.msra.mxu0 %v1367
    %1516 = vmatprep.mubr.f32.mxu0 %v1240
    %1517 = vmatmul.mubr.f32.gmra.mrb[0].mxu0 %v1239
    %v1518 = vpop.f32.mrb[0].mxu0
    %v1519 = vadd.f32 %v1448, %v1518
    %v1520 = vpop.f32.mrb[0].mxu0
    %v1521 = vadd.f32 %v1450, %v1520
    %1522 = vdwg.mxu0
    %v1523 = vmax.f32 %v1519, 0.0
    %v1524 = vmax.f32 %v1521, 0.0
    %v1525 = vld [vmem:[%s5] sm:$0xff]
    %v1526 = vld [vmem:[%s5 + $0x8] sm:$0xff]
    %v1527 = vld [vmem:[%s5 + $0x10] sm:$0xff]
    %v1528 = vld [vmem:[%s5 + $0x18] sm:$0xff]
    %v1529 = vld [vmem:[%s5 + $0x20] sm:$0xff]
    %v1530 = vld [vmem:[%s5 + $0x28] sm:$0xff]
    %v1531 = vld [vmem:[%s5 + $0x30] sm:$0xff]
    %v1532 = vld [vmem:[%s5 + $0x38] sm:$0xff]
    %v1533 = vld [vmem:[%s5 + $0x40] sm:$0xff]
    %v1534 = vld [vmem:[%s5 + $0x48] sm:$0xff]
    %v1535 = vld [vmem:[%s5 + $0x50] sm:$0xff]
    %v1536 = vld [vmem:[%s5 + $0x58] sm:$0xff]
    %v1537 = vld [vmem:[%s5 + $0x60] sm:$0xff]
    %v1538 = vld [vmem:[%s5 + $0x68] sm:$0xff]
    %v1539 = vld [vmem:[%s5 + $0x70] sm:$0xff]
    %v1540 = vld [vmem:[%s5 + $0x78] sm:$0xff]
    %v1541 = vld [vmem:[%s5 + $0x80] sm:$0xff]
    %v1542 = vld [vmem:[%s5 + $0x88] sm:$0xff]
    %v1543 = vld [vmem:[%s5 + $0x90] sm:$0xff]
    %v1544 = vld [vmem:[%s5 + $0x98] sm:$0xff]
    %v1545 = vld [vmem:[%s5 + $0xa0] sm:$0xff]
    %v1546 = vld [vmem:[%s5 + $0xa8] sm:$0xff]
    %v1547 = vld [vmem:[%s5 + $0xb0] sm:$0xff]
    %v1548 = vld [vmem:[%s5 + $0xb8] sm:$0xff]
    %v1549 = vld [vmem:[%s5 + $0xc0] sm:$0xff]
    %v1550 = vld [vmem:[%s5 + $0xc8] sm:$0xff]
    %v1551 = vld [vmem:[%s5 + $0xd0] sm:$0xff]
    %v1552 = vld [vmem:[%s5 + $0xd8] sm:$0xff]
    %v1553 = vld [vmem:[%s5 + $0xe0] sm:$0xff]
    %v1554 = vld [vmem:[%s5 + $0xe8] sm:$0xff]
    %v1555 = vld [vmem:[%s5 + $0xf0] sm:$0xff]
    %v1556 = vld [vmem:[%s5 + $0xf8] sm:$0xff]
    %v1557 = vld [vmem:[#allocation10] sm:$0x1]
    %v1559 = vlaneseq
    %v1560 = vshrl.u32 %v1559, 7
    %v1561 = vsub.s32 0, %v1560
    %v1562 = vrot.slane %v1557, %v1561
    %1564 = vmatprep.subr.mxu0 0.0
    %1565 = vmatpush1.msra.mxu0 %v1525
    %1566 = vmatprep.subr.mxu0 0.0
    %1567 = vmatpush1.msra.mxu0 %v1526
    %1568 = vmatprep.subr.mxu0 0.0
    %1569 = vmatpush1.msra.mxu0 %v1527
    %1570 = vmatprep.subr.mxu0 0.0
    %1571 = vmatpush1.msra.mxu0 %v1528
    %1572 = vmatprep.subr.mxu0 0.0
    %1573 = vmatpush1.msra.mxu0 %v1529
    %1574 = vmatprep.subr.mxu0 0.0
    %1575 = vmatpush1.msra.mxu0 %v1530
    %1576 = vmatprep.subr.mxu0 0.0
    %1577 = vmatpush1.msra.mxu0 %v1531
    %1578 = vmatprep.subr.mxu0 0.0
    %1579 = vmatpush1.msra.mxu0 %v1532
    %1580 = vmatprep.subr.mxu0 0.0
    %1581 = vmatpush1.msra.mxu0 %v1533
    %1582 = vmatprep.subr.mxu0 0.0
    %1583 = vmatpush1.msra.mxu0 %v1534
    %1584 = vmatprep.subr.mxu0 0.0
    %1585 = vmatpush1.msra.mxu0 %v1535
    %1586 = vmatprep.subr.mxu0 0.0
    %1587 = vmatpush1.msra.mxu0 %v1536
    %1588 = vmatprep.subr.mxu0 0.0
    %1589 = vmatpush1.msra.mxu0 %v1537
    %1590 = vmatprep.subr.mxu0 0.0
    %1591 = vmatpush1.msra.mxu0 %v1538
    %1592 = vmatprep.subr.mxu0 0.0
    %1593 = vmatpush1.msra.mxu0 %v1539
    %1594 = vmatprep.subr.mxu0 0.0
    %1595 = vmatpush1.msra.mxu0 %v1540
    %1596 = vmatprep.subr.mxu0 0.0
    %1597 = vmatpush1.msra.mxu0 %v1541
    %1598 = vmatprep.subr.mxu0 0.0
    %1599 = vmatpush1.msra.mxu0 %v1542
    %1600 = vmatprep.subr.mxu0 0.0
    %1601 = vmatpush1.msra.mxu0 %v1543
    %1602 = vmatprep.subr.mxu0 0.0
    %1603 = vmatpush1.msra.mxu0 %v1544
    %1604 = vmatprep.subr.mxu0 0.0
    %1605 = vmatpush1.msra.mxu0 %v1545
    %1606 = vmatprep.subr.mxu0 0.0
    %1607 = vmatpush1.msra.mxu0 %v1546
    %1608 = vmatprep.subr.mxu0 0.0
    %1609 = vmatpush1.msra.mxu0 %v1547
    %1610 = vmatprep.subr.mxu0 0.0
    %1611 = vmatpush1.msra.mxu0 %v1548
    %1612 = vmatprep.subr.mxu0 0.0
    %1613 = vmatpush1.msra.mxu0 %v1549
    %1614 = vmatprep.subr.mxu0 0.0
    %1615 = vmatpush1.msra.mxu0 %v1550
    %1616 = vmatprep.subr.mxu0 0.0
    %1617 = vmatpush1.msra.mxu0 %v1551
    %1618 = vmatprep.subr.mxu0 0.0
    %1619 = vmatpush1.msra.mxu0 %v1552
    %1620 = vmatprep.subr.mxu0 0.0
    %1621 = vmatpush1.msra.mxu0 %v1553
    %1622 = vmatprep.subr.mxu0 0.0
    %1623 = vmatpush1.msra.mxu0 %v1554
    %1624 = vmatprep.subr.mxu0 0.0
    %1625 = vmatpush1.msra.mxu0 %v1555
    %1626 = vmatprep.subr.mxu0 0.0
    %1627 = vmatpush1.msra.mxu0 %v1556
    %1628 = vmatprep.mubr.f32.mxu0 %v1524
    %1629 = vmatmul.mubr.f32.gmra.mrb[0].mxu0 %v1523
    %v1630 = vpop.f32.mrb[0].mxu0
    %v1631 = vadd.f32 %v1562, %v1630
    %v1632 = vpop.f32.mrb[0].mxu0
    %1633 = vdwg.mxu0
    %vm1634 = vcmask 74752
    %v1635 = vsel %vm1634, %v1631, -inf
    %1636 = vmax.xlane.f32.xlu0 %v1635
    %v1637 = vpop.xlane.xlu0 %1636
    %v1638 = vsub.f32 %v1631, %v1637
    %v1639 = vmul.f32 %v1638, 1.442695
    %v1640 = vpow.pop %v1639
    %v1641 = vsel %vm1634, %v1640, 0.0
    %1642 = vadd.xlane.f32.xlu0 %v1641
    %v1643 = vpop.xlane.xlu0 %1642
    %v1644 = vlog2.pop %v1643
    %v1645 = vmul.f32 %v1644, 0.6931472
    %v1646 = vadd.f32 %v1645, %v1637
    %v1647 = vsub.f32 %v1631, %v1646
    %1648 = vst.msk [vmem:[#allocation11] sm:$0x3] %vm1634, %v1647
    // Predicated region
    $region50: #{feature_net_forward.3} parent=1 // pred_check
      _
    $region51: #{feature_net_forward.3} parent=1 // pred_check_branch
      %1650 = sbr.rel (0) target = $region53
    $region52: #{feature_net_forward.3} parent=1 // pred_region
      %s1652 = ssub.s32 32, 32
      %1653 = vsyncadd [#allocation4], %s1652
      %s1655 = sshll.u32 [#allocation11], 4
      %s1656 = int_to_ptr.vmem [resolvable:$true] %s1655
      %1658 = dma.vmem_to_hbm [thread:$0]  %s1656, 32, %s7, [#allocation4]
    $region53: #{feature_net_forward.3} parent=1 // pred_fallthru
      _
    // Predicated region
    $region54: #{feature_net_forward.3} parent=1 // pred_check
      _
    $region55: #{feature_net_forward.3} parent=1 // pred_check_branch
      %1660 = sbr.rel (0) target = $region57
    $region56: #{feature_net_forward.3} parent=1 // pred_region
      %1661 = dma.done [#allocation4], 32
    $region57: #{feature_net_forward.3} parent=1 // pred_fallthru
      _
    %1662 = vsyncpa [#allocation3], 1
    %1663 = vsyncpa [#allocation6], 1
    %1664 = vsyncpa [#allocation9], 1
    %1665 = vsyncpa [#allocation4], 1

// kernel: feature_net_forward.2
$region0: #{feature_net_forward.2}
  #allocation0 [shape = 'u32[]', space=smem, size = 0x4, offset = 0x4, fixed_abs, tag = 'smem constant byte address 0x4 - core index']
  #allocation1 [shape = 'u32[144,128]{1,0:T(1,128)}', space=vmem, size = 0x12000, scoped, tag = 'internal scratch']
  %s0 = inlined_call_operand.hbm [shape: f32[2,256,128], index: 0, kind: input, shape index: {}]
  %s1 = inlined_call_operand.hbm [shape: f32[256,256], index: 1, kind: input, shape index: {}]
  %s2 = inlined_call_operand.hbm [shape: f32[128,128], index: 2, kind: input, shape index: {}]
  %s3 = inlined_call_operand.hbm [shape: f32[256,256], index: 3, kind: input, shape index: {}]
  %s4 = inlined_call_operand.hbm [shape: f32[32,32], index: 4, kind: input, shape index: {}]
  %s5 = inlined_call_operand.hbm [shape: f32[16], index: 5, kind: input, shape index: {}]
  %s6 = inlined_call_operand.hbm [shape: f32[4], index: 6, kind: input, shape index: {}]
  %s7 = inlined_call_operand.hbm [shape: f32[128], index: 7, kind: input, shape index: {}]
  %s8 = inlined_call_operand.hbm [shape: f32[8], index: 8, kind: input, shape index: {}]
  %s9 = inlined_call_operand.hbm [shape: f32[8], index: 9, kind: input, shape index: {}]
  %s10 = inlined_call_operand.hbm [shape: f32[8], index: 10, kind: input, shape index: {}]
  %s11 = inlined_call_operand.vmem [shape: f32[2,16,64], index: 11, kind: output, shape index: {}]
  %s12 = sld [smem:[#allocation0]]
  $region121: #{feature_net_forward.2} parent=0
    _
  %s14 = ssub.s32 1, %s12
  %s15 = scalar_select 0, %s14, %s12
  $region1: #{feature_net_forward.2} parent=0
    #allocation2 [shape = 'u8[262144]{0}', space=vmem, size = 0x40000, scoped, tag = 'input window, operand 0']
    #allocation3 [shape = 's32[2]{0}', space=sflag, size = 0x8, scoped, tag = 'scoped memory for feature_net_forward.2']
    #allocation4 [shape = 's32[2]{0}', space=sflag, size = 0x8, scoped, tag = 'scoped memory for feature_net_forward.2']
    #allocation5 [shape = 'u8[262144]{0}', space=vmem, size = 0x40000, scoped, tag = 'input window, operand 1, single buffered']
    #allocation6 [shape = 's32[1]{0}', space=sflag, size = 0x4, scoped, tag = 'scoped memory for feature_net_forward.2']
    #allocation7 [shape = 'u8[65536]{0}', space=vmem, size = 0x10000, scoped, tag = 'input window, operand 2, single buffered']
    #allocation8 [shape = 'u8[262144]{0}', space=vmem, size = 0x40000, scoped, tag = 'input window, operand 3, single buffered']
    #allocation9 [shape = 's32[1]{0}', space=sflag, size = 0x4, scoped, tag = 'scoped memory for feature_net_forward.2']
    #allocation10 [shape = 'u8[16384]{0}', space=vmem, size = 0x4000, scoped, tag = 'input window, operand 4, single buffered']
    #allocation11 [shape = 'u8[512]{0}', space=smem, size = 0x200, scoped, tag = 'input window, operand 5, single buffered']
    #allocation12 [shape = 'u8[512]{0}', space=smem, size = 0x200, scoped, tag = 'input window, operand 6, single buffered']
    #allocation13 [shape = 's32[1]{0}', space=sflag, size = 0x4, scoped, tag = 'scoped memory for feature_net_forward.2']
    #allocation14 [shape = 'u8[512]{0}', space=smem, size = 0x200, scoped, tag = 'input window, operand 7, single buffered']
    #allocation15 [shape = 'u8[512]{0}', space=smem, size = 0x200, scoped, tag = 'input window, operand 8, single buffered']
    #allocation16 [shape = 's32[1]{0}', space=sflag, size = 0x4, scoped, tag = 'scoped memory for feature_net_forward.2']
    #allocation17 [shape = 'u8[512]{0}', space=smem, size = 0x200, scoped, tag = 'input window, operand 9, single buffered']
    #allocation18 [shape = 'u8[512]{0}', space=smem, size = 0x200, scoped, tag = 'input window, operand 10, single buffered']
    #allocation19 [shape = 's32[1]{0}', space=sflag, size = 0x4, scoped, tag = 'scoped memory for feature_net_forward.2']
    %16 = vsyncpa [#allocation3], 0
    %s17 = scalar_lea.sflag [#allocation3], 1
    %18 = vsyncpa %s17, 0
    %19 = vsyncpa [#allocation6], 0
    %20 = vsyncpa [#allocation9], 0
    %21 = vsyncpa [#allocation4], 0
    %22 = vsyncpa [#allocation13], 0
    %23 = vsyncpa [#allocation16], 0
    %24 = vsyncpa [#allocation19], 0
    loop: start=0, step=1, limit=4
    $region2: #{feature_net_forward.2} parent=1 // loop_pre_header
      _
    $region3: #{feature_net_forward.2} parent=1 // loop_header
      %s26 = sphi 0, %s30
      %p27 = scmp.ge.s32.totalorder %s26, 4
      %s36 = sphi 0, %s38
      %s39 = sphi 0, %s36
      %s40 = sphi 0, %s39
      %s56 = sphi 0, %s40
      %s60 = sphi 0, %s60
      %s62 = sphi 0, %s60
      %s63 = sphi 0, %s62
      %s77 = sphi 0, %s63
      %s81 = sphi 0, %s81
      %s83 = sphi 0, %s81
      %s84 = sphi 0, %s83
      %s98 = sphi 0, %s84
      %s102 = sphi 0, %s102
      %s104 = sphi 0, %s102
      %s105 = sphi 0, %s104
      %s119 = sphi 0, %s105
      %s123 = sphi 0, %s123
      %s125 = sphi 0, %s123
      %s126 = sphi 0, %s125
      %s140 = sphi 0, %s126
      %s144 = sphi 0, %s144
      %s146 = sphi 0, %s144
      %s147 = sphi 0, %s146
      %s161 = sphi 0, %s147
      %s165 = sphi 0, %s165
      %s167 = sphi 0, %s165
      %s168 = sphi 0, %s167
      %s182 = sphi 0, %s168
      %s186 = sphi 0, %s186
      %s188 = sphi 0, %s186
      %s189 = sphi 0, %s188
      %s203 = sphi 0, %s189
      %s207 = sphi 0, %s207
      %s209 = sphi 0, %s207
      %s210 = sphi 0, %s209
      %s224 = sphi 0, %s210
      %s228 = sphi 0, %s228
      %s230 = sphi 0, %s228
      %s231 = sphi 0, %s230
      %s245 = sphi 0, %s231
      %s249 = sphi 0, %s249
      %s251 = sphi 0, %s249
      %s252 = sphi 0, %s251
      %s266 = sphi 0, %s252
      %s272 = sphi 0, %s274
      %s275 = sphi 0, %s272
      %s276 = sphi 0, %s275
      %s292 = sphi 0, %s276
    $region4: #{feature_net_forward.2} parent=1 // loop_header_branch
      %29 = sbr.rel (%p27) target = $region8
    $region5: #{feature_net_forward.2} parent=1 // loop_body
      %s31 = ssub.s32 %s26, 1
      %s32 = ssub.s32 %s26, 2
      %s33 = sadd.s32 %s26, 1
      %s34 = ssub.s32 %s26, %s33
      %p35 = scmp.eq.s32.totalorder %s34, 0
      %s37 = sadd.s32 %s36, 1
      %s38 = scalar_select %p35, %s36, %s37
      %p41 = pneg %p35
      %p42 = scmp.eq.s32.totalorder %s26, 1
      %p43 = por %p41, %p42
      %p44 = scmp.ne.s32.totalorder %s36, %s39
      %p45 = scmp.eq.s32.totalorder %s26, 0
      %p46 = por %p44, %p45
      %p47 = scmp.ne.s32.totalorder %s36, %s39
      %p48 = scmp.eq.s32.totalorder %s31, 1
      %p49 = por %p47, %p48
      %p50 = scmp.ne.s32.totalorder %s39, %s40
      %p51 = scmp.eq.s32.totalorder %s31, 0
      %p52 = por %p50, %p51
      %p53 = scmp.ne.s32.totalorder %s39, %s40
      %p54 = scmp.eq.s32.totalorder %s32, 1
      %p55 = por %p53, %p54
      %p57 = scmp.ne.s32.totalorder %s40, %s56
      %p58 = scmp.eq.s32.totalorder %s32, 0
      %p59 = por %p57, %p58
      %s61 = sadd.s32 %s60, 1
      %p64 = scmp.eq.s32.totalorder %s26, 1
      %p65 = scmp.ne.s32.totalorder %s60, %s62
      %p66 = scmp.eq.s32.totalorder %s26, 0
      %p67 = por %p65, %p66
      %p68 = scmp.ne.s32.totalorder %s60, %s62
      %p69 = scmp.eq.s32.totalorder %s31, 1
      %p70 = por %p68, %p69
      %p71 = scmp.ne.s32.totalorder %s62, %s63
      %p72 = scmp.eq.s32.totalorder %s31, 0
      %p73 = por %p71, %p72
      %p74 = scmp.ne.s32.totalorder %s62, %s63
      %p75 = scmp.eq.s32.totalorder %s32, 1
      %p76 = por %p74, %p75
      %p78 = scmp.ne.s32.totalorder %s63, %s77
      %p79 = scmp.eq.s32.totalorder %s32, 0
      %p80 = por %p78, %p79
      %s82 = sadd.s32 %s81, 1
      %p85 = scmp.eq.s32.totalorder %s26, 1
      %p86 = scmp.ne.s32.totalorder %s81, %s83
      %p87 = scmp.eq.s32.totalorder %s26, 0
      %p88 = por %p86, %p87
      %p89 = scmp.ne.s32.totalorder %s81, %s83
      %p90 = scmp.eq.s32.totalorder %s31, 1
      %p91 = por %p89, %p90
      %p92 = scmp.ne.s32.totalorder %s83, %s84
      %p93 = scmp.eq.s32.totalorder %s31, 0
      %p94 = por %p92, %p93
      %p95 = scmp.ne.s32.totalorder %s83, %s84
      %p96 = scmp.eq.s32.totalorder %s32, 1
      %p97 = por %p95, %p96
      %p99 = scmp.ne.s32.totalorder %s84, %s98
      %p100 = scmp.eq.s32.totalorder %s32, 0
      %p101 = por %p99, %p100
      %s103 = sadd.s32 %s102, 1
      %p106 = scmp.eq.s32.totalorder %s26, 1
      %p107 = scmp.ne.s32.totalorder %s102, %s104
      %p108 = scmp.eq.s32.totalorder %s26, 0
      %p109 = por %p107, %p108
      %p110 = scmp.ne.s32.totalorder %s102, %s104
      %p111 = scmp.eq.s32.totalorder %s31, 1
      %p112 = por %p110, %p111
      %p113 = scmp.ne.s32.totalorder %s104, %s105
      %p114 = scmp.eq.s32.totalorder %s31, 0
      %p115 = por %p113, %p114
      %p116 = scmp.ne.s32.totalorder %s104, %s105
      %p117 = scmp.eq.s32.totalorder %s32, 1
      %p118 = por %p116, %p117
      %p120 = scmp.ne.s32.totalorder %s105, %s119
      %p121 = scmp.eq.s32.totalorder %s32, 0
      %p122 = por %p120, %p121
      %s124 = sadd.s32 %s123, 1
      %p127 = scmp.eq.s32.totalorder %s26, 1
      %p128 = scmp.ne.s32.totalorder %s123, %s125
      %p129 = scmp.eq.s32.totalorder %s26, 0
      %p130 = por %p128, %p129
      %p131 = scmp.ne.s32.totalorder %s123, %s125
      %p132 = scmp.eq.s32.totalorder %s31, 1
      %p133 = por %p131, %p132
      %p134 = scmp.ne.s32.totalorder %s125, %s126
      %p135 = scmp.eq.s32.totalorder %s31, 0
      %p136 = por %p134, %p135
      %p137 = scmp.ne.s32.totalorder %s125, %s126
      %p138 = scmp.eq.s32.totalorder %s32, 1
      %p139 = por %p137, %p138
      %p141 = scmp.ne.s32.totalorder %s126, %s140
      %p142 = scmp.eq.s32.totalorder %s32, 0
      %p143 = por %p141, %p142
      %s145 = sadd.s32 %s144, 1
      %p148 = scmp.eq.s32.totalorder %s26, 1
      %p149 = scmp.ne.s32.totalorder %s144, %s146
      %p150 = scmp.eq.s32.totalorder %s26, 0
      %p151 = por %p149, %p150
      %p152 = scmp.ne.s32.totalorder %s144, %s146
      %p153 = scmp.eq.s32.totalorder %s31, 1
      %p154 = por %p152, %p153
      %p155 = scmp.ne.s32.totalorder %s146, %s147
      %p156 = scmp.eq.s32.totalorder %s31, 0
      %p157 = por %p155, %p156
      %p158 = scmp.ne.s32.totalorder %s146, %s147
      %p159 = scmp.eq.s32.totalorder %s32, 1
      %p160 = por %p158, %p159
      %p162 = scmp.ne.s32.totalorder %s147, %s161
      %p163 = scmp.eq.s32.totalorder %s32, 0
      %p164 = por %p162, %p163
      %s166 = sadd.s32 %s165, 1
      %p169 = scmp.eq.s32.totalorder %s26, 1
      %p170 = scmp.ne.s32.totalorder %s165, %s167
      %p171 = scmp.eq.s32.totalorder %s26, 0
      %p172 = por %p170, %p171
      %p173 = scmp.ne.s32.totalorder %s165, %s167
      %p174 = scmp.eq.s32.totalorder %s31, 1
      %p175 = por %p173, %p174
      %p176 = scmp.ne.s32.totalorder %s167, %s168
      %p177 = scmp.eq.s32.totalorder %s31, 0
      %p178 = por %p176, %p177
      %p179 = scmp.ne.s32.totalorder %s167, %s168
      %p180 = scmp.eq.s32.totalorder %s32, 1
      %p181 = por %p179, %p180
      %p183 = scmp.ne.s32.totalorder %s168, %s182
      %p184 = scmp.eq.s32.totalorder %s32, 0
      %p185 = por %p183, %p184
      %s187 = sadd.s32 %s186, 1
      %p190 = scmp.eq.s32.totalorder %s26, 1
      %p191 = scmp.ne.s32.totalorder %s186, %s188
      %p192 = scmp.eq.s32.totalorder %s26, 0
      %p193 = por %p191, %p192
      %p194 = scmp.ne.s32.totalorder %s186, %s188
      %p195 = scmp.eq.s32.totalorder %s31, 1
      %p196 = por %p194, %p195
      %p197 = scmp.ne.s32.totalorder %s188, %s189
      %p198 = scmp.eq.s32.totalorder %s31, 0
      %p199 = por %p197, %p198
      %p200 = scmp.ne.s32.totalorder %s188, %s189
      %p201 = scmp.eq.s32.totalorder %s32, 1
      %p202 = por %p200, %p201
      %p204 = scmp.ne.s32.totalorder %s189, %s203
      %p205 = scmp.eq.s32.totalorder %s32, 0
      %p206 = por %p204, %p205
      %s208 = sadd.s32 %s207, 1
      %p211 = scmp.eq.s32.totalorder %s26, 1
      %p212 = scmp.ne.s32.totalorder %s207, %s209
      %p213 = scmp.eq.s32.totalorder %s26, 0
      %p214 = por %p212, %p213
      %p215 = scmp.ne.s32.totalorder %s207, %s209
      %p216 = scmp.eq.s32.totalorder %s31, 1
      %p217 = por %p215, %p216
      %p218 = scmp.ne.s32.totalorder %s209, %s210
      %p219 = scmp.eq.s32.totalorder %s31, 0
      %p220 = por %p218, %p219
      %p221 = scmp.ne.s32.totalorder %s209, %s210
      %p222 = scmp.eq.s32.totalorder %s32, 1
      %p223 = por %p221, %p222
      %p225 = scmp.ne.s32.totalorder %s210, %s224
      %p226 = scmp.eq.s32.totalorder %s32, 0
      %p227 = por %p225, %p226
      %s229 = sadd.s32 %s228, 1
      %p232 = scmp.eq.s32.totalorder %s26, 1
      %p233 = scmp.ne.s32.totalorder %s228, %s230
      %p234 = scmp.eq.s32.totalorder %s26, 0
      %p235 = por %p233, %p234
      %p236 = scmp.ne.s32.totalorder %s228, %s230
      %p237 = scmp.eq.s32.totalorder %s31, 1
      %p238 = por %p236, %p237
      %p239 = scmp.ne.s32.totalorder %s230, %s231
      %p240 = scmp.eq.s32.totalorder %s31, 0
      %p241 = por %p239, %p240
      %p242 = scmp.ne.s32.totalorder %s230, %s231
      %p243 = scmp.eq.s32.totalorder %s32, 1
      %p244 = por %p242, %p243
      %p246 = scmp.ne.s32.totalorder %s231, %s245
      %p247 = scmp.eq.s32.totalorder %s32, 0
      %p248 = por %p246, %p247
      %s250 = sadd.s32 %s249, 1
      %p253 = scmp.eq.s32.totalorder %s26, 1
      %p254 = scmp.ne.s32.totalorder %s249, %s251
      %p255 = scmp.eq.s32.totalorder %s26, 0
      %p256 = por %p254, %p255
      %p257 = scmp.ne.s32.totalorder %s249, %s251
      %p258 = scmp.eq.s32.totalorder %s31, 1
      %p259 = por %p257, %p258
      %p260 = scmp.ne.s32.totalorder %s251, %s252
      %p261 = scmp.eq.s32.totalorder %s31, 0
      %p262 = por %p260, %p261
      %p263 = scmp.ne.s32.totalorder %s251, %s252
      %p264 = scmp.eq.s32.totalorder %s32, 1
      %p265 = por %p263, %p264
      %p267 = scmp.ne.s32.totalorder %s252, %s266
      %p268 = scmp.eq.s32.totalorder %s32, 0
      %p269 = por %p267, %p268
      %s270 = ssub.s32 %s26, %s33
      %p271 = scmp.eq.s32.totalorder %s270, 0
      %s273 = sadd.s32 %s272, 1
      %s274 = scalar_select %p271, %s272, %s273
      %p277 = pneg %p271
      %p278 = scmp.eq.s32.totalorder %s26, 1
      %p279 = por %p277, %p278
      %p280 = scmp.ne.s32.totalorder %s272, %s275
      %p281 = scmp.eq.s32.totalorder %s26, 0
      %p282 = por %p280, %p281
      %p283 = scmp.ne.s32.totalorder %s272, %s275
      %p284 = scmp.eq.s32.totalorder %s31, 1
      %p285 = por %p283, %p284
      %p286 = scmp.ne.s32.totalorder %s275, %s276
      %p287 = scmp.eq.s32.totalorder %s31, 0
      %p288 = por %p286, %p287
      %p289 = scmp.ne.s32.totalorder %s275, %s276
      %p290 = scmp.eq.s32.totalorder %s32, 1
      %p291 = por %p289, %p290
      %p293 = scmp.ne.s32.totalorder %s276, %s292
      %p294 = scmp.eq.s32.totalorder %s32, 0
      %p295 = por %p293, %p294
      %p296 = scmp.le.s32.totalorder 1, %s26
      %p297 = scmp.lt.s32.totalorder %s26, 3
      %p298 = pnand %p296, %p297
      %p299 = pneg %p298
      // Predicated region
      $region9: #{feature_net_forward.2} parent=5 // pred_check
        _
      $region10: #{feature_net_forward.2} parent=5 // pred_check_branch
        %301 = sbr.rel (%p298) target = $region12
      $region11: #{feature_net_forward.2} parent=5 // pred_region
        %s302 = ssub.s32 %s26, 1
        // Predicated region
        $region13: #{feature_net_forward.2} parent=11 // pred_check
          %p303 = pneg %p73
        $region14: #{feature_net_forward.2} parent=11 // pred_check_branch
          %305 = sbr.rel (%p303) target = $region16
        $region15: #{feature_net_forward.2} parent=11 // pred_region
          %s307 = ssub.s32 8192, 8192
          %308 = vsyncadd [#allocation6], %s307
          %s309 = sshll.u32 [#allocation5], 4
          %s310 = int_to_ptr.vmem [resolvable:$true] %s309
          %315 = dma.hbm_to_vmem [thread:$0]  %s1, 8192, %s310, [#allocation6], 256, 256, 16
        $region16: #{feature_net_forward.2} parent=11 // pred_fallthru
          _
        // Predicated region
        $region17: #{feature_net_forward.2} parent=11 // pred_check
          %p316 = pneg %p94
        $region18: #{feature_net_forward.2} parent=11 // pred_check_branch
          %318 = sbr.rel (%p316) target = $region20
        $region19: #{feature_net_forward.2} parent=11 // pred_region
          %s320 = ssub.s32 2048, 2048
          %321 = vsyncadd [#allocation6], %s320
          %s322 = sshll.u32 [#allocation7], 4
          %s323 = int_to_ptr.vmem [resolvable:$true] %s322
          %328 = dma.hbm_to_vmem [thread:$0]  %s2, 2048, %s323, [#allocation6], 128, 128, 8
        $region20: #{feature_net_forward.2} parent=11 // pred_fallthru
          _
        // Predicated region
        $region21: #{feature_net_forward.2} parent=11 // pred_check
          %p329 = pneg %p115
        $region22: #{feature_net_forward.2} parent=11 // pred_check_branch
          %331 = sbr.rel (%p329) target = $region24
        $region23: #{feature_net_forward.2} parent=11 // pred_region
          %s333 = ssub.s32 8192, 8192
          %334 = vsyncadd [#allocation9], %s333
          %s335 = sshll.u32 [#allocation8], 4
          %s336 = int_to_ptr.vmem [resolvable:$true] %s335
          %341 = dma.hbm_to_vmem [thread:$0]  %s3, 8192, %s336, [#allocation9], 256, 256, 16
        $region24: #{feature_net_forward.2} parent=11 // pred_fallthru
          _
        // Predicated region
        $region25: #{feature_net_forward.2} parent=11 // pred_check
          %p342 = pneg %p136
        $region26: #{feature_net_forward.2} parent=11 // pred_check_branch
          %344 = sbr.rel (%p342) target = $region28
        $region27: #{feature_net_forward.2} parent=11 // pred_region
          %s346 = ssub.s32 512, 512
          %347 = vsyncadd [#allocation9], %s346
          %s348 = sshll.u32 [#allocation10], 4
          %s349 = int_to_ptr.vmem [resolvable:$true] %s348
          %354 = dma.hbm_to_vmem [thread:$0]  %s4, 512, %s349, [#allocation9], 128, 128, 8
        $region28: #{feature_net_forward.2} parent=11 // pred_fallthru
          _
        // Predicated region
        $region29: #{feature_net_forward.2} parent=11 // pred_check
          %p355 = pneg %p157
        $region30: #{feature_net_forward.2} parent=11 // pred_check_branch
          %357 = sbr.rel (%p355) target = $region32
        $region31: #{feature_net_forward.2} parent=11 // pred_region
          %s359 = ssub.s32 16, 16
          %360 = vsyncadd [#allocation4], %s359
          %363 = dma.hbm_to_smem %s5, 16, [#allocation11], [#allocation4]
        $region32: #{feature_net_forward.2} parent=11 // pred_fallthru
          _
        // Predicated region
        $region33: #{feature_net_forward.2} parent=11 // pred_check
          %p364 = pneg %p178
        $region34: #{feature_net_forward.2} parent=11 // pred_check_branch
          %366 = sbr.rel (%p364) target = $region36
        $region35: #{feature_net_forward.2} parent=11 // pred_region
          %s368 = ssub.s32 16, 16
          %369 = vsyncadd [#allocation13], %s368
          %372 = dma.hbm_to_smem %s6, 16, [#allocation12], [#allocation13]
        $region36: #{feature_net_forward.2} parent=11 // pred_fallthru
          _
        // Predicated region
        $region37: #{feature_net_forward.2} parent=11 // pred_check
          %p373 = pneg %p199
        $region38: #{feature_net_forward.2} parent=11 // pred_check_branch
          %375 = sbr.rel (%p373) target = $region40
        $region39: #{feature_net_forward.2} parent=11 // pred_region
          %s377 = ssub.s32 16, 16
          %378 = vsyncadd [#allocation13], %s377
          %381 = dma.hbm_to_smem %s7, 16, [#allocation14], [#allocation13]
        $region40: #{feature_net_forward.2} parent=11 // pred_fallthru
          _
        // Predicated region
        $region41: #{feature_net_forward.2} parent=11 // pred_check
          %p382 = pneg %p220
        $region42: #{feature_net_forward.2} parent=11 // pred_check_branch
          %384 = sbr.rel (%p382) target = $region44
        $region43: #{feature_net_forward.2} parent=11 // pred_region
          %s386 = ssub.s32 16, 16
          %387 = vsyncadd [#allocation16], %s386
          %390 = dma.hbm_to_smem %s8, 16, [#allocation15], [#allocation16]
        $region44: #{feature_net_forward.2} parent=11 // pred_fallthru
          _
        // Predicated region
        $region45: #{feature_net_forward.2} parent=11 // pred_check
          %p391 = pneg %p241
        $region46: #{feature_net_forward.2} parent=11 // pred_check_branch
          %393 = sbr.rel (%p391) target = $region48
        $region47: #{feature_net_forward.2} parent=11 // pred_region
          %s395 = ssub.s32 16, 16
          %396 = vsyncadd [#allocation16], %s395
          %399 = dma.hbm_to_smem %s9, 16, [#allocation17], [#allocation16]
        $region48: #{feature_net_forward.2} parent=11 // pred_fallthru
          _
        // Predicated region
        $region49: #{feature_net_forward.2} parent=11 // pred_check
          %p400 = pneg %p262
        $region50: #{feature_net_forward.2} parent=11 // pred_check_branch
          %402 = sbr.rel (%p400) target = $region52
        $region51: #{feature_net_forward.2} parent=11 // pred_region
          %s404 = ssub.s32 16, 16
          %405 = vsyncadd [#allocation19], %s404
          %408 = dma.hbm_to_smem %s10, 16, [#allocation18], [#allocation19]
        $region52: #{feature_net_forward.2} parent=11 // pred_fallthru
          _
      $region12: #{feature_net_forward.2} parent=5 // pred_fallthru
        _
      %p409 = scmp.lt.s32.totalorder %s26, 2
      // Predicated region
      $region53: #{feature_net_forward.2} parent=5 // pred_check
        %p410 = pneg %p409
      $region54: #{feature_net_forward.2} parent=5 // pred_check_branch
        %412 = sbr.rel (%p410) target = $region56
      $region55: #{feature_net_forward.2} parent=5 // pred_region
        // Predicated region
        $region57: #{feature_net_forward.2} parent=55 // pred_check
          %p413 = pneg %p46
        $region58: #{feature_net_forward.2} parent=55 // pred_check_branch
          %415 = sbr.rel (%p413) target = $region60
        $region59: #{feature_net_forward.2} parent=55 // pred_region
          %s416 = sand.u32 %s36, 1
          %s417 = scalar_lea.sflag [#allocation3], %s416
          %s418 = sand.u32 %s36, 1
          %s419 = smul.addr %s418, 256
          %s420 = scalar_lea.vmem [#allocation2], %s419
          %s422 = ssub.s32 4096, 4096
          %423 = vsyncadd %s417, %s422
          %s424 = smul.addr %s26, 32
          %s425 = smul.addr %s424, 128
          %s426 = scalar_lea.hbm %s0, %s425
          %s427 = sshll.u32 %s420, 4
          %s428 = int_to_ptr.vmem [resolvable:$true] %s427
          %433 = dma.hbm_to_vmem [thread:$0]  %s426, 4096, %s428, %s417, 128, 128, 8
        $region60: #{feature_net_forward.2} parent=55 // pred_fallthru
          _
      $region56: #{feature_net_forward.2} parent=5 // pred_fallthru
        _
      %p434 = scmp.le.s32.totalorder 1, %s26
      %p435 = scmp.lt.s32.totalorder %s26, 3
      %p436 = pnand %p434, %p435
      %p437 = pneg %p436
      // Predicated region
      $region61: #{feature_net_forward.2} parent=5 // pred_check
        _
      $region62: #{feature_net_forward.2} parent=5 // pred_check_branch
        %439 = sbr.rel (%p436) target = $region64
      $region63: #{feature_net_forward.2} parent=5 // pred_region
        %s440 = ssub.s32 %s26, 1
        %s441 = sand.u32 %s39, 1
        %s442 = scalar_lea.sflag [#allocation3], %s441
        %s443 = sand.u32 %s39, 1
        %s444 = smul.addr %s443, 256
        %s445 = scalar_lea.vmem [#allocation2], %s444
        // Predicated region
        $region65: #{feature_net_forward.2} parent=63 // pred_check
          %p446 = pneg %p52
        $region66: #{feature_net_forward.2} parent=63 // pred_check_branch
          %448 = sbr.rel (%p446) target = $region68
        $region67: #{feature_net_forward.2} parent=63 // pred_region
          %449 = dma.done %s442, 4096
        $region68: #{feature_net_forward.2} parent=63 // pred_fallthru
          _
        // Predicated region
        $region69: #{feature_net_forward.2} parent=63 // pred_check
          %p450 = pneg %p73
        $region70: #{feature_net_forward.2} parent=63 // pred_check_branch
          %452 = sbr.rel (%p450) target = $region72
        $region71: #{feature_net_forward.2} parent=63 // pred_region
          %453 = dma.done [#allocation6], 8192
        $region72: #{feature_net_forward.2} parent=63 // pred_fallthru
          _
        // Predicated region
        $region73: #{feature_net_forward.2} parent=63 // pred_check
          %p454 = pneg %p94
        $region74: #{feature_net_forward.2} parent=63 // pred_check_branch
          %456 = sbr.rel (%p454) target = $region76
        $region75: #{feature_net_forward.2} parent=63 // pred_region
          %457 = dma.done [#allocation6], 2048
        $region76: #{feature_net_forward.2} parent=63 // pred_fallthru
          _
        // Predicated region
        $region77: #{feature_net_forward.2} parent=63 // pred_check
          %p458 = pneg %p115
        $region78: #{feature_net_forward.2} parent=63 // pred_check_branch
          %460 = sbr.rel (%p458) target = $region80
        $region79: #{feature_net_forward.2} parent=63 // pred_region
          %461 = dma.done [#allocation9], 8192
        $region80: #{feature_net_forward.2} parent=63 // pred_fallthru
          _
        // Predicated region
        $region81: #{feature_net_forward.2} parent=63 // pred_check
          %p462 = pneg %p136
        $region82: #{feature_net_forward.2} parent=63 // pred_check_branch
          %464 = sbr.rel (%p462) target = $region84
        $region83: #{feature_net_forward.2} parent=63 // pred_region
          %465 = dma.done [#allocation9], 512
        $region84: #{feature_net_forward.2} parent=63 // pred_fallthru
          _
        // Predicated region
        $region85: #{feature_net_forward.2} parent=63 // pred_check
          %p466 = pneg %p157
        $region86: #{feature_net_forward.2} parent=63 // pred_check_branch
          %468 = sbr.rel (%p466) target = $region88
        $region87: #{feature_net_forward.2} parent=63 // pred_region
          %469 = dma.done [#allocation4], 16
        $region88: #{feature_net_forward.2} parent=63 // pred_fallthru
          _
        // Predicated region
        $region89: #{feature_net_forward.2} parent=63 // pred_check
          %p470 = pneg %p178
        $region90: #{feature_net_forward.2} parent=63 // pred_check_branch
          %472 = sbr.rel (%p470) target = $region92
        $region91: #{feature_net_forward.2} parent=63 // pred_region
          %473 = dma.done [#allocation13], 16
        $region92: #{feature_net_forward.2} parent=63 // pred_fallthru
          _
        // Predicated region
        $region93: #{feature_net_forward.2} parent=63 // pred_check
          %p474 = pneg %p199
        $region94: #{feature_net_forward.2} parent=63 // pred_check_branch
          %476 = sbr.rel (%p474) target = $region96
        $region95: #{feature_net_forward.2} parent=63 // pred_region
          %477 = dma.done [#allocation13], 16
        $region96: #{feature_net_forward.2} parent=63 // pred_fallthru
          _
        // Predicated region
        $region97: #{feature_net_forward.2} parent=63 // pred_check
          %p478 = pneg %p220
        $region98: #{feature_net_forward.2} parent=63 // pred_check_branch
          %480 = sbr.rel (%p478) target = $region100
        $region99: #{feature_net_forward.2} parent=63 // pred_region
          %481 = dma.done [#allocation16], 16
        $region100: #{feature_net_forward.2} parent=63 // pred_fallthru
          _
        // Predicated region
        $region101: #{feature_net_forward.2} parent=63 // pred_check
          %p482 = pneg %p241
        $region102: #{feature_net_forward.2} parent=63 // pred_check_branch
          %484 = sbr.rel (%p482) target = $region104
        $region103: #{feature_net_forward.2} parent=63 // pred_region
          %485 = dma.done [#allocation16], 16
        $region104: #{feature_net_forward.2} parent=63 // pred_fallthru
          _
        // Predicated region
        $region105: #{feature_net_forward.2} parent=63 // pred_check
          %p486 = pneg %p262
        $region106: #{feature_net_forward.2} parent=63 // pred_check_branch
          %488 = sbr.rel (%p486) target = $region108
        $region107: #{feature_net_forward.2} parent=63 // pred_region
          %489 = dma.done [#allocation19], 16
        $region108: #{feature_net_forward.2} parent=63 // pred_fallthru
          _
        %490 = sfence
        %s491 = sand.u32 %s39, 1
        %s492 = scalar_lea.sflag [#allocation3], %s491
        %s493 = sand.u32 %s39, 1
        %s494 = smul.addr %s493, 256
        %s495 = scalar_lea.vmem [#allocation2], %s494
        %p496 = pneg %p52
        %p497 = pneg %p49
        %p498 = pneg %p73
        %p499 = pneg %p70
        %p500 = pneg %p94
        %p501 = pneg %p91
        %p502 = pneg %p115
        %p503 = pneg %p112
        %p504 = pneg %p136
        %p505 = pneg %p133
        %p506 = pneg %p157
        %p507 = pneg %p154
        %p508 = pneg %p178
        %p509 = pneg %p175
        %p510 = pneg %p199
        %p511 = pneg %p196
        %p512 = pneg %p220
        %p513 = pneg %p217
        %p514 = pneg %p241
        %p515 = pneg %p238
        %p516 = pneg %p262
        %p517 = pneg %p259
        %p518 = pneg %p288
        %p519 = pneg %p285
        %p520 = scmp.lt.s32.totalorder %s31, 1
        %s521 = scalar_select %p520, %s31, 1
        %s522 = smul.addr %s521, 2
        %s523 = smul.addr %s522, 8
        %s524 = scalar_lea.vmem %s11, %s523
        %p525 = scmp.lt.s32.totalorder %s31, 1
        %s526 = scalar_select %p525, %s31, 1
        %s527 = smul.addr %s526, 2
        %s528 = smul.addr %s527, 8
        %s529 = scalar_lea.vmem %s11, %s528
        %v530 = vld [vmem:[%s445] sm:$0xff]
        %v531 = vld [vmem:[%s445 + $0x8] sm:$0xff]
        %v532 = vld [vmem:[%s445 + $0x10] sm:$0xff]
        %v533 = vld [vmem:[%s445 + $0x18] sm:$0xff]
        %v534 = vld [vmem:[%s445 + $0x20] sm:$0xff]
        %v535 = vld [vmem:[%s445 + $0x28] sm:$0xff]
        %v536 = vld [vmem:[%s445 + $0x30] sm:$0xff]
        %v537 = vld [vmem:[%s445 + $0x38] sm:$0xff]
        %v538 = vld [vmem:[%s445 + $0x40] sm:$0xff]
        %v539 = vld [vmem:[%s445 + $0x48] sm:$0xff]
        %v540 = vld [vmem:[%s445 + $0x50] sm:$0xff]
        %v541 = vld [vmem:[%s445 + $0x58] sm:$0xff]
        %v542 = vld [vmem:[%s445 + $0x60] sm:$0xff]
        %v543 = vld [vmem:[%s445 + $0x68] sm:$0xff]
        %v544 = vld [vmem:[%s445 + $0x70] sm:$0xff]
        %v545 = vld [vmem:[%s445 + $0x78] sm:$0xff]
        %v546 = vld [vmem:[%s445 + $0x80] sm:$0xff]
        %v547 = vld [vmem:[%s445 + $0x88] sm:$0xff]
        %v548 = vld [vmem:[%s445 + $0x90] sm:$0xff]
        %v549 = vld [vmem:[%s445 + $0x98] sm:$0xff]
        %v550 = vld [vmem:[%s445 + $0xa0] sm:$0xff]
        %v551 = vld [vmem:[%s445 + $0xa8] sm:$0xff]
        %v552 = vld [vmem:[%s445 + $0xb0] sm:$0xff]
        %v553 = vld [vmem:[%s445 + $0xb8] sm:$0xff]
        %v554 = vld [vmem:[%s445 + $0xc0] sm:$0xff]
        %v555 = vld [vmem:[%s445 + $0xc8] sm:$0xff]
        %v556 = vld [vmem:[%s445 + $0xd0] sm:$0xff]
        %v557 = vld [vmem:[%s445 + $0xd8] sm:$0xff]
        %v558 = vld [vmem:[%s445 + $0xe0] sm:$0xff]
        %v559 = vld [vmem:[%s445 + $0xe8] sm:$0xff]
        %v560 = vld [vmem:[%s445 + $0xf0] sm:$0xff]
        %v561 = vld [vmem:[%s445 + $0xf8] sm:$0xff]
        %v562 = vld [vmem:[#allocation5] sm:$0xff]
        %v563 = vld [vmem:[#allocation5 + $0x8] sm:$0xff]
        %v564 = vld [vmem:[#allocation5 + $0x10] sm:$0xff]
        %v565 = vld [vmem:[#allocation5 + $0x18] sm:$0xff]
        %v566 = vld [vmem:[#allocation5 + $0x20] sm:$0xff]
        %v567 = vld [vmem:[#allocation5 + $0x28] sm:$0xff]
        %v568 = vld [vmem:[#allocation5 + $0x30] sm:$0xff]
        %v569 = vld [vmem:[#allocation5 + $0x38] sm:$0xff]
        %v570 = vld [vmem:[#allocation5 + $0x40] sm:$0xff]
        %v571 = vld [vmem:[#allocation5 + $0x48] sm:$0xff]
        %v572 = vld [vmem:[#allocation5 + $0x50] sm:$0xff]
        %v573 = vld [vmem:[#allocation5 + $0x58] sm:$0xff]
        %v574 = vld [vmem:[#allocation5 + $0x60] sm:$0xff]
        %v575 = vld [vmem:[#allocation5 + $0x68] sm:$0xff]
        %v576 = vld [vmem:[#allocation5 + $0x70] sm:$0xff]
        %v577 = vld [vmem:[#allocation5 + $0x78] sm:$0xff]
        %v578 = vld [vmem:[#allocation5 + $0x80] sm:$0xff]
        %v579 = vld [vmem:[#allocation5 + $0x88] sm:$0xff]
        %v580 = vld [vmem:[#allocation5 + $0x90] sm:$0xff]
        %v581 = vld [vmem:[#allocation5 + $0x98] sm:$0xff]
        %v582 = vld [vmem:[#allocation5 + $0xa0] sm:$0xff]
        %v583 = vld [vmem:[#allocation5 + $0xa8] sm:$0xff]
        %v584 = vld [vmem:[#allocation5 + $0xb0] sm:$0xff]
        %v585 = vld [vmem:[#allocation5 + $0xb8] sm:$0xff]
        %v586 = vld [vmem:[#allocation5 + $0xc0] sm:$0xff]
        %v587 = vld [vmem:[#allocation5 + $0xc8] sm:$0xff]
        %v588 = vld [vmem:[#allocation5 + $0xd0] sm:$0xff]
        %v589 = vld [vmem:[#allocation5 + $0xd8] sm:$0xff]
        %v590 = vld [vmem:[#allocation5 + $0xe0] sm:$0xff]
        %v591 = vld [vmem:[#allocation5 + $0xe8] sm:$0xff]
        %v592 = vld [vmem:[#allocation5 + $0xf0] sm:$0xff]
        %v593 = vld [vmem:[#allocation5 + $0xf8] sm:$0xff]
        %v594 = vld [vmem:[#allocation5 + $0x100] sm:$0xff]
        %v595 = vld [vmem:[#allocation5 + $0x108] sm:$0xff]
        %v596 = vld [vmem:[#allocation5 + $0x110] sm:$0xff]
        %v597 = vld [vmem:[#allocation5 + $0x118] sm:$0xff]
        %v598 = vld [vmem:[#allocation5 + $0x120] sm:$0xff]
        %v599 = vld [vmem:[#allocation5 + $0x128] sm:$0xff]
        %v600 = vld [vmem:[#allocation5 + $0x130] sm:$0xff]
        %v601 = vld [vmem:[#allocation5 + $0x138] sm:$0xff]
        %v602 = vld [vmem:[#allocation5 + $0x140] sm:$0xff]
        %v603 = vld [vmem:[#allocation5 + $0x148] sm:$0xff]
        %v604 = vld [vmem:[#allocation5 + $0x150] sm:$0xff]
        %v605 = vld [vmem:[#allocation5 + $0x158] sm:$0xff]
        %v606 = vld [vmem:[#allocation5 + $0x160] sm:$0xff]
        %v607 = vld [vmem:[#allocation5 + $0x168] sm:$0xff]
        %v608 = vld [vmem:[#allocation5 + $0x170] sm:$0xff]
        %v609 = vld [vmem:[#allocation5 + $0x178] sm:$0xff]
        %v610 = vld [vmem:[#allocation5 + $0x180] sm:$0xff]
        %v611 = vld [vmem:[#allocation5 + $0x188] sm:$0xff]
        %v612 = vld [vmem:[#allocation5 + $0x190] sm:$0xff]
        %v613 = vld [vmem:[#allocation5 + $0x198] sm:$0xff]
        %v614 = vld [vmem:[#allocation5 + $0x1a0] sm:$0xff]
        %v615 = vld [vmem:[#allocation5 + $0x1a8] sm:$0xff]
        %v616 = vld [vmem:[#allocation5 + $0x1b0] sm:$0xff]
        %v617 = vld [vmem:[#allocation5 + $0x1b8] sm:$0xff]
        %v618 = vld [vmem:[#allocation5 + $0x1c0] sm:$0xff]
        %v619 = vld [vmem:[#allocation5 + $0x1c8] sm:$0xff]
        %v620 = vld [vmem:[#allocation5 + $0x1d0] sm:$0xff]
        %v621 = vld [vmem:[#allocation5 + $0x1d8] sm:$0xff]
        %v622 = vld [vmem:[#allocation5 + $0x1e0] sm:$0xff]
        %v623 = vld [vmem:[#allocation5 + $0x1e8] sm:$0xff]
        %v624 = vld [vmem:[#allocation5 + $0x1f0] sm:$0xff]
        %v625 = vld [vmem:[#allocation5 + $0x1f8] sm:$0xff]
        %626 = vmatprep.subr.mxu0 0.0
        %627 = vmatpush1.msra.mxu0 %v530
        %628 = vmatprep.subr.mxu0 0.0
        %629 = vmatpush1.msra.mxu0 %v531
        %630 = vmatprep.subr.mxu0 0.0
        %631 = vmatpush1.msra.mxu0 %v532
        %632 = vmatprep.subr.mxu0 0.0
        %633 = vmatpush1.msra.mxu0 %v533
        %634 = vmatprep.subr.mxu0 0.0
        %635 = vmatpush1.msra.mxu0 %v534
        %636 = vmatprep.subr.mxu0 0.0
        %637 = vmatpush1.msra.mxu0 %v535
        %638 = vmatprep.subr.mxu0 0.0
        %639 = vmatpush1.msra.mxu0 %v536
        %640 = vmatprep.subr.mxu0 0.0
        %641 = vmatpush1.msra.mxu0 %v537
        %642 = vmatprep.subr.mxu0 0.0
        %643 = vmatpush1.msra.mxu0 %v538
        %644 = vmatprep.subr.mxu0 0.0
        %645 = vmatpush1.msra.mxu0 %v539
        %646 = vmatprep.subr.mxu0 0.0
        %647 = vmatpush1.msra.mxu0 %v540
        %648 = vmatprep.subr.mxu0 0.0
        %649 = vmatpush1.msra.mxu0 %v541
        %650 = vmatprep.subr.mxu0 0.0
        %651 = vmatpush1.msra.mxu0 %v542
        %652 = vmatprep.subr.mxu0 0.0
        %653 = vmatpush1.msra.mxu0 %v543
        %654 = vmatprep.subr.mxu0 0.0
        %655 = vmatpush1.msra.mxu0 %v544
        %656 = vmatprep.subr.mxu0 0.0
        %657 = vmatpush1.msra.mxu0 %v545
        %658 = vmatprep.subr.mxu0 0.0
        %659 = vmatpush1.msra.mxu0 %v546
        %660 = vmatprep.subr.mxu0 0.0
        %661 = vmatpush1.msra.mxu0 %v547
        %662 = vmatprep.subr.mxu0 0.0
        %663 = vmatpush1.msra.mxu0 %v548
        %664 = vmatprep.subr.mxu0 0.0
        %665 = vmatpush1.msra.mxu0 %v549
        %666 = vmatprep.subr.mxu0 0.0
        %667 = vmatpush1.msra.mxu0 %v550
        %668 = vmatprep.subr.mxu0 0.0
        %669 = vmatpush1.msra.mxu0 %v551
        %670 = vmatprep.subr.mxu0 0.0
        %671 = vmatpush1.msra.mxu0 %v552
        %672 = vmatprep.subr.mxu0 0.0
        %673 = vmatpush1.msra.mxu0 %v553
        %674 = vmatprep.subr.mxu0 0.0
        %675 = vmatpush1.msra.mxu0 %v554
        %676 = vmatprep.subr.mxu0 0.0
        %677 = vmatpush1.msra.mxu0 %v555
        %678 = vmatprep.subr.mxu0 0.0
        %679 = vmatpush1.msra.mxu0 %v556
        %680 = vmatprep.subr.mxu0 0.0
        %681 = vmatpush1.msra.mxu0 %v557
        %682 = vmatprep.subr.mxu0 0.0
        %683 = vmatpush1.msra.mxu0 %v558
        %684 = vmatprep.subr.mxu0 0.0
        %685 = vmatpush1.msra.mxu0 %v559
        %686 = vmatprep.subr.mxu0 0.0
        %687 = vmatpush1.msra.mxu0 %v560
        %688 = vmatprep.subr.mxu0 0.0
        %689 = vmatpush1.msra.mxu0 %v561
        %690 = vmatprep.mubr.f32.mxu0 %v563
        %691 = vmatmul.mubr.f32.gmra.mrb[0].mxu0 %v562
        %v692 = vpop.f32.mrb[0].mxu0
        %v693 = vadd.f32 0.0, %v692
        %v694 = vpop.f32.mrb[0].mxu0
        %695 = vmatprep.mubr.f32.mxu0 %v565
        %696 = vmatmul.mubr.f32.gmra.mrb[0].mxu0 %v564
        %v697 = vpop.f32.mrb[0].mxu0
        %v698 = vadd.f32 0.0, %v697
        %v699 = vpop.f32.mrb[0].mxu0
        %700 = vmatprep.mubr.f32.mxu0 %v567
        %701 = vmatmul.mubr.f32.gmra.mrb[0].mxu0 %v566
        %v702 = vpop.f32.mrb[0].mxu0
        %v703 = vadd.f32 0.0, %v702
        %v704 = vpop.f32.mrb[0].mxu0
        %705 = vmatprep.mubr.f32.mxu0 %v569
        %706 = vmatmul.mubr.f32.gmra.mrb[0].mxu0 %v568
        %v707 = vpop.f32.mrb[0].mxu0
        %v708 = vadd.f32 0.0, %v707
        %v709 = vpop.f32.mrb[0].mxu0
        %710 = vmatprep.mubr.f32.mxu0 %v571
        %711 = vmatmul.mubr.f32.gmra.mrb[0].mxu0 %v570
        %v712 = vpop.f32.mrb[0].mxu0
        %v713 = vadd.f32 0.0, %v712
        %v714 = vpop.f32.mrb[0].mxu0
        %715 = vmatprep.mubr.f32.mxu0 %v573
        %716 = vmatmul.mubr.f32.gmra.mrb[0].mxu0 %v572
        %v717 = vpop.f32.mrb[0].mxu0
        %v718 = vadd.f32 0.0, %v717
        %v719 = vpop.f32.mrb[0].mxu0
        %720 = vmatprep.mubr.f32.mxu0 %v575
        %721 = vmatmul.mubr.f32.gmra.mrb[0].mxu0 %v574
        %v722 = vpop.f32.mrb[0].mxu0
        %v723 = vadd.f32 0.0, %v722
        %v724 = vpop.f32.mrb[0].mxu0
        %725 = vmatprep.mubr.f32.mxu0 %v577
        %726 = vmatmul.mubr.f32.gmra.mrb[0].mxu0 %v576
        %v727 = vpop.f32.mrb[0].mxu0
        %v728 = vadd.f32 0.0, %v727
        %v729 = vpop.f32.mrb[0].mxu0
        %730 = vmatprep.mubr.f32.mxu0 %v579
        %731 = vmatmul.mubr.f32.gmra.mrb[0].mxu0 %v578
        %v732 = vpop.f32.mrb[0].mxu0
        %v733 = vadd.f32 0.0, %v732
        %v734 = vpop.f32.mrb[0].mxu0
        %735 = vmatprep.mubr.f32.mxu0 %v581
        %736 = vmatmul.mubr.f32.gmra.mrb[0].mxu0 %v580
        %v737 = vpop.f32.mrb[0].mxu0
        %v738 = vadd.f32 0.0, %v737
        %v739 = vpop.f32.mrb[0].mxu0
        %740 = vmatprep.mubr.f32.mxu0 %v583
        %741 = vmatmul.mubr.f32.gmra.mrb[0].mxu0 %v582
        %v742 = vpop.f32.mrb[0].mxu0
        %v743 = vadd.f32 0.0, %v742
        %v744 = vpop.f32.mrb[0].mxu0
        %745 = vmatprep.mubr.f32.mxu0 %v585
        %746 = vmatmul.mubr.f32.gmra.mrb[0].mxu0 %v584
        %v747 = vpop.f32.mrb[0].mxu0
        %v748 = vadd.f32 0.0, %v747
        %v749 = vpop.f32.mrb[0].mxu0
        %750 = vmatprep.mubr.f32.mxu0 %v587
        %751 = vmatmul.mubr.f32.gmra.mrb[0].mxu0 %v586
        %v752 = vpop.f32.mrb[0].mxu0
        %v753 = vadd.f32 0.0, %v752
        %v754 = vpop.f32.mrb[0].mxu0
        %755 = vmatprep.mubr.f32.mxu0 %v589
        %756 = vmatmul.mubr.f32.gmra.mrb[0].mxu0 %v588
        %v757 = vpop.f32.mrb[0].mxu0
        %v758 = vadd.f32 0.0, %v757
        %v759 = vpop.f32.mrb[0].mxu0
        %760 = vmatprep.mubr.f32.mxu0 %v591
        %761 = vmatmul.mubr.f32.gmra.mrb[0].mxu0 %v590
        %v762 = vpop.f32.mrb[0].mxu0
        %v763 = vadd.f32 0.0, %v762
        %v764 = vpop.f32.mrb[0].mxu0
        %765 = vmatprep.mubr.f32.mxu0 %v593
        %766 = vmatmul.mubr.f32.gmra.mrb[0].mxu0 %v592
        %v767 = vpop.f32.mrb[0].mxu0
        %v768 = vadd.f32 0.0, %v767
        %v769 = vpop.f32.mrb[0].mxu0
        %770 = vmatprep.mubr.f32.mxu0 %v595
        %771 = vmatmul.mubr.f32.gmra.mrb[0].mxu0 %v594
        %v772 = vpop.f32.mrb[0].mxu0
        %v773 = vadd.f32 0.0, %v772
        %v774 = vpop.f32.mrb[0].mxu0
        %775 = vmatprep.mubr.f32.mxu0 %v597
        %776 = vmatmul.mubr.f32.gmra.mrb[0].mxu0 %v596
        %v777 = vpop.f32.mrb[0].mxu0
        %v778 = vadd.f32 0.0, %v777
        %v779 = vpop.f32.mrb[0].mxu0
        %780 = vmatprep.mubr.f32.mxu0 %v599
        %781 = vmatmul.mubr.f32.gmra.mrb[0].mxu0 %v598
        %v782 = vpop.f32.mrb[0].mxu0
        %v783 = vadd.f32 0.0, %v782
        %v784 = vpop.f32.mrb[0].mxu0
        %785 = vmatprep.mubr.f32.mxu0 %v601
        %786 = vmatmul.mubr.f32.gmra.mrb[0].mxu0 %v600
        %v787 = vpop.f32.mrb[0].mxu0
        %v788 = vadd.f32 0.0, %v787
        %v789 = vpop.f32.mrb[0].mxu0
        %790 = vmatprep.mubr.f32.mxu0 %v603
        %791 = vmatmul.mubr.f32.gmra.mrb[0].mxu0 %v602
        %v792 = vpop.f32.mrb[0].mxu0
        %v793 = vadd.f32 0.0, %v792
        %v794 = vpop.f32.mrb[0].mxu0
        %795 = vmatprep.mubr.f32.mxu0 %v605
        %796 = vmatmul.mubr.f32.gmra.mrb[0].mxu0 %v604
        %v797 = vpop.f32.mrb[0].mxu0
        %v798 = vadd.f32 0.0, %v797
        %v799 = vpop.f32.mrb[0].mxu0
        %800 = vmatprep.mubr.f32.mxu0 %v607
        %801 = vmatmul.mubr.f32.gmra.mrb[0].mxu0 %v606
        %v802 = vpop.f32.mrb[0].mxu0
        %v803 = vadd.f32 0.0, %v802
        %v804 = vpop.f32.mrb[0].mxu0
        %805 = vmatprep.mubr.f32.mxu0 %v609
        %806 = vmatmul.mubr.f32.gmra.mrb[0].mxu0 %v608
        %v807 = vpop.f32.mrb[0].mxu0
        %v808 = vadd.f32 0.0, %v807
        %v809 = vpop.f32.mrb[0].mxu0
        %810 = vmatprep.mubr.f32.mxu0 %v611
        %811 = vmatmul.mubr.f32.gmra.mrb[0].mxu0 %v610
        %v812 = vpop.f32.mrb[0].mxu0
        %v813 = vadd.f32 0.0, %v812
        %v814 = vpop.f32.mrb[0].mxu0
        %815 = vmatprep.mubr.f32.mxu0 %v613
        %816 = vmatmul.mubr.f32.gmra.mrb[0].mxu0 %v612
        %v817 = vpop.f32.mrb[0].mxu0
        %v818 = vadd.f32 0.0, %v817
        %v819 = vpop.f32.mrb[0].mxu0
        %820 = vmatprep.mubr.f32.mxu0 %v615
        %821 = vmatmul.mubr.f32.gmra.mrb[0].mxu0 %v614
        %v822 = vpop.f32.mrb[0].mxu0
        %v823 = vadd.f32 0.0, %v822
        %v824 = vpop.f32.mrb[0].mxu0
        %825 = vmatprep.mubr.f32.mxu0 %v617
        %826 = vmatmul.mubr.f32.gmra.mrb[0].mxu0 %v616
        %v827 = vpop.f32.mrb[0].mxu0
        %v828 = vadd.f32 0.0, %v827
        %v829 = vpop.f32.mrb[0].mxu0
        %830 = vmatprep.mubr.f32.mxu0 %v619
        %831 = vmatmul.mubr.f32.gmra.mrb[0].mxu0 %v618
        %v832 = vpop.f32.mrb[0].mxu0
        %v833 = vadd.f32 0.0, %v832
        %v834 = vpop.f32.mrb[0].mxu0
        %835 = vmatprep.mubr.f32.mxu0 %v621
        %836 = vmatmul.mubr.f32.gmra.mrb[0].mxu0 %v620
        %v837 = vpop.f32.mrb[0].mxu0
        %v838 = vadd.f32 0.0, %v837
        %v839 = vpop.f32.mrb[0].mxu0
        %840 = vmatprep.mubr.f32.mxu0 %v623
        %841 = vmatmul.mubr.f32.gmra.mrb[0].mxu0 %v622
        %v842 = vpop.f32.mrb[0].mxu0
        %v843 = vadd.f32 0.0, %v842
        %v844 = vpop.f32.mrb[0].mxu0
        %845 = vmatprep.mubr.f32.mxu0 %v625
        %846 = vmatmul.mubr.f32.gmra.mrb[0].mxu0 %v624
        %v847 = vpop.f32.mrb[0].mxu0
        %v848 = vadd.f32 0.0, %v847
        %v849 = vpop.f32.mrb[0].mxu0
        %850 = vdwg.mxu0
        %v851 = vld [vmem:[#allocation7] sm:$0xff]
        %v852 = vld [vmem:[#allocation7 + $0x8] sm:$0xff]
        %v853 = vld [vmem:[#allocation7 + $0x10] sm:$0xff]
        %v854 = vld [vmem:[#allocation7 + $0x18] sm:$0xff]
        %v855 = vld [vmem:[#allocation7 + $0x20] sm:$0xff]
        %v856 = vld [vmem:[#allocation7 + $0x28] sm:$0xff]
        %v857 = vld [vmem:[#allocation7 + $0x30] sm:$0xff]
        %v858 = vld [vmem:[#allocation7 + $0x38] sm:$0xff]
        %v859 = vld [vmem:[#allocation7 + $0x40] sm:$0xff]
        %v860 = vld [vmem:[#allocation7 + $0x48] sm:$0xff]
        %v861 = vld [vmem:[#allocation7 + $0x50] sm:$0xff]
        %v862 = vld [vmem:[#allocation7 + $0x58] sm:$0xff]
        %v863 = vld [vmem:[#allocation7 + $0x60] sm:$0xff]
        %v864 = vld [vmem:[#allocation7 + $0x68] sm:$0xff]
        %v865 = vld [vmem:[#allocation7 + $0x70] sm:$0xff]
        %v866 = vld [vmem:[#allocation7 + $0x78] sm:$0xff]
        %867 = vmatprep.subr.mxu0 0.0
        %868 = vmatpush1.msra.mxu0 %v851
        %869 = vmatprep.subr.mxu0 0.0
        %870 = vmatpush1.msra.mxu0 %v852
        %871 = vmatprep.subr.mxu0 0.0
        %872 = vmatpush1.msra.mxu0 %v853
        %873 = vmatprep.subr.mxu0 0.0
        %874 = vmatpush1.msra.mxu0 %v854
        %875 = vmatprep.subr.mxu0 0.0
        %876 = vmatpush1.msra.mxu0 %v855
        %877 = vmatprep.subr.mxu0 0.0
        %878 = vmatpush1.msra.mxu0 %v856
        %879 = vmatprep.subr.mxu0 0.0
        %880 = vmatpush1.msra.mxu0 %v857
        %881 = vmatprep.subr.mxu0 0.0
        %882 = vmatpush1.msra.mxu0 %v858
        %883 = vmatprep.subr.mxu0 0.0
        %884 = vmatpush1.msra.mxu0 %v859
        %885 = vmatprep.subr.mxu0 0.0
        %886 = vmatpush1.msra.mxu0 %v860
        %887 = vmatprep.subr.mxu0 0.0
        %888 = vmatpush1.msra.mxu0 %v861
        %889 = vmatprep.subr.mxu0 0.0
        %890 = vmatpush1.msra.mxu0 %v862
        %891 = vmatprep.subr.mxu0 0.0
        %892 = vmatpush1.msra.mxu0 %v863
        %893 = vmatprep.subr.mxu0 0.0
        %894 = vmatpush1.msra.mxu0 %v864
        %895 = vmatprep.subr.mxu0 0.0
        %896 = vmatpush1.msra.mxu0 %v865
        %897 = vmatprep.subr.mxu0 0.0
        %898 = vmatpush1.msra.mxu0 %v866
        %899 = vmatprep.subr.mxu0 0.0
        %900 = vmatpush1.msra.mxu0 0.0
        %901 = vmatprep.subr.mxu0 0.0
        %902 = vmatpush1.msra.mxu0 0.0
        %903 = vmatprep.subr.mxu0 0.0
        %904 = vmatpush1.msra.mxu0 0.0
        %905 = vmatprep.subr.mxu0 0.0
        %906 = vmatpush1.msra.mxu0 0.0
        %907 = vmatprep.subr.mxu0 0.0
        %908 = vmatpush1.msra.mxu0 0.0
        %909 = vmatprep.subr.mxu0 0.0
        %910 = vmatpush1.msra.mxu0 0.0
        %911 = vmatprep.subr.mxu0 0.0
        %912 = vmatpush1.msra.mxu0 0.0
        %913 = vmatprep.subr.mxu0 0.0
        %914 = vmatpush1.msra.mxu0 0.0
        %915 = vmatprep.subr.mxu0 0.0
        %916 = vmatpush1.msra.mxu0 0.0
        %917 = vmatprep.subr.mxu0 0.0
        %918 = vmatpush1.msra.mxu0 0.0
        %919 = vmatprep.subr.mxu0 0.0
        %920 = vmatpush1.msra.mxu0 0.0
        %921 = vmatprep.subr.mxu0 0.0
        %922 = vmatpush1.msra.mxu0 0.0
        %923 = vmatprep.subr.mxu0 0.0
        %924 = vmatpush1.msra.mxu0 0.0
        %925 = vmatprep.subr.mxu0 0.0
        %926 = vmatpush1.msra.mxu0 0.0
        %927 = vmatprep.subr.mxu0 0.0
        %928 = vmatpush1.msra.mxu0 0.0
        %929 = vmatprep.subr.mxu0 0.0
        %930 = vmatpush1.msra.mxu0 0.0
        %931 = vmatprep.mubr.f32.mxu0 0.0
        %932 = vmatmul.mubr.f32.gmra.mrb[0].mxu0 %v693
        %v933 = vpop.f32.mrb[0].mxu0
        %v934 = vadd.f32 0.0, %v933
        %v935 = vpop.f32.mrb[0].mxu0
        %936 = vmatprep.mubr.f32.mxu0 0.0
        %937 = vmatmul.mubr.f32.gmra.mrb[0].mxu0 %v698
        %v938 = vpop.f32.mrb[0].mxu0
        %v939 = vadd.f32 0.0, %v938
        %v940 = vpop.f32.mrb[0].mxu0
        %941 = vmatprep.mubr.f32.mxu0 0.0
        %942 = vmatmul.mubr.f32.gmra.mrb[0].mxu0 %v703
        %v943 = vpop.f32.mrb[0].mxu0
        %v944 = vadd.f32 0.0, %v943
        %v945 = vpop.f32.mrb[0].mxu0
        %946 = vmatprep.mubr.f32.mxu0 0.0
        %947 = vmatmul.mubr.f32.gmra.mrb[0].mxu0 %v708
        %v948 = vpop.f32.mrb[0].mxu0
        %v949 = vadd.f32 0.0, %v948
        %v950 = vpop.f32.mrb[0].mxu0
        %951 = vmatprep.mubr.f32.mxu0 0.0
        %952 = vmatmul.mubr.f32.gmra.mrb[0].mxu0 %v713
        %v953 = vpop.f32.mrb[0].mxu0
        %v954 = vadd.f32 0.0, %v953
        %v955 = vpop.f32.mrb[0].mxu0
        %956 = vmatprep.mubr.f32.mxu0 0.0
        %957 = vmatmul.mubr.f32.gmra.mrb[0].mxu0 %v718
        %v958 = vpop.f32.mrb[0].mxu0
        %v959 = vadd.f32 0.0, %v958
        %v960 = vpop.f32.mrb[0].mxu0
        %961 = vmatprep.mubr.f32.mxu0 0.0
        %962 = vmatmul.mubr.f32.gmra.mrb[0].mxu0 %v723
        %v963 = vpop.f32.mrb[0].mxu0
        %v964 = vadd.f32 0.0, %v963
        %v965 = vpop.f32.mrb[0].mxu0
        %966 = vmatprep.mubr.f32.mxu0 0.0
        %967 = vmatmul.mubr.f32.gmra.mrb[0].mxu0 %v728
        %v968 = vpop.f32.mrb[0].mxu0
        %v969 = vadd.f32 0.0, %v968
        %v970 = vpop.f32.mrb[0].mxu0
        %971 = vmatprep.mubr.f32.mxu0 0.0
        %972 = vmatmul.mubr.f32.gmra.mrb[0].mxu0 %v733
        %v973 = vpop.f32.mrb[0].mxu0
        %v974 = vadd.f32 0.0, %v973
        %v975 = vpop.f32.mrb[0].mxu0
        %976 = vmatprep.mubr.f32.mxu0 0.0
        %977 = vmatmul.mubr.f32.gmra.mrb[0].mxu0 %v738
        %v978 = vpop.f32.mrb[0].mxu0
        %v979 = vadd.f32 0.0, %v978
        %v980 = vpop.f32.mrb[0].mxu0
        %981 = vmatprep.mubr.f32.mxu0 0.0
        %982 = vmatmul.mubr.f32.gmra.mrb[0].mxu0 %v743
        %v983 = vpop.f32.mrb[0].mxu0
        %v984 = vadd.f32 0.0, %v983
        %v985 = vpop.f32.mrb[0].mxu0
        %986 = vmatprep.mubr.f32.mxu0 0.0
        %987 = vmatmul.mubr.f32.gmra.mrb[0].mxu0 %v748
        %v988 = vpop.f32.mrb[0].mxu0
        %v989 = vadd.f32 0.0, %v988
        %v990 = vpop.f32.mrb[0].mxu0
        %991 = vmatprep.mubr.f32.mxu0 0.0
        %992 = vmatmul.mubr.f32.gmra.mrb[0].mxu0 %v753
        %v993 = vpop.f32.mrb[0].mxu0
        %v994 = vadd.f32 0.0, %v993
        %v995 = vpop.f32.mrb[0].mxu0
        %996 = vmatprep.mubr.f32.mxu0 0.0
        %997 = vmatmul.mubr.f32.gmra.mrb[0].mxu0 %v758
        %v998 = vpop.f32.mrb[0].mxu0
        %v999 = vadd.f32 0.0, %v998
        %v1000 = vpop.f32.mrb[0].mxu0
        %1001 = vmatprep.mubr.f32.mxu0 0.0
        %1002 = vmatmul.mubr.f32.gmra.mrb[0].mxu0 %v763
        %v1003 = vpop.f32.mrb[0].mxu0
        %v1004 = vadd.f32 0.0, %v1003
        %v1005 = vpop.f32.mrb[0].mxu0
        %1006 = vmatprep.mubr.f32.mxu0 0.0
        %1007 = vmatmul.mubr.f32.gmra.mrb[0].mxu0 %v768
        %v1008 = vpop.f32.mrb[0].mxu0
        %v1009 = vadd.f32 0.0, %v1008
        %v1010 = vpop.f32.mrb[0].mxu0
        %1011 = vmatprep.mubr.f32.mxu0 0.0
        %1012 = vmatmul.mubr.f32.gmra.mrb[0].mxu0 %v773
        %v1013 = vpop.f32.mrb[0].mxu0
        %v1014 = vadd.f32 0.0, %v1013
        %v1015 = vpop.f32.mrb[0].mxu0
        %1016 = vmatprep.mubr.f32.mxu0 0.0
        %1017 = vmatmul.mubr.f32.gmra.mrb[0].mxu0 %v778
        %v1018 = vpop.f32.mrb[0].mxu0
        %v1019 = vadd.f32 0.0, %v1018
        %v1020 = vpop.f32.mrb[0].mxu0
        %1021 = vmatprep.mubr.f32.mxu0 0.0
        %1022 = vmatmul.mubr.f32.gmra.mrb[0].mxu0 %v783
        %v1023 = vpop.f32.mrb[0].mxu0
        %v1024 = vadd.f32 0.0, %v1023
        %v1025 = vpop.f32.mrb[0].mxu0
        %1026 = vmatprep.mubr.f32.mxu0 0.0
        %1027 = vmatmul.mubr.f32.gmra.mrb[0].mxu0 %v788
        %v1028 = vpop.f32.mrb[0].mxu0
        %v1029 = vadd.f32 0.0, %v1028
        %v1030 = vpop.f32.mrb[0].mxu0
        %1031 = vmatprep.mubr.f32.mxu0 0.0
        %1032 = vmatmul.mubr.f32.gmra.mrb[0].mxu0 %v793
        %v1033 = vpop.f32.mrb[0].mxu0
        %v1034 = vadd.f32 0.0, %v1033
        %v1035 = vpop.f32.mrb[0].mxu0
        %1036 = vmatprep.mubr.f32.mxu0 0.0
        %1037 = vmatmul.mubr.f32.gmra.mrb[0].mxu0 %v798
        %v1038 = vpop.f32.mrb[0].mxu0
        %v1039 = vadd.f32 0.0, %v1038
        %v1040 = vpop.f32.mrb[0].mxu0
        %1041 = vmatprep.mubr.f32.mxu0 0.0
        %1042 = vmatmul.mubr.f32.gmra.mrb[0].mxu0 %v803
        %v1043 = vpop.f32.mrb[0].mxu0
        %v1044 = vadd.f32 0.0, %v1043
        %v1045 = vpop.f32.mrb[0].mxu0
        %1046 = vmatprep.mubr.f32.mxu0 0.0
        %1047 = vmatmul.mubr.f32.gmra.mrb[0].mxu0 %v808
        %v1048 = vpop.f32.mrb[0].mxu0
        %v1049 = vadd.f32 0.0, %v1048
        %v1050 = vpop.f32.mrb[0].mxu0
        %1051 = vmatprep.mubr.f32.mxu0 0.0
        %1052 = vmatmul.mubr.f32.gmra.mrb[0].mxu0 %v813
        %v1053 = vpop.f32.mrb[0].mxu0
        %v1054 = vadd.f32 0.0, %v1053
        %v1055 = vpop.f32.mrb[0].mxu0
        %1056 = vmatprep.mubr.f32.mxu0 0.0
        %1057 = vmatmul.mubr.f32.gmra.mrb[0].mxu0 %v818
        %v1058 = vpop.f32.mrb[0].mxu0
        %v1059 = vadd.f32 0.0, %v1058
        %v1060 = vpop.f32.mrb[0].mxu0
        %1061 = vmatprep.mubr.f32.mxu0 0.0
        %1062 = vmatmul.mubr.f32.gmra.mrb[0].mxu0 %v823
        %v1063 = vpop.f32.mrb[0].mxu0
        %v1064 = vadd.f32 0.0, %v1063
        %v1065 = vpop.f32.mrb[0].mxu0
        %1066 = vmatprep.mubr.f32.mxu0 0.0
        %1067 = vmatmul.mubr.f32.gmra.mrb[0].mxu0 %v828
        %v1068 = vpop.f32.mrb[0].mxu0
        %v1069 = vadd.f32 0.0, %v1068
        %v1070 = vpop.f32.mrb[0].mxu0
        %1071 = vmatprep.mubr.f32.mxu0 0.0
        %1072 = vmatmul.mubr.f32.gmra.mrb[0].mxu0 %v833
        %v1073 = vpop.f32.mrb[0].mxu0
        %v1074 = vadd.f32 0.0, %v1073
        %v1075 = vpop.f32.mrb[0].mxu0
        %1076 = vmatprep.mubr.f32.mxu0 0.0
        %1077 = vmatmul.mubr.f32.gmra.mrb[0].mxu0 %v838
        %v1078 = vpop.f32.mrb[0].mxu0
        %v1079 = vadd.f32 0.0, %v1078
        %v1080 = vpop.f32.mrb[0].mxu0
        %1081 = vmatprep.mubr.f32.mxu0 0.0
        %1082 = vmatmul.mubr.f32.gmra.mrb[0].mxu0 %v843
        %v1083 = vpop.f32.mrb[0].mxu0
        %v1084 = vadd.f32 0.0, %v1083
        %v1085 = vpop.f32.mrb[0].mxu0
        %1086 = vmatprep.mubr.f32.mxu0 0.0
        %1087 = vmatmul.mubr.f32.gmra.mrb[0].mxu0 %v848
        %v1088 = vpop.f32.mrb[0].mxu0
        %v1089 = vadd.f32 0.0, %v1088
        %v1090 = vpop.f32.mrb[0].mxu0
        %1091 = vdwg.mxu0
        %s1092 = sld [smem:[#allocation11]]
        %v1093 = vstv %s1092
        %v1094 = vmul.f32 %v1093, %v934
        %v1095 = vmul.f32 %v1093, %v939
        %v1096 = vmul.f32 %v1093, %v944
        %v1097 = vmul.f32 %v1093, %v949
        %v1098 = vmul.f32 %v1093, %v954
        %v1099 = vmul.f32 %v1093, %v959
        %v1100 = vmul.f32 %v1093, %v964
        %v1101 = vmul.f32 %v1093, %v969
        %v1102 = vmul.f32 %v1093, %v974
        %v1103 = vmul.f32 %v1093, %v979
        %v1104 = vmul.f32 %v1093, %v984
        %v1105 = vmul.f32 %v1093, %v989
        %v1106 = vmul.f32 %v1093, %v994
        %v1107 = vmul.f32 %v1093, %v999
        %v1108 = vmul.f32 %v1093, %v1004
        %v1109 = vmul.f32 %v1093, %v1009
        %s1110 = sld [smem:[#allocation11 + $0x1]]
        %v1111 = vstv %s1110
        %v1112 = vmul.f32 %v1111, %v934
        %v1113 = vmul.f32 %v1111, %v939
        %v1114 = vmul.f32 %v1111, %v944
        %v1115 = vmul.f32 %v1111, %v949
        %v1116 = vmul.f32 %v1111, %v954
        %v1117 = vmul.f32 %v1111, %v959
        %v1118 = vmul.f32 %v1111, %v964
        %v1119 = vmul.f32 %v1111, %v969
        %v1120 = vmul.f32 %v1111, %v974
        %v1121 = vmul.f32 %v1111, %v979
        %v1122 = vmul.f32 %v1111, %v984
        %v1123 = vmul.f32 %v1111, %v989
        %v1124 = vmul.f32 %v1111, %v994
        %v1125 = vmul.f32 %v1111, %v999
        %v1126 = vmul.f32 %v1111, %v1004
        %v1127 = vmul.f32 %v1111, %v1009
        %1144 = vrot.lane.b32.xlu0 %v1112, 64
        %v1145 = vpop.permute.xlu0 %1144
        %1146 = vrot.lane.b32.xlu0 %v1113, 64
        %v1147 = vpop.permute.xlu0 %1146
        %1148 = vrot.lane.b32.xlu0 %v1114, 64
        %v1149 = vpop.permute.xlu0 %1148
        %1150 = vrot.lane.b32.xlu0 %v1115, 64
        %v1151 = vpop.permute.xlu0 %1150
        %1152 = vrot.lane.b32.xlu0 %v1116, 64
        %v1153 = vpop.permute.xlu0 %1152
        %1154 = vrot.lane.b32.xlu0 %v1117, 64
        %v1155 = vpop.permute.xlu0 %1154
        %1156 = vrot.lane.b32.xlu0 %v1118, 64
        %v1157 = vpop.permute.xlu0 %1156
        %1158 = vrot.lane.b32.xlu0 %v1119, 64
        %v1159 = vpop.permute.xlu0 %1158
        %1160 = vrot.lane.b32.xlu0 %v1120, 64
        %v1161 = vpop.permute.xlu0 %1160
        %1162 = vrot.lane.b32.xlu0 %v1121, 64
        %v1163 = vpop.permute.xlu0 %1162
        %1164 = vrot.lane.b32.xlu0 %v1122, 64
        %v1165 = vpop.permute.xlu0 %1164
        %1166 = vrot.lane.b32.xlu0 %v1123, 64
        %v1167 = vpop.permute.xlu0 %1166
        %1168 = vrot.lane.b32.xlu0 %v1124, 64
        %v1169 = vpop.permute.xlu0 %1168
        %1170 = vrot.lane.b32.xlu0 %v1125, 64
        %v1171 = vpop.permute.xlu0 %1170
        %1172 = vrot.lane.b32.xlu0 %v1126, 64
        %v1173 = vpop.permute.xlu0 %1172
        %1174 = vrot.lane.b32.xlu0 %v1127, 64
        %v1175 = vpop.permute.xlu0 %1174
        %v1192 = vadd.f32 %v1094, %v1145
        %v1193 = vadd.f32 %v1095, %v1147
        %v1194 = vadd.f32 %v1096, %v1149
        %v1195 = vadd.f32 %v1097, %v1151
        %v1196 = vadd.f32 %v1098, %v1153
        %v1197 = vadd.f32 %v1099, %v1155
        %v1198 = vadd.f32 %v1100, %v1157
        %v1199 = vadd.f32 %v1101, %v1159
        %v1200 = vadd.f32 %v1102, %v1161
        %v1201 = vadd.f32 %v1103, %v1163
        %v1202 = vadd.f32 %v1104, %v1165
        %v1203 = vadd.f32 %v1105, %v1167
        %v1204 = vadd.f32 %v1106, %v1169
        %v1205 = vadd.f32 %v1107, %v1171
        %v1206 = vadd.f32 %v1108, %v1173
        %v1207 = vadd.f32 %v1109, %v1175
        %s1208 = sld [smem:[#allocation11 + $0x2]]
        %v1209 = vstv %s1208
        %v1210 = vmul.f32 %v1209, %v1014
        %v1211 = vmul.f32 %v1209, %v1019
        %v1212 = vmul.f32 %v1209, %v1024
        %v1213 = vmul.f32 %v1209, %v1029
        %v1214 = vmul.f32 %v1209, %v1034
        %v1215 = vmul.f32 %v1209, %v1039
        %v1216 = vmul.f32 %v1209, %v1044
        %v1217 = vmul.f32 %v1209, %v1049
        %v1218 = vmul.f32 %v1209, %v1054
        %v1219 = vmul.f32 %v1209, %v1059
        %v1220 = vmul.f32 %v1209, %v1064
        %v1221 = vmul.f32 %v1209, %v1069
        %v1222 = vmul.f32 %v1209, %v1074
        %v1223 = vmul.f32 %v1209, %v1079
        %v1224 = vmul.f32 %v1209, %v1084
        %v1225 = vmul.f32 %v1209, %v1089
        %v1226 = vadd.f32 %v1192, %v1210
        %v1227 = vadd.f32 %v1193, %v1211
        %v1228 = vadd.f32 %v1194, %v1212
        %v1229 = vadd.f32 %v1195, %v1213
        %v1230 = vadd.f32 %v1196, %v1214
        %v1231 = vadd.f32 %v1197, %v1215
        %v1232 = vadd.f32 %v1198, %v1216
        %v1233 = vadd.f32 %v1199, %v1217
        %v1234 = vadd.f32 %v1200, %v1218
        %v1235 = vadd.f32 %v1201, %v1219
        %v1236 = vadd.f32 %v1202, %v1220
        %v1237 = vadd.f32 %v1203, %v1221
        %v1238 = vadd.f32 %v1204, %v1222
        %v1239 = vadd.f32 %v1205, %v1223
        %v1240 = vadd.f32 %v1206, %v1224
        %v1241 = vadd.f32 %v1207, %v1225
        %s1242 = sld [smem:[#allocation11 + $0x3]]
        %v1243 = vstv %s1242
        %v1244 = vmul.f32 %v1243, %v1014
        %v1245 = vmul.f32 %v1243, %v1019
        %v1246 = vmul.f32 %v1243, %v1024
        %v1247 = vmul.f32 %v1243, %v1029
        %v1248 = vmul.f32 %v1243, %v1034
        %v1249 = vmul.f32 %v1243, %v1039
        %v1250 = vmul.f32 %v1243, %v1044
        %v1251 = vmul.f32 %v1243, %v1049
        %v1252 = vmul.f32 %v1243, %v1054
        %v1253 = vmul.f32 %v1243, %v1059
        %v1254 = vmul.f32 %v1243, %v1064
        %v1255 = vmul.f32 %v1243, %v1069
        %v1256 = vmul.f32 %v1243, %v1074
        %v1257 = vmul.f32 %v1243, %v1079
        %v1258 = vmul.f32 %v1243, %v1084
        %v1259 = vmul.f32 %v1243, %v1089
        %1276 = vrot.lane.b32.xlu0 %v1244, 64
        %v1277 = vpop.permute.xlu0 %1276
        %1278 = vrot.lane.b32.xlu0 %v1245, 64
        %v1279 = vpop.permute.xlu0 %1278
        %1280 = vrot.lane.b32.xlu0 %v1246, 64
        %v1281 = vpop.permute.xlu0 %1280
        %1282 = vrot.lane.b32.xlu0 %v1247, 64
        %v1283 = vpop.permute.xlu0 %1282
        %1284 = vrot.lane.b32.xlu0 %v1248, 64
        %v1285 = vpop.permute.xlu0 %1284
        %1286 = vrot.lane.b32.xlu0 %v1249, 64
        %v1287 = vpop.permute.xlu0 %1286
        %1288 = vrot.lane.b32.xlu0 %v1250, 64
        %v1289 = vpop.permute.xlu0 %1288
        %1290 = vrot.lane.b32.xlu0 %v1251, 64
        %v1291 = vpop.permute.xlu0 %1290
        %1292 = vrot.lane.b32.xlu0 %v1252, 64
        %v1293 = vpop.permute.xlu0 %1292
        %1294 = vrot.lane.b32.xlu0 %v1253, 64
        %v1295 = vpop.permute.xlu0 %1294
        %1296 = vrot.lane.b32.xlu0 %v1254, 64
        %v1297 = vpop.permute.xlu0 %1296
        %1298 = vrot.lane.b32.xlu0 %v1255, 64
        %v1299 = vpop.permute.xlu0 %1298
        %1300 = vrot.lane.b32.xlu0 %v1256, 64
        %v1301 = vpop.permute.xlu0 %1300
        %1302 = vrot.lane.b32.xlu0 %v1257, 64
        %v1303 = vpop.permute.xlu0 %1302
        %1304 = vrot.lane.b32.xlu0 %v1258, 64
        %v1305 = vpop.permute.xlu0 %1304
        %1306 = vrot.lane.b32.xlu0 %v1259, 64
        %v1307 = vpop.permute.xlu0 %1306
        %v1324 = vadd.f32 %v1226, %v1277
        %v1325 = vadd.f32 %v1227, %v1279
        %v1326 = vadd.f32 %v1228, %v1281
        %v1327 = vadd.f32 %v1229, %v1283
        %v1328 = vadd.f32 %v1230, %v1285
        %v1329 = vadd.f32 %v1231, %v1287
        %v1330 = vadd.f32 %v1232, %v1289
        %v1331 = vadd.f32 %v1233, %v1291
        %v1332 = vadd.f32 %v1234, %v1293
        %v1333 = vadd.f32 %v1235, %v1295
        %v1334 = vadd.f32 %v1236, %v1297
        %v1335 = vadd.f32 %v1237, %v1299
        %v1336 = vadd.f32 %v1238, %v1301
        %v1337 = vadd.f32 %v1239, %v1303
        %v1338 = vadd.f32 %v1240, %v1305
        %v1339 = vadd.f32 %v1241, %v1307
        %1348 = vrot.lane.b32.xlu0 %v1324, 96
        %v1349 = vpop.permute.xlu0 %1348
        %1350 = vrot.lane.b32.xlu0 %v1325, 96
        %v1351 = vpop.permute.xlu0 %1350
        %1352 = vrot.lane.b32.xlu0 %v1326, 96
        %v1353 = vpop.permute.xlu0 %1352
        %1354 = vrot.lane.b32.xlu0 %v1327, 96
        %v1355 = vpop.permute.xlu0 %1354
        %1356 = vrot.lane.b32.xlu0 %v1328, 96
        %v1357 = vpop.permute.xlu0 %1356
        %1358 = vrot.lane.b32.xlu0 %v1329, 96
        %v1359 = vpop.permute.xlu0 %1358
        %1360 = vrot.lane.b32.xlu0 %v1330, 96
        %v1361 = vpop.permute.xlu0 %1360
        %1362 = vrot.lane.b32.xlu0 %v1331, 96
        %v1363 = vpop.permute.xlu0 %1362
        %v1372 = vmax.f32 %v1324, %v1349
        %v1373 = vmax.f32 %v1325, %v1351
        %v1374 = vmax.f32 %v1326, %v1353
        %v1375 = vmax.f32 %v1327, %v1355
        %v1376 = vmax.f32 %v1328, %v1357
        %v1377 = vmax.f32 %v1329, %v1359
        %v1378 = vmax.f32 %v1330, %v1361
        %v1379 = vmax.f32 %v1331, %v1363
        %1388 = vrot.lane.b32.xlu0 %v1332, 96
        %v1389 = vpop.permute.xlu0 %1388
        %1390 = vrot.lane.b32.xlu0 %v1333, 96
        %v1391 = vpop.permute.xlu0 %1390
        %1392 = vrot.lane.b32.xlu0 %v1334, 96
        %v1393 = vpop.permute.xlu0 %1392
        %1394 = vrot.lane.b32.xlu0 %v1335, 96
        %v1395 = vpop.permute.xlu0 %1394
        %1396 = vrot.lane.b32.xlu0 %v1336, 96
        %v1397 = vpop.permute.xlu0 %1396
        %1398 = vrot.lane.b32.xlu0 %v1337, 96
        %v1399 = vpop.permute.xlu0 %1398
        %1400 = vrot.lane.b32.xlu0 %v1338, 96
        %v1401 = vpop.permute.xlu0 %1400
        %1402 = vrot.lane.b32.xlu0 %v1339, 96
        %v1403 = vpop.permute.xlu0 %1402
        %v1412 = vmax.f32 %v1332, %v1389
        %v1413 = vmax.f32 %v1333, %v1391
        %v1414 = vmax.f32 %v1334, %v1393
        %v1415 = vmax.f32 %v1335, %v1395
        %v1416 = vmax.f32 %v1336, %v1397
        %v1417 = vmax.f32 %v1337, %v1399
        %v1418 = vmax.f32 %v1338, %v1401
        %v1419 = vmax.f32 %v1339, %v1403
        %v1420 = vmax.f32 %v1372, %v1412
        %v1421 = vmax.f32 %v1373, %v1413
        %v1422 = vmax.f32 %v1374, %v1414
        %v1423 = vmax.f32 %v1375, %v1415
        %v1424 = vmax.f32 %v1376, %v1416
        %v1425 = vmax.f32 %v1377, %v1417
        %v1426 = vmax.f32 %v1378, %v1418
        %v1427 = vmax.f32 %v1379, %v1419
        %s1428 = sld [smem:[#allocation12]]
        %v1429 = vstv %s1428
        %v1430 = vadd.f32 %v1420, %v1429
        %v1431 = vadd.f32 %v1421, %v1429
        %v1432 = vadd.f32 %v1422, %v1429
        %v1433 = vadd.f32 %v1423, %v1429
        %v1434 = vadd.f32 %v1424, %v1429
        %v1435 = vadd.f32 %v1425, %v1429
        %v1436 = vadd.f32 %v1426, %v1429
        %v1437 = vadd.f32 %v1427, %v1429
        %v1438 = vmax.f32 %v1430, 0.0
        %v1439 = vmax.f32 %v1431, 0.0
        %v1440 = vmax.f32 %v1432, 0.0
        %v1441 = vmax.f32 %v1433, 0.0
        %v1442 = vmax.f32 %v1434, 0.0
        %v1443 = vmax.f32 %v1435, 0.0
        %v1444 = vmax.f32 %v1436, 0.0
        %v1445 = vmax.f32 %v1437, 0.0
        %s1446 = sld [smem:[#allocation11 + $0x4]]
        %v1447 = vstv %s1446
        %v1448 = vmul.f32 %v1447, %v934
        %v1449 = vmul.f32 %v1447, %v939
        %v1450 = vmul.f32 %v1447, %v944
        %v1451 = vmul.f32 %v1447, %v949
        %v1452 = vmul.f32 %v1447, %v954
        %v1453 = vmul.f32 %v1447, %v959
        %v1454 = vmul.f32 %v1447, %v964
        %v1455 = vmul.f32 %v1447, %v969
        %v1456 = vmul.f32 %v1447, %v974
        %v1457 = vmul.f32 %v1447, %v979
        %v1458 = vmul.f32 %v1447, %v984
        %v1459 = vmul.f32 %v1447, %v989
        %v1460 = vmul.f32 %v1447, %v994
        %v1461 = vmul.f32 %v1447, %v999
        %v1462 = vmul.f32 %v1447, %v1004
        %v1463 = vmul.f32 %v1447, %v1009
        %s1464 = sld [smem:[#allocation11 + $0x5]]
        %v1465 = vstv %s1464
        %v1466 = vmul.f32 %v1465, %v934
        %v1467 = vmul.f32 %v1465, %v939
        %v1468 = vmul.f32 %v1465, %v944
        %v1469 = vmul.f32 %v1465, %v949
        %v1470 = vmul.f32 %v1465, %v954
        %v1471 = vmul.f32 %v1465, %v959
        %v1472 = vmul.f32 %v1465, %v964
        %v1473 = vmul.f32 %v1465, %v969
        %v1474 = vmul.f32 %v1465, %v974
        %v1475 = vmul.f32 %v1465, %v979
        %v1476 = vmul.f32 %v1465, %v984
        %v1477 = vmul.f32 %v1465, %v989
        %v1478 = vmul.f32 %v1465, %v994
        %v1479 = vmul.f32 %v1465, %v999
        %v1480 = vmul.f32 %v1465, %v1004
        %v1481 = vmul.f32 %v1465, %v1009
        %1498 = vrot.lane.b32.xlu0 %v1466, 64
        %v1499 = vpop.permute.xlu0 %1498
        %1500 = vrot.lane.b32.xlu0 %v1467, 64
        %v1501 = vpop.permute.xlu0 %1500
        %1502 = vrot.lane.b32.xlu0 %v1468, 64
        %v1503 = vpop.permute.xlu0 %1502
        %1504 = vrot.lane.b32.xlu0 %v1469, 64
        %v1505 = vpop.permute.xlu0 %1504
        %1506 = vrot.lane.b32.xlu0 %v1470, 64
        %v1507 = vpop.permute.xlu0 %1506
        %1508 = vrot.lane.b32.xlu0 %v1471, 64
        %v1509 = vpop.permute.xlu0 %1508
        %1510 = vrot.lane.b32.xlu0 %v1472, 64
        %v1511 = vpop.permute.xlu0 %1510
        %1512 = vrot.lane.b32.xlu0 %v1473, 64
        %v1513 = vpop.permute.xlu0 %1512
        %1514 = vrot.lane.b32.xlu0 %v1474, 64
        %v1515 = vpop.permute.xlu0 %1514
        %1516 = vrot.lane.b32.xlu0 %v1475, 64
        %v1517 = vpop.permute.xlu0 %1516
        %1518 = vrot.lane.b32.xlu0 %v1476, 64
        %v1519 = vpop.permute.xlu0 %1518
        %1520 = vrot.lane.b32.xlu0 %v1477, 64
        %v1521 = vpop.permute.xlu0 %1520
        %1522 = vrot.lane.b32.xlu0 %v1478, 64
        %v1523 = vpop.permute.xlu0 %1522
        %1524 = vrot.lane.b32.xlu0 %v1479, 64
        %v1525 = vpop.permute.xlu0 %1524
        %1526 = vrot.lane.b32.xlu0 %v1480, 64
        %v1527 = vpop.permute.xlu0 %1526
        %1528 = vrot.lane.b32.xlu0 %v1481, 64
        %v1529 = vpop.permute.xlu0 %1528
        %v1546 = vadd.f32 %v1448, %v1499
        %v1547 = vadd.f32 %v1449, %v1501
        %v1548 = vadd.f32 %v1450, %v1503
        %v1549 = vadd.f32 %v1451, %v1505
        %v1550 = vadd.f32 %v1452, %v1507
        %v1551 = vadd.f32 %v1453, %v1509
        %v1552 = vadd.f32 %v1454, %v1511
        %v1553 = vadd.f32 %v1455, %v1513
        %v1554 = vadd.f32 %v1456, %v1515
        %v1555 = vadd.f32 %v1457, %v1517
        %v1556 = vadd.f32 %v1458, %v1519
        %v1557 = vadd.f32 %v1459, %v1521
        %v1558 = vadd.f32 %v1460, %v1523
        %v1559 = vadd.f32 %v1461, %v1525
        %v1560 = vadd.f32 %v1462, %v1527
        %v1561 = vadd.f32 %v1463, %v1529
        %s1562 = sld [smem:[#allocation11 + $0x6]]
        %v1563 = vstv %s1562
        %v1564 = vmul.f32 %v1563, %v1014
        %v1565 = vmul.f32 %v1563, %v1019
        %v1566 = vmul.f32 %v1563, %v1024
        %v1567 = vmul.f32 %v1563, %v1029
        %v1568 = vmul.f32 %v1563, %v1034
        %v1569 = vmul.f32 %v1563, %v1039
        %v1570 = vmul.f32 %v1563, %v1044
        %v1571 = vmul.f32 %v1563, %v1049
        %v1572 = vmul.f32 %v1563, %v1054
        %v1573 = vmul.f32 %v1563, %v1059
        %v1574 = vmul.f32 %v1563, %v1064
        %v1575 = vmul.f32 %v1563, %v1069
        %v1576 = vmul.f32 %v1563, %v1074
        %v1577 = vmul.f32 %v1563, %v1079
        %v1578 = vmul.f32 %v1563, %v1084
        %v1579 = vmul.f32 %v1563, %v1089
        %v1580 = vadd.f32 %v1546, %v1564
        %v1581 = vadd.f32 %v1547, %v1565
        %v1582 = vadd.f32 %v1548, %v1566
        %v1583 = vadd.f32 %v1549, %v1567
        %v1584 = vadd.f32 %v1550, %v1568
        %v1585 = vadd.f32 %v1551, %v1569
        %v1586 = vadd.f32 %v1552, %v1570
        %v1587 = vadd.f32 %v1553, %v1571
        %v1588 = vadd.f32 %v1554, %v1572
        %v1589 = vadd.f32 %v1555, %v1573
        %v1590 = vadd.f32 %v1556, %v1574
        %v1591 = vadd.f32 %v1557, %v1575
        %v1592 = vadd.f32 %v1558, %v1576
        %v1593 = vadd.f32 %v1559, %v1577
        %v1594 = vadd.f32 %v1560, %v1578
        %v1595 = vadd.f32 %v1561, %v1579
        %s1596 = sld [smem:[#allocation11 + $0x7]]
        %v1597 = vstv %s1596
        %v1598 = vmul.f32 %v1597, %v1014
        %v1599 = vmul.f32 %v1597, %v1019
        %v1600 = vmul.f32 %v1597, %v1024
        %v1601 = vmul.f32 %v1597, %v1029
        %v1602 = vmul.f32 %v1597, %v1034
        %v1603 = vmul.f32 %v1597, %v1039
        %v1604 = vmul.f32 %v1597, %v1044
        %v1605 = vmul.f32 %v1597, %v1049
        %v1606 = vmul.f32 %v1597, %v1054
        %v1607 = vmul.f32 %v1597, %v1059
        %v1608 = vmul.f32 %v1597, %v1064
        %v1609 = vmul.f32 %v1597, %v1069
        %v1610 = vmul.f32 %v1597, %v1074
        %v1611 = vmul.f32 %v1597, %v1079
        %v1612 = vmul.f32 %v1597, %v1084
        %v1613 = vmul.f32 %v1597, %v1089
        %1630 = vrot.lane.b32.xlu0 %v1598, 64
        %v1631 = vpop.permute.xlu0 %1630
        %1632 = vrot.lane.b32.xlu0 %v1599, 64
        %v1633 = vpop.permute.xlu0 %1632
        %1634 = vrot.lane.b32.xlu0 %v1600, 64
        %v1635 = vpop.permute.xlu0 %1634
        %1636 = vrot.lane.b32.xlu0 %v1601, 64
        %v1637 = vpop.permute.xlu0 %1636
        %1638 = vrot.lane.b32.xlu0 %v1602, 64
        %v1639 = vpop.permute.xlu0 %1638
        %1640 = vrot.lane.b32.xlu0 %v1603, 64
        %v1641 = vpop.permute.xlu0 %1640
        %1642 = vrot.lane.b32.xlu0 %v1604, 64
        %v1643 = vpop.permute.xlu0 %1642
        %1644 = vrot.lane.b32.xlu0 %v1605, 64
        %v1645 = vpop.permute.xlu0 %1644
        %1646 = vrot.lane.b32.xlu0 %v1606, 64
        %v1647 = vpop.permute.xlu0 %1646
        %1648 = vrot.lane.b32.xlu0 %v1607, 64
        %v1649 = vpop.permute.xlu0 %1648
        %1650 = vrot.lane.b32.xlu0 %v1608, 64
        %v1651 = vpop.permute.xlu0 %1650
        %1652 = vrot.lane.b32.xlu0 %v1609, 64
        %v1653 = vpop.permute.xlu0 %1652
        %1654 = vrot.lane.b32.xlu0 %v1610, 64
        %v1655 = vpop.permute.xlu0 %1654
        %1656 = vrot.lane.b32.xlu0 %v1611, 64
        %v1657 = vpop.permute.xlu0 %1656
        %1658 = vrot.lane.b32.xlu0 %v1612, 64
        %v1659 = vpop.permute.xlu0 %1658
        %1660 = vrot.lane.b32.xlu0 %v1613, 64
        %v1661 = vpop.permute.xlu0 %1660
        %v1678 = vadd.f32 %v1580, %v1631
        %v1679 = vadd.f32 %v1581, %v1633
        %v1680 = vadd.f32 %v1582, %v1635
        %v1681 = vadd.f32 %v1583, %v1637
        %v1682 = vadd.f32 %v1584, %v1639
        %v1683 = vadd.f32 %v1585, %v1641
        %v1684 = vadd.f32 %v1586, %v1643
        %v1685 = vadd.f32 %v1587, %v1645
        %v1686 = vadd.f32 %v1588, %v1647
        %v1687 = vadd.f32 %v1589, %v1649
        %v1688 = vadd.f32 %v1590, %v1651
        %v1689 = vadd.f32 %v1591, %v1653
        %v1690 = vadd.f32 %v1592, %v1655
        %v1691 = vadd.f32 %v1593, %v1657
        %v1692 = vadd.f32 %v1594, %v1659
        %v1693 = vadd.f32 %v1595, %v1661
        %1702 = vrot.lane.b32.xlu0 %v1678, 96
        %v1703 = vpop.permute.xlu0 %1702
        %1704 = vrot.lane.b32.xlu0 %v1679, 96
        %v1705 = vpop.permute.xlu0 %1704
        %1706 = vrot.lane.b32.xlu0 %v1680, 96
        %v1707 = vpop.permute.xlu0 %1706
        %1708 = vrot.lane.b32.xlu0 %v1681, 96
        %v1709 = vpop.permute.xlu0 %1708
        %1710 = vrot.lane.b32.xlu0 %v1682, 96
        %v1711 = vpop.permute.xlu0 %1710
        %1712 = vrot.lane.b32.xlu0 %v1683, 96
        %v1713 = vpop.permute.xlu0 %1712
        %1714 = vrot.lane.b32.xlu0 %v1684, 96
        %v1715 = vpop.permute.xlu0 %1714
        %1716 = vrot.lane.b32.xlu0 %v1685, 96
        %v1717 = vpop.permute.xlu0 %1716
        %v1726 = vmax.f32 %v1678, %v1703
        %v1727 = vmax.f32 %v1679, %v1705
        %v1728 = vmax.f32 %v1680, %v1707
        %v1729 = vmax.f32 %v1681, %v1709
        %v1730 = vmax.f32 %v1682, %v1711
        %v1731 = vmax.f32 %v1683, %v1713
        %v1732 = vmax.f32 %v1684, %v1715
        %v1733 = vmax.f32 %v1685, %v1717
        %1742 = vrot.lane.b32.xlu0 %v1686, 96
        %v1743 = vpop.permute.xlu0 %1742
        %1744 = vrot.lane.b32.xlu0 %v1687, 96
        %v1745 = vpop.permute.xlu0 %1744
        %1746 = vrot.lane.b32.xlu0 %v1688, 96
        %v1747 = vpop.permute.xlu0 %1746
        %1748 = vrot.lane.b32.xlu0 %v1689, 96
        %v1749 = vpop.permute.xlu0 %1748
        %1750 = vrot.lane.b32.xlu0 %v1690, 96
        %v1751 = vpop.permute.xlu0 %1750
        %1752 = vrot.lane.b32.xlu0 %v1691, 96
        %v1753 = vpop.permute.xlu0 %1752
        %1754 = vrot.lane.b32.xlu0 %v1692, 96
        %v1755 = vpop.permute.xlu0 %1754
        %1756 = vrot.lane.b32.xlu0 %v1693, 96
        %v1757 = vpop.permute.xlu0 %1756
        %v1766 = vmax.f32 %v1686, %v1743
        %v1767 = vmax.f32 %v1687, %v1745
        %v1768 = vmax.f32 %v1688, %v1747
        %v1769 = vmax.f32 %v1689, %v1749
        %v1770 = vmax.f32 %v1690, %v1751
        %v1771 = vmax.f32 %v1691, %v1753
        %v1772 = vmax.f32 %v1692, %v1755
        %v1773 = vmax.f32 %v1693, %v1757
        %v1774 = vmax.f32 %v1726, %v1766
        %v1775 = vmax.f32 %v1727, %v1767
        %v1776 = vmax.f32 %v1728, %v1768
        %v1777 = vmax.f32 %v1729, %v1769
        %v1778 = vmax.f32 %v1730, %v1770
        %v1779 = vmax.f32 %v1731, %v1771
        %v1780 = vmax.f32 %v1732, %v1772
        %v1781 = vmax.f32 %v1733, %v1773
        %s1782 = sld [smem:[#allocation12 + $0x1]]
        %v1783 = vstv %s1782
        %v1784 = vadd.f32 %v1774, %v1783
        %v1785 = vadd.f32 %v1775, %v1783
        %v1786 = vadd.f32 %v1776, %v1783
        %v1787 = vadd.f32 %v1777, %v1783
        %v1788 = vadd.f32 %v1778, %v1783
        %v1789 = vadd.f32 %v1779, %v1783
        %v1790 = vadd.f32 %v1780, %v1783
        %v1791 = vadd.f32 %v1781, %v1783
        %v1792 = vmax.f32 %v1784, 0.0
        %v1793 = vmax.f32 %v1785, 0.0
        %v1794 = vmax.f32 %v1786, 0.0
        %v1795 = vmax.f32 %v1787, 0.0
        %v1796 = vmax.f32 %v1788, 0.0
        %v1797 = vmax.f32 %v1789, 0.0
        %v1798 = vmax.f32 %v1790, 0.0
        %v1799 = vmax.f32 %v1791, 0.0
        %s1800 = sld [smem:[#allocation11 + $0x8]]
        %v1801 = vstv %s1800
        %v1802 = vmul.f32 %v1801, %v934
        %v1803 = vmul.f32 %v1801, %v939
        %v1804 = vmul.f32 %v1801, %v944
        %v1805 = vmul.f32 %v1801, %v949
        %v1806 = vmul.f32 %v1801, %v954
        %v1807 = vmul.f32 %v1801, %v959
        %v1808 = vmul.f32 %v1801, %v964
        %v1809 = vmul.f32 %v1801, %v969
        %v1810 = vmul.f32 %v1801, %v974
        %v1811 = vmul.f32 %v1801, %v979
        %v1812 = vmul.f32 %v1801, %v984
        %v1813 = vmul.f32 %v1801, %v989
        %v1814 = vmul.f32 %v1801, %v994
        %v1815 = vmul.f32 %v1801, %v999
        %v1816 = vmul.f32 %v1801, %v1004
        %v1817 = vmul.f32 %v1801, %v1009
        %s1818 = sld [smem:[#allocation11 + $0x9]]
        %v1819 = vstv %s1818
        %v1820 = vmul.f32 %v1819, %v934
        %v1821 = vmul.f32 %v1819, %v939
        %v1822 = vmul.f32 %v1819, %v944
        %v1823 = vmul.f32 %v1819, %v949
        %v1824 = vmul.f32 %v1819, %v954
        %v1825 = vmul.f32 %v1819, %v959
        %v1826 = vmul.f32 %v1819, %v964
        %v1827 = vmul.f32 %v1819, %v969
        %v1828 = vmul.f32 %v1819, %v974
        %v1829 = vmul.f32 %v1819, %v979
        %v1830 = vmul.f32 %v1819, %v984
        %v1831 = vmul.f32 %v1819, %v989
        %v1832 = vmul.f32 %v1819, %v994
        %v1833 = vmul.f32 %v1819, %v999
        %v1834 = vmul.f32 %v1819, %v1004
        %v1835 = vmul.f32 %v1819, %v1009
        %1852 = vrot.lane.b32.xlu0 %v1820, 64
        %v1853 = vpop.permute.xlu0 %1852
        %1854 = vrot.lane.b32.xlu0 %v1821, 64
        %v1855 = vpop.permute.xlu0 %1854
        %1856 = vrot.lane.b32.xlu0 %v1822, 64
        %v1857 = vpop.permute.xlu0 %1856
        %1858 = vrot.lane.b32.xlu0 %v1823, 64
        %v1859 = vpop.permute.xlu0 %1858
        %1860 = vrot.lane.b32.xlu0 %v1824, 64
        %v1861 = vpop.permute.xlu0 %1860
        %1862 = vrot.lane.b32.xlu0 %v1825, 64
        %v1863 = vpop.permute.xlu0 %1862
        %1864 = vrot.lane.b32.xlu0 %v1826, 64
        %v1865 = vpop.permute.xlu0 %1864
        %1866 = vrot.lane.b32.xlu0 %v1827, 64
        %v1867 = vpop.permute.xlu0 %1866
        %1868 = vrot.lane.b32.xlu0 %v1828, 64
        %v1869 = vpop.permute.xlu0 %1868
        %1870 = vrot.lane.b32.xlu0 %v1829, 64
        %v1871 = vpop.permute.xlu0 %1870
        %1872 = vrot.lane.b32.xlu0 %v1830, 64
        %v1873 = vpop.permute.xlu0 %1872
        %1874 = vrot.lane.b32.xlu0 %v1831, 64
        %v1875 = vpop.permute.xlu0 %1874
        %1876 = vrot.lane.b32.xlu0 %v1832, 64
        %v1877 = vpop.permute.xlu0 %1876
        %1878 = vrot.lane.b32.xlu0 %v1833, 64
        %v1879 = vpop.permute.xlu0 %1878
        %1880 = vrot.lane.b32.xlu0 %v1834, 64
        %v1881 = vpop.permute.xlu0 %1880
        %1882 = vrot.lane.b32.xlu0 %v1835, 64
        %v1883 = vpop.permute.xlu0 %1882
        %v1900 = vadd.f32 %v1802, %v1853
        %v1901 = vadd.f32 %v1803, %v1855
        %v1902 = vadd.f32 %v1804, %v1857
        %v1903 = vadd.f32 %v1805, %v1859
        %v1904 = vadd.f32 %v1806, %v1861
        %v1905 = vadd.f32 %v1807, %v1863
        %v1906 = vadd.f32 %v1808, %v1865
        %v1907 = vadd.f32 %v1809, %v1867
        %v1908 = vadd.f32 %v1810, %v1869
        %v1909 = vadd.f32 %v1811, %v1871
        %v1910 = vadd.f32 %v1812, %v1873
        %v1911 = vadd.f32 %v1813, %v1875
        %v1912 = vadd.f32 %v1814, %v1877
        %v1913 = vadd.f32 %v1815, %v1879
        %v1914 = vadd.f32 %v1816, %v1881
        %v1915 = vadd.f32 %v1817, %v1883
        %s1916 = sld [smem:[#allocation11 + $0xa]]
        %v1917 = vstv %s1916
        %v1918 = vmul.f32 %v1917, %v1014
        %v1919 = vmul.f32 %v1917, %v1019
        %v1920 = vmul.f32 %v1917, %v1024
        %v1921 = vmul.f32 %v1917, %v1029
        %v1922 = vmul.f32 %v1917, %v1034
        %v1923 = vmul.f32 %v1917, %v1039
        %v1924 = vmul.f32 %v1917, %v1044
        %v1925 = vmul.f32 %v1917, %v1049
        %v1926 = vmul.f32 %v1917, %v1054
        %v1927 = vmul.f32 %v1917, %v1059
        %v1928 = vmul.f32 %v1917, %v1064
        %v1929 = vmul.f32 %v1917, %v1069
        %v1930 = vmul.f32 %v1917, %v1074
        %v1931 = vmul.f32 %v1917, %v1079
        %v1932 = vmul.f32 %v1917, %v1084
        %v1933 = vmul.f32 %v1917, %v1089
        %v1934 = vadd.f32 %v1900, %v1918
        %v1935 = vadd.f32 %v1901, %v1919
        %v1936 = vadd.f32 %v1902, %v1920
        %v1937 = vadd.f32 %v1903, %v1921
        %v1938 = vadd.f32 %v1904, %v1922
        %v1939 = vadd.f32 %v1905, %v1923
        %v1940 = vadd.f32 %v1906, %v1924
        %v1941 = vadd.f32 %v1907, %v1925
        %v1942 = vadd.f32 %v1908, %v1926
        %v1943 = vadd.f32 %v1909, %v1927
        %v1944 = vadd.f32 %v1910, %v1928
        %v1945 = vadd.f32 %v1911, %v1929
        %v1946 = vadd.f32 %v1912, %v1930
        %v1947 = vadd.f32 %v1913, %v1931
        %v1948 = vadd.f32 %v1914, %v1932
        %v1949 = vadd.f32 %v1915, %v1933
        %s1950 = sld [smem:[#allocation11 + $0xb]]
        %v1951 = vstv %s1950
        %v1952 = vmul.f32 %v1951, %v1014
        %v1953 = vmul.f32 %v1951, %v1019
        %v1954 = vmul.f32 %v1951, %v1024
        %v1955 = vmul.f32 %v1951, %v1029
        %v1956 = vmul.f32 %v1951, %v1034
        %v1957 = vmul.f32 %v1951, %v1039
        %v1958 = vmul.f32 %v1951, %v1044
        %v1959 = vmul.f32 %v1951, %v1049
        %v1960 = vmul.f32 %v1951, %v1054
        %v1961 = vmul.f32 %v1951, %v1059
        %v1962 = vmul.f32 %v1951, %v1064
        %v1963 = vmul.f32 %v1951, %v1069
        %v1964 = vmul.f32 %v1951, %v1074
        %v1965 = vmul.f32 %v1951, %v1079
        %v1966 = vmul.f32 %v1951, %v1084
        %v1967 = vmul.f32 %v1951, %v1089
        %1984 = vrot.lane.b32.xlu0 %v1952, 64
        %v1985 = vpop.permute.xlu0 %1984
        %1986 = vrot.lane.b32.xlu0 %v1953, 64
        %v1987 = vpop.permute.xlu0 %1986
        %1988 = vrot.lane.b32.xlu0 %v1954, 64
        %v1989 = vpop.permute.xlu0 %1988
        %1990 = vrot.lane.b32.xlu0 %v1955, 64
        %v1991 = vpop.permute.xlu0 %1990
        %1992 = vrot.lane.b32.xlu0 %v1956, 64
        %v1993 = vpop.permute.xlu0 %1992
        %1994 = vrot.lane.b32.xlu0 %v1957, 64
        %v1995 = vpop.permute.xlu0 %1994
        %1996 = vrot.lane.b32.xlu0 %v1958, 64
        %v1997 = vpop.permute.xlu0 %1996
        %1998 = vrot.lane.b32.xlu0 %v1959, 64
        %v1999 = vpop.permute.xlu0 %1998
        %2000 = vrot.lane.b32.xlu0 %v1960, 64
        %v2001 = vpop.permute.xlu0 %2000
        %2002 = vrot.lane.b32.xlu0 %v1961, 64
        %v2003 = vpop.permute.xlu0 %2002
        %2004 = vrot.lane.b32.xlu0 %v1962, 64
        %v2005 = vpop.permute.xlu0 %2004
        %2006 = vrot.lane.b32.xlu0 %v1963, 64
        %v2007 = vpop.permute.xlu0 %2006
        %2008 = vrot.lane.b32.xlu0 %v1964, 64
        %v2009 = vpop.permute.xlu0 %2008
        %2010 = vrot.lane.b32.xlu0 %v1965, 64
        %v2011 = vpop.permute.xlu0 %2010
        %2012 = vrot.lane.b32.xlu0 %v1966, 64
        %v2013 = vpop.permute.xlu0 %2012
        %2014 = vrot.lane.b32.xlu0 %v1967, 64
        %v2015 = vpop.permute.xlu0 %2014
        %v2032 = vadd.f32 %v1934, %v1985
        %v2033 = vadd.f32 %v1935, %v1987
        %v2034 = vadd.f32 %v1936, %v1989
        %v2035 = vadd.f32 %v1937, %v1991
        %v2036 = vadd.f32 %v1938, %v1993
        %v2037 = vadd.f32 %v1939, %v1995
        %v2038 = vadd.f32 %v1940, %v1997
        %v2039 = vadd.f32 %v1941, %v1999
        %v2040 = vadd.f32 %v1942, %v2001
        %v2041 = vadd.f32 %v1943, %v2003
        %v2042 = vadd.f32 %v1944, %v2005
        %v2043 = vadd.f32 %v1945, %v2007
        %v2044 = vadd.f32 %v1946, %v2009
        %v2045 = vadd.f32 %v1947, %v2011
        %v2046 = vadd.f32 %v1948, %v2013
        %v2047 = vadd.f32 %v1949, %v2015
        %2056 = vrot.lane.b32.xlu0 %v2032, 96
        %v2057 = vpop.permute.xlu0 %2056
        %2058 = vrot.lane.b32.xlu0 %v2033, 96
        %v2059 = vpop.permute.xlu0 %2058
        %2060 = vrot.lane.b32.xlu0 %v2034, 96
        %v2061 = vpop.permute.xlu0 %2060
        %2062 = vrot.lane.b32.xlu0 %v2035, 96
        %v2063 = vpop.permute.xlu0 %2062
        %2064 = vrot.lane.b32.xlu0 %v2036, 96
        %v2065 = vpop.permute.xlu0 %2064
        %2066 = vrot.lane.b32.xlu0 %v2037, 96
        %v2067 = vpop.permute.xlu0 %2066
        %2068 = vrot.lane.b32.xlu0 %v2038, 96
        %v2069 = vpop.permute.xlu0 %2068
        %2070 = vrot.lane.b32.xlu0 %v2039, 96
        %v2071 = vpop.permute.xlu0 %2070
        %v2080 = vmax.f32 %v2032, %v2057
        %v2081 = vmax.f32 %v2033, %v2059
        %v2082 = vmax.f32 %v2034, %v2061
        %v2083 = vmax.f32 %v2035, %v2063
        %v2084 = vmax.f32 %v2036, %v2065
        %v2085 = vmax.f32 %v2037, %v2067
        %v2086 = vmax.f32 %v2038, %v2069
        %v2087 = vmax.f32 %v2039, %v2071
        %2096 = vrot.lane.b32.xlu0 %v2040, 96
        %v2097 = vpop.permute.xlu0 %2096
        %2098 = vrot.lane.b32.xlu0 %v2041, 96
        %v2099 = vpop.permute.xlu0 %2098
        %2100 = vrot.lane.b32.xlu0 %v2042, 96
        %v2101 = vpop.permute.xlu0 %2100
        %2102 = vrot.lane.b32.xlu0 %v2043, 96
        %v2103 = vpop.permute.xlu0 %2102
        %2104 = vrot.lane.b32.xlu0 %v2044, 96
        %v2105 = vpop.permute.xlu0 %2104
        %2106 = vrot.lane.b32.xlu0 %v2045, 96
        %v2107 = vpop.permute.xlu0 %2106
        %2108 = vrot.lane.b32.xlu0 %v2046, 96
        %v2109 = vpop.permute.xlu0 %2108
        %2110 = vrot.lane.b32.xlu0 %v2047, 96
        %v2111 = vpop.permute.xlu0 %2110
        %v2120 = vmax.f32 %v2040, %v2097
        %v2121 = vmax.f32 %v2041, %v2099
        %v2122 = vmax.f32 %v2042, %v2101
        %v2123 = vmax.f32 %v2043, %v2103
        %v2124 = vmax.f32 %v2044, %v2105
        %v2125 = vmax.f32 %v2045, %v2107
        %v2126 = vmax.f32 %v2046, %v2109
        %v2127 = vmax.f32 %v2047, %v2111
        %v2128 = vmax.f32 %v2080, %v2120
        %v2129 = vmax.f32 %v2081, %v2121
        %v2130 = vmax.f32 %v2082, %v2122
        %v2131 = vmax.f32 %v2083, %v2123
        %v2132 = vmax.f32 %v2084, %v2124
        %v2133 = vmax.f32 %v2085, %v2125
        %v2134 = vmax.f32 %v2086, %v2126
        %v2135 = vmax.f32 %v2087, %v2127
        %s2136 = sld [smem:[#allocation12 + $0x2]]
        %v2137 = vstv %s2136
        %v2138 = vadd.f32 %v2128, %v2137
        %v2139 = vadd.f32 %v2129, %v2137
        %v2140 = vadd.f32 %v2130, %v2137
        %v2141 = vadd.f32 %v2131, %v2137
        %v2142 = vadd.f32 %v2132, %v2137
        %v2143 = vadd.f32 %v2133, %v2137
        %v2144 = vadd.f32 %v2134, %v2137
        %v2145 = vadd.f32 %v2135, %v2137
        %v2146 = vmax.f32 %v2138, 0.0
        %v2147 = vmax.f32 %v2139, 0.0
        %v2148 = vmax.f32 %v2140, 0.0
        %v2149 = vmax.f32 %v2141, 0.0
        %v2150 = vmax.f32 %v2142, 0.0
        %v2151 = vmax.f32 %v2143, 0.0
        %v2152 = vmax.f32 %v2144, 0.0
        %v2153 = vmax.f32 %v2145, 0.0
        %s2154 = sld [smem:[#allocation11 + $0xc]]
        %v2155 = vstv %s2154
        %v2156 = vmul.f32 %v2155, %v934
        %v2157 = vmul.f32 %v2155, %v939
        %v2158 = vmul.f32 %v2155, %v944
        %v2159 = vmul.f32 %v2155, %v949
        %v2160 = vmul.f32 %v2155, %v954
        %v2161 = vmul.f32 %v2155, %v959
        %v2162 = vmul.f32 %v2155, %v964
        %v2163 = vmul.f32 %v2155, %v969
        %v2164 = vmul.f32 %v2155, %v974
        %v2165 = vmul.f32 %v2155, %v979
        %v2166 = vmul.f32 %v2155, %v984
        %v2167 = vmul.f32 %v2155, %v989
        %v2168 = vmul.f32 %v2155, %v994
        %v2169 = vmul.f32 %v2155, %v999
        %v2170 = vmul.f32 %v2155, %v1004
        %v2171 = vmul.f32 %v2155, %v1009
        %s2172 = sld [smem:[#allocation11 + $0xd]]
        %v2173 = vstv %s2172
        %v2174 = vmul.f32 %v2173, %v934
        %v2175 = vmul.f32 %v2173, %v939
        %v2176 = vmul.f32 %v2173, %v944
        %v2177 = vmul.f32 %v2173, %v949
        %v2178 = vmul.f32 %v2173, %v954
        %v2179 = vmul.f32 %v2173, %v959
        %v2180 = vmul.f32 %v2173, %v964
        %v2181 = vmul.f32 %v2173, %v969
        %v2182 = vmul.f32 %v2173, %v974
        %v2183 = vmul.f32 %v2173, %v979
        %v2184 = vmul.f32 %v2173, %v984
        %v2185 = vmul.f32 %v2173, %v989
        %v2186 = vmul.f32 %v2173, %v994
        %v2187 = vmul.f32 %v2173, %v999
        %v2188 = vmul.f32 %v2173, %v1004
        %v2189 = vmul.f32 %v2173, %v1009
        %2206 = vrot.lane.b32.xlu0 %v2174, 64
        %v2207 = vpop.permute.xlu0 %2206
        %2208 = vrot.lane.b32.xlu0 %v2175, 64
        %v2209 = vpop.permute.xlu0 %2208
        %2210 = vrot.lane.b32.xlu0 %v2176, 64
        %v2211 = vpop.permute.xlu0 %2210
        %2212 = vrot.lane.b32.xlu0 %v2177, 64
        %v2213 = vpop.permute.xlu0 %2212
        %2214 = vrot.lane.b32.xlu0 %v2178, 64
        %v2215 = vpop.permute.xlu0 %2214
        %2216 = vrot.lane.b32.xlu0 %v2179, 64
        %v2217 = vpop.permute.xlu0 %2216
        %2218 = vrot.lane.b32.xlu0 %v2180, 64
        %v2219 = vpop.permute.xlu0 %2218
        %2220 = vrot.lane.b32.xlu0 %v2181, 64
        %v2221 = vpop.permute.xlu0 %2220
        %2222 = vrot.lane.b32.xlu0 %v2182, 64
        %v2223 = vpop.permute.xlu0 %2222
        %2224 = vrot.lane.b32.xlu0 %v2183, 64
        %v2225 = vpop.permute.xlu0 %2224
        %2226 = vrot.lane.b32.xlu0 %v2184, 64
        %v2227 = vpop.permute.xlu0 %2226
        %2228 = vrot.lane.b32.xlu0 %v2185, 64
        %v2229 = vpop.permute.xlu0 %2228
        %2230 = vrot.lane.b32.xlu0 %v2186, 64
        %v2231 = vpop.permute.xlu0 %2230
        %2232 = vrot.lane.b32.xlu0 %v2187, 64
        %v2233 = vpop.permute.xlu0 %2232
        %2234 = vrot.lane.b32.xlu0 %v2188, 64
        %v2235 = vpop.permute.xlu0 %2234
        %2236 = vrot.lane.b32.xlu0 %v2189, 64
        %v2237 = vpop.permute.xlu0 %2236
        %v2254 = vadd.f32 %v2156, %v2207
        %v2255 = vadd.f32 %v2157, %v2209
        %v2256 = vadd.f32 %v2158, %v2211
        %v2257 = vadd.f32 %v2159, %v2213
        %v2258 = vadd.f32 %v2160, %v2215
        %v2259 = vadd.f32 %v2161, %v2217
        %v2260 = vadd.f32 %v2162, %v2219
        %v2261 = vadd.f32 %v2163, %v2221
        %v2262 = vadd.f32 %v2164, %v2223
        %v2263 = vadd.f32 %v2165, %v2225
        %v2264 = vadd.f32 %v2166, %v2227
        %v2265 = vadd.f32 %v2167, %v2229
        %v2266 = vadd.f32 %v2168, %v2231
        %v2267 = vadd.f32 %v2169, %v2233
        %v2268 = vadd.f32 %v2170, %v2235
        %v2269 = vadd.f32 %v2171, %v2237
        %s2270 = sld [smem:[#allocation11 + $0xe]]
        %v2271 = vstv %s2270
        %v2272 = vmul.f32 %v2271, %v1014
        %v2273 = vmul.f32 %v2271, %v1019
        %v2274 = vmul.f32 %v2271, %v1024
        %v2275 = vmul.f32 %v2271, %v1029
        %v2276 = vmul.f32 %v2271, %v1034
        %v2277 = vmul.f32 %v2271, %v1039
        %v2278 = vmul.f32 %v2271, %v1044
        %v2279 = vmul.f32 %v2271, %v1049
        %v2280 = vmul.f32 %v2271, %v1054
        %v2281 = vmul.f32 %v2271, %v1059
        %v2282 = vmul.f32 %v2271, %v1064
        %v2283 = vmul.f32 %v2271, %v1069
        %v2284 = vmul.f32 %v2271, %v1074
        %v2285 = vmul.f32 %v2271, %v1079
        %v2286 = vmul.f32 %v2271, %v1084
        %v2287 = vmul.f32 %v2271, %v1089
        %v2288 = vadd.f32 %v2254, %v2272
        %v2289 = vadd.f32 %v2255, %v2273
        %v2290 = vadd.f32 %v2256, %v2274
        %v2291 = vadd.f32 %v2257, %v2275
        %v2292 = vadd.f32 %v2258, %v2276
        %v2293 = vadd.f32 %v2259, %v2277
        %v2294 = vadd.f32 %v2260, %v2278
        %v2295 = vadd.f32 %v2261, %v2279
        %v2296 = vadd.f32 %v2262, %v2280
        %v2297 = vadd.f32 %v2263, %v2281
        %v2298 = vadd.f32 %v2264, %v2282
        %v2299 = vadd.f32 %v2265, %v2283
        %v2300 = vadd.f32 %v2266, %v2284
        %v2301 = vadd.f32 %v2267, %v2285
        %v2302 = vadd.f32 %v2268, %v2286
        %v2303 = vadd.f32 %v2269, %v2287
        %s2304 = sld [smem:[#allocation11 + $0xf]]
        %v2305 = vstv %s2304
        %v2306 = vmul.f32 %v2305, %v1014
        %v2307 = vmul.f32 %v2305, %v1019
        %v2308 = vmul.f32 %v2305, %v1024
        %v2309 = vmul.f32 %v2305, %v1029
        %v2310 = vmul.f32 %v2305, %v1034
        %v2311 = vmul.f32 %v2305, %v1039
        %v2312 = vmul.f32 %v2305, %v1044
        %v2313 = vmul.f32 %v2305, %v1049
        %v2314 = vmul.f32 %v2305, %v1054
        %v2315 = vmul.f32 %v2305, %v1059
        %v2316 = vmul.f32 %v2305, %v1064
        %v2317 = vmul.f32 %v2305, %v1069
        %v2318 = vmul.f32 %v2305, %v1074
        %v2319 = vmul.f32 %v2305, %v1079
        %v2320 = vmul.f32 %v2305, %v1084
        %v2321 = vmul.f32 %v2305, %v1089
        %2338 = vrot.lane.b32.xlu0 %v2306, 64
        %v2339 = vpop.permute.xlu0 %2338
        %2340 = vrot.lane.b32.xlu0 %v2307, 64
        %v2341 = vpop.permute.xlu0 %2340
        %2342 = vrot.lane.b32.xlu0 %v2308, 64
        %v2343 = vpop.permute.xlu0 %2342
        %2344 = vrot.lane.b32.xlu0 %v2309, 64
        %v2345 = vpop.permute.xlu0 %2344
        %2346 = vrot.lane.b32.xlu0 %v2310, 64
        %v2347 = vpop.permute.xlu0 %2346
        %2348 = vrot.lane.b32.xlu0 %v2311, 64
        %v2349 = vpop.permute.xlu0 %2348
        %2350 = vrot.lane.b32.xlu0 %v2312, 64
        %v2351 = vpop.permute.xlu0 %2350
        %2352 = vrot.lane.b32.xlu0 %v2313, 64
        %v2353 = vpop.permute.xlu0 %2352
        %2354 = vrot.lane.b32.xlu0 %v2314, 64
        %v2355 = vpop.permute.xlu0 %2354
        %2356 = vrot.lane.b32.xlu0 %v2315, 64
        %v2357 = vpop.permute.xlu0 %2356
        %2358 = vrot.lane.b32.xlu0 %v2316, 64
        %v2359 = vpop.permute.xlu0 %2358
        %2360 = vrot.lane.b32.xlu0 %v2317, 64
        %v2361 = vpop.permute.xlu0 %2360
        %2362 = vrot.lane.b32.xlu0 %v2318, 64
        %v2363 = vpop.permute.xlu0 %2362
        %2364 = vrot.lane.b32.xlu0 %v2319, 64
        %v2365 = vpop.permute.xlu0 %2364
        %2366 = vrot.lane.b32.xlu0 %v2320, 64
        %v2367 = vpop.permute.xlu0 %2366
        %2368 = vrot.lane.b32.xlu0 %v2321, 64
        %v2369 = vpop.permute.xlu0 %2368
        %v2386 = vadd.f32 %v2288, %v2339
        %v2387 = vadd.f32 %v2289, %v2341
        %v2388 = vadd.f32 %v2290, %v2343
        %v2389 = vadd.f32 %v2291, %v2345
        %v2390 = vadd.f32 %v2292, %v2347
        %v2391 = vadd.f32 %v2293, %v2349
        %v2392 = vadd.f32 %v2294, %v2351
        %v2393 = vadd.f32 %v2295, %v2353
        %v2394 = vadd.f32 %v2296, %v2355
        %v2395 = vadd.f32 %v2297, %v2357
        %v2396 = vadd.f32 %v2298, %v2359
        %v2397 = vadd.f32 %v2299, %v2361
        %v2398 = vadd.f32 %v2300, %v2363
        %v2399 = vadd.f32 %v2301, %v2365
        %v2400 = vadd.f32 %v2302, %v2367
        %v2401 = vadd.f32 %v2303, %v2369
        %2410 = vrot.lane.b32.xlu0 %v2386, 96
        %v2411 = vpop.permute.xlu0 %2410
        %2412 = vrot.lane.b32.xlu0 %v2387, 96
        %v2413 = vpop.permute.xlu0 %2412
        %2414 = vrot.lane.b32.xlu0 %v2388, 96
        %v2415 = vpop.permute.xlu0 %2414
        %2416 = vrot.lane.b32.xlu0 %v2389, 96
        %v2417 = vpop.permute.xlu0 %2416
        %2418 = vrot.lane.b32.xlu0 %v2390, 96
        %v2419 = vpop.permute.xlu0 %2418
        %2420 = vrot.lane.b32.xlu0 %v2391, 96
        %v2421 = vpop.permute.xlu0 %2420
        %2422 = vrot.lane.b32.xlu0 %v2392, 96
        %v2423 = vpop.permute.xlu0 %2422
        %2424 = vrot.lane.b32.xlu0 %v2393, 96
        %v2425 = vpop.permute.xlu0 %2424
        %v2434 = vmax.f32 %v2386, %v2411
        %v2435 = vmax.f32 %v2387, %v2413
        %v2436 = vmax.f32 %v2388, %v2415
        %v2437 = vmax.f32 %v2389, %v2417
        %v2438 = vmax.f32 %v2390, %v2419
        %v2439 = vmax.f32 %v2391, %v2421
        %v2440 = vmax.f32 %v2392, %v2423
        %v2441 = vmax.f32 %v2393, %v2425
        %2450 = vrot.lane.b32.xlu0 %v2394, 96
        %v2451 = vpop.permute.xlu0 %2450
        %2452 = vrot.lane.b32.xlu0 %v2395, 96
        %v2453 = vpop.permute.xlu0 %2452
        %2454 = vrot.lane.b32.xlu0 %v2396, 96
        %v2455 = vpop.permute.xlu0 %2454
        %2456 = vrot.lane.b32.xlu0 %v2397, 96
        %v2457 = vpop.permute.xlu0 %2456
        %2458 = vrot.lane.b32.xlu0 %v2398, 96
        %v2459 = vpop.permute.xlu0 %2458
        %2460 = vrot.lane.b32.xlu0 %v2399, 96
        %v2461 = vpop.permute.xlu0 %2460
        %2462 = vrot.lane.b32.xlu0 %v2400, 96
        %v2463 = vpop.permute.xlu0 %2462
        %2464 = vrot.lane.b32.xlu0 %v2401, 96
        %v2465 = vpop.permute.xlu0 %2464
        %v2474 = vmax.f32 %v2394, %v2451
        %v2475 = vmax.f32 %v2395, %v2453
        %v2476 = vmax.f32 %v2396, %v2455
        %v2477 = vmax.f32 %v2397, %v2457
        %v2478 = vmax.f32 %v2398, %v2459
        %v2479 = vmax.f32 %v2399, %v2461
        %v2480 = vmax.f32 %v2400, %v2463
        %v2481 = vmax.f32 %v2401, %v2465
        %v2482 = vmax.f32 %v2434, %v2474
        %v2483 = vmax.f32 %v2435, %v2475
        %v2484 = vmax.f32 %v2436, %v2476
        %v2485 = vmax.f32 %v2437, %v2477
        %v2486 = vmax.f32 %v2438, %v2478
        %v2487 = vmax.f32 %v2439, %v2479
        %v2488 = vmax.f32 %v2440, %v2480
        %v2489 = vmax.f32 %v2441, %v2481
        %s2490 = sld [smem:[#allocation12 + $0x3]]
        %v2491 = vstv %s2490
        %v2492 = vadd.f32 %v2482, %v2491
        %v2493 = vadd.f32 %v2483, %v2491
        %v2494 = vadd.f32 %v2484, %v2491
        %v2495 = vadd.f32 %v2485, %v2491
        %v2496 = vadd.f32 %v2486, %v2491
        %v2497 = vadd.f32 %v2487, %v2491
        %v2498 = vadd.f32 %v2488, %v2491
        %v2499 = vadd.f32 %v2489, %v2491
        %v2500 = vmax.f32 %v2492, 0.0
        %v2501 = vmax.f32 %v2493, 0.0
        %v2502 = vmax.f32 %v2494, 0.0
        %v2503 = vmax.f32 %v2495, 0.0
        %v2504 = vmax.f32 %v2496, 0.0
        %v2505 = vmax.f32 %v2497, 0.0
        %v2506 = vmax.f32 %v2498, 0.0
        %v2507 = vmax.f32 %v2499, 0.0
        %v2508 = vld [vmem:[#allocation8] sm:$0xff]
        %v2509 = vld [vmem:[#allocation8 + $0x8] sm:$0xff]
        %v2510 = vld [vmem:[#allocation8 + $0x10] sm:$0xff]
        %v2511 = vld [vmem:[#allocation8 + $0x18] sm:$0xff]
        %v2512 = vld [vmem:[#allocation8 + $0x20] sm:$0xff]
        %v2513 = vld [vmem:[#allocation8 + $0x28] sm:$0xff]
        %v2514 = vld [vmem:[#allocation8 + $0x30] sm:$0xff]
        %v2515 = vld [vmem:[#allocation8 + $0x38] sm:$0xff]
        %v2516 = vld [vmem:[#allocation8 + $0x40] sm:$0xff]
        %v2517 = vld [vmem:[#allocation8 + $0x48] sm:$0xff]
        %v2518 = vld [vmem:[#allocation8 + $0x50] sm:$0xff]
        %v2519 = vld [vmem:[#allocation8 + $0x58] sm:$0xff]
        %v2520 = vld [vmem:[#allocation8 + $0x60] sm:$0xff]
        %v2521 = vld [vmem:[#allocation8 + $0x68] sm:$0xff]
        %v2522 = vld [vmem:[#allocation8 + $0x70] sm:$0xff]
        %v2523 = vld [vmem:[#allocation8 + $0x78] sm:$0xff]
        %v2524 = vld [vmem:[#allocation8 + $0x80] sm:$0xff]
        %v2525 = vld [vmem:[#allocation8 + $0x88] sm:$0xff]
        %v2526 = vld [vmem:[#allocation8 + $0x90] sm:$0xff]
        %v2527 = vld [vmem:[#allocation8 + $0x98] sm:$0xff]
        %v2528 = vld [vmem:[#allocation8 + $0xa0] sm:$0xff]
        %v2529 = vld [vmem:[#allocation8 + $0xa8] sm:$0xff]
        %v2530 = vld [vmem:[#allocation8 + $0xb0] sm:$0xff]
        %v2531 = vld [vmem:[#allocation8 + $0xb8] sm:$0xff]
        %v2532 = vld [vmem:[#allocation8 + $0xc0] sm:$0xff]
        %v2533 = vld [vmem:[#allocation8 + $0xc8] sm:$0xff]
        %v2534 = vld [vmem:[#allocation8 + $0xd0] sm:$0xff]
        %v2535 = vld [vmem:[#allocation8 + $0xd8] sm:$0xff]
        %v2536 = vld [vmem:[#allocation8 + $0xe0] sm:$0xff]
        %v2537 = vld [vmem:[#allocation8 + $0xe8] sm:$0xff]
        %v2538 = vld [vmem:[#allocation8 + $0xf0] sm:$0xff]
        %v2539 = vld [vmem:[#allocation8 + $0xf8] sm:$0xff]
        %v2540 = vld [vmem:[#allocation8 + $0x100] sm:$0xff]
        %v2541 = vld [vmem:[#allocation8 + $0x108] sm:$0xff]
        %v2542 = vld [vmem:[#allocation8 + $0x110] sm:$0xff]
        %v2543 = vld [vmem:[#allocation8 + $0x118] sm:$0xff]
        %v2544 = vld [vmem:[#allocation8 + $0x120] sm:$0xff]
        %v2545 = vld [vmem:[#allocation8 + $0x128] sm:$0xff]
        %v2546 = vld [vmem:[#allocation8 + $0x130] sm:$0xff]
        %v2547 = vld [vmem:[#allocation8 + $0x138] sm:$0xff]
        %v2548 = vld [vmem:[#allocation8 + $0x140] sm:$0xff]
        %v2549 = vld [vmem:[#allocation8 + $0x148] sm:$0xff]
        %v2550 = vld [vmem:[#allocation8 + $0x150] sm:$0xff]
        %v2551 = vld [vmem:[#allocation8 + $0x158] sm:$0xff]
        %v2552 = vld [vmem:[#allocation8 + $0x160] sm:$0xff]
        %v2553 = vld [vmem:[#allocation8 + $0x168] sm:$0xff]
        %v2554 = vld [vmem:[#allocation8 + $0x170] sm:$0xff]
        %v2555 = vld [vmem:[#allocation8 + $0x178] sm:$0xff]
        %v2556 = vld [vmem:[#allocation8 + $0x180] sm:$0xff]
        %v2557 = vld [vmem:[#allocation8 + $0x188] sm:$0xff]
        %v2558 = vld [vmem:[#allocation8 + $0x190] sm:$0xff]
        %v2559 = vld [vmem:[#allocation8 + $0x198] sm:$0xff]
        %v2560 = vld [vmem:[#allocation8 + $0x1a0] sm:$0xff]
        %v2561 = vld [vmem:[#allocation8 + $0x1a8] sm:$0xff]
        %v2562 = vld [vmem:[#allocation8 + $0x1b0] sm:$0xff]
        %v2563 = vld [vmem:[#allocation8 + $0x1b8] sm:$0xff]
        %v2564 = vld [vmem:[#allocation8 + $0x1c0] sm:$0xff]
        %v2565 = vld [vmem:[#allocation8 + $0x1c8] sm:$0xff]
        %v2566 = vld [vmem:[#allocation8 + $0x1d0] sm:$0xff]
        %v2567 = vld [vmem:[#allocation8 + $0x1d8] sm:$0xff]
        %v2568 = vld [vmem:[#allocation8 + $0x1e0] sm:$0xff]
        %v2569 = vld [vmem:[#allocation8 + $0x1e8] sm:$0xff]
        %v2570 = vld [vmem:[#allocation8 + $0x1f0] sm:$0xff]
        %v2571 = vld [vmem:[#allocation8 + $0x1f8] sm:$0xff]
        %2572 = vmatprep.subr.mxu0 0.0
        %2573 = vmatpush1.msra.mxu0 %v1438
        %2574 = vmatprep.subr.mxu0 0.0
        %2575 = vmatpush1.msra.mxu0 %v1439
        %2576 = vmatprep.subr.mxu0 0.0
        %2577 = vmatpush1.msra.mxu0 %v1440
        %2578 = vmatprep.subr.mxu0 0.0
        %2579 = vmatpush1.msra.mxu0 %v1441
        %2580 = vmatprep.subr.mxu0 0.0
        %2581 = vmatpush1.msra.mxu0 %v1442
        %2582 = vmatprep.subr.mxu0 0.0
        %2583 = vmatpush1.msra.mxu0 %v1443
        %2584 = vmatprep.subr.mxu0 0.0
        %2585 = vmatpush1.msra.mxu0 %v1444
        %2586 = vmatprep.subr.mxu0 0.0
        %2587 = vmatpush1.msra.mxu0 %v1445
        %2588 = vmatprep.subr.mxu0 0.0
        %2589 = vmatpush1.msra.mxu0 %v1792
        %2590 = vmatprep.subr.mxu0 0.0
        %2591 = vmatpush1.msra.mxu0 %v1793
        %2592 = vmatprep.subr.mxu0 0.0
        %2593 = vmatpush1.msra.mxu0 %v1794
        %2594 = vmatprep.subr.mxu0 0.0
        %2595 = vmatpush1.msra.mxu0 %v1795
        %2596 = vmatprep.subr.mxu0 0.0
        %2597 = vmatpush1.msra.mxu0 %v1796
        %2598 = vmatprep.subr.mxu0 0.0
        %2599 = vmatpush1.msra.mxu0 %v1797
        %2600 = vmatprep.subr.mxu0 0.0
        %2601 = vmatpush1.msra.mxu0 %v1798
        %2602 = vmatprep.subr.mxu0 0.0
        %2603 = vmatpush1.msra.mxu0 %v1799
        %2604 = vmatprep.subr.mxu0 0.0
        %2605 = vmatpush1.msra.mxu0 %v2146
        %2606 = vmatprep.subr.mxu0 0.0
        %2607 = vmatpush1.msra.mxu0 %v2147
        %2608 = vmatprep.subr.mxu0 0.0
        %2609 = vmatpush1.msra.mxu0 %v2148
        %2610 = vmatprep.subr.mxu0 0.0
        %2611 = vmatpush1.msra.mxu0 %v2149
        %2612 = vmatprep.subr.mxu0 0.0
        %2613 = vmatpush1.msra.mxu0 %v2150
        %2614 = vmatprep.subr.mxu0 0.0
        %2615 = vmatpush1.msra.mxu0 %v2151
        %2616 = vmatprep.subr.mxu0 0.0
        %2617 = vmatpush1.msra.mxu0 %v2152
        %2618 = vmatprep.subr.mxu0 0.0
        %2619 = vmatpush1.msra.mxu0 %v2153
        %2620 = vmatprep.subr.mxu0 0.0
        %2621 = vmatpush1.msra.mxu0 %v2500
        %2622 = vmatprep.subr.mxu0 0.0
        %2623 = vmatpush1.msra.mxu0 %v2501
        %2624 = vmatprep.subr.mxu0 0.0
        %2625 = vmatpush1.msra.mxu0 %v2502
        %2626 = vmatprep.subr.mxu0 0.0
        %2627 = vmatpush1.msra.mxu0 %v2503
        %2628 = vmatprep.subr.mxu0 0.0
        %2629 = vmatpush1.msra.mxu0 %v2504
        %2630 = vmatprep.subr.mxu0 0.0
        %2631 = vmatpush1.msra.mxu0 %v2505
        %2632 = vmatprep.subr.mxu0 0.0
        %2633 = vmatpush1.msra.mxu0 %v2506
        %2634 = vmatprep.subr.mxu0 0.0
        %2635 = vmatpush1.msra.mxu0 %v2507
        %2636 = vmatprep.mubr.f32.mxu0 %v2509
        %2637 = vmatmul.mubr.f32.gmra.mrb[0].mxu0 %v2508
        %v2638 = vpop.f32.mrb[0].mxu0
        %v2639 = vadd.f32 0.0, %v2638
        %v2640 = vpop.f32.mrb[0].mxu0
        %2641 = vmatprep.mubr.f32.mxu0 %v2511
        %2642 = vmatmul.mubr.f32.gmra.mrb[0].mxu0 %v2510
        %v2643 = vpop.f32.mrb[0].mxu0
        %v2644 = vadd.f32 0.0, %v2643
        %v2645 = vpop.f32.mrb[0].mxu0
        %2646 = vmatprep.mubr.f32.mxu0 %v2513
        %2647 = vmatmul.mubr.f32.gmra.mrb[0].mxu0 %v2512
        %v2648 = vpop.f32.mrb[0].mxu0
        %v2649 = vadd.f32 0.0, %v2648
        %v2650 = vpop.f32.mrb[0].mxu0
        %2651 = vmatprep.mubr.f32.mxu0 %v2515
        %2652 = vmatmul.mubr.f32.gmra.mrb[0].mxu0 %v2514
        %v2653 = vpop.f32.mrb[0].mxu0
        %v2654 = vadd.f32 0.0, %v2653
        %v2655 = vpop.f32.mrb[0].mxu0
        %2656 = vmatprep.mubr.f32.mxu0 %v2517
        %2657 = vmatmul.mubr.f32.gmra.mrb[0].mxu0 %v2516
        %v2658 = vpop.f32.mrb[0].mxu0
        %v2659 = vadd.f32 0.0, %v2658
        %v2660 = vpop.f32.mrb[0].mxu0
        %2661 = vmatprep.mubr.f32.mxu0 %v2519
        %2662 = vmatmul.mubr.f32.gmra.mrb[0].mxu0 %v2518
        %v2663 = vpop.f32.mrb[0].mxu0
        %v2664 = vadd.f32 0.0, %v2663
        %v2665 = vpop.f32.mrb[0].mxu0
        %2666 = vmatprep.mubr.f32.mxu0 %v2521
        %2667 = vmatmul.mubr.f32.gmra.mrb[0].mxu0 %v2520
        %v2668 = vpop.f32.mrb[0].mxu0
        %v2669 = vadd.f32 0.0, %v2668
        %v2670 = vpop.f32.mrb[0].mxu0
        %2671 = vmatprep.mubr.f32.mxu0 %v2523
        %2672 = vmatmul.mubr.f32.gmra.mrb[0].mxu0 %v2522
        %v2673 = vpop.f32.mrb[0].mxu0
        %v2674 = vadd.f32 0.0, %v2673
        %v2675 = vpop.f32.mrb[0].mxu0
        %2676 = vmatprep.mubr.f32.mxu0 %v2525
        %2677 = vmatmul.mubr.f32.gmra.mrb[0].mxu0 %v2524
        %v2678 = vpop.f32.mrb[0].mxu0
        %v2679 = vadd.f32 0.0, %v2678
        %v2680 = vpop.f32.mrb[0].mxu0
        %2681 = vmatprep.mubr.f32.mxu0 %v2527
        %2682 = vmatmul.mubr.f32.gmra.mrb[0].mxu0 %v2526
        %v2683 = vpop.f32.mrb[0].mxu0
        %v2684 = vadd.f32 0.0, %v2683
        %v2685 = vpop.f32.mrb[0].mxu0
        %2686 = vmatprep.mubr.f32.mxu0 %v2529
        %2687 = vmatmul.mubr.f32.gmra.mrb[0].mxu0 %v2528
        %v2688 = vpop.f32.mrb[0].mxu0
        %v2689 = vadd.f32 0.0, %v2688
        %v2690 = vpop.f32.mrb[0].mxu0
        %2691 = vmatprep.mubr.f32.mxu0 %v2531
        %2692 = vmatmul.mubr.f32.gmra.mrb[0].mxu0 %v2530
        %v2693 = vpop.f32.mrb[0].mxu0
        %v2694 = vadd.f32 0.0, %v2693
        %v2695 = vpop.f32.mrb[0].mxu0
        %2696 = vmatprep.mubr.f32.mxu0 %v2533
        %2697 = vmatmul.mubr.f32.gmra.mrb[0].mxu0 %v2532
        %v2698 = vpop.f32.mrb[0].mxu0
        %v2699 = vadd.f32 0.0, %v2698
        %v2700 = vpop.f32.mrb[0].mxu0
        %2701 = vmatprep.mubr.f32.mxu0 %v2535
        %2702 = vmatmul.mubr.f32.gmra.mrb[0].mxu0 %v2534
        %v2703 = vpop.f32.mrb[0].mxu0
        %v2704 = vadd.f32 0.0, %v2703
        %v2705 = vpop.f32.mrb[0].mxu0
        %2706 = vmatprep.mubr.f32.mxu0 %v2537
        %2707 = vmatmul.mubr.f32.gmra.mrb[0].mxu0 %v2536
        %v2708 = vpop.f32.mrb[0].mxu0
        %v2709 = vadd.f32 0.0, %v2708
        %v2710 = vpop.f32.mrb[0].mxu0
        %2711 = vmatprep.mubr.f32.mxu0 %v2539
        %2712 = vmatmul.mubr.f32.gmra.mrb[0].mxu0 %v2538
        %v2713 = vpop.f32.mrb[0].mxu0
        %v2714 = vadd.f32 0.0, %v2713
        %v2715 = vpop.f32.mrb[0].mxu0
        %2716 = vmatprep.mubr.f32.mxu0 %v2541
        %2717 = vmatmul.mubr.f32.gmra.mrb[0].mxu0 %v2540
        %v2718 = vpop.f32.mrb[0].mxu0
        %v2719 = vadd.f32 0.0, %v2718
        %v2720 = vpop.f32.mrb[0].mxu0
        %2721 = vmatprep.mubr.f32.mxu0 %v2543
        %2722 = vmatmul.mubr.f32.gmra.mrb[0].mxu0 %v2542
        %v2723 = vpop.f32.mrb[0].mxu0
        %v2724 = vadd.f32 0.0, %v2723
        %v2725 = vpop.f32.mrb[0].mxu0
        %2726 = vmatprep.mubr.f32.mxu0 %v2545
        %2727 = vmatmul.mubr.f32.gmra.mrb[0].mxu0 %v2544
        %v2728 = vpop.f32.mrb[0].mxu0
        %v2729 = vadd.f32 0.0, %v2728
        %v2730 = vpop.f32.mrb[0].mxu0
        %2731 = vmatprep.mubr.f32.mxu0 %v2547
        %2732 = vmatmul.mubr.f32.gmra.mrb[0].mxu0 %v2546
        %v2733 = vpop.f32.mrb[0].mxu0
        %v2734 = vadd.f32 0.0, %v2733
        %v2735 = vpop.f32.mrb[0].mxu0
        %2736 = vmatprep.mubr.f32.mxu0 %v2549
        %2737 = vmatmul.mubr.f32.gmra.mrb[0].mxu0 %v2548
        %v2738 = vpop.f32.mrb[0].mxu0
        %v2739 = vadd.f32 0.0, %v2738
        %v2740 = vpop.f32.mrb[0].mxu0
        %2741 = vmatprep.mubr.f32.mxu0 %v2551
        %2742 = vmatmul.mubr.f32.gmra.mrb[0].mxu0 %v2550
        %v2743 = vpop.f32.mrb[0].mxu0
        %v2744 = vadd.f32 0.0, %v2743
        %v2745 = vpop.f32.mrb[0].mxu0
        %2746 = vmatprep.mubr.f32.mxu0 %v2553
        %2747 = vmatmul.mubr.f32.gmra.mrb[0].mxu0 %v2552
        %v2748 = vpop.f32.mrb[0].mxu0
        %v2749 = vadd.f32 0.0, %v2748
        %v2750 = vpop.f32.mrb[0].mxu0
        %2751 = vmatprep.mubr.f32.mxu0 %v2555
        %2752 = vmatmul.mubr.f32.gmra.mrb[0].mxu0 %v2554
        %v2753 = vpop.f32.mrb[0].mxu0
        %v2754 = vadd.f32 0.0, %v2753
        %v2755 = vpop.f32.mrb[0].mxu0
        %2756 = vmatprep.mubr.f32.mxu0 %v2557
        %2757 = vmatmul.mubr.f32.gmra.mrb[0].mxu0 %v2556
        %v2758 = vpop.f32.mrb[0].mxu0
        %v2759 = vadd.f32 0.0, %v2758
        %v2760 = vpop.f32.mrb[0].mxu0
        %2761 = vmatprep.mubr.f32.mxu0 %v2559
        %2762 = vmatmul.mubr.f32.gmra.mrb[0].mxu0 %v2558
        %v2763 = vpop.f32.mrb[0].mxu0
        %v2764 = vadd.f32 0.0, %v2763
        %v2765 = vpop.f32.mrb[0].mxu0
        %2766 = vmatprep.mubr.f32.mxu0 %v2561
        %2767 = vmatmul.mubr.f32.gmra.mrb[0].mxu0 %v2560
        %v2768 = vpop.f32.mrb[0].mxu0
        %v2769 = vadd.f32 0.0, %v2768
        %v2770 = vpop.f32.mrb[0].mxu0
        %2771 = vmatprep.mubr.f32.mxu0 %v2563
        %2772 = vmatmul.mubr.f32.gmra.mrb[0].mxu0 %v2562
        %v2773 = vpop.f32.mrb[0].mxu0
        %v2774 = vadd.f32 0.0, %v2773
        %v2775 = vpop.f32.mrb[0].mxu0
        %2776 = vmatprep.mubr.f32.mxu0 %v2565
        %2777 = vmatmul.mubr.f32.gmra.mrb[0].mxu0 %v2564
        %v2778 = vpop.f32.mrb[0].mxu0
        %v2779 = vadd.f32 0.0, %v2778
        %v2780 = vpop.f32.mrb[0].mxu0
        %2781 = vmatprep.mubr.f32.mxu0 %v2567
        %2782 = vmatmul.mubr.f32.gmra.mrb[0].mxu0 %v2566
        %v2783 = vpop.f32.mrb[0].mxu0
        %v2784 = vadd.f32 0.0, %v2783
        %v2785 = vpop.f32.mrb[0].mxu0
        %2786 = vmatprep.mubr.f32.mxu0 %v2569
        %2787 = vmatmul.mubr.f32.gmra.mrb[0].mxu0 %v2568
        %v2788 = vpop.f32.mrb[0].mxu0
        %v2789 = vadd.f32 0.0, %v2788
        %v2790 = vpop.f32.mrb[0].mxu0
        %2791 = vmatprep.mubr.f32.mxu0 %v2571
        %2792 = vmatmul.mubr.f32.gmra.mrb[0].mxu0 %v2570
        %v2793 = vpop.f32.mrb[0].mxu0
        %v2794 = vadd.f32 0.0, %v2793
        %v2795 = vpop.f32.mrb[0].mxu0
        %2796 = vdwg.mxu0
        %v2797 = vld [vmem:[#allocation10] sm:$0xff]
        %v2798 = vld [vmem:[#allocation10 + $0x8] sm:$0xff]
        %v2799 = vld [vmem:[#allocation10 + $0x10] sm:$0xff]
        %v2800 = vld [vmem:[#allocation10 + $0x18] sm:$0xff]
        %vm2801 = vcmask 261120
        %v2803 = vsel %vm2801, %v2639, 0
        %v2806 = vsel %vm2801, %v2644, 0
        %v2809 = vsel %vm2801, %v2649, 0
        %v2812 = vsel %vm2801, %v2654, 0
        %v2815 = vsel %vm2801, %v2659, 0
        %v2818 = vsel %vm2801, %v2664, 0
        %v2821 = vsel %vm2801, %v2669, 0
        %v2824 = vsel %vm2801, %v2674, 0
        %v2827 = vsel %vm2801, %v2679, 0
        %v2830 = vsel %vm2801, %v2684, 0
        %v2833 = vsel %vm2801, %v2689, 0
        %v2836 = vsel %vm2801, %v2694, 0
        %v2839 = vsel %vm2801, %v2699, 0
        %v2842 = vsel %vm2801, %v2704, 0
        %v2845 = vsel %vm2801, %v2709, 0
        %v2848 = vsel %vm2801, %v2714, 0
        %v2851 = vsel %vm2801, %v2719, 0
        %v2854 = vsel %vm2801, %v2724, 0
        %v2857 = vsel %vm2801, %v2729, 0
        %v2860 = vsel %vm2801, %v2734, 0
        %v2863 = vsel %vm2801, %v2739, 0
        %v2866 = vsel %vm2801, %v2744, 0
        %v2869 = vsel %vm2801, %v2749, 0
        %v2872 = vsel %vm2801, %v2754, 0
        %v2875 = vsel %vm2801, %v2759, 0
        %v2878 = vsel %vm2801, %v2764, 0
        %v2881 = vsel %vm2801, %v2769, 0
        %v2884 = vsel %vm2801, %v2774, 0
        %v2887 = vsel %vm2801, %v2779, 0
        %v2890 = vsel %vm2801, %v2784, 0
        %v2893 = vsel %vm2801, %v2789, 0
        %v2896 = vsel %vm2801, %v2794, 0
        %2898 = vmatprep.subr.mxu0 0.0
        %2899 = vmatpush1.msra.mxu0 %v2797
        %2900 = vmatprep.subr.mxu0 0.0
        %2901 = vmatpush1.msra.mxu0 %v2798
        %2902 = vmatprep.subr.mxu0 0.0
        %2903 = vmatpush1.msra.mxu0 %v2799
        %2904 = vmatprep.subr.mxu0 0.0
        %2905 = vmatpush1.msra.mxu0 %v2800
        %2906 = vmatprep.subr.mxu0 0.0
        %2907 = vmatpush1.msra.mxu0 0.0
        %2908 = vmatprep.subr.mxu0 0.0
        %2909 = vmatpush1.msra.mxu0 0.0
        %2910 = vmatprep.subr.mxu0 0.0
        %2911 = vmatpush1.msra.mxu0 0.0
        %2912 = vmatprep.subr.mxu0 0.0
        %2913 = vmatpush1.msra.mxu0 0.0
        %2914 = vmatprep.subr.mxu0 0.0
        %2915 = vmatpush1.msra.mxu0 0.0
        %2916 = vmatprep.subr.mxu0 0.0
        %2917 = vmatpush1.msra.mxu0 0.0
        %2918 = vmatprep.subr.mxu0 0.0
        %2919 = vmatpush1.msra.mxu0 0.0
        %2920 = vmatprep.subr.mxu0 0.0
        %2921 = vmatpush1.msra.mxu0 0.0
        %2922 = vmatprep.subr.mxu0 0.0
        %2923 = vmatpush1.msra.mxu0 0.0
        %2924 = vmatprep.subr.mxu0 0.0
        %2925 = vmatpush1.msra.mxu0 0.0
        %2926 = vmatprep.subr.mxu0 0.0
        %2927 = vmatpush1.msra.mxu0 0.0
        %2928 = vmatprep.subr.mxu0 0.0
        %2929 = vmatpush1.msra.mxu0 0.0
        %2930 = vmatprep.subr.mxu0 0.0
        %2931 = vmatpush1.msra.mxu0 0.0
        %2932 = vmatprep.subr.mxu0 0.0
        %2933 = vmatpush1.msra.mxu0 0.0
        %2934 = vmatprep.subr.mxu0 0.0
        %2935 = vmatpush1.msra.mxu0 0.0
        %2936 = vmatprep.subr.mxu0 0.0
        %2937 = vmatpush1.msra.mxu0 0.0
        %2938 = vmatprep.subr.mxu0 0.0
        %2939 = vmatpush1.msra.mxu0 0.0
        %2940 = vmatprep.subr.mxu0 0.0
        %2941 = vmatpush1.msra.mxu0 0.0
        %2942 = vmatprep.subr.mxu0 0.0
        %2943 = vmatpush1.msra.mxu0 0.0
        %2944 = vmatprep.subr.mxu0 0.0
        %2945 = vmatpush1.msra.mxu0 0.0
        %2946 = vmatprep.subr.mxu0 0.0
        %2947 = vmatpush1.msra.mxu0 0.0
        %2948 = vmatprep.subr.mxu0 0.0
        %2949 = vmatpush1.msra.mxu0 0.0
        %2950 = vmatprep.subr.mxu0 0.0
        %2951 = vmatpush1.msra.mxu0 0.0
        %2952 = vmatprep.subr.mxu0 0.0
        %2953 = vmatpush1.msra.mxu0 0.0
        %2954 = vmatprep.subr.mxu0 0.0
        %2955 = vmatpush1.msra.mxu0 0.0
        %2956 = vmatprep.subr.mxu0 0.0
        %2957 = vmatpush1.msra.mxu0 0.0
        %2958 = vmatprep.subr.mxu0 0.0
        %2959 = vmatpush1.msra.mxu0 0.0
        %2960 = vmatprep.subr.mxu0 0.0
        %2961 = vmatpush1.msra.mxu0 0.0
        %2962 = vmatprep.mubr.f32.mxu0 0.0
        %2963 = vmatmul.mubr.f32.gmra.mrb[0].mxu0 %v2803
        %v2964 = vpop.f32.mrb[0].mxu0
        %v2965 = vadd.f32 0.0, %v2964
        %v2966 = vpop.f32.mrb[0].mxu0
        %2967 = vmatprep.mubr.f32.mxu0 0.0
        %2968 = vmatmul.mubr.f32.gmra.mrb[0].mxu0 %v2806
        %v2969 = vpop.f32.mrb[0].mxu0
        %v2970 = vadd.f32 0.0, %v2969
        %v2971 = vpop.f32.mrb[0].mxu0
        %2972 = vmatprep.mubr.f32.mxu0 0.0
        %2973 = vmatmul.mubr.f32.gmra.mrb[0].mxu0 %v2809
        %v2974 = vpop.f32.mrb[0].mxu0
        %v2975 = vadd.f32 0.0, %v2974
        %v2976 = vpop.f32.mrb[0].mxu0
        %2977 = vmatprep.mubr.f32.mxu0 0.0
        %2978 = vmatmul.mubr.f32.gmra.mrb[0].mxu0 %v2812
        %v2979 = vpop.f32.mrb[0].mxu0
        %v2980 = vadd.f32 0.0, %v2979
        %v2981 = vpop.f32.mrb[0].mxu0
        %2982 = vmatprep.mubr.f32.mxu0 0.0
        %2983 = vmatmul.mubr.f32.gmra.mrb[0].mxu0 %v2815
        %v2984 = vpop.f32.mrb[0].mxu0
        %v2985 = vadd.f32 0.0, %v2984
        %v2986 = vpop.f32.mrb[0].mxu0
        %2987 = vmatprep.mubr.f32.mxu0 0.0
        %2988 = vmatmul.mubr.f32.gmra.mrb[0].mxu0 %v2818
        %v2989 = vpop.f32.mrb[0].mxu0
        %v2990 = vadd.f32 0.0, %v2989
        %v2991 = vpop.f32.mrb[0].mxu0
        %2992 = vmatprep.mubr.f32.mxu0 0.0
        %2993 = vmatmul.mubr.f32.gmra.mrb[0].mxu0 %v2821
        %v2994 = vpop.f32.mrb[0].mxu0
        %v2995 = vadd.f32 0.0, %v2994
        %v2996 = vpop.f32.mrb[0].mxu0
        %2997 = vmatprep.mubr.f32.mxu0 0.0
        %2998 = vmatmul.mubr.f32.gmra.mrb[0].mxu0 %v2824
        %v2999 = vpop.f32.mrb[0].mxu0
        %v3000 = vadd.f32 0.0, %v2999
        %v3001 = vpop.f32.mrb[0].mxu0
        %3002 = vmatprep.mubr.f32.mxu0 0.0
        %3003 = vmatmul.mubr.f32.gmra.mrb[0].mxu0 %v2827
        %v3004 = vpop.f32.mrb[0].mxu0
        %v3005 = vadd.f32 0.0, %v3004
        %v3006 = vpop.f32.mrb[0].mxu0
        %3007 = vmatprep.mubr.f32.mxu0 0.0
        %3008 = vmatmul.mubr.f32.gmra.mrb[0].mxu0 %v2830
        %v3009 = vpop.f32.mrb[0].mxu0
        %v3010 = vadd.f32 0.0, %v3009
        %v3011 = vpop.f32.mrb[0].mxu0
        %3012 = vmatprep.mubr.f32.mxu0 0.0
        %3013 = vmatmul.mubr.f32.gmra.mrb[0].mxu0 %v2833
        %v3014 = vpop.f32.mrb[0].mxu0
        %v3015 = vadd.f32 0.0, %v3014
        %v3016 = vpop.f32.mrb[0].mxu0
        %3017 = vmatprep.mubr.f32.mxu0 0.0
        %3018 = vmatmul.mubr.f32.gmra.mrb[0].mxu0 %v2836
        %v3019 = vpop.f32.mrb[0].mxu0
        %v3020 = vadd.f32 0.0, %v3019
        %v3021 = vpop.f32.mrb[0].mxu0
        %3022 = vmatprep.mubr.f32.mxu0 0.0
        %3023 = vmatmul.mubr.f32.gmra.mrb[0].mxu0 %v2839
        %v3024 = vpop.f32.mrb[0].mxu0
        %v3025 = vadd.f32 0.0, %v3024
        %v3026 = vpop.f32.mrb[0].mxu0
        %3027 = vmatprep.mubr.f32.mxu0 0.0
        %3028 = vmatmul.mubr.f32.gmra.mrb[0].mxu0 %v2842
        %v3029 = vpop.f32.mrb[0].mxu0
        %v3030 = vadd.f32 0.0, %v3029
        %v3031 = vpop.f32.mrb[0].mxu0
        %3032 = vmatprep.mubr.f32.mxu0 0.0
        %3033 = vmatmul.mubr.f32.gmra.mrb[0].mxu0 %v2845
        %v3034 = vpop.f32.mrb[0].mxu0
        %v3035 = vadd.f32 0.0, %v3034
        %v3036 = vpop.f32.mrb[0].mxu0
        %3037 = vmatprep.mubr.f32.mxu0 0.0
        %3038 = vmatmul.mubr.f32.gmra.mrb[0].mxu0 %v2848
        %v3039 = vpop.f32.mrb[0].mxu0
        %v3040 = vadd.f32 0.0, %v3039
        %v3041 = vpop.f32.mrb[0].mxu0
        %3042 = vmatprep.mubr.f32.mxu0 0.0
        %3043 = vmatmul.mubr.f32.gmra.mrb[0].mxu0 %v2851
        %v3044 = vpop.f32.mrb[0].mxu0
        %v3045 = vadd.f32 0.0, %v3044
        %v3046 = vpop.f32.mrb[0].mxu0
        %3047 = vmatprep.mubr.f32.mxu0 0.0
        %3048 = vmatmul.mubr.f32.gmra.mrb[0].mxu0 %v2854
        %v3049 = vpop.f32.mrb[0].mxu0
        %v3050 = vadd.f32 0.0, %v3049
        %v3051 = vpop.f32.mrb[0].mxu0
        %3052 = vmatprep.mubr.f32.mxu0 0.0
        %3053 = vmatmul.mubr.f32.gmra.mrb[0].mxu0 %v2857
        %v3054 = vpop.f32.mrb[0].mxu0
        %v3055 = vadd.f32 0.0, %v3054
        %v3056 = vpop.f32.mrb[0].mxu0
        %3057 = vmatprep.mubr.f32.mxu0 0.0
        %3058 = vmatmul.mubr.f32.gmra.mrb[0].mxu0 %v2860
        %v3059 = vpop.f32.mrb[0].mxu0
        %v3060 = vadd.f32 0.0, %v3059
        %v3061 = vpop.f32.mrb[0].mxu0
        %3062 = vmatprep.mubr.f32.mxu0 0.0
        %3063 = vmatmul.mubr.f32.gmra.mrb[0].mxu0 %v2863
        %v3064 = vpop.f32.mrb[0].mxu0
        %v3065 = vadd.f32 0.0, %v3064
        %v3066 = vpop.f32.mrb[0].mxu0
        %3067 = vmatprep.mubr.f32.mxu0 0.0
        %3068 = vmatmul.mubr.f32.gmra.mrb[0].mxu0 %v2866
        %v3069 = vpop.f32.mrb[0].mxu0
        %v3070 = vadd.f32 0.0, %v3069
        %v3071 = vpop.f32.mrb[0].mxu0
        %3072 = vmatprep.mubr.f32.mxu0 0.0
        %3073 = vmatmul.mubr.f32.gmra.mrb[0].mxu0 %v2869
        %v3074 = vpop.f32.mrb[0].mxu0
        %v3075 = vadd.f32 0.0, %v3074
        %v3076 = vpop.f32.mrb[0].mxu0
        %3077 = vmatprep.mubr.f32.mxu0 0.0
        %3078 = vmatmul.mubr.f32.gmra.mrb[0].mxu0 %v2872
        %v3079 = vpop.f32.mrb[0].mxu0
        %v3080 = vadd.f32 0.0, %v3079
        %v3081 = vpop.f32.mrb[0].mxu0
        %3082 = vmatprep.mubr.f32.mxu0 0.0
        %3083 = vmatmul.mubr.f32.gmra.mrb[0].mxu0 %v2875
        %v3084 = vpop.f32.mrb[0].mxu0
        %v3085 = vadd.f32 0.0, %v3084
        %v3086 = vpop.f32.mrb[0].mxu0
        %3087 = vmatprep.mubr.f32.mxu0 0.0
        %3088 = vmatmul.mubr.f32.gmra.mrb[0].mxu0 %v2878
        %v3089 = vpop.f32.mrb[0].mxu0
        %v3090 = vadd.f32 0.0, %v3089
        %v3091 = vpop.f32.mrb[0].mxu0
        %3092 = vmatprep.mubr.f32.mxu0 0.0
        %3093 = vmatmul.mubr.f32.gmra.mrb[0].mxu0 %v2881
        %v3094 = vpop.f32.mrb[0].mxu0
        %v3095 = vadd.f32 0.0, %v3094
        %v3096 = vpop.f32.mrb[0].mxu0
        %3097 = vmatprep.mubr.f32.mxu0 0.0
        %3098 = vmatmul.mubr.f32.gmra.mrb[0].mxu0 %v2884
        %v3099 = vpop.f32.mrb[0].mxu0
        %v3100 = vadd.f32 0.0, %v3099
        %v3101 = vpop.f32.mrb[0].mxu0
        %3102 = vmatprep.mubr.f32.mxu0 0.0
        %3103 = vmatmul.mubr.f32.gmra.mrb[0].mxu0 %v2887
        %v3104 = vpop.f32.mrb[0].mxu0
        %v3105 = vadd.f32 0.0, %v3104
        %v3106 = vpop.f32.mrb[0].mxu0
        %3107 = vmatprep.mubr.f32.mxu0 0.0
        %3108 = vmatmul.mubr.f32.gmra.mrb[0].mxu0 %v2890
        %v3109 = vpop.f32.mrb[0].mxu0
        %v3110 = vadd.f32 0.0, %v3109
        %v3111 = vpop.f32.mrb[0].mxu0
        %3112 = vmatprep.mubr.f32.mxu0 0.0
        %3113 = vmatmul.mubr.f32.gmra.mrb[0].mxu0 %v2893
        %v3114 = vpop.f32.mrb[0].mxu0
        %v3115 = vadd.f32 0.0, %v3114
        %v3116 = vpop.f32.mrb[0].mxu0
        %3117 = vmatprep.mubr.f32.mxu0 0.0
        %3118 = vmatmul.mubr.f32.gmra.mrb[0].mxu0 %v2896
        %v3119 = vpop.f32.mrb[0].mxu0
        %v3120 = vadd.f32 0.0, %v3119
        %v3121 = vpop.f32.mrb[0].mxu0
        %3122 = vdwg.mxu0
        %s3123 = sld [smem:[#allocation14]]
        %v3124 = vstv %s3123
        %v3125 = vmul.f32 %v3124, %v2965
        %v3126 = vmul.f32 %v3124, %v2970
        %v3127 = vmul.f32 %v3124, %v2975
        %v3128 = vmul.f32 %v3124, %v2980
        %s3129 = sld [smem:[#allocation14 + $0x1]]
        %v3130 = vstv %s3129
        %v3131 = vmul.f32 %v3130, %v2965
        %v3132 = vmul.f32 %v3130, %v2970
        %v3133 = vmul.f32 %v3130, %v2975
        %v3134 = vmul.f32 %v3130, %v2980
        %3139 = vrot.lane.b32.xlu0 %v3131, 112
        %v3140 = vpop.permute.xlu0 %3139
        %3141 = vrot.lane.b32.xlu0 %v3132, 112
        %v3142 = vpop.permute.xlu0 %3141
        %3143 = vrot.lane.b32.xlu0 %v3133, 112
        %v3144 = vpop.permute.xlu0 %3143
        %3145 = vrot.lane.b32.xlu0 %v3134, 112
        %v3146 = vpop.permute.xlu0 %3145
        %v3151 = vadd.f32 %v3125, %v3140
        %v3152 = vadd.f32 %v3126, %v3142
        %v3153 = vadd.f32 %v3127, %v3144
        %v3154 = vadd.f32 %v3128, %v3146
        %s3155 = sld [smem:[#allocation14 + $0x2]]
        %v3156 = vstv %s3155
        %v3157 = vmul.f32 %v3156, %v2985
        %v3158 = vmul.f32 %v3156, %v2990
        %v3159 = vmul.f32 %v3156, %v2995
        %v3160 = vmul.f32 %v3156, %v3000
        %v3161 = vadd.f32 %v3151, %v3157
        %v3162 = vadd.f32 %v3152, %v3158
        %v3163 = vadd.f32 %v3153, %v3159
        %v3164 = vadd.f32 %v3154, %v3160
        %s3165 = sld [smem:[#allocation14 + $0x3]]
        %v3166 = vstv %s3165
        %v3167 = vmul.f32 %v3166, %v2985
        %v3168 = vmul.f32 %v3166, %v2990
        %v3169 = vmul.f32 %v3166, %v2995
        %v3170 = vmul.f32 %v3166, %v3000
        %3175 = vrot.lane.b32.xlu0 %v3167, 112
        %v3176 = vpop.permute.xlu0 %3175
        %3177 = vrot.lane.b32.xlu0 %v3168, 112
        %v3178 = vpop.permute.xlu0 %3177
        %3179 = vrot.lane.b32.xlu0 %v3169, 112
        %v3180 = vpop.permute.xlu0 %3179
        %3181 = vrot.lane.b32.xlu0 %v3170, 112
        %v3182 = vpop.permute.xlu0 %3181
        %v3187 = vadd.f32 %v3161, %v3176
        %v3188 = vadd.f32 %v3162, %v3178
        %v3189 = vadd.f32 %v3163, %v3180
        %v3190 = vadd.f32 %v3164, %v3182
        %s3191 = sld [smem:[#allocation14 + $0x4]]
        %v3192 = vstv %s3191
        %v3193 = vmul.f32 %v3192, %v3005
        %v3194 = vmul.f32 %v3192, %v3010
        %v3195 = vmul.f32 %v3192, %v3015
        %v3196 = vmul.f32 %v3192, %v3020
        %v3197 = vadd.f32 %v3187, %v3193
        %v3198 = vadd.f32 %v3188, %v3194
        %v3199 = vadd.f32 %v3189, %v3195
        %v3200 = vadd.f32 %v3190, %v3196
        %s3201 = sld [smem:[#allocation14 + $0x5]]
        %v3202 = vstv %s3201
        %v3203 = vmul.f32 %v3202, %v3005
        %v3204 = vmul.f32 %v3202, %v3010
        %v3205 = vmul.f32 %v3202, %v3015
        %v3206 = vmul.f32 %v3202, %v3020
        %3211 = vrot.lane.b32.xlu0 %v3203, 112
        %v3212 = vpop.permute.xlu0 %3211
        %3213 = vrot.lane.b32.xlu0 %v3204, 112
        %v3214 = vpop.permute.xlu0 %3213
        %3215 = vrot.lane.b32.xlu0 %v3205, 112
        %v3216 = vpop.permute.xlu0 %3215
        %3217 = vrot.lane.b32.xlu0 %v3206, 112
        %v3218 = vpop.permute.xlu0 %3217
        %v3223 = vadd.f32 %v3197, %v3212
        %v3224 = vadd.f32 %v3198, %v3214
        %v3225 = vadd.f32 %v3199, %v3216
        %v3226 = vadd.f32 %v3200, %v3218
        %s3227 = sld [smem:[#allocation14 + $0x6]]
        %v3228 = vstv %s3227
        %v3229 = vmul.f32 %v3228, %v3025
        %v3230 = vmul.f32 %v3228, %v3030
        %v3231 = vmul.f32 %v3228, %v3035
        %v3232 = vmul.f32 %v3228, %v3040
        %v3233 = vadd.f32 %v3223, %v3229
        %v3234 = vadd.f32 %v3224, %v3230
        %v3235 = vadd.f32 %v3225, %v3231
        %v3236 = vadd.f32 %v3226, %v3232
        %s3237 = sld [smem:[#allocation14 + $0x7]]
        %v3238 = vstv %s3237
        %v3239 = vmul.f32 %v3238, %v3025
        %v3240 = vmul.f32 %v3238, %v3030
        %v3241 = vmul.f32 %v3238, %v3035
        %v3242 = vmul.f32 %v3238, %v3040
        %3247 = vrot.lane.b32.xlu0 %v3239, 112
        %v3248 = vpop.permute.xlu0 %3247
        %3249 = vrot.lane.b32.xlu0 %v3240, 112
        %v3250 = vpop.permute.xlu0 %3249
        %3251 = vrot.lane.b32.xlu0 %v3241, 112
        %v3252 = vpop.permute.xlu0 %3251
        %3253 = vrot.lane.b32.xlu0 %v3242, 112
        %v3254 = vpop.permute.xlu0 %3253
        %v3259 = vadd.f32 %v3233, %v3248
        %v3260 = vadd.f32 %v3234, %v3250
        %v3261 = vadd.f32 %v3235, %v3252
        %v3262 = vadd.f32 %v3236, %v3254
        %s3263 = sld [smem:[#allocation14 + $0x8]]
        %v3264 = vstv %s3263
        %v3265 = vmul.f32 %v3264, %v3045
        %v3266 = vmul.f32 %v3264, %v3050
        %v3267 = vmul.f32 %v3264, %v3055
        %v3268 = vmul.f32 %v3264, %v3060
        %v3269 = vadd.f32 %v3259, %v3265
        %v3270 = vadd.f32 %v3260, %v3266
        %v3271 = vadd.f32 %v3261, %v3267
        %v3272 = vadd.f32 %v3262, %v3268
        %s3273 = sld [smem:[#allocation14 + $0x9]]
        %v3274 = vstv %s3273
        %v3275 = vmul.f32 %v3274, %v3045
        %v3276 = vmul.f32 %v3274, %v3050
        %v3277 = vmul.f32 %v3274, %v3055
        %v3278 = vmul.f32 %v3274, %v3060
        %3283 = vrot.lane.b32.xlu0 %v3275, 112
        %v3284 = vpop.permute.xlu0 %3283
        %3285 = vrot.lane.b32.xlu0 %v3276, 112
        %v3286 = vpop.permute.xlu0 %3285
        %3287 = vrot.lane.b32.xlu0 %v3277, 112
        %v3288 = vpop.permute.xlu0 %3287
        %3289 = vrot.lane.b32.xlu0 %v3278, 112
        %v3290 = vpop.permute.xlu0 %3289
        %v3295 = vadd.f32 %v3269, %v3284
        %v3296 = vadd.f32 %v3270, %v3286
        %v3297 = vadd.f32 %v3271, %v3288
        %v3298 = vadd.f32 %v3272, %v3290
        %s3299 = sld [smem:[#allocation14 + $0xa]]
        %v3300 = vstv %s3299
        %v3301 = vmul.f32 %v3300, %v3065
        %v3302 = vmul.f32 %v3300, %v3070
        %v3303 = vmul.f32 %v3300, %v3075
        %v3304 = vmul.f32 %v3300, %v3080
        %v3305 = vadd.f32 %v3295, %v3301
        %v3306 = vadd.f32 %v3296, %v3302
        %v3307 = vadd.f32 %v3297, %v3303
        %v3308 = vadd.f32 %v3298, %v3304
        %s3309 = sld [smem:[#allocation14 + $0xb]]
        %v3310 = vstv %s3309
        %v3311 = vmul.f32 %v3310, %v3065
        %v3312 = vmul.f32 %v3310, %v3070
        %v3313 = vmul.f32 %v3310, %v3075
        %v3314 = vmul.f32 %v3310, %v3080
        %3319 = vrot.lane.b32.xlu0 %v3311, 112
        %v3320 = vpop.permute.xlu0 %3319
        %3321 = vrot.lane.b32.xlu0 %v3312, 112
        %v3322 = vpop.permute.xlu0 %3321
        %3323 = vrot.lane.b32.xlu0 %v3313, 112
        %v3324 = vpop.permute.xlu0 %3323
        %3325 = vrot.lane.b32.xlu0 %v3314, 112
        %v3326 = vpop.permute.xlu0 %3325
        %v3331 = vadd.f32 %v3305, %v3320
        %v3332 = vadd.f32 %v3306, %v3322
        %v3333 = vadd.f32 %v3307, %v3324
        %v3334 = vadd.f32 %v3308, %v3326
        %s3335 = sld [smem:[#allocation14 + $0xc]]
        %v3336 = vstv %s3335
        %v3337 = vmul.f32 %v3336, %v3085
        %v3338 = vmul.f32 %v3336, %v3090
        %v3339 = vmul.f32 %v3336, %v3095
        %v3340 = vmul.f32 %v3336, %v3100
        %v3341 = vadd.f32 %v3331, %v3337
        %v3342 = vadd.f32 %v3332, %v3338
        %v3343 = vadd.f32 %v3333, %v3339
        %v3344 = vadd.f32 %v3334, %v3340
        %s3345 = sld [smem:[#allocation14 + $0xd]]
        %v3346 = vstv %s3345
        %v3347 = vmul.f32 %v3346, %v3085
        %v3348 = vmul.f32 %v3346, %v3090
        %v3349 = vmul.f32 %v3346, %v3095
        %v3350 = vmul.f32 %v3346, %v3100
        %3355 = vrot.lane.b32.xlu0 %v3347, 112
        %v3356 = vpop.permute.xlu0 %3355
        %3357 = vrot.lane.b32.xlu0 %v3348, 112
        %v3358 = vpop.permute.xlu0 %3357
        %3359 = vrot.lane.b32.xlu0 %v3349, 112
        %v3360 = vpop.permute.xlu0 %3359
        %3361 = vrot.lane.b32.xlu0 %v3350, 112
        %v3362 = vpop.permute.xlu0 %3361
        %v3367 = vadd.f32 %v3341, %v3356
        %v3368 = vadd.f32 %v3342, %v3358
        %v3369 = vadd.f32 %v3343, %v3360
        %v3370 = vadd.f32 %v3344, %v3362
        %s3371 = sld [smem:[#allocation14 + $0xe]]
        %v3372 = vstv %s3371
        %v3373 = vmul.f32 %v3372, %v3105
        %v3374 = vmul.f32 %v3372, %v3110
        %v3375 = vmul.f32 %v3372, %v3115
        %v3376 = vmul.f32 %v3372, %v3120
        %v3377 = vadd.f32 %v3367, %v3373
        %v3378 = vadd.f32 %v3368, %v3374
        %v3379 = vadd.f32 %v3369, %v3375
        %v3380 = vadd.f32 %v3370, %v3376
        %s3381 = sld [smem:[#allocation14 + $0xf]]
        %v3382 = vstv %s3381
        %v3383 = vmul.f32 %v3382, %v3105
        %v3384 = vmul.f32 %v3382, %v3110
        %v3385 = vmul.f32 %v3382, %v3115
        %v3386 = vmul.f32 %v3382, %v3120
        %3391 = vrot.lane.b32.xlu0 %v3383, 112
        %v3392 = vpop.permute.xlu0 %3391
        %3393 = vrot.lane.b32.xlu0 %v3384, 112
        %v3394 = vpop.permute.xlu0 %3393
        %3395 = vrot.lane.b32.xlu0 %v3385, 112
        %v3396 = vpop.permute.xlu0 %3395
        %3397 = vrot.lane.b32.xlu0 %v3386, 112
        %v3398 = vpop.permute.xlu0 %3397
        %v3403 = vadd.f32 %v3377, %v3392
        %v3404 = vadd.f32 %v3378, %v3394
        %v3405 = vadd.f32 %v3379, %v3396
        %v3406 = vadd.f32 %v3380, %v3398
        %3409 = vrot.lane.b32.xlu0 %v3403, 120
        %v3410 = vpop.permute.xlu0 %3409
        %3411 = vrot.lane.b32.xlu0 %v3404, 120
        %v3412 = vpop.permute.xlu0 %3411
        %v3415 = vmax.f32 %v3403, %v3410
        %v3416 = vmax.f32 %v3404, %v3412
        %3419 = vrot.lane.b32.xlu0 %v3405, 120
        %v3420 = vpop.permute.xlu0 %3419
        %3421 = vrot.lane.b32.xlu0 %v3406, 120
        %v3422 = vpop.permute.xlu0 %3421
        %v3425 = vmax.f32 %v3405, %v3420
        %v3426 = vmax.f32 %v3406, %v3422
        %v3427 = vmax.f32 %v3415, %v3425
        %v3428 = vmax.f32 %v3416, %v3426
        %s3429 = sld [smem:[#allocation15]]
        %v3430 = vstv %s3429
        %v3431 = vadd.f32 %v3427, %v3430
        %v3432 = vadd.f32 %v3428, %v3430
        %v3433 = vmax.f32 %v3431, 0.0
        %v3434 = vmax.f32 %v3432, 0.0
        %s3435 = sld [smem:[#allocation17]]
        %v3436 = vstv %s3435
        %v3437 = vmul.f32 %v3433, %v3436
        %v3438 = vmul.f32 %v3434, %v3436
        %s3439 = sld [smem:[#allocation18]]
        %v3440 = vstv %s3439
        %v3441 = vadd.f32 %v3437, %v3440
        %v3442 = vadd.f32 %v3438, %v3440
        %s3443 = sld [smem:[#allocation14 + $0x10]]
        %v3444 = vstv %s3443
        %v3445 = vmul.f32 %v3444, %v2965
        %v3446 = vmul.f32 %v3444, %v2970
        %v3447 = vmul.f32 %v3444, %v2975
        %v3448 = vmul.f32 %v3444, %v2980
        %s3449 = sld [smem:[#allocation14 + $0x11]]
        %v3450 = vstv %s3449
        %v3451 = vmul.f32 %v3450, %v2965
        %v3452 = vmul.f32 %v3450, %v2970
        %v3453 = vmul.f32 %v3450, %v2975
        %v3454 = vmul.f32 %v3450, %v2980
        %3459 = vrot.lane.b32.xlu0 %v3451, 112
        %v3460 = vpop.permute.xlu0 %3459
        %3461 = vrot.lane.b32.xlu0 %v3452, 112
        %v3462 = vpop.permute.xlu0 %3461
        %3463 = vrot.lane.b32.xlu0 %v3453, 112
        %v3464 = vpop.permute.xlu0 %3463
        %3465 = vrot.lane.b32.xlu0 %v3454, 112
        %v3466 = vpop.permute.xlu0 %3465
        %v3471 = vadd.f32 %v3445, %v3460
        %v3472 = vadd.f32 %v3446, %v3462
        %v3473 = vadd.f32 %v3447, %v3464
        %v3474 = vadd.f32 %v3448, %v3466
        %s3475 = sld [smem:[#allocation14 + $0x12]]
        %v3476 = vstv %s3475
        %v3477 = vmul.f32 %v3476, %v2985
        %v3478 = vmul.f32 %v3476, %v2990
        %v3479 = vmul.f32 %v3476, %v2995
        %v3480 = vmul.f32 %v3476, %v3000
        %v3481 = vadd.f32 %v3471, %v3477
        %v3482 = vadd.f32 %v3472, %v3478
        %v3483 = vadd.f32 %v3473, %v3479
        %v3484 = vadd.f32 %v3474, %v3480
        %s3485 = sld [smem:[#allocation14 + $0x13]]
        %v3486 = vstv %s3485
        %v3487 = vmul.f32 %v3486, %v2985
        %v3488 = vmul.f32 %v3486, %v2990
        %v3489 = vmul.f32 %v3486, %v2995
        %v3490 = vmul.f32 %v3486, %v3000
        %3495 = vrot.lane.b32.xlu0 %v3487, 112
        %v3496 = vpop.permute.xlu0 %3495
        %3497 = vrot.lane.b32.xlu0 %v3488, 112
        %v3498 = vpop.permute.xlu0 %3497
        %3499 = vrot.lane.b32.xlu0 %v3489, 112
        %v3500 = vpop.permute.xlu0 %3499
        %3501 = vrot.lane.b32.xlu0 %v3490, 112
        %v3502 = vpop.permute.xlu0 %3501
        %v3507 = vadd.f32 %v3481, %v3496
        %v3508 = vadd.f32 %v3482, %v3498
        %v3509 = vadd.f32 %v3483, %v3500
        %v3510 = vadd.f32 %v3484, %v3502
        %s3511 = sld [smem:[#allocation14 + $0x14]]
        %v3512 = vstv %s3511
        %v3513 = vmul.f32 %v3512, %v3005
        %v3514 = vmul.f32 %v3512, %v3010
        %v3515 = vmul.f32 %v3512, %v3015
        %v3516 = vmul.f32 %v3512, %v3020
        %v3517 = vadd.f32 %v3507, %v3513
        %v3518 = vadd.f32 %v3508, %v3514
        %v3519 = vadd.f32 %v3509, %v3515
        %v3520 = vadd.f32 %v3510, %v3516
        %s3521 = sld [smem:[#allocation14 + $0x15]]
        %v3522 = vstv %s3521
        %v3523 = vmul.f32 %v3522, %v3005
        %v3524 = vmul.f32 %v3522, %v3010
        %v3525 = vmul.f32 %v3522, %v3015
        %v3526 = vmul.f32 %v3522, %v3020
        %3531 = vrot.lane.b32.xlu0 %v3523, 112
        %v3532 = vpop.permute.xlu0 %3531
        %3533 = vrot.lane.b32.xlu0 %v3524, 112
        %v3534 = vpop.permute.xlu0 %3533
        %3535 = vrot.lane.b32.xlu0 %v3525, 112
        %v3536 = vpop.permute.xlu0 %3535
        %3537 = vrot.lane.b32.xlu0 %v3526, 112
        %v3538 = vpop.permute.xlu0 %3537
        %v3543 = vadd.f32 %v3517, %v3532
        %v3544 = vadd.f32 %v3518, %v3534
        %v3545 = vadd.f32 %v3519, %v3536
        %v3546 = vadd.f32 %v3520, %v3538
        %s3547 = sld [smem:[#allocation14 + $0x16]]
        %v3548 = vstv %s3547
        %v3549 = vmul.f32 %v3548, %v3025
        %v3550 = vmul.f32 %v3548, %v3030
        %v3551 = vmul.f32 %v3548, %v3035
        %v3552 = vmul.f32 %v3548, %v3040
        %v3553 = vadd.f32 %v3543, %v3549
        %v3554 = vadd.f32 %v3544, %v3550
        %v3555 = vadd.f32 %v3545, %v3551
        %v3556 = vadd.f32 %v3546, %v3552
        %s3557 = sld [smem:[#allocation14 + $0x17]]
        %v3558 = vstv %s3557
        %v3559 = vmul.f32 %v3558, %v3025
        %v3560 = vmul.f32 %v3558, %v3030
        %v3561 = vmul.f32 %v3558, %v3035
        %v3562 = vmul.f32 %v3558, %v3040
        %3567 = vrot.lane.b32.xlu0 %v3559, 112
        %v3568 = vpop.permute.xlu0 %3567
        %3569 = vrot.lane.b32.xlu0 %v3560, 112
        %v3570 = vpop.permute.xlu0 %3569
        %3571 = vrot.lane.b32.xlu0 %v3561, 112
        %v3572 = vpop.permute.xlu0 %3571
        %3573 = vrot.lane.b32.xlu0 %v3562, 112
        %v3574 = vpop.permute.xlu0 %3573
        %v3579 = vadd.f32 %v3553, %v3568
        %v3580 = vadd.f32 %v3554, %v3570
        %v3581 = vadd.f32 %v3555, %v3572
        %v3582 = vadd.f32 %v3556, %v3574
        %s3583 = sld [smem:[#allocation14 + $0x18]]
        %v3584 = vstv %s3583
        %v3585 = vmul.f32 %v3584, %v3045
        %v3586 = vmul.f32 %v3584, %v3050
        %v3587 = vmul.f32 %v3584, %v3055
        %v3588 = vmul.f32 %v3584, %v3060
        %v3589 = vadd.f32 %v3579, %v3585
        %v3590 = vadd.f32 %v3580, %v3586
        %v3591 = vadd.f32 %v3581, %v3587
        %v3592 = vadd.f32 %v3582, %v3588
        %s3593 = sld [smem:[#allocation14 + $0x19]]
        %v3594 = vstv %s3593
        %v3595 = vmul.f32 %v3594, %v3045
        %v3596 = vmul.f32 %v3594, %v3050
        %v3597 = vmul.f32 %v3594, %v3055
        %v3598 = vmul.f32 %v3594, %v3060
        %3603 = vrot.lane.b32.xlu0 %v3595, 112
        %v3604 = vpop.permute.xlu0 %3603
        %3605 = vrot.lane.b32.xlu0 %v3596, 112
        %v3606 = vpop.permute.xlu0 %3605
        %3607 = vrot.lane.b32.xlu0 %v3597, 112
        %v3608 = vpop.permute.xlu0 %3607
        %3609 = vrot.lane.b32.xlu0 %v3598, 112
        %v3610 = vpop.permute.xlu0 %3609
        %v3615 = vadd.f32 %v3589, %v3604
        %v3616 = vadd.f32 %v3590, %v3606
        %v3617 = vadd.f32 %v3591, %v3608
        %v3618 = vadd.f32 %v3592, %v3610
        %s3619 = sld [smem:[#allocation14 + $0x1a]]
        %v3620 = vstv %s3619
        %v3621 = vmul.f32 %v3620, %v3065
        %v3622 = vmul.f32 %v3620, %v3070
        %v3623 = vmul.f32 %v3620, %v3075
        %v3624 = vmul.f32 %v3620, %v3080
        %v3625 = vadd.f32 %v3615, %v3621
        %v3626 = vadd.f32 %v3616, %v3622
        %v3627 = vadd.f32 %v3617, %v3623
        %v3628 = vadd.f32 %v3618, %v3624
        %s3629 = sld [smem:[#allocation14 + $0x1b]]
        %v3630 = vstv %s3629
        %v3631 = vmul.f32 %v3630, %v3065
        %v3632 = vmul.f32 %v3630, %v3070
        %v3633 = vmul.f32 %v3630, %v3075
        %v3634 = vmul.f32 %v3630, %v3080
        %3639 = vrot.lane.b32.xlu0 %v3631, 112
        %v3640 = vpop.permute.xlu0 %3639
        %3641 = vrot.lane.b32.xlu0 %v3632, 112
        %v3642 = vpop.permute.xlu0 %3641
        %3643 = vrot.lane.b32.xlu0 %v3633, 112
        %v3644 = vpop.permute.xlu0 %3643
        %3645 = vrot.lane.b32.xlu0 %v3634, 112
        %v3646 = vpop.permute.xlu0 %3645
        %v3651 = vadd.f32 %v3625, %v3640
        %v3652 = vadd.f32 %v3626, %v3642
        %v3653 = vadd.f32 %v3627, %v3644
        %v3654 = vadd.f32 %v3628, %v3646
        %s3655 = sld [smem:[#allocation14 + $0x1c]]
        %v3656 = vstv %s3655
        %v3657 = vmul.f32 %v3656, %v3085
        %v3658 = vmul.f32 %v3656, %v3090
        %v3659 = vmul.f32 %v3656, %v3095
        %v3660 = vmul.f32 %v3656, %v3100
        %v3661 = vadd.f32 %v3651, %v3657
        %v3662 = vadd.f32 %v3652, %v3658
        %v3663 = vadd.f32 %v3653, %v3659
        %v3664 = vadd.f32 %v3654, %v3660
        %s3665 = sld [smem:[#allocation14 + $0x1d]]
        %v3666 = vstv %s3665
        %v3667 = vmul.f32 %v3666, %v3085
        %v3668 = vmul.f32 %v3666, %v3090
        %v3669 = vmul.f32 %v3666, %v3095
        %v3670 = vmul.f32 %v3666, %v3100
        %3675 = vrot.lane.b32.xlu0 %v3667, 112
        %v3676 = vpop.permute.xlu0 %3675
        %3677 = vrot.lane.b32.xlu0 %v3668, 112
        %v3678 = vpop.permute.xlu0 %3677
        %3679 = vrot.lane.b32.xlu0 %v3669, 112
        %v3680 = vpop.permute.xlu0 %3679
        %3681 = vrot.lane.b32.xlu0 %v3670, 112
        %v3682 = vpop.permute.xlu0 %3681
        %v3687 = vadd.f32 %v3661, %v3676
        %v3688 = vadd.f32 %v3662, %v3678
        %v3689 = vadd.f32 %v3663, %v3680
        %v3690 = vadd.f32 %v3664, %v3682
        %s3691 = sld [smem:[#allocation14 + $0x1e]]
        %v3692 = vstv %s3691
        %v3693 = vmul.f32 %v3692, %v3105
        %v3694 = vmul.f32 %v3692, %v3110
        %v3695 = vmul.f32 %v3692, %v3115
        %v3696 = vmul.f32 %v3692, %v3120
        %v3697 = vadd.f32 %v3687, %v3693
        %v3698 = vadd.f32 %v3688, %v3694
        %v3699 = vadd.f32 %v3689, %v3695
        %v3700 = vadd.f32 %v3690, %v3696
        %s3701 = sld [smem:[#allocation14 + $0x1f]]
        %v3702 = vstv %s3701
        %v3703 = vmul.f32 %v3702, %v3105
        %v3704 = vmul.f32 %v3702, %v3110
        %v3705 = vmul.f32 %v3702, %v3115
        %v3706 = vmul.f32 %v3702, %v3120
        %3711 = vrot.lane.b32.xlu0 %v3703, 112
        %v3712 = vpop.permute.xlu0 %3711
        %3713 = vrot.lane.b32.xlu0 %v3704, 112
        %v3714 = vpop.permute.xlu0 %3713
        %3715 = vrot.lane.b32.xlu0 %v3705, 112
        %v3716 = vpop.permute.xlu0 %3715
        %3717 = vrot.lane.b32.xlu0 %v3706, 112
        %v3718 = vpop.permute.xlu0 %3717
        %v3723 = vadd.f32 %v3697, %v3712
        %v3724 = vadd.f32 %v3698, %v3714
        %v3725 = vadd.f32 %v3699, %v3716
        %v3726 = vadd.f32 %v3700, %v3718
        %3729 = vrot.lane.b32.xlu0 %v3723, 120
        %v3730 = vpop.permute.xlu0 %3729
        %3731 = vrot.lane.b32.xlu0 %v3724, 120
        %v3732 = vpop.permute.xlu0 %3731
        %v3735 = vmax.f32 %v3723, %v3730
        %v3736 = vmax.f32 %v3724, %v3732
        %3739 = vrot.lane.b32.xlu0 %v3725, 120
        %v3740 = vpop.permute.xlu0 %3739
        %3741 = vrot.lane.b32.xlu0 %v3726, 120
        %v3742 = vpop.permute.xlu0 %3741
        %v3745 = vmax.f32 %v3725, %v3740
        %v3746 = vmax.f32 %v3726, %v3742
        %v3747 = vmax.f32 %v3735, %v3745
        %v3748 = vmax.f32 %v3736, %v3746
        %s3749 = sld [smem:[#allocation15 + $0x1]]
        %v3750 = vstv %s3749
        %v3751 = vadd.f32 %v3747, %v3750
        %v3752 = vadd.f32 %v3748, %v3750
        %v3753 = vmax.f32 %v3751, 0.0
        %v3754 = vmax.f32 %v3752, 0.0
        %s3755 = sld [smem:[#allocation17 + $0x1]]
        %v3756 = vstv %s3755
        %v3757 = vmul.f32 %v3753, %v3756
        %v3758 = vmul.f32 %v3754, %v3756
        %s3759 = sld [smem:[#allocation18 + $0x1]]
        %v3760 = vstv %s3759
        %v3761 = vadd.f32 %v3757, %v3760
        %v3762 = vadd.f32 %v3758, %v3760
        %s3763 = sld [smem:[#allocation14 + $0x20]]
        %v3764 = vstv %s3763
        %v3765 = vmul.f32 %v3764, %v2965
        %v3766 = vmul.f32 %v3764, %v2970
        %v3767 = vmul.f32 %v3764, %v2975
        %v3768 = vmul.f32 %v3764, %v2980
        %s3769 = sld [smem:[#allocation14 + $0x21]]
        %v3770 = vstv %s3769
        %v3771 = vmul.f32 %v3770, %v2965
        %v3772 = vmul.f32 %v3770, %v2970
        %v3773 = vmul.f32 %v3770, %v2975
        %v3774 = vmul.f32 %v3770, %v2980
        %3779 = vrot.lane.b32.xlu0 %v3771, 112
        %v3780 = vpop.permute.xlu0 %3779
        %3781 = vrot.lane.b32.xlu0 %v3772, 112
        %v3782 = vpop.permute.xlu0 %3781
        %3783 = vrot.lane.b32.xlu0 %v3773, 112
        %v3784 = vpop.permute.xlu0 %3783
        %3785 = vrot.lane.b32.xlu0 %v3774, 112
        %v3786 = vpop.permute.xlu0 %3785
        %v3791 = vadd.f32 %v3765, %v3780
        %v3792 = vadd.f32 %v3766, %v3782
        %v3793 = vadd.f32 %v3767, %v3784
        %v3794 = vadd.f32 %v3768, %v3786
        %s3795 = sld [smem:[#allocation14 + $0x22]]
        %v3796 = vstv %s3795
        %v3797 = vmul.f32 %v3796, %v2985
        %v3798 = vmul.f32 %v3796, %v2990
        %v3799 = vmul.f32 %v3796, %v2995
        %v3800 = vmul.f32 %v3796, %v3000
        %v3801 = vadd.f32 %v3791, %v3797
        %v3802 = vadd.f32 %v3792, %v3798
        %v3803 = vadd.f32 %v3793, %v3799
        %v3804 = vadd.f32 %v3794, %v3800
        %s3805 = sld [smem:[#allocation14 + $0x23]]
        %v3806 = vstv %s3805
        %v3807 = vmul.f32 %v3806, %v2985
        %v3808 = vmul.f32 %v3806, %v2990
        %v3809 = vmul.f32 %v3806, %v2995
        %v3810 = vmul.f32 %v3806, %v3000
        %3815 = vrot.lane.b32.xlu0 %v3807, 112
        %v3816 = vpop.permute.xlu0 %3815
        %3817 = vrot.lane.b32.xlu0 %v3808, 112
        %v3818 = vpop.permute.xlu0 %3817
        %3819 = vrot.lane.b32.xlu0 %v3809, 112
        %v3820 = vpop.permute.xlu0 %3819
        %3821 = vrot.lane.b32.xlu0 %v3810, 112
        %v3822 = vpop.permute.xlu0 %3821
        %v3827 = vadd.f32 %v3801, %v3816
        %v3828 = vadd.f32 %v3802, %v3818
        %v3829 = vadd.f32 %v3803, %v3820
        %v3830 = vadd.f32 %v3804, %v3822
        %s3831 = sld [smem:[#allocation14 + $0x24]]
        %v3832 = vstv %s3831
        %v3833 = vmul.f32 %v3832, %v3005
        %v3834 = vmul.f32 %v3832, %v3010
        %v3835 = vmul.f32 %v3832, %v3015
        %v3836 = vmul.f32 %v3832, %v3020
        %v3837 = vadd.f32 %v3827, %v3833
        %v3838 = vadd.f32 %v3828, %v3834
        %v3839 = vadd.f32 %v3829, %v3835
        %v3840 = vadd.f32 %v3830, %v3836
        %s3841 = sld [smem:[#allocation14 + $0x25]]
        %v3842 = vstv %s3841
        %v3843 = vmul.f32 %v3842, %v3005
        %v3844 = vmul.f32 %v3842, %v3010
        %v3845 = vmul.f32 %v3842, %v3015
        %v3846 = vmul.f32 %v3842, %v3020
        %3851 = vrot.lane.b32.xlu0 %v3843, 112
        %v3852 = vpop.permute.xlu0 %3851
        %3853 = vrot.lane.b32.xlu0 %v3844, 112
        %v3854 = vpop.permute.xlu0 %3853
        %3855 = vrot.lane.b32.xlu0 %v3845, 112
        %v3856 = vpop.permute.xlu0 %3855
        %3857 = vrot.lane.b32.xlu0 %v3846, 112
        %v3858 = vpop.permute.xlu0 %3857
        %v3863 = vadd.f32 %v3837, %v3852
        %v3864 = vadd.f32 %v3838, %v3854
        %v3865 = vadd.f32 %v3839, %v3856
        %v3866 = vadd.f32 %v3840, %v3858
        %s3867 = sld [smem:[#allocation14 + $0x26]]
        %v3868 = vstv %s3867
        %v3869 = vmul.f32 %v3868, %v3025
        %v3870 = vmul.f32 %v3868, %v3030
        %v3871 = vmul.f32 %v3868, %v3035
        %v3872 = vmul.f32 %v3868, %v3040
        %v3873 = vadd.f32 %v3863, %v3869
        %v3874 = vadd.f32 %v3864, %v3870
        %v3875 = vadd.f32 %v3865, %v3871
        %v3876 = vadd.f32 %v3866, %v3872
        %s3877 = sld [smem:[#allocation14 + $0x27]]
        %v3878 = vstv %s3877
        %v3879 = vmul.f32 %v3878, %v3025
        %v3880 = vmul.f32 %v3878, %v3030
        %v3881 = vmul.f32 %v3878, %v3035
        %v3882 = vmul.f32 %v3878, %v3040
        %3887 = vrot.lane.b32.xlu0 %v3879, 112
        %v3888 = vpop.permute.xlu0 %3887
        %3889 = vrot.lane.b32.xlu0 %v3880, 112
        %v3890 = vpop.permute.xlu0 %3889
        %3891 = vrot.lane.b32.xlu0 %v3881, 112
        %v3892 = vpop.permute.xlu0 %3891
        %3893 = vrot.lane.b32.xlu0 %v3882, 112
        %v3894 = vpop.permute.xlu0 %3893
        %v3899 = vadd.f32 %v3873, %v3888
        %v3900 = vadd.f32 %v3874, %v3890
        %v3901 = vadd.f32 %v3875, %v3892
        %v3902 = vadd.f32 %v3876, %v3894
        %s3903 = sld [smem:[#allocation14 + $0x28]]
        %v3904 = vstv %s3903
        %v3905 = vmul.f32 %v3904, %v3045
        %v3906 = vmul.f32 %v3904, %v3050
        %v3907 = vmul.f32 %v3904, %v3055
        %v3908 = vmul.f32 %v3904, %v3060
        %v3909 = vadd.f32 %v3899, %v3905
        %v3910 = vadd.f32 %v3900, %v3906
        %v3911 = vadd.f32 %v3901, %v3907
        %v3912 = vadd.f32 %v3902, %v3908
        %s3913 = sld [smem:[#allocation14 + $0x29]]
        %v3914 = vstv %s3913
        %v3915 = vmul.f32 %v3914, %v3045
        %v3916 = vmul.f32 %v3914, %v3050
        %v3917 = vmul.f32 %v3914, %v3055
        %v3918 = vmul.f32 %v3914, %v3060
        %3923 = vrot.lane.b32.xlu0 %v3915, 112
        %v3924 = vpop.permute.xlu0 %3923
        %3925 = vrot.lane.b32.xlu0 %v3916, 112
        %v3926 = vpop.permute.xlu0 %3925
        %3927 = vrot.lane.b32.xlu0 %v3917, 112
        %v3928 = vpop.permute.xlu0 %3927
        %3929 = vrot.lane.b32.xlu0 %v3918, 112
        %v3930 = vpop.permute.xlu0 %3929
        %v3935 = vadd.f32 %v3909, %v3924
        %v3936 = vadd.f32 %v3910, %v3926
        %v3937 = vadd.f32 %v3911, %v3928
        %v3938 = vadd.f32 %v3912, %v3930
        %s3939 = sld [smem:[#allocation14 + $0x2a]]
        %v3940 = vstv %s3939
        %v3941 = vmul.f32 %v3940, %v3065
        %v3942 = vmul.f32 %v3940, %v3070
        %v3943 = vmul.f32 %v3940, %v3075
        %v3944 = vmul.f32 %v3940, %v3080
        %v3945 = vadd.f32 %v3935, %v3941
        %v3946 = vadd.f32 %v3936, %v3942
        %v3947 = vadd.f32 %v3937, %v3943
        %v3948 = vadd.f32 %v3938, %v3944
        %s3949 = sld [smem:[#allocation14 + $0x2b]]
        %v3950 = vstv %s3949
        %v3951 = vmul.f32 %v3950, %v3065
        %v3952 = vmul.f32 %v3950, %v3070
        %v3953 = vmul.f32 %v3950, %v3075
        %v3954 = vmul.f32 %v3950, %v3080
        %3959 = vrot.lane.b32.xlu0 %v3951, 112
        %v3960 = vpop.permute.xlu0 %3959
        %3961 = vrot.lane.b32.xlu0 %v3952, 112
        %v3962 = vpop.permute.xlu0 %3961
        %3963 = vrot.lane.b32.xlu0 %v3953, 112
        %v3964 = vpop.permute.xlu0 %3963
        %3965 = vrot.lane.b32.xlu0 %v3954, 112
        %v3966 = vpop.permute.xlu0 %3965
        %v3971 = vadd.f32 %v3945, %v3960
        %v3972 = vadd.f32 %v3946, %v3962
        %v3973 = vadd.f32 %v3947, %v3964
        %v3974 = vadd.f32 %v3948, %v3966
        %s3975 = sld [smem:[#allocation14 + $0x2c]]
        %v3976 = vstv %s3975
        %v3977 = vmul.f32 %v3976, %v3085
        %v3978 = vmul.f32 %v3976, %v3090
        %v3979 = vmul.f32 %v3976, %v3095
        %v3980 = vmul.f32 %v3976, %v3100
        %v3981 = vadd.f32 %v3971, %v3977
        %v3982 = vadd.f32 %v3972, %v3978
        %v3983 = vadd.f32 %v3973, %v3979
        %v3984 = vadd.f32 %v3974, %v3980
        %s3985 = sld [smem:[#allocation14 + $0x2d]]
        %v3986 = vstv %s3985
        %v3987 = vmul.f32 %v3986, %v3085
        %v3988 = vmul.f32 %v3986, %v3090
        %v3989 = vmul.f32 %v3986, %v3095
        %v3990 = vmul.f32 %v3986, %v3100
        %3995 = vrot.lane.b32.xlu0 %v3987, 112
        %v3996 = vpop.permute.xlu0 %3995
        %3997 = vrot.lane.b32.xlu0 %v3988, 112
        %v3998 = vpop.permute.xlu0 %3997
        %3999 = vrot.lane.b32.xlu0 %v3989, 112
        %v4000 = vpop.permute.xlu0 %3999
        %4001 = vrot.lane.b32.xlu0 %v3990, 112
        %v4002 = vpop.permute.xlu0 %4001
        %v4007 = vadd.f32 %v3981, %v3996
        %v4008 = vadd.f32 %v3982, %v3998
        %v4009 = vadd.f32 %v3983, %v4000
        %v4010 = vadd.f32 %v3984, %v4002
        %s4011 = sld [smem:[#allocation14 + $0x2e]]
        %v4012 = vstv %s4011
        %v4013 = vmul.f32 %v4012, %v3105
        %v4014 = vmul.f32 %v4012, %v3110
        %v4015 = vmul.f32 %v4012, %v3115
        %v4016 = vmul.f32 %v4012, %v3120
        %v4017 = vadd.f32 %v4007, %v4013
        %v4018 = vadd.f32 %v4008, %v4014
        %v4019 = vadd.f32 %v4009, %v4015
        %v4020 = vadd.f32 %v4010, %v4016
        %s4021 = sld [smem:[#allocation14 + $0x2f]]
        %v4022 = vstv %s4021
        %v4023 = vmul.f32 %v4022, %v3105
        %v4024 = vmul.f32 %v4022, %v3110
        %v4025 = vmul.f32 %v4022, %v3115
        %v4026 = vmul.f32 %v4022, %v3120
        %4031 = vrot.lane.b32.xlu0 %v4023, 112
        %v4032 = vpop.permute.xlu0 %4031
        %4033 = vrot.lane.b32.xlu0 %v4024, 112
        %v4034 = vpop.permute.xlu0 %4033
        %4035 = vrot.lane.b32.xlu0 %v4025, 112
        %v4036 = vpop.permute.xlu0 %4035
        %4037 = vrot.lane.b32.xlu0 %v4026, 112
        %v4038 = vpop.permute.xlu0 %4037
        %v4043 = vadd.f32 %v4017, %v4032
        %v4044 = vadd.f32 %v4018, %v4034
        %v4045 = vadd.f32 %v4019, %v4036
        %v4046 = vadd.f32 %v4020, %v4038
        %4049 = vrot.lane.b32.xlu0 %v4043, 120
        %v4050 = vpop.permute.xlu0 %4049
        %4051 = vrot.lane.b32.xlu0 %v4044, 120
        %v4052 = vpop.permute.xlu0 %4051
        %v4055 = vmax.f32 %v4043, %v4050
        %v4056 = vmax.f32 %v4044, %v4052
        %4059 = vrot.lane.b32.xlu0 %v4045, 120
        %v4060 = vpop.permute.xlu0 %4059
        %4061 = vrot.lane.b32.xlu0 %v4046, 120
        %v4062 = vpop.permute.xlu0 %4061
        %v4065 = vmax.f32 %v4045, %v4060
        %v4066 = vmax.f32 %v4046, %v4062
        %v4067 = vmax.f32 %v4055, %v4065
        %v4068 = vmax.f32 %v4056, %v4066
        %s4069 = sld [smem:[#allocation15 + $0x2]]
        %v4070 = vstv %s4069
        %v4071 = vadd.f32 %v4067, %v4070
        %v4072 = vadd.f32 %v4068, %v4070
        %v4073 = vmax.f32 %v4071, 0.0
        %v4074 = vmax.f32 %v4072, 0.0
        %s4075 = sld [smem:[#allocation17 + $0x2]]
        %v4076 = vstv %s4075
        %v4077 = vmul.f32 %v4073, %v4076
        %v4078 = vmul.f32 %v4074, %v4076
        %s4079 = sld [smem:[#allocation18 + $0x2]]
        %v4080 = vstv %s4079
        %v4081 = vadd.f32 %v4077, %v4080
        %v4082 = vadd.f32 %v4078, %v4080
        %s4083 = sld [smem:[#allocation14 + $0x30]]
        %v4084 = vstv %s4083
        %v4085 = vmul.f32 %v4084, %v2965
        %v4086 = vmul.f32 %v4084, %v2970
        %v4087 = vmul.f32 %v4084, %v2975
        %v4088 = vmul.f32 %v4084, %v2980
        %s4089 = sld [smem:[#allocation14 + $0x31]]
        %v4090 = vstv %s4089
        %v4091 = vmul.f32 %v4090, %v2965
        %v4092 = vmul.f32 %v4090, %v2970
        %v4093 = vmul.f32 %v4090, %v2975
        %v4094 = vmul.f32 %v4090, %v2980
        %4099 = vrot.lane.b32.xlu0 %v4091, 112
        %v4100 = vpop.permute.xlu0 %4099
        %4101 = vrot.lane.b32.xlu0 %v4092, 112
        %v4102 = vpop.permute.xlu0 %4101
        %4103 = vrot.lane.b32.xlu0 %v4093, 112
        %v4104 = vpop.permute.xlu0 %4103
        %4105 = vrot.lane.b32.xlu0 %v4094, 112
        %v4106 = vpop.permute.xlu0 %4105
        %v4111 = vadd.f32 %v4085, %v4100
        %v4112 = vadd.f32 %v4086, %v4102
        %v4113 = vadd.f32 %v4087, %v4104
        %v4114 = vadd.f32 %v4088, %v4106
        %s4115 = sld [smem:[#allocation14 + $0x32]]
        %v4116 = vstv %s4115
        %v4117 = vmul.f32 %v4116, %v2985
        %v4118 = vmul.f32 %v4116, %v2990
        %v4119 = vmul.f32 %v4116, %v2995
        %v4120 = vmul.f32 %v4116, %v3000
        %v4121 = vadd.f32 %v4111, %v4117
        %v4122 = vadd.f32 %v4112, %v4118
        %v4123 = vadd.f32 %v4113, %v4119
        %v4124 = vadd.f32 %v4114, %v4120
        %s4125 = sld [smem:[#allocation14 + $0x33]]
        %v4126 = vstv %s4125
        %v4127 = vmul.f32 %v4126, %v2985
        %v4128 = vmul.f32 %v4126, %v2990
        %v4129 = vmul.f32 %v4126, %v2995
        %v4130 = vmul.f32 %v4126, %v3000
        %4135 = vrot.lane.b32.xlu0 %v4127, 112
        %v4136 = vpop.permute.xlu0 %4135
        %4137 = vrot.lane.b32.xlu0 %v4128, 112
        %v4138 = vpop.permute.xlu0 %4137
        %4139 = vrot.lane.b32.xlu0 %v4129, 112
        %v4140 = vpop.permute.xlu0 %4139
        %4141 = vrot.lane.b32.xlu0 %v4130, 112
        %v4142 = vpop.permute.xlu0 %4141
        %v4147 = vadd.f32 %v4121, %v4136
        %v4148 = vadd.f32 %v4122, %v4138
        %v4149 = vadd.f32 %v4123, %v4140
        %v4150 = vadd.f32 %v4124, %v4142
        %s4151 = sld [smem:[#allocation14 + $0x34]]
        %v4152 = vstv %s4151
        %v4153 = vmul.f32 %v4152, %v3005
        %v4154 = vmul.f32 %v4152, %v3010
        %v4155 = vmul.f32 %v4152, %v3015
        %v4156 = vmul.f32 %v4152, %v3020
        %v4157 = vadd.f32 %v4147, %v4153
        %v4158 = vadd.f32 %v4148, %v4154
        %v4159 = vadd.f32 %v4149, %v4155
        %v4160 = vadd.f32 %v4150, %v4156
        %s4161 = sld [smem:[#allocation14 + $0x35]]
        %v4162 = vstv %s4161
        %v4163 = vmul.f32 %v4162, %v3005
        %v4164 = vmul.f32 %v4162, %v3010
        %v4165 = vmul.f32 %v4162, %v3015
        %v4166 = vmul.f32 %v4162, %v3020
        %4171 = vrot.lane.b32.xlu0 %v4163, 112
        %v4172 = vpop.permute.xlu0 %4171
        %4173 = vrot.lane.b32.xlu0 %v4164, 112
        %v4174 = vpop.permute.xlu0 %4173
        %4175 = vrot.lane.b32.xlu0 %v4165, 112
        %v4176 = vpop.permute.xlu0 %4175
        %4177 = vrot.lane.b32.xlu0 %v4166, 112
        %v4178 = vpop.permute.xlu0 %4177
        %v4183 = vadd.f32 %v4157, %v4172
        %v4184 = vadd.f32 %v4158, %v4174
        %v4185 = vadd.f32 %v4159, %v4176
        %v4186 = vadd.f32 %v4160, %v4178
        %s4187 = sld [smem:[#allocation14 + $0x36]]
        %v4188 = vstv %s4187
        %v4189 = vmul.f32 %v4188, %v3025
        %v4190 = vmul.f32 %v4188, %v3030
        %v4191 = vmul.f32 %v4188, %v3035
        %v4192 = vmul.f32 %v4188, %v3040
        %v4193 = vadd.f32 %v4183, %v4189
        %v4194 = vadd.f32 %v4184, %v4190
        %v4195 = vadd.f32 %v4185, %v4191
        %v4196 = vadd.f32 %v4186, %v4192
        %s4197 = sld [smem:[#allocation14 + $0x37]]
        %v4198 = vstv %s4197
        %v4199 = vmul.f32 %v4198, %v3025
        %v4200 = vmul.f32 %v4198, %v3030
        %v4201 = vmul.f32 %v4198, %v3035
        %v4202 = vmul.f32 %v4198, %v3040
        %4207 = vrot.lane.b32.xlu0 %v4199, 112
        %v4208 = vpop.permute.xlu0 %4207
        %4209 = vrot.lane.b32.xlu0 %v4200, 112
        %v4210 = vpop.permute.xlu0 %4209
        %4211 = vrot.lane.b32.xlu0 %v4201, 112
        %v4212 = vpop.permute.xlu0 %4211
        %4213 = vrot.lane.b32.xlu0 %v4202, 112
        %v4214 = vpop.permute.xlu0 %4213
        %v4219 = vadd.f32 %v4193, %v4208
        %v4220 = vadd.f32 %v4194, %v4210
        %v4221 = vadd.f32 %v4195, %v4212
        %v4222 = vadd.f32 %v4196, %v4214
        %s4223 = sld [smem:[#allocation14 + $0x38]]
        %v4224 = vstv %s4223
        %v4225 = vmul.f32 %v4224, %v3045
        %v4226 = vmul.f32 %v4224, %v3050
        %v4227 = vmul.f32 %v4224, %v3055
        %v4228 = vmul.f32 %v4224, %v3060
        %v4229 = vadd.f32 %v4219, %v4225
        %v4230 = vadd.f32 %v4220, %v4226
        %v4231 = vadd.f32 %v4221, %v4227
        %v4232 = vadd.f32 %v4222, %v4228
        %s4233 = sld [smem:[#allocation14 + $0x39]]
        %v4234 = vstv %s4233
        %v4235 = vmul.f32 %v4234, %v3045
        %v4236 = vmul.f32 %v4234, %v3050
        %v4237 = vmul.f32 %v4234, %v3055
        %v4238 = vmul.f32 %v4234, %v3060
        %4243 = vrot.lane.b32.xlu0 %v4235, 112
        %v4244 = vpop.permute.xlu0 %4243
        %4245 = vrot.lane.b32.xlu0 %v4236, 112
        %v4246 = vpop.permute.xlu0 %4245
        %4247 = vrot.lane.b32.xlu0 %v4237, 112
        %v4248 = vpop.permute.xlu0 %4247
        %4249 = vrot.lane.b32.xlu0 %v4238, 112
        %v4250 = vpop.permute.xlu0 %4249
        %v4255 = vadd.f32 %v4229, %v4244
        %v4256 = vadd.f32 %v4230, %v4246
        %v4257 = vadd.f32 %v4231, %v4248
        %v4258 = vadd.f32 %v4232, %v4250
        %s4259 = sld [smem:[#allocation14 + $0x3a]]
        %v4260 = vstv %s4259
        %v4261 = vmul.f32 %v4260, %v3065
        %v4262 = vmul.f32 %v4260, %v3070
        %v4263 = vmul.f32 %v4260, %v3075
        %v4264 = vmul.f32 %v4260, %v3080
        %v4265 = vadd.f32 %v4255, %v4261
        %v4266 = vadd.f32 %v4256, %v4262
        %v4267 = vadd.f32 %v4257, %v4263
        %v4268 = vadd.f32 %v4258, %v4264
        %s4269 = sld [smem:[#allocation14 + $0x3b]]
        %v4270 = vstv %s4269
        %v4271 = vmul.f32 %v4270, %v3065
        %v4272 = vmul.f32 %v4270, %v3070
        %v4273 = vmul.f32 %v4270, %v3075
        %v4274 = vmul.f32 %v4270, %v3080
        %4279 = vrot.lane.b32.xlu0 %v4271, 112
        %v4280 = vpop.permute.xlu0 %4279
        %4281 = vrot.lane.b32.xlu0 %v4272, 112
        %v4282 = vpop.permute.xlu0 %4281
        %4283 = vrot.lane.b32.xlu0 %v4273, 112
        %v4284 = vpop.permute.xlu0 %4283
        %4285 = vrot.lane.b32.xlu0 %v4274, 112
        %v4286 = vpop.permute.xlu0 %4285
        %v4291 = vadd.f32 %v4265, %v4280
        %v4292 = vadd.f32 %v4266, %v4282
        %v4293 = vadd.f32 %v4267, %v4284
        %v4294 = vadd.f32 %v4268, %v4286
        %s4295 = sld [smem:[#allocation14 + $0x3c]]
        %v4296 = vstv %s4295
        %v4297 = vmul.f32 %v4296, %v3085
        %v4298 = vmul.f32 %v4296, %v3090
        %v4299 = vmul.f32 %v4296, %v3095
        %v4300 = vmul.f32 %v4296, %v3100
        %v4301 = vadd.f32 %v4291, %v4297
        %v4302 = vadd.f32 %v4292, %v4298
        %v4303 = vadd.f32 %v4293, %v4299
        %v4304 = vadd.f32 %v4294, %v4300
        %s4305 = sld [smem:[#allocation14 + $0x3d]]
        %v4306 = vstv %s4305
        %v4307 = vmul.f32 %v4306, %v3085
        %v4308 = vmul.f32 %v4306, %v3090
        %v4309 = vmul.f32 %v4306, %v3095
        %v4310 = vmul.f32 %v4306, %v3100
        %4315 = vrot.lane.b32.xlu0 %v4307, 112
        %v4316 = vpop.permute.xlu0 %4315
        %4317 = vrot.lane.b32.xlu0 %v4308, 112
        %v4318 = vpop.permute.xlu0 %4317
        %4319 = vrot.lane.b32.xlu0 %v4309, 112
        %v4320 = vpop.permute.xlu0 %4319
        %4321 = vrot.lane.b32.xlu0 %v4310, 112
        %v4322 = vpop.permute.xlu0 %4321
        %v4327 = vadd.f32 %v4301, %v4316
        %v4328 = vadd.f32 %v4302, %v4318
        %v4329 = vadd.f32 %v4303, %v4320
        %v4330 = vadd.f32 %v4304, %v4322
        %s4331 = sld [smem:[#allocation14 + $0x3e]]
        %v4332 = vstv %s4331
        %v4333 = vmul.f32 %v4332, %v3105
        %v4334 = vmul.f32 %v4332, %v3110
        %v4335 = vmul.f32 %v4332, %v3115
        %v4336 = vmul.f32 %v4332, %v3120
        %v4337 = vadd.f32 %v4327, %v4333
        %v4338 = vadd.f32 %v4328, %v4334
        %v4339 = vadd.f32 %v4329, %v4335
        %v4340 = vadd.f32 %v4330, %v4336
        %s4341 = sld [smem:[#allocation14 + $0x3f]]
        %v4342 = vstv %s4341
        %v4343 = vmul.f32 %v4342, %v3105
        %v4344 = vmul.f32 %v4342, %v3110
        %v4345 = vmul.f32 %v4342, %v3115
        %v4346 = vmul.f32 %v4342, %v3120
        %4351 = vrot.lane.b32.xlu0 %v4343, 112
        %v4352 = vpop.permute.xlu0 %4351
        %4353 = vrot.lane.b32.xlu0 %v4344, 112
        %v4354 = vpop.permute.xlu0 %4353
        %4355 = vrot.lane.b32.xlu0 %v4345, 112
        %v4356 = vpop.permute.xlu0 %4355
        %4357 = vrot.lane.b32.xlu0 %v4346, 112
        %v4358 = vpop.permute.xlu0 %4357
        %v4363 = vadd.f32 %v4337, %v4352
        %v4364 = vadd.f32 %v4338, %v4354
        %v4365 = vadd.f32 %v4339, %v4356
        %v4366 = vadd.f32 %v4340, %v4358
        %4369 = vrot.lane.b32.xlu0 %v4363, 120
        %v4370 = vpop.permute.xlu0 %4369
        %4371 = vrot.lane.b32.xlu0 %v4364, 120
        %v4372 = vpop.permute.xlu0 %4371
        %v4375 = vmax.f32 %v4363, %v4370
        %v4376 = vmax.f32 %v4364, %v4372
        %4379 = vrot.lane.b32.xlu0 %v4365, 120
        %v4380 = vpop.permute.xlu0 %4379
        %4381 = vrot.lane.b32.xlu0 %v4366, 120
        %v4382 = vpop.permute.xlu0 %4381
        %v4385 = vmax.f32 %v4365, %v4380
        %v4386 = vmax.f32 %v4366, %v4382
        %v4387 = vmax.f32 %v4375, %v4385
        %v4388 = vmax.f32 %v4376, %v4386
        %s4389 = sld [smem:[#allocation15 + $0x3]]
        %v4390 = vstv %s4389
        %v4391 = vadd.f32 %v4387, %v4390
        %v4392 = vadd.f32 %v4388, %v4390
        %v4393 = vmax.f32 %v4391, 0.0
        %v4394 = vmax.f32 %v4392, 0.0
        %s4395 = sld [smem:[#allocation17 + $0x3]]
        %v4396 = vstv %s4395
        %v4397 = vmul.f32 %v4393, %v4396
        %v4398 = vmul.f32 %v4394, %v4396
        %s4399 = sld [smem:[#allocation18 + $0x3]]
        %v4400 = vstv %s4399
        %v4401 = vadd.f32 %v4397, %v4400
        %v4402 = vadd.f32 %v4398, %v4400
        %s4403 = sld [smem:[#allocation14 + $0x40]]
        %v4404 = vstv %s4403
        %v4405 = vmul.f32 %v4404, %v2965
        %v4406 = vmul.f32 %v4404, %v2970
        %v4407 = vmul.f32 %v4404, %v2975
        %v4408 = vmul.f32 %v4404, %v2980
        %s4409 = sld [smem:[#allocation14 + $0x41]]
        %v4410 = vstv %s4409
        %v4411 = vmul.f32 %v4410, %v2965
        %v4412 = vmul.f32 %v4410, %v2970
        %v4413 = vmul.f32 %v4410, %v2975
        %v4414 = vmul.f32 %v4410, %v2980
        %4419 = vrot.lane.b32.xlu0 %v4411, 112
        %v4420 = vpop.permute.xlu0 %4419
        %4421 = vrot.lane.b32.xlu0 %v4412, 112
        %v4422 = vpop.permute.xlu0 %4421
        %4423 = vrot.lane.b32.xlu0 %v4413, 112
        %v4424 = vpop.permute.xlu0 %4423
        %4425 = vrot.lane.b32.xlu0 %v4414, 112
        %v4426 = vpop.permute.xlu0 %4425
        %v4431 = vadd.f32 %v4405, %v4420
        %v4432 = vadd.f32 %v4406, %v4422
        %v4433 = vadd.f32 %v4407, %v4424
        %v4434 = vadd.f32 %v4408, %v4426
        %s4435 = sld [smem:[#allocation14 + $0x42]]
        %v4436 = vstv %s4435
        %v4437 = vmul.f32 %v4436, %v2985
        %v4438 = vmul.f32 %v4436, %v2990
        %v4439 = vmul.f32 %v4436, %v2995
        %v4440 = vmul.f32 %v4436, %v3000
        %v4441 = vadd.f32 %v4431, %v4437
        %v4442 = vadd.f32 %v4432, %v4438
        %v4443 = vadd.f32 %v4433, %v4439
        %v4444 = vadd.f32 %v4434, %v4440
        %s4445 = sld [smem:[#allocation14 + $0x43]]
        %v4446 = vstv %s4445
        %v4447 = vmul.f32 %v4446, %v2985
        %v4448 = vmul.f32 %v4446, %v2990
        %v4449 = vmul.f32 %v4446, %v2995
        %v4450 = vmul.f32 %v4446, %v3000
        %4455 = vrot.lane.b32.xlu0 %v4447, 112
        %v4456 = vpop.permute.xlu0 %4455
        %4457 = vrot.lane.b32.xlu0 %v4448, 112
        %v4458 = vpop.permute.xlu0 %4457
        %4459 = vrot.lane.b32.xlu0 %v4449, 112
        %v4460 = vpop.permute.xlu0 %4459
        %4461 = vrot.lane.b32.xlu0 %v4450, 112
        %v4462 = vpop.permute.xlu0 %4461
        %v4467 = vadd.f32 %v4441, %v4456
        %v4468 = vadd.f32 %v4442, %v4458
        %v4469 = vadd.f32 %v4443, %v4460
        %v4470 = vadd.f32 %v4444, %v4462
        %s4471 = sld [smem:[#allocation14 + $0x44]]
        %v4472 = vstv %s4471
        %v4473 = vmul.f32 %v4472, %v3005
        %v4474 = vmul.f32 %v4472, %v3010
        %v4475 = vmul.f32 %v4472, %v3015
        %v4476 = vmul.f32 %v4472, %v3020
        %v4477 = vadd.f32 %v4467, %v4473
        %v4478 = vadd.f32 %v4468, %v4474
        %v4479 = vadd.f32 %v4469, %v4475
        %v4480 = vadd.f32 %v4470, %v4476
        %s4481 = sld [smem:[#allocation14 + $0x45]]
        %v4482 = vstv %s4481
        %v4483 = vmul.f32 %v4482, %v3005
        %v4484 = vmul.f32 %v4482, %v3010
        %v4485 = vmul.f32 %v4482, %v3015
        %v4486 = vmul.f32 %v4482, %v3020
        %4491 = vrot.lane.b32.xlu0 %v4483, 112
        %v4492 = vpop.permute.xlu0 %4491
        %4493 = vrot.lane.b32.xlu0 %v4484, 112
        %v4494 = vpop.permute.xlu0 %4493
        %4495 = vrot.lane.b32.xlu0 %v4485, 112
        %v4496 = vpop.permute.xlu0 %4495
        %4497 = vrot.lane.b32.xlu0 %v4486, 112
        %v4498 = vpop.permute.xlu0 %4497
        %v4503 = vadd.f32 %v4477, %v4492
        %v4504 = vadd.f32 %v4478, %v4494
        %v4505 = vadd.f32 %v4479, %v4496
        %v4506 = vadd.f32 %v4480, %v4498
        %s4507 = sld [smem:[#allocation14 + $0x46]]
        %v4508 = vstv %s4507
        %v4509 = vmul.f32 %v4508, %v3025
        %v4510 = vmul.f32 %v4508, %v3030
        %v4511 = vmul.f32 %v4508, %v3035
        %v4512 = vmul.f32 %v4508, %v3040
        %v4513 = vadd.f32 %v4503, %v4509
        %v4514 = vadd.f32 %v4504, %v4510
        %v4515 = vadd.f32 %v4505, %v4511
        %v4516 = vadd.f32 %v4506, %v4512
        %s4517 = sld [smem:[#allocation14 + $0x47]]
        %v4518 = vstv %s4517
        %v4519 = vmul.f32 %v4518, %v3025
        %v4520 = vmul.f32 %v4518, %v3030
        %v4521 = vmul.f32 %v4518, %v3035
        %v4522 = vmul.f32 %v4518, %v3040
        %4527 = vrot.lane.b32.xlu0 %v4519, 112
        %v4528 = vpop.permute.xlu0 %4527
        %4529 = vrot.lane.b32.xlu0 %v4520, 112
        %v4530 = vpop.permute.xlu0 %4529
        %4531 = vrot.lane.b32.xlu0 %v4521, 112
        %v4532 = vpop.permute.xlu0 %4531
        %4533 = vrot.lane.b32.xlu0 %v4522, 112
        %v4534 = vpop.permute.xlu0 %4533
        %v4539 = vadd.f32 %v4513, %v4528
        %v4540 = vadd.f32 %v4514, %v4530
        %v4541 = vadd.f32 %v4515, %v4532
        %v4542 = vadd.f32 %v4516, %v4534
        %s4543 = sld [smem:[#allocation14 + $0x48]]
        %v4544 = vstv %s4543
        %v4545 = vmul.f32 %v4544, %v3045
        %v4546 = vmul.f32 %v4544, %v3050
        %v4547 = vmul.f32 %v4544, %v3055
        %v4548 = vmul.f32 %v4544, %v3060
        %v4549 = vadd.f32 %v4539, %v4545
        %v4550 = vadd.f32 %v4540, %v4546
        %v4551 = vadd.f32 %v4541, %v4547
        %v4552 = vadd.f32 %v4542, %v4548
        %s4553 = sld [smem:[#allocation14 + $0x49]]
        %v4554 = vstv %s4553
        %v4555 = vmul.f32 %v4554, %v3045
        %v4556 = vmul.f32 %v4554, %v3050
        %v4557 = vmul.f32 %v4554, %v3055
        %v4558 = vmul.f32 %v4554, %v3060
        %4563 = vrot.lane.b32.xlu0 %v4555, 112
        %v4564 = vpop.permute.xlu0 %4563
        %4565 = vrot.lane.b32.xlu0 %v4556, 112
        %v4566 = vpop.permute.xlu0 %4565
        %4567 = vrot.lane.b32.xlu0 %v4557, 112
        %v4568 = vpop.permute.xlu0 %4567
        %4569 = vrot.lane.b32.xlu0 %v4558, 112
        %v4570 = vpop.permute.xlu0 %4569
        %v4575 = vadd.f32 %v4549, %v4564
        %v4576 = vadd.f32 %v4550, %v4566
        %v4577 = vadd.f32 %v4551, %v4568
        %v4578 = vadd.f32 %v4552, %v4570
        %s4579 = sld [smem:[#allocation14 + $0x4a]]
        %v4580 = vstv %s4579
        %v4581 = vmul.f32 %v4580, %v3065
        %v4582 = vmul.f32 %v4580, %v3070
        %v4583 = vmul.f32 %v4580, %v3075
        %v4584 = vmul.f32 %v4580, %v3080
        %v4585 = vadd.f32 %v4575, %v4581
        %v4586 = vadd.f32 %v4576, %v4582
        %v4587 = vadd.f32 %v4577, %v4583
        %v4588 = vadd.f32 %v4578, %v4584
        %s4589 = sld [smem:[#allocation14 + $0x4b]]
        %v4590 = vstv %s4589
        %v4591 = vmul.f32 %v4590, %v3065
        %v4592 = vmul.f32 %v4590, %v3070
        %v4593 = vmul.f32 %v4590, %v3075
        %v4594 = vmul.f32 %v4590, %v3080
        %4599 = vrot.lane.b32.xlu0 %v4591, 112
        %v4600 = vpop.permute.xlu0 %4599
        %4601 = vrot.lane.b32.xlu0 %v4592, 112
        %v4602 = vpop.permute.xlu0 %4601
        %4603 = vrot.lane.b32.xlu0 %v4593, 112
        %v4604 = vpop.permute.xlu0 %4603
        %4605 = vrot.lane.b32.xlu0 %v4594, 112
        %v4606 = vpop.permute.xlu0 %4605
        %v4611 = vadd.f32 %v4585, %v4600
        %v4612 = vadd.f32 %v4586, %v4602
        %v4613 = vadd.f32 %v4587, %v4604
        %v4614 = vadd.f32 %v4588, %v4606
        %s4615 = sld [smem:[#allocation14 + $0x4c]]
        %v4616 = vstv %s4615
        %v4617 = vmul.f32 %v4616, %v3085
        %v4618 = vmul.f32 %v4616, %v3090
        %v4619 = vmul.f32 %v4616, %v3095
        %v4620 = vmul.f32 %v4616, %v3100
        %v4621 = vadd.f32 %v4611, %v4617
        %v4622 = vadd.f32 %v4612, %v4618
        %v4623 = vadd.f32 %v4613, %v4619
        %v4624 = vadd.f32 %v4614, %v4620
        %s4625 = sld [smem:[#allocation14 + $0x4d]]
        %v4626 = vstv %s4625
        %v4627 = vmul.f32 %v4626, %v3085
        %v4628 = vmul.f32 %v4626, %v3090
        %v4629 = vmul.f32 %v4626, %v3095
        %v4630 = vmul.f32 %v4626, %v3100
        %4635 = vrot.lane.b32.xlu0 %v4627, 112
        %v4636 = vpop.permute.xlu0 %4635
        %4637 = vrot.lane.b32.xlu0 %v4628, 112
        %v4638 = vpop.permute.xlu0 %4637
        %4639 = vrot.lane.b32.xlu0 %v4629, 112
        %v4640 = vpop.permute.xlu0 %4639
        %4641 = vrot.lane.b32.xlu0 %v4630, 112
        %v4642 = vpop.permute.xlu0 %4641
        %v4647 = vadd.f32 %v4621, %v4636
        %v4648 = vadd.f32 %v4622, %v4638
        %v4649 = vadd.f32 %v4623, %v4640
        %v4650 = vadd.f32 %v4624, %v4642
        %s4651 = sld [smem:[#allocation14 + $0x4e]]
        %v4652 = vstv %s4651
        %v4653 = vmul.f32 %v4652, %v3105
        %v4654 = vmul.f32 %v4652, %v3110
        %v4655 = vmul.f32 %v4652, %v3115
        %v4656 = vmul.f32 %v4652, %v3120
        %v4657 = vadd.f32 %v4647, %v4653
        %v4658 = vadd.f32 %v4648, %v4654
        %v4659 = vadd.f32 %v4649, %v4655
        %v4660 = vadd.f32 %v4650, %v4656
        %s4661 = sld [smem:[#allocation14 + $0x4f]]
        %v4662 = vstv %s4661
        %v4663 = vmul.f32 %v4662, %v3105
        %v4664 = vmul.f32 %v4662, %v3110
        %v4665 = vmul.f32 %v4662, %v3115
        %v4666 = vmul.f32 %v4662, %v3120
        %4671 = vrot.lane.b32.xlu0 %v4663, 112
        %v4672 = vpop.permute.xlu0 %4671
        %4673 = vrot.lane.b32.xlu0 %v4664, 112
        %v4674 = vpop.permute.xlu0 %4673
        %4675 = vrot.lane.b32.xlu0 %v4665, 112
        %v4676 = vpop.permute.xlu0 %4675
        %4677 = vrot.lane.b32.xlu0 %v4666, 112
        %v4678 = vpop.permute.xlu0 %4677
        %v4683 = vadd.f32 %v4657, %v4672
        %v4684 = vadd.f32 %v4658, %v4674
        %v4685 = vadd.f32 %v4659, %v4676
        %v4686 = vadd.f32 %v4660, %v4678
        %4689 = vrot.lane.b32.xlu0 %v4683, 120
        %v4690 = vpop.permute.xlu0 %4689
        %4691 = vrot.lane.b32.xlu0 %v4684, 120
        %v4692 = vpop.permute.xlu0 %4691
        %v4695 = vmax.f32 %v4683, %v4690
        %v4696 = vmax.f32 %v4684, %v4692
        %4699 = vrot.lane.b32.xlu0 %v4685, 120
        %v4700 = vpop.permute.xlu0 %4699
        %4701 = vrot.lane.b32.xlu0 %v4686, 120
        %v4702 = vpop.permute.xlu0 %4701
        %v4705 = vmax.f32 %v4685, %v4700
        %v4706 = vmax.f32 %v4686, %v4702
        %v4707 = vmax.f32 %v4695, %v4705
        %v4708 = vmax.f32 %v4696, %v4706
        %s4709 = sld [smem:[#allocation15 + $0x4]]
        %v4710 = vstv %s4709
        %v4711 = vadd.f32 %v4707, %v4710
        %v4712 = vadd.f32 %v4708, %v4710
        %v4713 = vmax.f32 %v4711, 0.0
        %v4714 = vmax.f32 %v4712, 0.0
        %s4715 = sld [smem:[#allocation17 + $0x4]]
        %v4716 = vstv %s4715
        %v4717 = vmul.f32 %v4713, %v4716
        %v4718 = vmul.f32 %v4714, %v4716
        %s4719 = sld [smem:[#allocation18 + $0x4]]
        %v4720 = vstv %s4719
        %v4721 = vadd.f32 %v4717, %v4720
        %v4722 = vadd.f32 %v4718, %v4720
        %s4723 = sld [smem:[#allocation14 + $0x50]]
        %v4724 = vstv %s4723
        %v4725 = vmul.f32 %v4724, %v2965
        %v4726 = vmul.f32 %v4724, %v2970
        %v4727 = vmul.f32 %v4724, %v2975
        %v4728 = vmul.f32 %v4724, %v2980
        %s4729 = sld [smem:[#allocation14 + $0x51]]
        %v4730 = vstv %s4729
        %v4731 = vmul.f32 %v4730, %v2965
        %v4732 = vmul.f32 %v4730, %v2970
        %v4733 = vmul.f32 %v4730, %v2975
        %v4734 = vmul.f32 %v4730, %v2980
        %4739 = vrot.lane.b32.xlu0 %v4731, 112
        %v4740 = vpop.permute.xlu0 %4739
        %4741 = vrot.lane.b32.xlu0 %v4732, 112
        %v4742 = vpop.permute.xlu0 %4741
        %4743 = vrot.lane.b32.xlu0 %v4733, 112
        %v4744 = vpop.permute.xlu0 %4743
        %4745 = vrot.lane.b32.xlu0 %v4734, 112
        %v4746 = vpop.permute.xlu0 %4745
        %v4751 = vadd.f32 %v4725, %v4740
        %v4752 = vadd.f32 %v4726, %v4742
        %v4753 = vadd.f32 %v4727, %v4744
        %v4754 = vadd.f32 %v4728, %v4746
        %s4755 = sld [smem:[#allocation14 + $0x52]]
        %v4756 = vstv %s4755
        %v4757 = vmul.f32 %v4756, %v2985
        %v4758 = vmul.f32 %v4756, %v2990
        %v4759 = vmul.f32 %v4756, %v2995
        %v4760 = vmul.f32 %v4756, %v3000
        %v4761 = vadd.f32 %v4751, %v4757
        %v4762 = vadd.f32 %v4752, %v4758
        %v4763 = vadd.f32 %v4753, %v4759
        %v4764 = vadd.f32 %v4754, %v4760
        %s4765 = sld [smem:[#allocation14 + $0x53]]
        %v4766 = vstv %s4765
        %v4767 = vmul.f32 %v4766, %v2985
        %v4768 = vmul.f32 %v4766, %v2990
        %v4769 = vmul.f32 %v4766, %v2995
        %v4770 = vmul.f32 %v4766, %v3000
        %4775 = vrot.lane.b32.xlu0 %v4767, 112
        %v4776 = vpop.permute.xlu0 %4775
        %4777 = vrot.lane.b32.xlu0 %v4768, 112
        %v4778 = vpop.permute.xlu0 %4777
        %4779 = vrot.lane.b32.xlu0 %v4769, 112
        %v4780 = vpop.permute.xlu0 %4779
        %4781 = vrot.lane.b32.xlu0 %v4770, 112
        %v4782 = vpop.permute.xlu0 %4781
        %v4787 = vadd.f32 %v4761, %v4776
        %v4788 = vadd.f32 %v4762, %v4778
        %v4789 = vadd.f32 %v4763, %v4780
        %v4790 = vadd.f32 %v4764, %v4782
        %s4791 = sld [smem:[#allocation14 + $0x54]]
        %v4792 = vstv %s4791
        %v4793 = vmul.f32 %v4792, %v3005
        %v4794 = vmul.f32 %v4792, %v3010
        %v4795 = vmul.f32 %v4792, %v3015
        %v4796 = vmul.f32 %v4792, %v3020
        %v4797 = vadd.f32 %v4787, %v4793
        %v4798 = vadd.f32 %v4788, %v4794
        %v4799 = vadd.f32 %v4789, %v4795
        %v4800 = vadd.f32 %v4790, %v4796
        %s4801 = sld [smem:[#allocation14 + $0x55]]
        %v4802 = vstv %s4801
        %v4803 = vmul.f32 %v4802, %v3005
        %v4804 = vmul.f32 %v4802, %v3010
        %v4805 = vmul.f32 %v4802, %v3015
        %v4806 = vmul.f32 %v4802, %v3020
        %4811 = vrot.lane.b32.xlu0 %v4803, 112
        %v4812 = vpop.permute.xlu0 %4811
        %4813 = vrot.lane.b32.xlu0 %v4804, 112
        %v4814 = vpop.permute.xlu0 %4813
        %4815 = vrot.lane.b32.xlu0 %v4805, 112
        %v4816 = vpop.permute.xlu0 %4815
        %4817 = vrot.lane.b32.xlu0 %v4806, 112
        %v4818 = vpop.permute.xlu0 %4817
        %v4823 = vadd.f32 %v4797, %v4812
        %v4824 = vadd.f32 %v4798, %v4814
        %v4825 = vadd.f32 %v4799, %v4816
        %v4826 = vadd.f32 %v4800, %v4818
        %s4827 = sld [smem:[#allocation14 + $0x56]]
        %v4828 = vstv %s4827
        %v4829 = vmul.f32 %v4828, %v3025
        %v4830 = vmul.f32 %v4828, %v3030
        %v4831 = vmul.f32 %v4828, %v3035
        %v4832 = vmul.f32 %v4828, %v3040
        %v4833 = vadd.f32 %v4823, %v4829
        %v4834 = vadd.f32 %v4824, %v4830
        %v4835 = vadd.f32 %v4825, %v4831
        %v4836 = vadd.f32 %v4826, %v4832
        %s4837 = sld [smem:[#allocation14 + $0x57]]
        %v4838 = vstv %s4837
        %v4839 = vmul.f32 %v4838, %v3025
        %v4840 = vmul.f32 %v4838, %v3030
        %v4841 = vmul.f32 %v4838, %v3035
        %v4842 = vmul.f32 %v4838, %v3040
        %4847 = vrot.lane.b32.xlu0 %v4839, 112
        %v4848 = vpop.permute.xlu0 %4847
        %4849 = vrot.lane.b32.xlu0 %v4840, 112
        %v4850 = vpop.permute.xlu0 %4849
        %4851 = vrot.lane.b32.xlu0 %v4841, 112
        %v4852 = vpop.permute.xlu0 %4851
        %4853 = vrot.lane.b32.xlu0 %v4842, 112
        %v4854 = vpop.permute.xlu0 %4853
        %v4859 = vadd.f32 %v4833, %v4848
        %v4860 = vadd.f32 %v4834, %v4850
        %v4861 = vadd.f32 %v4835, %v4852
        %v4862 = vadd.f32 %v4836, %v4854
        %s4863 = sld [smem:[#allocation14 + $0x58]]
        %v4864 = vstv %s4863
        %v4865 = vmul.f32 %v4864, %v3045
        %v4866 = vmul.f32 %v4864, %v3050
        %v4867 = vmul.f32 %v4864, %v3055
        %v4868 = vmul.f32 %v4864, %v3060
        %v4869 = vadd.f32 %v4859, %v4865
        %v4870 = vadd.f32 %v4860, %v4866
        %v4871 = vadd.f32 %v4861, %v4867
        %v4872 = vadd.f32 %v4862, %v4868
        %s4873 = sld [smem:[#allocation14 + $0x59]]
        %v4874 = vstv %s4873
        %v4875 = vmul.f32 %v4874, %v3045
        %v4876 = vmul.f32 %v4874, %v3050
        %v4877 = vmul.f32 %v4874, %v3055
        %v4878 = vmul.f32 %v4874, %v3060
        %4883 = vrot.lane.b32.xlu0 %v4875, 112
        %v4884 = vpop.permute.xlu0 %4883
        %4885 = vrot.lane.b32.xlu0 %v4876, 112
        %v4886 = vpop.permute.xlu0 %4885
        %4887 = vrot.lane.b32.xlu0 %v4877, 112
        %v4888 = vpop.permute.xlu0 %4887
        %4889 = vrot.lane.b32.xlu0 %v4878, 112
        %v4890 = vpop.permute.xlu0 %4889
        %v4895 = vadd.f32 %v4869, %v4884
        %v4896 = vadd.f32 %v4870, %v4886
        %v4897 = vadd.f32 %v4871, %v4888
        %v4898 = vadd.f32 %v4872, %v4890
        %s4899 = sld [smem:[#allocation14 + $0x5a]]
        %v4900 = vstv %s4899
        %v4901 = vmul.f32 %v4900, %v3065
        %v4902 = vmul.f32 %v4900, %v3070
        %v4903 = vmul.f32 %v4900, %v3075
        %v4904 = vmul.f32 %v4900, %v3080
        %v4905 = vadd.f32 %v4895, %v4901
        %v4906 = vadd.f32 %v4896, %v4902
        %v4907 = vadd.f32 %v4897, %v4903
        %v4908 = vadd.f32 %v4898, %v4904
        %s4909 = sld [smem:[#allocation14 + $0x5b]]
        %v4910 = vstv %s4909
        %v4911 = vmul.f32 %v4910, %v3065
        %v4912 = vmul.f32 %v4910, %v3070
        %v4913 = vmul.f32 %v4910, %v3075
        %v4914 = vmul.f32 %v4910, %v3080
        %4919 = vrot.lane.b32.xlu0 %v4911, 112
        %v4920 = vpop.permute.xlu0 %4919
        %4921 = vrot.lane.b32.xlu0 %v4912, 112
        %v4922 = vpop.permute.xlu0 %4921
        %4923 = vrot.lane.b32.xlu0 %v4913, 112
        %v4924 = vpop.permute.xlu0 %4923
        %4925 = vrot.lane.b32.xlu0 %v4914, 112
        %v4926 = vpop.permute.xlu0 %4925
        %v4931 = vadd.f32 %v4905, %v4920
        %v4932 = vadd.f32 %v4906, %v4922
        %v4933 = vadd.f32 %v4907, %v4924
        %v4934 = vadd.f32 %v4908, %v4926
        %s4935 = sld [smem:[#allocation14 + $0x5c]]
        %v4936 = vstv %s4935
        %v4937 = vmul.f32 %v4936, %v3085
        %v4938 = vmul.f32 %v4936, %v3090
        %v4939 = vmul.f32 %v4936, %v3095
        %v4940 = vmul.f32 %v4936, %v3100
        %v4941 = vadd.f32 %v4931, %v4937
        %v4942 = vadd.f32 %v4932, %v4938
        %v4943 = vadd.f32 %v4933, %v4939
        %v4944 = vadd.f32 %v4934, %v4940
        %s4945 = sld [smem:[#allocation14 + $0x5d]]
        %v4946 = vstv %s4945
        %v4947 = vmul.f32 %v4946, %v3085
        %v4948 = vmul.f32 %v4946, %v3090
        %v4949 = vmul.f32 %v4946, %v3095
        %v4950 = vmul.f32 %v4946, %v3100
        %4955 = vrot.lane.b32.xlu0 %v4947, 112
        %v4956 = vpop.permute.xlu0 %4955
        %4957 = vrot.lane.b32.xlu0 %v4948, 112
        %v4958 = vpop.permute.xlu0 %4957
        %4959 = vrot.lane.b32.xlu0 %v4949, 112
        %v4960 = vpop.permute.xlu0 %4959
        %4961 = vrot.lane.b32.xlu0 %v4950, 112
        %v4962 = vpop.permute.xlu0 %4961
        %v4967 = vadd.f32 %v4941, %v4956
        %v4968 = vadd.f32 %v4942, %v4958
        %v4969 = vadd.f32 %v4943, %v4960
        %v4970 = vadd.f32 %v4944, %v4962
        %s4971 = sld [smem:[#allocation14 + $0x5e]]
        %v4972 = vstv %s4971
        %v4973 = vmul.f32 %v4972, %v3105
        %v4974 = vmul.f32 %v4972, %v3110
        %v4975 = vmul.f32 %v4972, %v3115
        %v4976 = vmul.f32 %v4972, %v3120
        %v4977 = vadd.f32 %v4967, %v4973
        %v4978 = vadd.f32 %v4968, %v4974
        %v4979 = vadd.f32 %v4969, %v4975
        %v4980 = vadd.f32 %v4970, %v4976
        %s4981 = sld [smem:[#allocation14 + $0x5f]]
        %v4982 = vstv %s4981
        %v4983 = vmul.f32 %v4982, %v3105
        %v4984 = vmul.f32 %v4982, %v3110
        %v4985 = vmul.f32 %v4982, %v3115
        %v4986 = vmul.f32 %v4982, %v3120
        %4991 = vrot.lane.b32.xlu0 %v4983, 112
        %v4992 = vpop.permute.xlu0 %4991
        %4993 = vrot.lane.b32.xlu0 %v4984, 112
        %v4994 = vpop.permute.xlu0 %4993
        %4995 = vrot.lane.b32.xlu0 %v4985, 112
        %v4996 = vpop.permute.xlu0 %4995
        %4997 = vrot.lane.b32.xlu0 %v4986, 112
        %v4998 = vpop.permute.xlu0 %4997
        %v5003 = vadd.f32 %v4977, %v4992
        %v5004 = vadd.f32 %v4978, %v4994
        %v5005 = vadd.f32 %v4979, %v4996
        %v5006 = vadd.f32 %v4980, %v4998
        %5009 = vrot.lane.b32.xlu0 %v5003, 120
        %v5010 = vpop.permute.xlu0 %5009
        %5011 = vrot.lane.b32.xlu0 %v5004, 120
        %v5012 = vpop.permute.xlu0 %5011
        %v5015 = vmax.f32 %v5003, %v5010
        %v5016 = vmax.f32 %v5004, %v5012
        %5019 = vrot.lane.b32.xlu0 %v5005, 120
        %v5020 = vpop.permute.xlu0 %5019
        %5021 = vrot.lane.b32.xlu0 %v5006, 120
        %v5022 = vpop.permute.xlu0 %5021
        %v5025 = vmax.f32 %v5005, %v5020
        %v5026 = vmax.f32 %v5006, %v5022
        %v5027 = vmax.f32 %v5015, %v5025
        %v5028 = vmax.f32 %v5016, %v5026
        %s5029 = sld [smem:[#allocation15 + $0x5]]
        %v5030 = vstv %s5029
        %v5031 = vadd.f32 %v5027, %v5030
        %v5032 = vadd.f32 %v5028, %v5030
        %v5033 = vmax.f32 %v5031, 0.0
        %v5034 = vmax.f32 %v5032, 0.0
        %s5035 = sld [smem:[#allocation17 + $0x5]]
        %v5036 = vstv %s5035
        %v5037 = vmul.f32 %v5033, %v5036
        %v5038 = vmul.f32 %v5034, %v5036
        %s5039 = sld [smem:[#allocation18 + $0x5]]
        %v5040 = vstv %s5039
        %v5041 = vadd.f32 %v5037, %v5040
        %v5042 = vadd.f32 %v5038, %v5040
        %s5043 = sld [smem:[#allocation14 + $0x60]]
        %v5044 = vstv %s5043
        %v5045 = vmul.f32 %v5044, %v2965
        %v5046 = vmul.f32 %v5044, %v2970
        %v5047 = vmul.f32 %v5044, %v2975
        %v5048 = vmul.f32 %v5044, %v2980
        %s5049 = sld [smem:[#allocation14 + $0x61]]
        %v5050 = vstv %s5049
        %v5051 = vmul.f32 %v5050, %v2965
        %v5052 = vmul.f32 %v5050, %v2970
        %v5053 = vmul.f32 %v5050, %v2975
        %v5054 = vmul.f32 %v5050, %v2980
        %5059 = vrot.lane.b32.xlu0 %v5051, 112
        %v5060 = vpop.permute.xlu0 %5059
        %5061 = vrot.lane.b32.xlu0 %v5052, 112
        %v5062 = vpop.permute.xlu0 %5061
        %5063 = vrot.lane.b32.xlu0 %v5053, 112
        %v5064 = vpop.permute.xlu0 %5063
        %5065 = vrot.lane.b32.xlu0 %v5054, 112
        %v5066 = vpop.permute.xlu0 %5065
        %v5071 = vadd.f32 %v5045, %v5060
        %v5072 = vadd.f32 %v5046, %v5062
        %v5073 = vadd.f32 %v5047, %v5064
        %v5074 = vadd.f32 %v5048, %v5066
        %s5075 = sld [smem:[#allocation14 + $0x62]]
        %v5076 = vstv %s5075
        %v5077 = vmul.f32 %v5076, %v2985
        %v5078 = vmul.f32 %v5076, %v2990
        %v5079 = vmul.f32 %v5076, %v2995
        %v5080 = vmul.f32 %v5076, %v3000
        %v5081 = vadd.f32 %v5071, %v5077
        %v5082 = vadd.f32 %v5072, %v5078
        %v5083 = vadd.f32 %v5073, %v5079
        %v5084 = vadd.f32 %v5074, %v5080
        %s5085 = sld [smem:[#allocation14 + $0x63]]
        %v5086 = vstv %s5085
        %v5087 = vmul.f32 %v5086, %v2985
        %v5088 = vmul.f32 %v5086, %v2990
        %v5089 = vmul.f32 %v5086, %v2995
        %v5090 = vmul.f32 %v5086, %v3000
        %5095 = vrot.lane.b32.xlu0 %v5087, 112
        %v5096 = vpop.permute.xlu0 %5095
        %5097 = vrot.lane.b32.xlu0 %v5088, 112
        %v5098 = vpop.permute.xlu0 %5097
        %5099 = vrot.lane.b32.xlu0 %v5089, 112
        %v5100 = vpop.permute.xlu0 %5099
        %5101 = vrot.lane.b32.xlu0 %v5090, 112
        %v5102 = vpop.permute.xlu0 %5101
        %v5107 = vadd.f32 %v5081, %v5096
        %v5108 = vadd.f32 %v5082, %v5098
        %v5109 = vadd.f32 %v5083, %v5100
        %v5110 = vadd.f32 %v5084, %v5102
        %s5111 = sld [smem:[#allocation14 + $0x64]]
        %v5112 = vstv %s5111
        %v5113 = vmul.f32 %v5112, %v3005
        %v5114 = vmul.f32 %v5112, %v3010
        %v5115 = vmul.f32 %v5112, %v3015
        %v5116 = vmul.f32 %v5112, %v3020
        %v5117 = vadd.f32 %v5107, %v5113
        %v5118 = vadd.f32 %v5108, %v5114
        %v5119 = vadd.f32 %v5109, %v5115
        %v5120 = vadd.f32 %v5110, %v5116
        %s5121 = sld [smem:[#allocation14 + $0x65]]
        %v5122 = vstv %s5121
        %v5123 = vmul.f32 %v5122, %v3005
        %v5124 = vmul.f32 %v5122, %v3010
        %v5125 = vmul.f32 %v5122, %v3015
        %v5126 = vmul.f32 %v5122, %v3020
        %5131 = vrot.lane.b32.xlu0 %v5123, 112
        %v5132 = vpop.permute.xlu0 %5131
        %5133 = vrot.lane.b32.xlu0 %v5124, 112
        %v5134 = vpop.permute.xlu0 %5133
        %5135 = vrot.lane.b32.xlu0 %v5125, 112
        %v5136 = vpop.permute.xlu0 %5135
        %5137 = vrot.lane.b32.xlu0 %v5126, 112
        %v5138 = vpop.permute.xlu0 %5137
        %v5143 = vadd.f32 %v5117, %v5132
        %v5144 = vadd.f32 %v5118, %v5134
        %v5145 = vadd.f32 %v5119, %v5136
        %v5146 = vadd.f32 %v5120, %v5138
        %s5147 = sld [smem:[#allocation14 + $0x66]]
        %v5148 = vstv %s5147
        %v5149 = vmul.f32 %v5148, %v3025
        %v5150 = vmul.f32 %v5148, %v3030
        %v5151 = vmul.f32 %v5148, %v3035
        %v5152 = vmul.f32 %v5148, %v3040
        %v5153 = vadd.f32 %v5143, %v5149
        %v5154 = vadd.f32 %v5144, %v5150
        %v5155 = vadd.f32 %v5145, %v5151
        %v5156 = vadd.f32 %v5146, %v5152
        %s5157 = sld [smem:[#allocation14 + $0x67]]
        %v5158 = vstv %s5157
        %v5159 = vmul.f32 %v5158, %v3025
        %v5160 = vmul.f32 %v5158, %v3030
        %v5161 = vmul.f32 %v5158, %v3035
        %v5162 = vmul.f32 %v5158, %v3040
        %5167 = vrot.lane.b32.xlu0 %v5159, 112
        %v5168 = vpop.permute.xlu0 %5167
        %5169 = vrot.lane.b32.xlu0 %v5160, 112
        %v5170 = vpop.permute.xlu0 %5169
        %5171 = vrot.lane.b32.xlu0 %v5161, 112
        %v5172 = vpop.permute.xlu0 %5171
        %5173 = vrot.lane.b32.xlu0 %v5162, 112
        %v5174 = vpop.permute.xlu0 %5173
        %v5179 = vadd.f32 %v5153, %v5168
        %v5180 = vadd.f32 %v5154, %v5170
        %v5181 = vadd.f32 %v5155, %v5172
        %v5182 = vadd.f32 %v5156, %v5174
        %s5183 = sld [smem:[#allocation14 + $0x68]]
        %v5184 = vstv %s5183
        %v5185 = vmul.f32 %v5184, %v3045
        %v5186 = vmul.f32 %v5184, %v3050
        %v5187 = vmul.f32 %v5184, %v3055
        %v5188 = vmul.f32 %v5184, %v3060
        %v5189 = vadd.f32 %v5179, %v5185
        %v5190 = vadd.f32 %v5180, %v5186
        %v5191 = vadd.f32 %v5181, %v5187
        %v5192 = vadd.f32 %v5182, %v5188
        %s5193 = sld [smem:[#allocation14 + $0x69]]
        %v5194 = vstv %s5193
        %v5195 = vmul.f32 %v5194, %v3045
        %v5196 = vmul.f32 %v5194, %v3050
        %v5197 = vmul.f32 %v5194, %v3055
        %v5198 = vmul.f32 %v5194, %v3060
        %5203 = vrot.lane.b32.xlu0 %v5195, 112
        %v5204 = vpop.permute.xlu0 %5203
        %5205 = vrot.lane.b32.xlu0 %v5196, 112
        %v5206 = vpop.permute.xlu0 %5205
        %5207 = vrot.lane.b32.xlu0 %v5197, 112
        %v5208 = vpop.permute.xlu0 %5207
        %5209 = vrot.lane.b32.xlu0 %v5198, 112
        %v5210 = vpop.permute.xlu0 %5209
        %v5215 = vadd.f32 %v5189, %v5204
        %v5216 = vadd.f32 %v5190, %v5206
        %v5217 = vadd.f32 %v5191, %v5208
        %v5218 = vadd.f32 %v5192, %v5210
        %s5219 = sld [smem:[#allocation14 + $0x6a]]
        %v5220 = vstv %s5219
        %v5221 = vmul.f32 %v5220, %v3065
        %v5222 = vmul.f32 %v5220, %v3070
        %v5223 = vmul.f32 %v5220, %v3075
        %v5224 = vmul.f32 %v5220, %v3080
        %v5225 = vadd.f32 %v5215, %v5221
        %v5226 = vadd.f32 %v5216, %v5222
        %v5227 = vadd.f32 %v5217, %v5223
        %v5228 = vadd.f32 %v5218, %v5224
        %s5229 = sld [smem:[#allocation14 + $0x6b]]
        %v5230 = vstv %s5229
        %v5231 = vmul.f32 %v5230, %v3065
        %v5232 = vmul.f32 %v5230, %v3070
        %v5233 = vmul.f32 %v5230, %v3075
        %v5234 = vmul.f32 %v5230, %v3080
        %5239 = vrot.lane.b32.xlu0 %v5231, 112
        %v5240 = vpop.permute.xlu0 %5239
        %5241 = vrot.lane.b32.xlu0 %v5232, 112
        %v5242 = vpop.permute.xlu0 %5241
        %5243 = vrot.lane.b32.xlu0 %v5233, 112
        %v5244 = vpop.permute.xlu0 %5243
        %5245 = vrot.lane.b32.xlu0 %v5234, 112
        %v5246 = vpop.permute.xlu0 %5245
        %v5251 = vadd.f32 %v5225, %v5240
        %v5252 = vadd.f32 %v5226, %v5242
        %v5253 = vadd.f32 %v5227, %v5244
        %v5254 = vadd.f32 %v5228, %v5246
        %s5255 = sld [smem:[#allocation14 + $0x6c]]
        %v5256 = vstv %s5255
        %v5257 = vmul.f32 %v5256, %v3085
        %v5258 = vmul.f32 %v5256, %v3090
        %v5259 = vmul.f32 %v5256, %v3095
        %v5260 = vmul.f32 %v5256, %v3100
        %v5261 = vadd.f32 %v5251, %v5257
        %v5262 = vadd.f32 %v5252, %v5258
        %v5263 = vadd.f32 %v5253, %v5259
        %v5264 = vadd.f32 %v5254, %v5260
        %s5265 = sld [smem:[#allocation14 + $0x6d]]
        %v5266 = vstv %s5265
        %v5267 = vmul.f32 %v5266, %v3085
        %v5268 = vmul.f32 %v5266, %v3090
        %v5269 = vmul.f32 %v5266, %v3095
        %v5270 = vmul.f32 %v5266, %v3100
        %5275 = vrot.lane.b32.xlu0 %v5267, 112
        %v5276 = vpop.permute.xlu0 %5275
        %5277 = vrot.lane.b32.xlu0 %v5268, 112
        %v5278 = vpop.permute.xlu0 %5277
        %5279 = vrot.lane.b32.xlu0 %v5269, 112
        %v5280 = vpop.permute.xlu0 %5279
        %5281 = vrot.lane.b32.xlu0 %v5270, 112
        %v5282 = vpop.permute.xlu0 %5281
        %v5287 = vadd.f32 %v5261, %v5276
        %v5288 = vadd.f32 %v5262, %v5278
        %v5289 = vadd.f32 %v5263, %v5280
        %v5290 = vadd.f32 %v5264, %v5282
        %s5291 = sld [smem:[#allocation14 + $0x6e]]
        %v5292 = vstv %s5291
        %v5293 = vmul.f32 %v5292, %v3105
        %v5294 = vmul.f32 %v5292, %v3110
        %v5295 = vmul.f32 %v5292, %v3115
        %v5296 = vmul.f32 %v5292, %v3120
        %v5297 = vadd.f32 %v5287, %v5293
        %v5298 = vadd.f32 %v5288, %v5294
        %v5299 = vadd.f32 %v5289, %v5295
        %v5300 = vadd.f32 %v5290, %v5296
        %s5301 = sld [smem:[#allocation14 + $0x6f]]
        %v5302 = vstv %s5301
        %v5303 = vmul.f32 %v5302, %v3105
        %v5304 = vmul.f32 %v5302, %v3110
        %v5305 = vmul.f32 %v5302, %v3115
        %v5306 = vmul.f32 %v5302, %v3120
        %5311 = vrot.lane.b32.xlu0 %v5303, 112
        %v5312 = vpop.permute.xlu0 %5311
        %5313 = vrot.lane.b32.xlu0 %v5304, 112
        %v5314 = vpop.permute.xlu0 %5313
        %5315 = vrot.lane.b32.xlu0 %v5305, 112
        %v5316 = vpop.permute.xlu0 %5315
        %5317 = vrot.lane.b32.xlu0 %v5306, 112
        %v5318 = vpop.permute.xlu0 %5317
        %v5323 = vadd.f32 %v5297, %v5312
        %v5324 = vadd.f32 %v5298, %v5314
        %v5325 = vadd.f32 %v5299, %v5316
        %v5326 = vadd.f32 %v5300, %v5318
        %5329 = vrot.lane.b32.xlu0 %v5323, 120
        %v5330 = vpop.permute.xlu0 %5329
        %5331 = vrot.lane.b32.xlu0 %v5324, 120
        %v5332 = vpop.permute.xlu0 %5331
        %v5335 = vmax.f32 %v5323, %v5330
        %v5336 = vmax.f32 %v5324, %v5332
        %5339 = vrot.lane.b32.xlu0 %v5325, 120
        %v5340 = vpop.permute.xlu0 %5339
        %5341 = vrot.lane.b32.xlu0 %v5326, 120
        %v5342 = vpop.permute.xlu0 %5341
        %v5345 = vmax.f32 %v5325, %v5340
        %v5346 = vmax.f32 %v5326, %v5342
        %v5347 = vmax.f32 %v5335, %v5345
        %v5348 = vmax.f32 %v5336, %v5346
        %s5349 = sld [smem:[#allocation15 + $0x6]]
        %v5350 = vstv %s5349
        %v5351 = vadd.f32 %v5347, %v5350
        %v5352 = vadd.f32 %v5348, %v5350
        %v5353 = vmax.f32 %v5351, 0.0
        %v5354 = vmax.f32 %v5352, 0.0
        %s5355 = sld [smem:[#allocation17 + $0x6]]
        %v5356 = vstv %s5355
        %v5357 = vmul.f32 %v5353, %v5356
        %v5358 = vmul.f32 %v5354, %v5356
        %s5359 = sld [smem:[#allocation18 + $0x6]]
        %v5360 = vstv %s5359
        %v5361 = vadd.f32 %v5357, %v5360
        %v5362 = vadd.f32 %v5358, %v5360
        %s5363 = sld [smem:[#allocation14 + $0x70]]
        %v5364 = vstv %s5363
        %v5365 = vmul.f32 %v5364, %v2965
        %v5366 = vmul.f32 %v5364, %v2970
        %v5367 = vmul.f32 %v5364, %v2975
        %v5368 = vmul.f32 %v5364, %v2980
        %s5369 = sld [smem:[#allocation14 + $0x71]]
        %v5370 = vstv %s5369
        %v5371 = vmul.f32 %v5370, %v2965
        %v5372 = vmul.f32 %v5370, %v2970
        %v5373 = vmul.f32 %v5370, %v2975
        %v5374 = vmul.f32 %v5370, %v2980
        %5379 = vrot.lane.b32.xlu0 %v5371, 112
        %v5380 = vpop.permute.xlu0 %5379
        %5381 = vrot.lane.b32.xlu0 %v5372, 112
        %v5382 = vpop.permute.xlu0 %5381
        %5383 = vrot.lane.b32.xlu0 %v5373, 112
        %v5384 = vpop.permute.xlu0 %5383
        %5385 = vrot.lane.b32.xlu0 %v5374, 112
        %v5386 = vpop.permute.xlu0 %5385
        %v5391 = vadd.f32 %v5365, %v5380
        %v5392 = vadd.f32 %v5366, %v5382
        %v5393 = vadd.f32 %v5367, %v5384
        %v5394 = vadd.f32 %v5368, %v5386
        %s5395 = sld [smem:[#allocation14 + $0x72]]
        %v5396 = vstv %s5395
        %v5397 = vmul.f32 %v5396, %v2985
        %v5398 = vmul.f32 %v5396, %v2990
        %v5399 = vmul.f32 %v5396, %v2995
        %v5400 = vmul.f32 %v5396, %v3000
        %v5401 = vadd.f32 %v5391, %v5397
        %v5402 = vadd.f32 %v5392, %v5398
        %v5403 = vadd.f32 %v5393, %v5399
        %v5404 = vadd.f32 %v5394, %v5400
        %s5405 = sld [smem:[#allocation14 + $0x73]]
        %v5406 = vstv %s5405
        %v5407 = vmul.f32 %v5406, %v2985
        %v5408 = vmul.f32 %v5406, %v2990
        %v5409 = vmul.f32 %v5406, %v2995
        %v5410 = vmul.f32 %v5406, %v3000
        %5415 = vrot.lane.b32.xlu0 %v5407, 112
        %v5416 = vpop.permute.xlu0 %5415
        %5417 = vrot.lane.b32.xlu0 %v5408, 112
        %v5418 = vpop.permute.xlu0 %5417
        %5419 = vrot.lane.b32.xlu0 %v5409, 112
        %v5420 = vpop.permute.xlu0 %5419
        %5421 = vrot.lane.b32.xlu0 %v5410, 112
        %v5422 = vpop.permute.xlu0 %5421
        %v5427 = vadd.f32 %v5401, %v5416
        %v5428 = vadd.f32 %v5402, %v5418
        %v5429 = vadd.f32 %v5403, %v5420
        %v5430 = vadd.f32 %v5404, %v5422
        %s5431 = sld [smem:[#allocation14 + $0x74]]
        %v5432 = vstv %s5431
        %v5433 = vmul.f32 %v5432, %v3005
        %v5434 = vmul.f32 %v5432, %v3010
        %v5435 = vmul.f32 %v5432, %v3015
        %v5436 = vmul.f32 %v5432, %v3020
        %v5437 = vadd.f32 %v5427, %v5433
        %v5438 = vadd.f32 %v5428, %v5434
        %v5439 = vadd.f32 %v5429, %v5435
        %v5440 = vadd.f32 %v5430, %v5436
        %s5441 = sld [smem:[#allocation14 + $0x75]]
        %v5442 = vstv %s5441
        %v5443 = vmul.f32 %v5442, %v3005
        %v5444 = vmul.f32 %v5442, %v3010
        %v5445 = vmul.f32 %v5442, %v3015
        %v5446 = vmul.f32 %v5442, %v3020
        %5451 = vrot.lane.b32.xlu0 %v5443, 112
        %v5452 = vpop.permute.xlu0 %5451
        %5453 = vrot.lane.b32.xlu0 %v5444, 112
        %v5454 = vpop.permute.xlu0 %5453
        %5455 = vrot.lane.b32.xlu0 %v5445, 112
        %v5456 = vpop.permute.xlu0 %5455
        %5457 = vrot.lane.b32.xlu0 %v5446, 112
        %v5458 = vpop.permute.xlu0 %5457
        %v5463 = vadd.f32 %v5437, %v5452
        %v5464 = vadd.f32 %v5438, %v5454
        %v5465 = vadd.f32 %v5439, %v5456
        %v5466 = vadd.f32 %v5440, %v5458
        %s5467 = sld [smem:[#allocation14 + $0x76]]
        %v5468 = vstv %s5467
        %v5469 = vmul.f32 %v5468, %v3025
        %v5470 = vmul.f32 %v5468, %v3030
        %v5471 = vmul.f32 %v5468, %v3035
        %v5472 = vmul.f32 %v5468, %v3040
        %v5473 = vadd.f32 %v5463, %v5469
        %v5474 = vadd.f32 %v5464, %v5470
        %v5475 = vadd.f32 %v5465, %v5471
        %v5476 = vadd.f32 %v5466, %v5472
        %s5477 = sld [smem:[#allocation14 + $0x77]]
        %v5478 = vstv %s5477
        %v5479 = vmul.f32 %v5478, %v3025
        %v5480 = vmul.f32 %v5478, %v3030
        %v5481 = vmul.f32 %v5478, %v3035
        %v5482 = vmul.f32 %v5478, %v3040
        %5487 = vrot.lane.b32.xlu0 %v5479, 112
        %v5488 = vpop.permute.xlu0 %5487
        %5489 = vrot.lane.b32.xlu0 %v5480, 112
        %v5490 = vpop.permute.xlu0 %5489
        %5491 = vrot.lane.b32.xlu0 %v5481, 112
        %v5492 = vpop.permute.xlu0 %5491
        %5493 = vrot.lane.b32.xlu0 %v5482, 112
        %v5494 = vpop.permute.xlu0 %5493
        %v5499 = vadd.f32 %v5473, %v5488
        %v5500 = vadd.f32 %v5474, %v5490
        %v5501 = vadd.f32 %v5475, %v5492
        %v5502 = vadd.f32 %v5476, %v5494
        %s5503 = sld [smem:[#allocation14 + $0x78]]
        %v5504 = vstv %s5503
        %v5505 = vmul.f32 %v5504, %v3045
        %v5506 = vmul.f32 %v5504, %v3050
        %v5507 = vmul.f32 %v5504, %v3055
        %v5508 = vmul.f32 %v5504, %v3060
        %v5509 = vadd.f32 %v5499, %v5505
        %v5510 = vadd.f32 %v5500, %v5506
        %v5511 = vadd.f32 %v5501, %v5507
        %v5512 = vadd.f32 %v5502, %v5508
        %s5513 = sld [smem:[#allocation14 + $0x79]]
        %v5514 = vstv %s5513
        %v5515 = vmul.f32 %v5514, %v3045
        %v5516 = vmul.f32 %v5514, %v3050
        %v5517 = vmul.f32 %v5514, %v3055
        %v5518 = vmul.f32 %v5514, %v3060
        %5523 = vrot.lane.b32.xlu0 %v5515, 112
        %v5524 = vpop.permute.xlu0 %5523
        %5525 = vrot.lane.b32.xlu0 %v5516, 112
        %v5526 = vpop.permute.xlu0 %5525
        %5527 = vrot.lane.b32.xlu0 %v5517, 112
        %v5528 = vpop.permute.xlu0 %5527
        %5529 = vrot.lane.b32.xlu0 %v5518, 112
        %v5530 = vpop.permute.xlu0 %5529
        %v5535 = vadd.f32 %v5509, %v5524
        %v5536 = vadd.f32 %v5510, %v5526
        %v5537 = vadd.f32 %v5511, %v5528
        %v5538 = vadd.f32 %v5512, %v5530
        %s5539 = sld [smem:[#allocation14 + $0x7a]]
        %v5540 = vstv %s5539
        %v5541 = vmul.f32 %v5540, %v3065
        %v5542 = vmul.f32 %v5540, %v3070
        %v5543 = vmul.f32 %v5540, %v3075
        %v5544 = vmul.f32 %v5540, %v3080
        %v5545 = vadd.f32 %v5535, %v5541
        %v5546 = vadd.f32 %v5536, %v5542
        %v5547 = vadd.f32 %v5537, %v5543
        %v5548 = vadd.f32 %v5538, %v5544
        %s5549 = sld [smem:[#allocation14 + $0x7b]]
        %v5550 = vstv %s5549
        %v5551 = vmul.f32 %v5550, %v3065
        %v5552 = vmul.f32 %v5550, %v3070
        %v5553 = vmul.f32 %v5550, %v3075
        %v5554 = vmul.f32 %v5550, %v3080
        %5559 = vrot.lane.b32.xlu0 %v5551, 112
        %v5560 = vpop.permute.xlu0 %5559
        %5561 = vrot.lane.b32.xlu0 %v5552, 112
        %v5562 = vpop.permute.xlu0 %5561
        %5563 = vrot.lane.b32.xlu0 %v5553, 112
        %v5564 = vpop.permute.xlu0 %5563
        %5565 = vrot.lane.b32.xlu0 %v5554, 112
        %v5566 = vpop.permute.xlu0 %5565
        %v5571 = vadd.f32 %v5545, %v5560
        %v5572 = vadd.f32 %v5546, %v5562
        %v5573 = vadd.f32 %v5547, %v5564
        %v5574 = vadd.f32 %v5548, %v5566
        %s5575 = sld [smem:[#allocation14 + $0x7c]]
        %v5576 = vstv %s5575
        %v5577 = vmul.f32 %v5576, %v3085
        %v5578 = vmul.f32 %v5576, %v3090
        %v5579 = vmul.f32 %v5576, %v3095
        %v5580 = vmul.f32 %v5576, %v3100
        %v5581 = vadd.f32 %v5571, %v5577
        %v5582 = vadd.f32 %v5572, %v5578
        %v5583 = vadd.f32 %v5573, %v5579
        %v5584 = vadd.f32 %v5574, %v5580
        %s5585 = sld [smem:[#allocation14 + $0x7d]]
        %v5586 = vstv %s5585
        %v5587 = vmul.f32 %v5586, %v3085
        %v5588 = vmul.f32 %v5586, %v3090
        %v5589 = vmul.f32 %v5586, %v3095
        %v5590 = vmul.f32 %v5586, %v3100
        %5595 = vrot.lane.b32.xlu0 %v5587, 112
        %v5596 = vpop.permute.xlu0 %5595
        %5597 = vrot.lane.b32.xlu0 %v5588, 112
        %v5598 = vpop.permute.xlu0 %5597
        %5599 = vrot.lane.b32.xlu0 %v5589, 112
        %v5600 = vpop.permute.xlu0 %5599
        %5601 = vrot.lane.b32.xlu0 %v5590, 112
        %v5602 = vpop.permute.xlu0 %5601
        %v5607 = vadd.f32 %v5581, %v5596
        %v5608 = vadd.f32 %v5582, %v5598
        %v5609 = vadd.f32 %v5583, %v5600
        %v5610 = vadd.f32 %v5584, %v5602
        %s5611 = sld [smem:[#allocation14 + $0x7e]]
        %v5612 = vstv %s5611
        %v5613 = vmul.f32 %v5612, %v3105
        %v5614 = vmul.f32 %v5612, %v3110
        %v5615 = vmul.f32 %v5612, %v3115
        %v5616 = vmul.f32 %v5612, %v3120
        %v5617 = vadd.f32 %v5607, %v5613
        %v5618 = vadd.f32 %v5608, %v5614
        %v5619 = vadd.f32 %v5609, %v5615
        %v5620 = vadd.f32 %v5610, %v5616
        %s5621 = sld [smem:[#allocation14 + $0x7f]]
        %v5622 = vstv %s5621
        %v5623 = vmul.f32 %v5622, %v3105
        %v5624 = vmul.f32 %v5622, %v3110
        %v5625 = vmul.f32 %v5622, %v3115
        %v5626 = vmul.f32 %v5622, %v3120
        %5631 = vrot.lane.b32.xlu0 %v5623, 112
        %v5632 = vpop.permute.xlu0 %5631
        %5633 = vrot.lane.b32.xlu0 %v5624, 112
        %v5634 = vpop.permute.xlu0 %5633
        %5635 = vrot.lane.b32.xlu0 %v5625, 112
        %v5636 = vpop.permute.xlu0 %5635
        %5637 = vrot.lane.b32.xlu0 %v5626, 112
        %v5638 = vpop.permute.xlu0 %5637
        %v5643 = vadd.f32 %v5617, %v5632
        %v5644 = vadd.f32 %v5618, %v5634
        %v5645 = vadd.f32 %v5619, %v5636
        %v5646 = vadd.f32 %v5620, %v5638
        %5649 = vrot.lane.b32.xlu0 %v5643, 120
        %v5650 = vpop.permute.xlu0 %5649
        %5651 = vrot.lane.b32.xlu0 %v5644, 120
        %v5652 = vpop.permute.xlu0 %5651
        %v5655 = vmax.f32 %v5643, %v5650
        %v5656 = vmax.f32 %v5644, %v5652
        %5659 = vrot.lane.b32.xlu0 %v5645, 120
        %v5660 = vpop.permute.xlu0 %5659
        %5661 = vrot.lane.b32.xlu0 %v5646, 120
        %v5662 = vpop.permute.xlu0 %5661
        %v5665 = vmax.f32 %v5645, %v5660
        %v5666 = vmax.f32 %v5646, %v5662
        %v5667 = vmax.f32 %v5655, %v5665
        %v5668 = vmax.f32 %v5656, %v5666
        %s5669 = sld [smem:[#allocation15 + $0x7]]
        %v5670 = vstv %s5669
        %v5671 = vadd.f32 %v5667, %v5670
        %v5672 = vadd.f32 %v5668, %v5670
        %v5673 = vmax.f32 %v5671, 0.0
        %v5674 = vmax.f32 %v5672, 0.0
        %s5675 = sld [smem:[#allocation17 + $0x7]]
        %v5676 = vstv %s5675
        %v5677 = vmul.f32 %v5673, %v5676
        %v5678 = vmul.f32 %v5674, %v5676
        %s5679 = sld [smem:[#allocation18 + $0x7]]
        %v5680 = vstv %s5679
        %v5681 = vadd.f32 %v5677, %v5680
        %v5682 = vadd.f32 %v5678, %v5680
        %5685 = vrot.lane.b32.xlu0 %v3761, 8
        %v5686 = vpop.permute.xlu0 %5685
        %5687 = vrot.lane.b32.xlu0 %v3762, 8
        %v5688 = vpop.permute.xlu0 %5687
        %5693 = vrot.lane.b32.xlu0 %v4081, 16
        %v5694 = vpop.permute.xlu0 %5693
        %5695 = vrot.lane.b32.xlu0 %v4082, 16
        %v5696 = vpop.permute.xlu0 %5695
        %5701 = vrot.lane.b32.xlu0 %v4401, 24
        %v5702 = vpop.permute.xlu0 %5701
        %5703 = vrot.lane.b32.xlu0 %v4402, 24
        %v5704 = vpop.permute.xlu0 %5703
        %5709 = vrot.lane.b32.xlu0 %v4721, 32
        %v5710 = vpop.permute.xlu0 %5709
        %5711 = vrot.lane.b32.xlu0 %v4722, 32
        %v5712 = vpop.permute.xlu0 %5711
        %5717 = vrot.lane.b32.xlu0 %v5041, 40
        %v5718 = vpop.permute.xlu0 %5717
        %5719 = vrot.lane.b32.xlu0 %v5042, 40
        %v5720 = vpop.permute.xlu0 %5719
        %5725 = vrot.lane.b32.xlu0 %v5361, 48
        %v5726 = vpop.permute.xlu0 %5725
        %5727 = vrot.lane.b32.xlu0 %v5362, 48
        %v5728 = vpop.permute.xlu0 %5727
        %5733 = vrot.lane.b32.xlu0 %v5681, 56
        %v5734 = vpop.permute.xlu0 %5733
        %5735 = vrot.lane.b32.xlu0 %v5682, 56
        %v5736 = vpop.permute.xlu0 %5735
        %vm5739 = vcmask 64512
        %v5740 = vsel %vm5739, %v3441, %v5686
        %v5741 = vsel %vm5739, %v3442, %v5688
        %vm5742 = vcmask 130048
        %v5743 = vsel %vm5742, %v5740, %v5694
        %v5744 = vsel %vm5742, %v5741, %v5696
        %vm5745 = vcmask 195584
        %v5746 = vsel %vm5745, %v5743, %v5702
        %v5747 = vsel %vm5745, %v5744, %v5704
        %v5748 = vsel %vm2801, %v5746, %v5710
        %v5749 = vsel %vm2801, %v5747, %v5712
        %vm5750 = vcmask 326656
        %v5751 = vsel %vm5750, %v5748, %v5718
        %v5752 = vsel %vm5750, %v5749, %v5720
        %vm5753 = vcmask 392192
        %v5754 = vsel %vm5753, %v5751, %v5726
        %v5755 = vsel %vm5753, %v5752, %v5728
        %vm5756 = vcmask 457728
        %v5757 = vsel %vm5756, %v5754, %v5734
        %v5758 = vsel %vm5756, %v5755, %v5736
        %vm5759 = vcmask 523264
        %5760 = vst.msk [vmem:[%s529] sm:$0xff] %vm5759, %v5757
        %5761 = vst.msk [vmem:[%s529 + $0x8] sm:$0xff] %vm5759, %v5758
        %p5762 = scmp.lt.s32.totalorder %s31, 1
        %s5763 = scalar_select %p5762, %s31, 1
        %s5764 = smul.addr %s5763, 2
        %s5765 = smul.addr %s5764, 8
        %s5766 = scalar_lea.vmem %s11, %s5765
        // Predicated region
        $region109: #{feature_net_forward.2} parent=63 // pred_check
          %p5767 = pneg %p285
        $region110: #{feature_net_forward.2} parent=63 // pred_check_branch
          %5769 = sbr.rel (%p5767) target = $region112
        $region111: #{feature_net_forward.2} parent=63 // pred_region
          _
        $region112: #{feature_net_forward.2} parent=63 // pred_fallthru
          _
      $region64: #{feature_net_forward.2} parent=5 // pred_fallthru
        _
      %p5770 = scmp.le.s32.totalorder 2, %s26
      // Predicated region
      $region113: #{feature_net_forward.2} parent=5 // pred_check
        %p5771 = pneg %p5770
      $region114: #{feature_net_forward.2} parent=5 // pred_check_branch
        %5773 = sbr.rel (%p5771) target = $region116
      $region115: #{feature_net_forward.2} parent=5 // pred_region
        %s5774 = ssub.s32 %s26, 2
        // Predicated region
        $region117: #{feature_net_forward.2} parent=115 // pred_check
          %p5775 = pneg %p291
        $region118: #{feature_net_forward.2} parent=115 // pred_check_branch
          %5777 = sbr.rel (%p5775) target = $region120
        $region119: #{feature_net_forward.2} parent=115 // pred_region
          %p5778 = scmp.lt.s32.totalorder %s32, 1
          %s5779 = scalar_select %p5778, %s32, 1
          %s5780 = smul.addr %s5779, 2
          %s5781 = smul.addr %s5780, 8
          %s5782 = scalar_lea.vmem %s11, %s5781
        $region120: #{feature_net_forward.2} parent=115 // pred_fallthru
          _
      $region116: #{feature_net_forward.2} parent=5 // pred_fallthru
        _
    $region6: #{feature_net_forward.2} parent=1 // loop_footer
      %s30 = sadd.s32 1, %s26
    $region7: #{feature_net_forward.2} parent=1 // loop_footer_branch
      %25 = sbr.rel target = $region3
    $region8: #{feature_net_forward.2} parent=1 // loop_exit
      _
    %5783 = vsyncpa [#allocation3], 1
    %s5784 = scalar_lea.sflag [#allocation3], 1
    %5785 = vsyncpa %s5784, 1
    %5786 = vsyncpa [#allocation6], 1
    %5787 = vsyncpa [#allocation9], 1
    %5788 = vsyncpa [#allocation4], 1
    %s5789 = scalar_lea.sflag [#allocation4], 1
    %5790 = vsyncpa %s5789, 1
    %5791 = vsyncpa [#allocation13], 1
    %5792 = vsyncpa [#allocation16], 1
    %5793 = vsyncpa [#allocation19], 1

</llo_original>
